<compile_context>
chip_gen: v7x
topology: tpu7x:2x2x1
jax: 0.10.0
libtpu: 0.0.40
codegen_flags: <defaults>
</compile_context>

<pallas_src>
import jax
import jax.numpy as jnp
from jax.experimental import pallas as pl
from jax.experimental.pallas import tpu as pltpu

IN_DIM = 28 * 28
H1, H2, H3, ZDIM = 512, 256, 128, 2


def vae_kernel(x_ref,
               e1w, e1b, e2w, e2b, e3w, e3b,
               hw, hb,                      # fused mean/var head: (H3, 2*ZDIM)
               eps_ref,
               d1w, d1b,                    # decoder entry, f32, handled on VPU
               d2w, d2b, d3w, d3b, d4w, d4b,
               out_ref):
    f32 = jnp.float32
    bf16 = jnp.bfloat16

    def linear(h, w_ref, b_ref):
        # bf16 x bf16 -> f32 accumulation on the MXU; bias (1, out) broadcasts
        # over the batch (sublane) axis in f32.
        return jnp.dot(h.astype(bf16), w_ref[...],
                       preferred_element_type=f32) + b_ref[...]

    x = x_ref[...]

    # ---- encoder: 784 -> 512 -> 256 -> 128, ReLU after each ----
    h = jnp.maximum(linear(x, e1w, e1b), 0.0)
    h = jnp.maximum(linear(h, e2w, e2b), 0.0)
    h = jnp.maximum(linear(h, e3w, e3b), 0.0)

    # ---- fused heads: one (H3, 2*ZDIM) matmul, then slice mu / log_var ----
    head = linear(h, hw, hb)                 # (bt, 2*ZDIM)
    mu = head[:, :ZDIM]
    log_var = head[:, ZDIM:2 * ZDIM]

    # ---- sample: eps ~ U[0, 1)  (matches torch.rand_like in the reference) ----
    z = mu + eps_ref[...] * jnp.exp(log_var * 0.5)     # (bt, ZDIM)

    # ---- decoder entry 2 -> 128 on the VPU (K=2 matmul would waste the MXU) ----
    d = (z[:, 0:1] * d1w[0:1, :]
         + z[:, 1:2] * d1w[1:2, :]
         + d1b[...])
    d = jnp.maximum(d, 0.0)

    # ---- decoder: 128 -> 256 -> 512 -> 784, ReLU / final Sigmoid ----
    d = jnp.maximum(linear(d, d2w, d2b), 0.0)
    d = jnp.maximum(linear(d, d3w, d3b), 0.0)
    logits = linear(d, d4w, d4b)
    out_ref[...] = jax.nn.sigmoid(logits).astype(out_ref.dtype)


def make_params(key):
    """Deterministic synthetic f32 parameters (same shapes as the PyTorch module)."""
    dims = [
        (IN_DIM, H1), (H1, H2), (H2, H3),              # encoder
        (H3, ZDIM), (H3, ZDIM),                        # head_mean, head_var
        (ZDIM, H3), (H3, H2), (H2, H1), (H1, IN_DIM),  # decoder
    ]
    params = []
    for i, (fin, fout) in enumerate(dims):
        kw, kb = jax.random.split(jax.random.fold_in(key, i))
        scale = 1.0 / jnp.sqrt(jnp.float32(fin))
        w = jax.random.uniform(kw, (fin, fout), jnp.float32, -scale, scale)
        b = jax.random.uniform(kb, (1, fout), jnp.float32, -scale, scale)
        params.append((w, b))
    return params


def _prepare_params(params):
    """Cast matmul weights to bf16, fuse the two heads, keep decoder entry f32."""
    bf16 = jnp.bfloat16
    e1, e2, e3, hm, hv, d1, d2, d3, d4 = params
    enc = [(w.astype(bf16), b) for (w, b) in (e1, e2, e3)]
    head_w = jnp.concatenate([hm[0], hv[0]], axis=1).astype(bf16)   # (H3, 2*ZDIM)
    head_b = jnp.concatenate([hm[1], hv[1]], axis=1)                # (1, 2*ZDIM) f32
    dec_entry = (d1[0], d1[1])                                      # f32, VPU path
    dec = [(w.astype(bf16), b) for (w, b) in (d2, d3, d4)]
    return enc, (head_w, head_b), dec_entry, dec


def vae_forward(x, eps, params, *, batch_tile=128):
    B = x.shape[0]
    # Shrink the tile for tiny batches (multiple of 8 sublanes), pad B up to a
    # multiple of the tile.
    bt = min(batch_tile, max(8, ((B + 7) // 8) * 8))
    padded = ((B + bt - 1) // bt) * bt
    if padded != B:
        x = jnp.pad(x, ((0, padded - B), (0, 0)))
        eps = jnp.pad(eps, ((0, padded - B), (0, 0)))
    grid = (padded // bt,)

    enc, (head_w, head_b), (d1w, d1b), dec = _prepare_params(params)

    def batch_spec(feat):
        return pl.BlockSpec((bt, feat), lambda i: (i, 0))

    def full_spec(shape):
        # Grid-invariant block: fetched once, resident across all grid steps.
        return pl.BlockSpec(shape, lambda i: (0, 0))

    in_specs = [batch_spec(IN_DIM)]
    args = [x]
    for w, b in enc:
        in_specs += [full_spec(w.shape), full_spec(b.shape)]
        args += [w, b]
    in_specs += [full_spec(head_w.shape), full_spec(head_b.shape)]
    args += [head_w, head_b]
    in_specs.append(batch_spec(ZDIM))
    args.append(eps)
    in_specs += [full_spec(d1w.shape), full_spec(d1b.shape)]
    args += [d1w, d1b]
    for w, b in dec:
        in_specs += [full_spec(w.shape), full_spec(b.shape)]
        args += [w, b]

    macs = (IN_DIM * H1 + H1 * H2 + H2 * H3 + H3 * (2 * ZDIM)
            + ZDIM * H3 + H3 * H2 + H2 * H1 + H1 * IN_DIM)
    cost = pl.CostEstimate(
        flops=2 * padded * macs,
        transcendentals=padded * (ZDIM + IN_DIM),
        bytes_accessed=sum(int(a.size) * a.dtype.itemsize for a in args)
        + padded * IN_DIM * 4,
    )

    out = pl.pallas_call(
        vae_kernel,
        out_shape=jax.ShapeDtypeStruct((padded, IN_DIM), jnp.float32),
        grid=grid,
        in_specs=in_specs,
        out_specs=batch_spec(IN_DIM),
        compiler_params=pltpu.CompilerParams(
            dimension_semantics=("parallel",),
        ),
        cost_estimate=cost,
    )(*args)
    return out[:B]


def vae_forward_ref(x, eps, params):
    """Pure-JAX reference with the same bf16-weight / f32-accumulate numerics."""
    bf16 = jnp.bfloat16

    def lin_bf16(h, p):
        return jnp.dot(h.astype(bf16), p[0].astype(bf16),
                       preferred_element_type=jnp.float32) + p[1]

    h = x
    for p in params[:3]:
        h = jnp.maximum(lin_bf16(h, p), 0.0)
    mu = lin_bf16(h, params[3])
    log_var = lin_bf16(h, params[4])
    z = mu + eps * jnp.exp(log_var * 0.5)
    d1w, d1b = params[5]
    d = jnp.maximum(z @ d1w + d1b, 0.0)          # f32, matches in-kernel VPU path
    for p in params[6:8]:
        d = jnp.maximum(lin_bf16(d, p), 0.0)
    return jax.nn.sigmoid(lin_bf16(d, params[8]))


if __name__ == "__main__":
    key = jax.random.PRNGKey(0)
    k_x, k_eps, k_p = jax.random.split(key, 3)

    B = 256  # two 128-row batch tiles -> 2 "parallel" grid steps (v7x megacore)
    x = jax.random.uniform(k_x, (B, IN_DIM), jnp.float32)     # flattened 28x28 images
    eps = jax.random.uniform(k_eps, (B, ZDIM), jnp.float32)   # torch.rand_like equivalent
    params = make_params(k_p)

    out = jax.block_until_ready(vae_forward(x, eps, params))
    ref = vae_forward_ref(x, eps, params)

    assert out.shape == (B, IN_DIM)
    assert bool(jnp.all(jnp.isfinite(out)))
    max_err = float(jnp.max(jnp.abs(out - ref)))
    assert max_err < 2e-3, f"max abs err vs reference: {max_err}"

    print("KERNEL_OK")
</pallas_src>

<mosaic_0001>
module attributes {stable_mosaic.version = 11 : i64} {
  func.func @vae_kernel(%arg0: i32, %arg1: memref<128x784xf32, #tpu.memory_space<vmem>>, %arg2: memref<784x512xbf16, #tpu.memory_space<vmem>>, %arg3: memref<1x512xf32, #tpu.memory_space<vmem>>, %arg4: memref<512x256xbf16, #tpu.memory_space<vmem>>, %arg5: memref<1x256xf32, #tpu.memory_space<vmem>>, %arg6: memref<256x128xbf16, #tpu.memory_space<vmem>>, %arg7: memref<1x128xf32, #tpu.memory_space<vmem>>, %arg8: memref<128x4xbf16, #tpu.memory_space<vmem>>, %arg9: memref<1x4xf32, #tpu.memory_space<vmem>>, %arg10: memref<128x2xf32, #tpu.memory_space<vmem>>, %arg11: memref<2x128xf32, #tpu.memory_space<vmem>>, %arg12: memref<1x128xf32, #tpu.memory_space<vmem>>, %arg13: memref<128x256xbf16, #tpu.memory_space<vmem>>, %arg14: memref<1x256xf32, #tpu.memory_space<vmem>>, %arg15: memref<256x512xbf16, #tpu.memory_space<vmem>>, %arg16: memref<1x512xf32, #tpu.memory_space<vmem>>, %arg17: memref<512x784xbf16, #tpu.memory_space<vmem>>, %arg18: memref<1x784xf32, #tpu.memory_space<vmem>>, %arg19: memref<128x784xf32, #tpu.memory_space<vmem>>) attributes {dimension_semantics = [#tpu.dimension_semantics<parallel>], iteration_bounds = array<i64: 2>, scalar_prefetch = 0 : i64, scratch_operands = 0 : i64, tpu.core_type = #tpu.core_type<tc>, window_params = [{transform_indices = @transform_0, window_bounds = array<i64: 128, 784>}, {pipeline_mode = #tpu.pipeline_mode<synchronous>, transform_indices = @transform_1, window_bounds = array<i64: 784, 512>}, {pipeline_mode = #tpu.pipeline_mode<synchronous>, transform_indices = @transform_2, window_bounds = array<i64: 1, 512>}, {pipeline_mode = #tpu.pipeline_mode<synchronous>, transform_indices = @transform_3, window_bounds = array<i64: 512, 256>}, {pipeline_mode = #tpu.pipeline_mode<synchronous>, transform_indices = @transform_4, window_bounds = array<i64: 1, 256>}, {pipeline_mode = #tpu.pipeline_mode<synchronous>, transform_indices = @transform_5, window_bounds = array<i64: 256, 128>}, {pipeline_mode = #tpu.pipeline_mode<synchronous>, transform_indices = @transform_6, window_bounds = array<i64: 1, 128>}, {pipeline_mode = #tpu.pipeline_mode<synchronous>, transform_indices = @transform_7, window_bounds = array<i64: 128, 4>}, {pipeline_mode = #tpu.pipeline_mode<synchronous>, transform_indices = @transform_8, window_bounds = array<i64: 1, 4>}, {transform_indices = @transform_9, window_bounds = array<i64: 128, 2>}, {pipeline_mode = #tpu.pipeline_mode<synchronous>, transform_indices = @transform_10, window_bounds = array<i64: 2, 128>}, {pipeline_mode = #tpu.pipeline_mode<synchronous>, transform_indices = @transform_11, window_bounds = array<i64: 1, 128>}, {pipeline_mode = #tpu.pipeline_mode<synchronous>, transform_indices = @transform_12, window_bounds = array<i64: 128, 256>}, {pipeline_mode = #tpu.pipeline_mode<synchronous>, transform_indices = @transform_13, window_bounds = array<i64: 1, 256>}, {pipeline_mode = #tpu.pipeline_mode<synchronous>, transform_indices = @transform_14, window_bounds = array<i64: 256, 512>}, {pipeline_mode = #tpu.pipeline_mode<synchronous>, transform_indices = @transform_15, window_bounds = array<i64: 1, 512>}, {pipeline_mode = #tpu.pipeline_mode<synchronous>, transform_indices = @transform_16, window_bounds = array<i64: 512, 784>}, {pipeline_mode = #tpu.pipeline_mode<synchronous>, transform_indices = @transform_17, window_bounds = array<i64: 1, 784>}, {transform_indices = @transform_18, window_bounds = array<i64: 128, 784>}]} {
    %c0 = arith.constant 0 : index
    %c0_0 = arith.constant 0 : index
    %0 = vector.load %arg1[%c0, %c0_0] : memref<128x784xf32, #tpu.memory_space<vmem>>, vector<128x784xf32>
    %1 = arith.truncf %0 : vector<128x784xf32> to vector<128x784xbf16>
    %c0_1 = arith.constant 0 : index
    %c0_2 = arith.constant 0 : index
    %2 = vector.load %arg2[%c0_1, %c0_2] : memref<784x512xbf16, #tpu.memory_space<vmem>>, vector<784x512xbf16>
    %cst = arith.constant dense<0.000000e+00> : vector<128x512xf32>
    %3 = tpu.matmul %1, %2, %cst {dimension_numbers = #tpu.dot_dimension_numbers<[1], [0], [0], [1], [0, 0, 1, 1], [], []>} : vector<128x784xbf16>, vector<784x512xbf16>, vector<128x512xf32> -> vector<128x512xf32>
    %c0_3 = arith.constant 0 : index
    %c0_4 = arith.constant 0 : index
    %4 = vector.load %arg3[%c0_3, %c0_4] : memref<1x512xf32, #tpu.memory_space<vmem>>, vector<1x512xf32>
    %5 = vector.broadcast %4 : vector<1x512xf32> to vector<128x512xf32>
    %6 = arith.addf %3, %5 : vector<128x512xf32>
    %cst_5 = arith.constant 0.000000e+00 : f32
    %7 = vector.broadcast %cst_5 : f32 to vector<128x512xf32>
    %8 = arith.maximumf %6, %7 : vector<128x512xf32>
    %9 = arith.truncf %8 : vector<128x512xf32> to vector<128x512xbf16>
    %c0_6 = arith.constant 0 : index
    %c0_7 = arith.constant 0 : index
    %10 = vector.load %arg4[%c0_6, %c0_7] : memref<512x256xbf16, #tpu.memory_space<vmem>>, vector<512x256xbf16>
    %cst_8 = arith.constant dense<0.000000e+00> : vector<128x256xf32>
    %11 = tpu.matmul %9, %10, %cst_8 {dimension_numbers = #tpu.dot_dimension_numbers<[1], [0], [0], [1], [0, 0, 1, 1], [], []>} : vector<128x512xbf16>, vector<512x256xbf16>, vector<128x256xf32> -> vector<128x256xf32>
    %c0_9 = arith.constant 0 : index
    %c0_10 = arith.constant 0 : index
    %12 = vector.load %arg5[%c0_9, %c0_10] : memref<1x256xf32, #tpu.memory_space<vmem>>, vector<1x256xf32>
    %13 = vector.broadcast %12 : vector<1x256xf32> to vector<128x256xf32>
    %14 = arith.addf %11, %13 : vector<128x256xf32>
    %cst_11 = arith.constant 0.000000e+00 : f32
    %15 = vector.broadcast %cst_11 : f32 to vector<128x256xf32>
    %16 = arith.maximumf %14, %15 : vector<128x256xf32>
    %17 = arith.truncf %16 : vector<128x256xf32> to vector<128x256xbf16>
    %c0_12 = arith.constant 0 : index
    %c0_13 = arith.constant 0 : index
    %18 = vector.load %arg6[%c0_12, %c0_13] : memref<256x128xbf16, #tpu.memory_space<vmem>>, vector<256x128xbf16>
    %cst_14 = arith.constant dense<0.000000e+00> : vector<128x128xf32>
    %19 = tpu.matmul %17, %18, %cst_14 {dimension_numbers = #tpu.dot_dimension_numbers<[1], [0], [0], [1], [0, 0, 1, 1], [], []>} : vector<128x256xbf16>, vector<256x128xbf16>, vector<128x128xf32> -> vector<128x128xf32>
    %c0_15 = arith.constant 0 : index
    %c0_16 = arith.constant 0 : index
    %20 = vector.load %arg7[%c0_15, %c0_16] : memref<1x128xf32, #tpu.memory_space<vmem>>, vector<1x128xf32>
    %21 = vector.broadcast %20 : vector<1x128xf32> to vector<128x128xf32>
    %22 = arith.addf %19, %21 : vector<128x128xf32>
    %cst_17 = arith.constant 0.000000e+00 : f32
    %23 = vector.broadcast %cst_17 : f32 to vector<128x128xf32>
    %24 = arith.maximumf %22, %23 : vector<128x128xf32>
    %25 = arith.truncf %24 : vector<128x128xf32> to vector<128x128xbf16>
    %c0_18 = arith.constant 0 : index
    %c0_19 = arith.constant 0 : index
    %26 = vector.load %arg8[%c0_18, %c0_19] : memref<128x4xbf16, #tpu.memory_space<vmem>>, vector<128x4xbf16>
    %cst_20 = arith.constant dense<0.000000e+00> : vector<128x4xf32>
    %27 = tpu.matmul %25, %26, %cst_20 {dimension_numbers = #tpu.dot_dimension_numbers<[1], [0], [0], [1], [0, 0, 1, 1], [], []>} : vector<128x128xbf16>, vector<128x4xbf16>, vector<128x4xf32> -> vector<128x4xf32>
    %c0_21 = arith.constant 0 : index
    %c0_22 = arith.constant 0 : index
    %28 = vector.load %arg9[%c0_21, %c0_22] : memref<1x4xf32, #tpu.memory_space<vmem>>, vector<1x4xf32>
    %29 = vector.broadcast %28 : vector<1x4xf32> to vector<128x4xf32>
    %30 = arith.addf %27, %29 : vector<128x4xf32>
    %31 = vector.extract_strided_slice %30 {offsets = [0, 0], sizes = [128, 2], strides = [1, 1]} : vector<128x4xf32> to vector<128x2xf32>
    %32 = vector.extract_strided_slice %30 {offsets = [0, 2], sizes = [128, 2], strides = [1, 1]} : vector<128x4xf32> to vector<128x2xf32>
    %c0_23 = arith.constant 0 : index
    %c0_24 = arith.constant 0 : index
    %33 = vector.load %arg10[%c0_23, %c0_24] : memref<128x2xf32, #tpu.memory_space<vmem>>, vector<128x2xf32>
    %cst_25 = arith.constant 5.000000e-01 : f32
    %34 = vector.broadcast %cst_25 : f32 to vector<128x2xf32>
    %35 = arith.mulf %32, %34 : vector<128x2xf32>
    %36 = math.exp %35 : vector<128x2xf32>
    %37 = arith.mulf %33, %36 : vector<128x2xf32>
    %38 = arith.addf %31, %37 : vector<128x2xf32>
    %39 = vector.extract_strided_slice %38 {offsets = [0, 0], sizes = [128, 1], strides = [1, 1]} : vector<128x2xf32> to vector<128x1xf32>
    %c0_26 = arith.constant 0 : index
    %c0_27 = arith.constant 0 : index
    %40 = vector.load %arg11[%c0_26, %c0_27] : memref<2x128xf32, #tpu.memory_space<vmem>>, vector<1x128xf32>
    %41 = vector.broadcast %39 : vector<128x1xf32> to vector<128x128xf32>
    %42 = vector.broadcast %40 : vector<1x128xf32> to vector<128x128xf32>
    %43 = arith.mulf %41, %42 : vector<128x128xf32>
    %44 = vector.extract_strided_slice %38 {offsets = [0, 1], sizes = [128, 1], strides = [1, 1]} : vector<128x2xf32> to vector<128x1xf32>
    %c1 = arith.constant 1 : index
    %c0_28 = arith.constant 0 : index
    %45 = vector.load %arg11[%c1, %c0_28] : memref<2x128xf32, #tpu.memory_space<vmem>>, vector<1x128xf32>
    %46 = vector.broadcast %44 : vector<128x1xf32> to vector<128x128xf32>
    %47 = vector.broadcast %45 : vector<1x128xf32> to vector<128x128xf32>
    %48 = arith.mulf %46, %47 : vector<128x128xf32>
    %49 = arith.addf %43, %48 : vector<128x128xf32>
    %c0_29 = arith.constant 0 : index
    %c0_30 = arith.constant 0 : index
    %50 = vector.load %arg12[%c0_29, %c0_30] : memref<1x128xf32, #tpu.memory_space<vmem>>, vector<1x128xf32>
    %51 = vector.broadcast %50 : vector<1x128xf32> to vector<128x128xf32>
    %52 = arith.addf %49, %51 : vector<128x128xf32>
    %cst_31 = arith.constant 0.000000e+00 : f32
    %53 = vector.broadcast %cst_31 : f32 to vector<128x128xf32>
    %54 = arith.maximumf %52, %53 : vector<128x128xf32>
    %55 = arith.truncf %54 : vector<128x128xf32> to vector<128x128xbf16>
    %c0_32 = arith.constant 0 : index
    %c0_33 = arith.constant 0 : index
    %56 = vector.load %arg13[%c0_32, %c0_33] : memref<128x256xbf16, #tpu.memory_space<vmem>>, vector<128x256xbf16>
    %cst_34 = arith.constant dense<0.000000e+00> : vector<128x256xf32>
    %57 = tpu.matmul %55, %56, %cst_34 {dimension_numbers = #tpu.dot_dimension_numbers<[1], [0], [0], [1], [0, 0, 1, 1], [], []>} : vector<128x128xbf16>, vector<128x256xbf16>, vector<128x256xf32> -> vector<128x256xf32>
    %c0_35 = arith.constant 0 : index
    %c0_36 = arith.constant 0 : index
    %58 = vector.load %arg14[%c0_35, %c0_36] : memref<1x256xf32, #tpu.memory_space<vmem>>, vector<1x256xf32>
    %59 = vector.broadcast %58 : vector<1x256xf32> to vector<128x256xf32>
    %60 = arith.addf %57, %59 : vector<128x256xf32>
    %cst_37 = arith.constant 0.000000e+00 : f32
    %61 = vector.broadcast %cst_37 : f32 to vector<128x256xf32>
    %62 = arith.maximumf %60, %61 : vector<128x256xf32>
    %63 = arith.truncf %62 : vector<128x256xf32> to vector<128x256xbf16>
    %c0_38 = arith.constant 0 : index
    %c0_39 = arith.constant 0 : index
    %64 = vector.load %arg15[%c0_38, %c0_39] : memref<256x512xbf16, #tpu.memory_space<vmem>>, vector<256x512xbf16>
    %cst_40 = arith.constant dense<0.000000e+00> : vector<128x512xf32>
    %65 = tpu.matmul %63, %64, %cst_40 {dimension_numbers = #tpu.dot_dimension_numbers<[1], [0], [0], [1], [0, 0, 1, 1], [], []>} : vector<128x256xbf16>, vector<256x512xbf16>, vector<128x512xf32> -> vector<128x512xf32>
    %c0_41 = arith.constant 0 : index
    %c0_42 = arith.constant 0 : index
    %66 = vector.load %arg16[%c0_41, %c0_42] : memref<1x512xf32, #tpu.memory_space<vmem>>, vector<1x512xf32>
    %67 = vector.broadcast %66 : vector<1x512xf32> to vector<128x512xf32>
    %68 = arith.addf %65, %67 : vector<128x512xf32>
    %cst_43 = arith.constant 0.000000e+00 : f32
    %69 = vector.broadcast %cst_43 : f32 to vector<128x512xf32>
    %70 = arith.maximumf %68, %69 : vector<128x512xf32>
    %71 = arith.truncf %70 : vector<128x512xf32> to vector<128x512xbf16>
    %c0_44 = arith.constant 0 : index
    %c0_45 = arith.constant 0 : index
    %72 = vector.load %arg17[%c0_44, %c0_45] : memref<512x784xbf16, #tpu.memory_space<vmem>>, vector<512x784xbf16>
    %cst_46 = arith.constant dense<0.000000e+00> : vector<128x784xf32>
    %73 = tpu.matmul %71, %72, %cst_46 {dimension_numbers = #tpu.dot_dimension_numbers<[1], [0], [0], [1], [0, 0, 1, 1], [], []>} : vector<128x512xbf16>, vector<512x784xbf16>, vector<128x784xf32> -> vector<128x784xf32>
    %c0_47 = arith.constant 0 : index
    %c0_48 = arith.constant 0 : index
    %74 = vector.load %arg18[%c0_47, %c0_48] : memref<1x784xf32, #tpu.memory_space<vmem>>, vector<1x784xf32>
    %75 = vector.broadcast %74 : vector<1x784xf32> to vector<128x784xf32>
    %76 = arith.addf %73, %75 : vector<128x784xf32>
    %77 = arith.negf %76 : vector<128x784xf32>
    %78 = math.exp %77 : vector<128x784xf32>
    %cst_49 = arith.constant 1.000000e+00 : f32
    %79 = vector.broadcast %cst_49 : f32 to vector<128x784xf32>
    %80 = arith.addf %79, %78 : vector<128x784xf32>
    %81 = arith.divf %79, %80 : vector<128x784xf32>
    %c0_50 = arith.constant 0 : index
    %c0_51 = arith.constant 0 : index
    %82 = vector.load %arg19[%c0_50, %c0_51] : memref<128x784xf32, #tpu.memory_space<vmem>>, vector<128x784xf32>
    tpu.vector_store %arg19[%c0_50, %c0_51], %81 {strides = array<i32>} : memref<128x784xf32, #tpu.memory_space<vmem>>, vector<128x784xf32>,
    return
  }
  func.func @transform_0(%arg0: i32) -> (i32, i32) {
    %c0_i32 = arith.constant 0 : i32
    %c0_i32_0 = arith.constant 0 : i32
    return %arg0, %c0_i32 : i32, i32
  }
  func.func @transform_1(%arg0: i32) -> (i32, i32) {
    %c0_i32 = arith.constant 0 : i32
    %c0_i32_0 = arith.constant 0 : i32
    %c0_i32_1 = arith.constant 0 : i32
    return %c0_i32, %c0_i32_0 : i32, i32
  }
  func.func @transform_2(%arg0: i32) -> (i32, i32) {
    %c0_i32 = arith.constant 0 : i32
    %c0_i32_0 = arith.constant 0 : i32
    %c0_i32_1 = arith.constant 0 : i32
    return %c0_i32, %c0_i32_0 : i32, i32
  }
  func.func @transform_3(%arg0: i32) -> (i32, i32) {
    %c0_i32 = arith.constant 0 : i32
    %c0_i32_0 = arith.constant 0 : i32
    %c0_i32_1 = arith.constant 0 : i32
    return %c0_i32, %c0_i32_0 : i32, i32
  }
  func.func @transform_4(%arg0: i32) -> (i32, i32) {
    %c0_i32 = arith.constant 0 : i32
    %c0_i32_0 = arith.constant 0 : i32
    %c0_i32_1 = arith.constant 0 : i32
    return %c0_i32, %c0_i32_0 : i32, i32
  }
  func.func @transform_5(%arg0: i32) -> (i32, i32) {
    %c0_i32 = arith.constant 0 : i32
    %c0_i32_0 = arith.constant 0 : i32
    %c0_i32_1 = arith.constant 0 : i32
    return %c0_i32, %c0_i32_0 : i32, i32
  }
  func.func @transform_6(%arg0: i32) -> (i32, i32) {
    %c0_i32 = arith.constant 0 : i32
    %c0_i32_0 = arith.constant 0 : i32
    %c0_i32_1 = arith.constant 0 : i32
    return %c0_i32, %c0_i32_0 : i32, i32
  }
  func.func @transform_7(%arg0: i32) -> (i32, i32) {
    %c0_i32 = arith.constant 0 : i32
    %c0_i32_0 = arith.constant 0 : i32
    %c0_i32_1 = arith.constant 0 : i32
    return %c0_i32, %c0_i32_0 : i32, i32
  }
  func.func @transform_8(%arg0: i32) -> (i32, i32) {
    %c0_i32 = arith.constant 0 : i32
    %c0_i32_0 = arith.constant 0 : i32
    %c0_i32_1 = arith.constant 0 : i32
    return %c0_i32, %c0_i32_0 : i32, i32
  }
  func.func @transform_9(%arg0: i32) -> (i32, i32) {
    %c0_i32 = arith.constant 0 : i32
    %c0_i32_0 = arith.constant 0 : i32
    return %arg0, %c0_i32 : i32, i32
  }
  func.func @transform_10(%arg0: i32) -> (i32, i32) {
    %c0_i32 = arith.constant 0 : i32
    %c0_i32_0 = arith.constant 0 : i32
    %c0_i32_1 = arith.constant 0 : i32
    return %c0_i32, %c0_i32_0 : i32, i32
  }
  func.func @transform_11(%arg0: i32) -> (i32, i32) {
    %c0_i32 = arith.constant 0 : i32
    %c0_i32_0 = arith.constant 0 : i32
    %c0_i32_1 = arith.constant 0 : i32
    return %c0_i32, %c0_i32_0 : i32, i32
  }
  func.func @transform_12(%arg0: i32) -> (i32, i32) {
    %c0_i32 = arith.constant 0 : i32
    %c0_i32_0 = arith.constant 0 : i32
    %c0_i32_1 = arith.constant 0 : i32
    return %c0_i32, %c0_i32_0 : i32, i32
  }
  func.func @transform_13(%arg0: i32) -> (i32, i32) {
    %c0_i32 = arith.constant 0 : i32
    %c0_i32_0 = arith.constant 0 : i32
    %c0_i32_1 = arith.constant 0 : i32
    return %c0_i32, %c0_i32_0 : i32, i32
  }
  func.func @transform_14(%arg0: i32) -> (i32, i32) {
    %c0_i32 = arith.constant 0 : i32
    %c0_i32_0 = arith.constant 0 : i32
    %c0_i32_1 = arith.constant 0 : i32
    return %c0_i32, %c0_i32_0 : i32, i32
  }
  func.func @transform_15(%arg0: i32) -> (i32, i32) {
    %c0_i32 = arith.constant 0 : i32
    %c0_i32_0 = arith.constant 0 : i32
    %c0_i32_1 = arith.constant 0 : i32
    return %c0_i32, %c0_i32_0 : i32, i32
  }
  func.func @transform_16(%arg0: i32) -> (i32, i32) {
    %c0_i32 = arith.constant 0 : i32
    %c0_i32_0 = arith.constant 0 : i32
    %c0_i32_1 = arith.constant 0 : i32
    return %c0_i32, %c0_i32_0 : i32, i32
  }
  func.func @transform_17(%arg0: i32) -> (i32, i32) {
    %c0_i32 = arith.constant 0 : i32
    %c0_i32_0 = arith.constant 0 : i32
    %c0_i32_1 = arith.constant 0 : i32
    return %c0_i32, %c0_i32_0 : i32, i32
  }
  func.func @transform_18(%arg0: i32) -> (i32, i32) {
    %c0_i32 = arith.constant 0 : i32
    %c0_i32_0 = arith.constant 0 : i32
    return %arg0, %c0_i32 : i32, i32
  }
}

</mosaic_0001>

<llo_original>
// kernel: tpu_custom_call.1
$region0: #{tpu_custom_call.1}
  #allocation0 [shape = 'u32[]', space=smem, size = 0x4, offset = 0x4, fixed_abs, tag = 'smem constant byte address 0x4 - core index']
  #allocation1 [shape = 'u32[144,128]{1,0:T(1,128)}', space=vmem, size = 0x12000, scoped, tag = 'internal scratch']
  %s0 = inlined_call_operand.vmem [shape: f32[256,784], index: 0, kind: input, shape index: {}]
  %s1 = inlined_call_operand.vmem [shape: bf16[784,512], index: 1, kind: input, shape index: {}]
  %s2 = inlined_call_operand.vmem [shape: f32[1,512], index: 2, kind: input, shape index: {}]
  %s3 = inlined_call_operand.vmem [shape: bf16[512,256], index: 3, kind: input, shape index: {}]
  %s4 = inlined_call_operand.vmem [shape: f32[1,256], index: 4, kind: input, shape index: {}]
  %s5 = inlined_call_operand.vmem [shape: bf16[256,128], index: 5, kind: input, shape index: {}]
  %s6 = inlined_call_operand.vmem [shape: f32[1,128], index: 6, kind: input, shape index: {}]
  %s7 = inlined_call_operand.vmem [shape: bf16[128,4], index: 7, kind: input, shape index: {}]
  %s8 = inlined_call_operand.vmem [shape: f32[1,4], index: 8, kind: input, shape index: {}]
  %s9 = inlined_call_operand.vmem [shape: f32[256,2], index: 9, kind: input, shape index: {}]
  %s10 = inlined_call_operand.vmem [shape: f32[2,128], index: 10, kind: input, shape index: {}]
  %s11 = inlined_call_operand.vmem [shape: f32[1,128], index: 11, kind: input, shape index: {}]
  %s12 = inlined_call_operand.vmem [shape: bf16[128,256], index: 12, kind: input, shape index: {}]
  %s13 = inlined_call_operand.vmem [shape: f32[1,256], index: 13, kind: input, shape index: {}]
  %s14 = inlined_call_operand.vmem [shape: bf16[256,512], index: 14, kind: input, shape index: {}]
  %s15 = inlined_call_operand.vmem [shape: f32[1,512], index: 15, kind: input, shape index: {}]
  %s16 = inlined_call_operand.vmem [shape: bf16[512,784], index: 16, kind: input, shape index: {}]
  %s17 = inlined_call_operand.vmem [shape: f32[1,784], index: 17, kind: input, shape index: {}]
  %s18 = inlined_call_operand.vmem [shape: f32[256,784], index: 18, kind: output, shape index: {}]
  %s19 = sld [smem:[#allocation0]]
  $region105: #{tpu_custom_call.1} parent=0
    _
  %s21 = ssub.s32 1, %s19
  %s22 = scalar_select 0, %s21, %s19
  loop: start=0, step=1, limit=4
  $region2: #{tpu_custom_call.1} parent=0 // loop_pre_header
    _
  $region3: #{tpu_custom_call.1} parent=0 // loop_header
    %s24 = sphi 0, %s28
    %p25 = scmp.ge.s32.totalorder %s24, 4
    %s34 = sphi 0, %s36
    %s37 = sphi 0, %s34
    %s38 = sphi 0, %s37
    %s54 = sphi 0, %s38
    %s58 = sphi 0, %s58
    %s60 = sphi 0, %s58
    %s61 = sphi 0, %s60
    %s75 = sphi 0, %s61
    %s79 = sphi 0, %s79
    %s81 = sphi 0, %s79
    %s82 = sphi 0, %s81
    %s96 = sphi 0, %s82
    %s100 = sphi 0, %s100
    %s102 = sphi 0, %s100
    %s103 = sphi 0, %s102
    %s117 = sphi 0, %s103
    %s121 = sphi 0, %s121
    %s123 = sphi 0, %s121
    %s124 = sphi 0, %s123
    %s138 = sphi 0, %s124
    %s142 = sphi 0, %s142
    %s144 = sphi 0, %s142
    %s145 = sphi 0, %s144
    %s159 = sphi 0, %s145
    %s163 = sphi 0, %s163
    %s165 = sphi 0, %s163
    %s166 = sphi 0, %s165
    %s180 = sphi 0, %s166
    %s184 = sphi 0, %s184
    %s186 = sphi 0, %s184
    %s187 = sphi 0, %s186
    %s201 = sphi 0, %s187
    %s205 = sphi 0, %s205
    %s207 = sphi 0, %s205
    %s208 = sphi 0, %s207
    %s222 = sphi 0, %s208
    %s228 = sphi 0, %s230
    %s231 = sphi 0, %s228
    %s232 = sphi 0, %s231
    %s248 = sphi 0, %s232
    %s252 = sphi 0, %s252
    %s254 = sphi 0, %s252
    %s255 = sphi 0, %s254
    %s269 = sphi 0, %s255
    %s273 = sphi 0, %s273
    %s275 = sphi 0, %s273
    %s276 = sphi 0, %s275
    %s290 = sphi 0, %s276
    %s294 = sphi 0, %s294
    %s296 = sphi 0, %s294
    %s297 = sphi 0, %s296
    %s311 = sphi 0, %s297
    %s315 = sphi 0, %s315
    %s317 = sphi 0, %s315
    %s318 = sphi 0, %s317
    %s332 = sphi 0, %s318
    %s336 = sphi 0, %s336
    %s338 = sphi 0, %s336
    %s339 = sphi 0, %s338
    %s353 = sphi 0, %s339
    %s357 = sphi 0, %s357
    %s359 = sphi 0, %s357
    %s360 = sphi 0, %s359
    %s374 = sphi 0, %s360
    %s378 = sphi 0, %s378
    %s380 = sphi 0, %s378
    %s381 = sphi 0, %s380
    %s395 = sphi 0, %s381
    %s399 = sphi 0, %s399
    %s401 = sphi 0, %s399
    %s402 = sphi 0, %s401
    %s416 = sphi 0, %s402
    %s422 = sphi 0, %s424
    %s425 = sphi 0, %s422
    %s426 = sphi 0, %s425
    %s442 = sphi 0, %s426
  $region4: #{tpu_custom_call.1} parent=0 // loop_header_branch
    %27 = sbr.rel (%p25) target = $region8
  $region5: #{tpu_custom_call.1} parent=0 // loop_body
    %s29 = ssub.s32 %s24, 1
    %s30 = ssub.s32 %s24, 2
    %s31 = sadd.s32 %s24, 1
    %s32 = ssub.s32 %s24, %s31
    %p33 = scmp.eq.s32.totalorder %s32, 0
    %s35 = sadd.s32 %s34, 1
    %s36 = scalar_select %p33, %s34, %s35
    %p39 = pneg %p33
    %p40 = scmp.eq.s32.totalorder %s24, 1
    %p41 = por %p39, %p40
    %p42 = scmp.ne.s32.totalorder %s34, %s37
    %p43 = scmp.eq.s32.totalorder %s24, 0
    %p44 = por %p42, %p43
    %p45 = scmp.ne.s32.totalorder %s34, %s37
    %p46 = scmp.eq.s32.totalorder %s29, 1
    %p47 = por %p45, %p46
    %p48 = scmp.ne.s32.totalorder %s37, %s38
    %p49 = scmp.eq.s32.totalorder %s29, 0
    %p50 = por %p48, %p49
    %p51 = scmp.ne.s32.totalorder %s37, %s38
    %p52 = scmp.eq.s32.totalorder %s30, 1
    %p53 = por %p51, %p52
    %p55 = scmp.ne.s32.totalorder %s38, %s54
    %p56 = scmp.eq.s32.totalorder %s30, 0
    %p57 = por %p55, %p56
    %s59 = sadd.s32 %s58, 1
    %p62 = scmp.eq.s32.totalorder %s24, 1
    %p63 = scmp.ne.s32.totalorder %s58, %s60
    %p64 = scmp.eq.s32.totalorder %s24, 0
    %p65 = por %p63, %p64
    %p66 = scmp.ne.s32.totalorder %s58, %s60
    %p67 = scmp.eq.s32.totalorder %s29, 1
    %p68 = por %p66, %p67
    %p69 = scmp.ne.s32.totalorder %s60, %s61
    %p70 = scmp.eq.s32.totalorder %s29, 0
    %p71 = por %p69, %p70
    %p72 = scmp.ne.s32.totalorder %s60, %s61
    %p73 = scmp.eq.s32.totalorder %s30, 1
    %p74 = por %p72, %p73
    %p76 = scmp.ne.s32.totalorder %s61, %s75
    %p77 = scmp.eq.s32.totalorder %s30, 0
    %p78 = por %p76, %p77
    %s80 = sadd.s32 %s79, 1
    %p83 = scmp.eq.s32.totalorder %s24, 1
    %p84 = scmp.ne.s32.totalorder %s79, %s81
    %p85 = scmp.eq.s32.totalorder %s24, 0
    %p86 = por %p84, %p85
    %p87 = scmp.ne.s32.totalorder %s79, %s81
    %p88 = scmp.eq.s32.totalorder %s29, 1
    %p89 = por %p87, %p88
    %p90 = scmp.ne.s32.totalorder %s81, %s82
    %p91 = scmp.eq.s32.totalorder %s29, 0
    %p92 = por %p90, %p91
    %p93 = scmp.ne.s32.totalorder %s81, %s82
    %p94 = scmp.eq.s32.totalorder %s30, 1
    %p95 = por %p93, %p94
    %p97 = scmp.ne.s32.totalorder %s82, %s96
    %p98 = scmp.eq.s32.totalorder %s30, 0
    %p99 = por %p97, %p98
    %s101 = sadd.s32 %s100, 1
    %p104 = scmp.eq.s32.totalorder %s24, 1
    %p105 = scmp.ne.s32.totalorder %s100, %s102
    %p106 = scmp.eq.s32.totalorder %s24, 0
    %p107 = por %p105, %p106
    %p108 = scmp.ne.s32.totalorder %s100, %s102
    %p109 = scmp.eq.s32.totalorder %s29, 1
    %p110 = por %p108, %p109
    %p111 = scmp.ne.s32.totalorder %s102, %s103
    %p112 = scmp.eq.s32.totalorder %s29, 0
    %p113 = por %p111, %p112
    %p114 = scmp.ne.s32.totalorder %s102, %s103
    %p115 = scmp.eq.s32.totalorder %s30, 1
    %p116 = por %p114, %p115
    %p118 = scmp.ne.s32.totalorder %s103, %s117
    %p119 = scmp.eq.s32.totalorder %s30, 0
    %p120 = por %p118, %p119
    %s122 = sadd.s32 %s121, 1
    %p125 = scmp.eq.s32.totalorder %s24, 1
    %p126 = scmp.ne.s32.totalorder %s121, %s123
    %p127 = scmp.eq.s32.totalorder %s24, 0
    %p128 = por %p126, %p127
    %p129 = scmp.ne.s32.totalorder %s121, %s123
    %p130 = scmp.eq.s32.totalorder %s29, 1
    %p131 = por %p129, %p130
    %p132 = scmp.ne.s32.totalorder %s123, %s124
    %p133 = scmp.eq.s32.totalorder %s29, 0
    %p134 = por %p132, %p133
    %p135 = scmp.ne.s32.totalorder %s123, %s124
    %p136 = scmp.eq.s32.totalorder %s30, 1
    %p137 = por %p135, %p136
    %p139 = scmp.ne.s32.totalorder %s124, %s138
    %p140 = scmp.eq.s32.totalorder %s30, 0
    %p141 = por %p139, %p140
    %s143 = sadd.s32 %s142, 1
    %p146 = scmp.eq.s32.totalorder %s24, 1
    %p147 = scmp.ne.s32.totalorder %s142, %s144
    %p148 = scmp.eq.s32.totalorder %s24, 0
    %p149 = por %p147, %p148
    %p150 = scmp.ne.s32.totalorder %s142, %s144
    %p151 = scmp.eq.s32.totalorder %s29, 1
    %p152 = por %p150, %p151
    %p153 = scmp.ne.s32.totalorder %s144, %s145
    %p154 = scmp.eq.s32.totalorder %s29, 0
    %p155 = por %p153, %p154
    %p156 = scmp.ne.s32.totalorder %s144, %s145
    %p157 = scmp.eq.s32.totalorder %s30, 1
    %p158 = por %p156, %p157
    %p160 = scmp.ne.s32.totalorder %s145, %s159
    %p161 = scmp.eq.s32.totalorder %s30, 0
    %p162 = por %p160, %p161
    %s164 = sadd.s32 %s163, 1
    %p167 = scmp.eq.s32.totalorder %s24, 1
    %p168 = scmp.ne.s32.totalorder %s163, %s165
    %p169 = scmp.eq.s32.totalorder %s24, 0
    %p170 = por %p168, %p169
    %p171 = scmp.ne.s32.totalorder %s163, %s165
    %p172 = scmp.eq.s32.totalorder %s29, 1
    %p173 = por %p171, %p172
    %p174 = scmp.ne.s32.totalorder %s165, %s166
    %p175 = scmp.eq.s32.totalorder %s29, 0
    %p176 = por %p174, %p175
    %p177 = scmp.ne.s32.totalorder %s165, %s166
    %p178 = scmp.eq.s32.totalorder %s30, 1
    %p179 = por %p177, %p178
    %p181 = scmp.ne.s32.totalorder %s166, %s180
    %p182 = scmp.eq.s32.totalorder %s30, 0
    %p183 = por %p181, %p182
    %s185 = sadd.s32 %s184, 1
    %p188 = scmp.eq.s32.totalorder %s24, 1
    %p189 = scmp.ne.s32.totalorder %s184, %s186
    %p190 = scmp.eq.s32.totalorder %s24, 0
    %p191 = por %p189, %p190
    %p192 = scmp.ne.s32.totalorder %s184, %s186
    %p193 = scmp.eq.s32.totalorder %s29, 1
    %p194 = por %p192, %p193
    %p195 = scmp.ne.s32.totalorder %s186, %s187
    %p196 = scmp.eq.s32.totalorder %s29, 0
    %p197 = por %p195, %p196
    %p198 = scmp.ne.s32.totalorder %s186, %s187
    %p199 = scmp.eq.s32.totalorder %s30, 1
    %p200 = por %p198, %p199
    %p202 = scmp.ne.s32.totalorder %s187, %s201
    %p203 = scmp.eq.s32.totalorder %s30, 0
    %p204 = por %p202, %p203
    %s206 = sadd.s32 %s205, 1
    %p209 = scmp.eq.s32.totalorder %s24, 1
    %p210 = scmp.ne.s32.totalorder %s205, %s207
    %p211 = scmp.eq.s32.totalorder %s24, 0
    %p212 = por %p210, %p211
    %p213 = scmp.ne.s32.totalorder %s205, %s207
    %p214 = scmp.eq.s32.totalorder %s29, 1
    %p215 = por %p213, %p214
    %p216 = scmp.ne.s32.totalorder %s207, %s208
    %p217 = scmp.eq.s32.totalorder %s29, 0
    %p218 = por %p216, %p217
    %p219 = scmp.ne.s32.totalorder %s207, %s208
    %p220 = scmp.eq.s32.totalorder %s30, 1
    %p221 = por %p219, %p220
    %p223 = scmp.ne.s32.totalorder %s208, %s222
    %p224 = scmp.eq.s32.totalorder %s30, 0
    %p225 = por %p223, %p224
    %s226 = ssub.s32 %s24, %s31
    %p227 = scmp.eq.s32.totalorder %s226, 0
    %s229 = sadd.s32 %s228, 1
    %s230 = scalar_select %p227, %s228, %s229
    %p233 = pneg %p227
    %p234 = scmp.eq.s32.totalorder %s24, 1
    %p235 = por %p233, %p234
    %p236 = scmp.ne.s32.totalorder %s228, %s231
    %p237 = scmp.eq.s32.totalorder %s24, 0
    %p238 = por %p236, %p237
    %p239 = scmp.ne.s32.totalorder %s228, %s231
    %p240 = scmp.eq.s32.totalorder %s29, 1
    %p241 = por %p239, %p240
    %p242 = scmp.ne.s32.totalorder %s231, %s232
    %p243 = scmp.eq.s32.totalorder %s29, 0
    %p244 = por %p242, %p243
    %p245 = scmp.ne.s32.totalorder %s231, %s232
    %p246 = scmp.eq.s32.totalorder %s30, 1
    %p247 = por %p245, %p246
    %p249 = scmp.ne.s32.totalorder %s232, %s248
    %p250 = scmp.eq.s32.totalorder %s30, 0
    %p251 = por %p249, %p250
    %s253 = sadd.s32 %s252, 1
    %p256 = scmp.eq.s32.totalorder %s24, 1
    %p257 = scmp.ne.s32.totalorder %s252, %s254
    %p258 = scmp.eq.s32.totalorder %s24, 0
    %p259 = por %p257, %p258
    %p260 = scmp.ne.s32.totalorder %s252, %s254
    %p261 = scmp.eq.s32.totalorder %s29, 1
    %p262 = por %p260, %p261
    %p263 = scmp.ne.s32.totalorder %s254, %s255
    %p264 = scmp.eq.s32.totalorder %s29, 0
    %p265 = por %p263, %p264
    %p266 = scmp.ne.s32.totalorder %s254, %s255
    %p267 = scmp.eq.s32.totalorder %s30, 1
    %p268 = por %p266, %p267
    %p270 = scmp.ne.s32.totalorder %s255, %s269
    %p271 = scmp.eq.s32.totalorder %s30, 0
    %p272 = por %p270, %p271
    %s274 = sadd.s32 %s273, 1
    %p277 = scmp.eq.s32.totalorder %s24, 1
    %p278 = scmp.ne.s32.totalorder %s273, %s275
    %p279 = scmp.eq.s32.totalorder %s24, 0
    %p280 = por %p278, %p279
    %p281 = scmp.ne.s32.totalorder %s273, %s275
    %p282 = scmp.eq.s32.totalorder %s29, 1
    %p283 = por %p281, %p282
    %p284 = scmp.ne.s32.totalorder %s275, %s276
    %p285 = scmp.eq.s32.totalorder %s29, 0
    %p286 = por %p284, %p285
    %p287 = scmp.ne.s32.totalorder %s275, %s276
    %p288 = scmp.eq.s32.totalorder %s30, 1
    %p289 = por %p287, %p288
    %p291 = scmp.ne.s32.totalorder %s276, %s290
    %p292 = scmp.eq.s32.totalorder %s30, 0
    %p293 = por %p291, %p292
    %s295 = sadd.s32 %s294, 1
    %p298 = scmp.eq.s32.totalorder %s24, 1
    %p299 = scmp.ne.s32.totalorder %s294, %s296
    %p300 = scmp.eq.s32.totalorder %s24, 0
    %p301 = por %p299, %p300
    %p302 = scmp.ne.s32.totalorder %s294, %s296
    %p303 = scmp.eq.s32.totalorder %s29, 1
    %p304 = por %p302, %p303
    %p305 = scmp.ne.s32.totalorder %s296, %s297
    %p306 = scmp.eq.s32.totalorder %s29, 0
    %p307 = por %p305, %p306
    %p308 = scmp.ne.s32.totalorder %s296, %s297
    %p309 = scmp.eq.s32.totalorder %s30, 1
    %p310 = por %p308, %p309
    %p312 = scmp.ne.s32.totalorder %s297, %s311
    %p313 = scmp.eq.s32.totalorder %s30, 0
    %p314 = por %p312, %p313
    %s316 = sadd.s32 %s315, 1
    %p319 = scmp.eq.s32.totalorder %s24, 1
    %p320 = scmp.ne.s32.totalorder %s315, %s317
    %p321 = scmp.eq.s32.totalorder %s24, 0
    %p322 = por %p320, %p321
    %p323 = scmp.ne.s32.totalorder %s315, %s317
    %p324 = scmp.eq.s32.totalorder %s29, 1
    %p325 = por %p323, %p324
    %p326 = scmp.ne.s32.totalorder %s317, %s318
    %p327 = scmp.eq.s32.totalorder %s29, 0
    %p328 = por %p326, %p327
    %p329 = scmp.ne.s32.totalorder %s317, %s318
    %p330 = scmp.eq.s32.totalorder %s30, 1
    %p331 = por %p329, %p330
    %p333 = scmp.ne.s32.totalorder %s318, %s332
    %p334 = scmp.eq.s32.totalorder %s30, 0
    %p335 = por %p333, %p334
    %s337 = sadd.s32 %s336, 1
    %p340 = scmp.eq.s32.totalorder %s24, 1
    %p341 = scmp.ne.s32.totalorder %s336, %s338
    %p342 = scmp.eq.s32.totalorder %s24, 0
    %p343 = por %p341, %p342
    %p344 = scmp.ne.s32.totalorder %s336, %s338
    %p345 = scmp.eq.s32.totalorder %s29, 1
    %p346 = por %p344, %p345
    %p347 = scmp.ne.s32.totalorder %s338, %s339
    %p348 = scmp.eq.s32.totalorder %s29, 0
    %p349 = por %p347, %p348
    %p350 = scmp.ne.s32.totalorder %s338, %s339
    %p351 = scmp.eq.s32.totalorder %s30, 1
    %p352 = por %p350, %p351
    %p354 = scmp.ne.s32.totalorder %s339, %s353
    %p355 = scmp.eq.s32.totalorder %s30, 0
    %p356 = por %p354, %p355
    %s358 = sadd.s32 %s357, 1
    %p361 = scmp.eq.s32.totalorder %s24, 1
    %p362 = scmp.ne.s32.totalorder %s357, %s359
    %p363 = scmp.eq.s32.totalorder %s24, 0
    %p364 = por %p362, %p363
    %p365 = scmp.ne.s32.totalorder %s357, %s359
    %p366 = scmp.eq.s32.totalorder %s29, 1
    %p367 = por %p365, %p366
    %p368 = scmp.ne.s32.totalorder %s359, %s360
    %p369 = scmp.eq.s32.totalorder %s29, 0
    %p370 = por %p368, %p369
    %p371 = scmp.ne.s32.totalorder %s359, %s360
    %p372 = scmp.eq.s32.totalorder %s30, 1
    %p373 = por %p371, %p372
    %p375 = scmp.ne.s32.totalorder %s360, %s374
    %p376 = scmp.eq.s32.totalorder %s30, 0
    %p377 = por %p375, %p376
    %s379 = sadd.s32 %s378, 1
    %p382 = scmp.eq.s32.totalorder %s24, 1
    %p383 = scmp.ne.s32.totalorder %s378, %s380
    %p384 = scmp.eq.s32.totalorder %s24, 0
    %p385 = por %p383, %p384
    %p386 = scmp.ne.s32.totalorder %s378, %s380
    %p387 = scmp.eq.s32.totalorder %s29, 1
    %p388 = por %p386, %p387
    %p389 = scmp.ne.s32.totalorder %s380, %s381
    %p390 = scmp.eq.s32.totalorder %s29, 0
    %p391 = por %p389, %p390
    %p392 = scmp.ne.s32.totalorder %s380, %s381
    %p393 = scmp.eq.s32.totalorder %s30, 1
    %p394 = por %p392, %p393
    %p396 = scmp.ne.s32.totalorder %s381, %s395
    %p397 = scmp.eq.s32.totalorder %s30, 0
    %p398 = por %p396, %p397
    %s400 = sadd.s32 %s399, 1
    %p403 = scmp.eq.s32.totalorder %s24, 1
    %p404 = scmp.ne.s32.totalorder %s399, %s401
    %p405 = scmp.eq.s32.totalorder %s24, 0
    %p406 = por %p404, %p405
    %p407 = scmp.ne.s32.totalorder %s399, %s401
    %p408 = scmp.eq.s32.totalorder %s29, 1
    %p409 = por %p407, %p408
    %p410 = scmp.ne.s32.totalorder %s401, %s402
    %p411 = scmp.eq.s32.totalorder %s29, 0
    %p412 = por %p410, %p411
    %p413 = scmp.ne.s32.totalorder %s401, %s402
    %p414 = scmp.eq.s32.totalorder %s30, 1
    %p415 = por %p413, %p414
    %p417 = scmp.ne.s32.totalorder %s402, %s416
    %p418 = scmp.eq.s32.totalorder %s30, 0
    %p419 = por %p417, %p418
    %s420 = ssub.s32 %s24, %s31
    %p421 = scmp.eq.s32.totalorder %s420, 0
    %s423 = sadd.s32 %s422, 1
    %s424 = scalar_select %p421, %s422, %s423
    %p427 = pneg %p421
    %p428 = scmp.eq.s32.totalorder %s24, 1
    %p429 = por %p427, %p428
    %p430 = scmp.ne.s32.totalorder %s422, %s425
    %p431 = scmp.eq.s32.totalorder %s24, 0
    %p432 = por %p430, %p431
    %p433 = scmp.ne.s32.totalorder %s422, %s425
    %p434 = scmp.eq.s32.totalorder %s29, 1
    %p435 = por %p433, %p434
    %p436 = scmp.ne.s32.totalorder %s425, %s426
    %p437 = scmp.eq.s32.totalorder %s29, 0
    %p438 = por %p436, %p437
    %p439 = scmp.ne.s32.totalorder %s425, %s426
    %p440 = scmp.eq.s32.totalorder %s30, 1
    %p441 = por %p439, %p440
    %p443 = scmp.ne.s32.totalorder %s426, %s442
    %p444 = scmp.eq.s32.totalorder %s30, 0
    %p445 = por %p443, %p444
    %p446 = scmp.le.s32.totalorder 1, %s24
    %p447 = scmp.lt.s32.totalorder %s24, 3
    %p448 = pnand %p446, %p447
    %p449 = pneg %p448
    // Predicated region
    $region9: #{tpu_custom_call.1} parent=5 // pred_check
      _
    $region10: #{tpu_custom_call.1} parent=5 // pred_check_branch
      %451 = sbr.rel (%p448) target = $region12
    $region11: #{tpu_custom_call.1} parent=5 // pred_region
      %s452 = ssub.s32 %s24, 1
      // Predicated region
      $region13: #{tpu_custom_call.1} parent=11 // pred_check
        %p453 = pneg %p71
      $region14: #{tpu_custom_call.1} parent=11 // pred_check_branch
        %455 = sbr.rel (%p453) target = $region16
      $region15: #{tpu_custom_call.1} parent=11 // pred_region
        _
      $region16: #{tpu_custom_call.1} parent=11 // pred_fallthru
        _
      // Predicated region
      $region17: #{tpu_custom_call.1} parent=11 // pred_check
        %p456 = pneg %p92
      $region18: #{tpu_custom_call.1} parent=11 // pred_check_branch
        %458 = sbr.rel (%p456) target = $region20
      $region19: #{tpu_custom_call.1} parent=11 // pred_region
        _
      $region20: #{tpu_custom_call.1} parent=11 // pred_fallthru
        _
      // Predicated region
      $region21: #{tpu_custom_call.1} parent=11 // pred_check
        %p459 = pneg %p113
      $region22: #{tpu_custom_call.1} parent=11 // pred_check_branch
        %461 = sbr.rel (%p459) target = $region24
      $region23: #{tpu_custom_call.1} parent=11 // pred_region
        _
      $region24: #{tpu_custom_call.1} parent=11 // pred_fallthru
        _
      // Predicated region
      $region25: #{tpu_custom_call.1} parent=11 // pred_check
        %p462 = pneg %p134
      $region26: #{tpu_custom_call.1} parent=11 // pred_check_branch
        %464 = sbr.rel (%p462) target = $region28
      $region27: #{tpu_custom_call.1} parent=11 // pred_region
        _
      $region28: #{tpu_custom_call.1} parent=11 // pred_fallthru
        _
      // Predicated region
      $region29: #{tpu_custom_call.1} parent=11 // pred_check
        %p465 = pneg %p155
      $region30: #{tpu_custom_call.1} parent=11 // pred_check_branch
        %467 = sbr.rel (%p465) target = $region32
      $region31: #{tpu_custom_call.1} parent=11 // pred_region
        _
      $region32: #{tpu_custom_call.1} parent=11 // pred_fallthru
        _
      // Predicated region
      $region33: #{tpu_custom_call.1} parent=11 // pred_check
        %p468 = pneg %p176
      $region34: #{tpu_custom_call.1} parent=11 // pred_check_branch
        %470 = sbr.rel (%p468) target = $region36
      $region35: #{tpu_custom_call.1} parent=11 // pred_region
        _
      $region36: #{tpu_custom_call.1} parent=11 // pred_fallthru
        _
      // Predicated region
      $region37: #{tpu_custom_call.1} parent=11 // pred_check
        %p471 = pneg %p197
      $region38: #{tpu_custom_call.1} parent=11 // pred_check_branch
        %473 = sbr.rel (%p471) target = $region40
      $region39: #{tpu_custom_call.1} parent=11 // pred_region
        _
      $region40: #{tpu_custom_call.1} parent=11 // pred_fallthru
        _
      // Predicated region
      $region41: #{tpu_custom_call.1} parent=11 // pred_check
        %p474 = pneg %p218
      $region42: #{tpu_custom_call.1} parent=11 // pred_check_branch
        %476 = sbr.rel (%p474) target = $region44
      $region43: #{tpu_custom_call.1} parent=11 // pred_region
        _
      $region44: #{tpu_custom_call.1} parent=11 // pred_fallthru
        _
      // Predicated region
      $region45: #{tpu_custom_call.1} parent=11 // pred_check
        %p477 = pneg %p265
      $region46: #{tpu_custom_call.1} parent=11 // pred_check_branch
        %479 = sbr.rel (%p477) target = $region48
      $region47: #{tpu_custom_call.1} parent=11 // pred_region
        _
      $region48: #{tpu_custom_call.1} parent=11 // pred_fallthru
        _
      // Predicated region
      $region49: #{tpu_custom_call.1} parent=11 // pred_check
        %p480 = pneg %p286
      $region50: #{tpu_custom_call.1} parent=11 // pred_check_branch
        %482 = sbr.rel (%p480) target = $region52
      $region51: #{tpu_custom_call.1} parent=11 // pred_region
        _
      $region52: #{tpu_custom_call.1} parent=11 // pred_fallthru
        _
      // Predicated region
      $region53: #{tpu_custom_call.1} parent=11 // pred_check
        %p483 = pneg %p307
      $region54: #{tpu_custom_call.1} parent=11 // pred_check_branch
        %485 = sbr.rel (%p483) target = $region56
      $region55: #{tpu_custom_call.1} parent=11 // pred_region
        _
      $region56: #{tpu_custom_call.1} parent=11 // pred_fallthru
        _
      // Predicated region
      $region57: #{tpu_custom_call.1} parent=11 // pred_check
        %p486 = pneg %p328
      $region58: #{tpu_custom_call.1} parent=11 // pred_check_branch
        %488 = sbr.rel (%p486) target = $region60
      $region59: #{tpu_custom_call.1} parent=11 // pred_region
        _
      $region60: #{tpu_custom_call.1} parent=11 // pred_fallthru
        _
      // Predicated region
      $region61: #{tpu_custom_call.1} parent=11 // pred_check
        %p489 = pneg %p349
      $region62: #{tpu_custom_call.1} parent=11 // pred_check_branch
        %491 = sbr.rel (%p489) target = $region64
      $region63: #{tpu_custom_call.1} parent=11 // pred_region
        _
      $region64: #{tpu_custom_call.1} parent=11 // pred_fallthru
        _
      // Predicated region
      $region65: #{tpu_custom_call.1} parent=11 // pred_check
        %p492 = pneg %p370
      $region66: #{tpu_custom_call.1} parent=11 // pred_check_branch
        %494 = sbr.rel (%p492) target = $region68
      $region67: #{tpu_custom_call.1} parent=11 // pred_region
        _
      $region68: #{tpu_custom_call.1} parent=11 // pred_fallthru
        _
      // Predicated region
      $region69: #{tpu_custom_call.1} parent=11 // pred_check
        %p495 = pneg %p391
      $region70: #{tpu_custom_call.1} parent=11 // pred_check_branch
        %497 = sbr.rel (%p495) target = $region72
      $region71: #{tpu_custom_call.1} parent=11 // pred_region
        _
      $region72: #{tpu_custom_call.1} parent=11 // pred_fallthru
        _
      // Predicated region
      $region73: #{tpu_custom_call.1} parent=11 // pred_check
        %p498 = pneg %p412
      $region74: #{tpu_custom_call.1} parent=11 // pred_check_branch
        %500 = sbr.rel (%p498) target = $region76
      $region75: #{tpu_custom_call.1} parent=11 // pred_region
        _
      $region76: #{tpu_custom_call.1} parent=11 // pred_fallthru
        _
    $region12: #{tpu_custom_call.1} parent=5 // pred_fallthru
      _
    %p501 = scmp.lt.s32.totalorder %s24, 2
    // Predicated region
    $region77: #{tpu_custom_call.1} parent=5 // pred_check
      %p502 = pneg %p501
    $region78: #{tpu_custom_call.1} parent=5 // pred_check_branch
      %504 = sbr.rel (%p502) target = $region80
    $region79: #{tpu_custom_call.1} parent=5 // pred_region
      // Predicated region
      $region81: #{tpu_custom_call.1} parent=79 // pred_check
        %p505 = pneg %p44
      $region82: #{tpu_custom_call.1} parent=79 // pred_check_branch
        %507 = sbr.rel (%p505) target = $region84
      $region83: #{tpu_custom_call.1} parent=79 // pred_region
        %s508 = smul.u32 16, %s24
        %p509 = scmp.lt.s32.totalorder %s508, 31
        %s510 = scalar_select %p509, %s508, 31
        %s511 = smul.addr %s510, 7
        %s512 = smul.addr %s511, 8
        %s513 = scalar_lea.vmem %s0, %s512
        %s514 = smul.u32 16, %s24
      $region84: #{tpu_custom_call.1} parent=79 // pred_fallthru
        _
      // Predicated region
      $region85: #{tpu_custom_call.1} parent=79 // pred_check
        %p515 = pneg %p238
      $region86: #{tpu_custom_call.1} parent=79 // pred_check_branch
        %517 = sbr.rel (%p515) target = $region88
      $region87: #{tpu_custom_call.1} parent=79 // pred_region
        %s518 = smul.u32 16, %s24
        %p519 = scmp.lt.s32.totalorder %s518, 31
        %s520 = scalar_select %p519, %s518, 31
        %s521 = smul.addr %s520, 8
        %s522 = scalar_lea.vmem %s9, %s521
        %s523 = smul.u32 16, %s24
      $region88: #{tpu_custom_call.1} parent=79 // pred_fallthru
        _
    $region80: #{tpu_custom_call.1} parent=5 // pred_fallthru
      _
    %p524 = scmp.le.s32.totalorder 1, %s24
    %p525 = scmp.lt.s32.totalorder %s24, 3
    %p526 = pnand %p524, %p525
    %p527 = pneg %p526
    // Predicated region
    $region89: #{tpu_custom_call.1} parent=5 // pred_check
      _
    $region90: #{tpu_custom_call.1} parent=5 // pred_check_branch
      %529 = sbr.rel (%p526) target = $region92
    $region91: #{tpu_custom_call.1} parent=5 // pred_region
      %s530 = ssub.s32 %s24, 1
      %s531 = smul.u32 16, %s29
      %p532 = scmp.lt.s32.totalorder %s531, 31
      %s533 = scalar_select %p532, %s531, 31
      %s534 = smul.addr %s533, 7
      %s535 = smul.addr %s534, 8
      %s536 = scalar_lea.vmem %s0, %s535
      %p537 = pneg %p50
      %p538 = pneg %p47
      %p539 = pneg %p71
      %p540 = pneg %p68
      %p541 = pneg %p92
      %p542 = pneg %p89
      %p543 = pneg %p113
      %p544 = pneg %p110
      %p545 = pneg %p134
      %p546 = pneg %p131
      %p547 = pneg %p155
      %p548 = pneg %p152
      %p549 = pneg %p176
      %p550 = pneg %p173
      %p551 = pneg %p197
      %p552 = pneg %p194
      %p553 = pneg %p218
      %p554 = pneg %p215
      %s555 = smul.u32 16, %s29
      %p556 = scmp.lt.s32.totalorder %s555, 31
      %s557 = scalar_select %p556, %s555, 31
      %s558 = smul.addr %s557, 8
      %s559 = scalar_lea.vmem %s9, %s558
      %p560 = pneg %p244
      %p561 = pneg %p241
      %p562 = pneg %p265
      %p563 = pneg %p262
      %p564 = pneg %p286
      %p565 = pneg %p283
      %p566 = pneg %p307
      %p567 = pneg %p304
      %p568 = pneg %p328
      %p569 = pneg %p325
      %p570 = pneg %p349
      %p571 = pneg %p346
      %p572 = pneg %p370
      %p573 = pneg %p367
      %p574 = pneg %p391
      %p575 = pneg %p388
      %p576 = pneg %p412
      %p577 = pneg %p409
      %p578 = pneg %p438
      %p579 = pneg %p435
      %s580 = smul.u32 16, %s29
      %p581 = scmp.lt.s32.totalorder %s580, 31
      %s582 = scalar_select %p581, %s580, 31
      %s583 = smul.addr %s582, 7
      %s584 = smul.addr %s583, 8
      %s585 = scalar_lea.vmem %s18, %s584
      %s586 = smul.u32 16, %s29
      %p587 = scmp.lt.s32.totalorder %s586, 31
      %s588 = scalar_select %p587, %s586, 31
      %s589 = smul.addr %s588, 7
      %s590 = smul.addr %s589, 8
      %s591 = scalar_lea.vmem %s0, %s590
      %s592 = smul.u32 16, %s29
      %s593 = smul.u32 16, %s29
      %p594 = scmp.lt.s32.totalorder %s593, 31
      %s595 = scalar_select %p594, %s593, 31
      %s596 = smul.addr %s595, 8
      %s597 = scalar_lea.vmem %s9, %s596
      %s598 = smul.u32 16, %s29
      %s599 = smul.u32 16, %s29
      %p600 = scmp.lt.s32.totalorder %s599, 31
      %s601 = scalar_select %p600, %s599, 31
      %s602 = smul.addr %s601, 7
      %s603 = smul.addr %s602, 8
      %s604 = scalar_lea.vmem %s18, %s603
      %s605 = smul.u32 16, %s29
      %v607 = vld [vmem:[%s591] sm:$0xff]
      %v608 = vld [vmem:[%s591 + $0x8] sm:$0xff]
      %v609 = vld [vmem:[%s591 + $0x10] sm:$0xff]
      %v610 = vld [vmem:[%s591 + $0x18] sm:$0xff]
      %v611 = vld [vmem:[%s591 + $0x20] sm:$0xff]
      %v612 = vld [vmem:[%s591 + $0x28] sm:$0xff]
      %v613 = vld [vmem:[%s591 + $0x30] sm:$0xff]
      %v614 = vld [vmem:[%s591 + $0x38] sm:$0xff]
      %v615 = vld [vmem:[%s591 + $0x40] sm:$0xff]
      %v616 = vld [vmem:[%s591 + $0x48] sm:$0xff]
      %v617 = vld [vmem:[%s591 + $0x50] sm:$0xff]
      %v618 = vld [vmem:[%s591 + $0x58] sm:$0xff]
      %v619 = vld [vmem:[%s591 + $0x60] sm:$0xff]
      %v620 = vld [vmem:[%s591 + $0x68] sm:$0xff]
      %v621 = vld [vmem:[%s591 + $0x70] sm:$0xff]
      %v622 = vld [vmem:[%s591 + $0x78] sm:$0xff]
      %v623 = vld [vmem:[%s591 + $0x80] sm:$0xff]
      %v624 = vld [vmem:[%s591 + $0x88] sm:$0xff]
      %v625 = vld [vmem:[%s591 + $0x90] sm:$0xff]
      %v626 = vld [vmem:[%s591 + $0x98] sm:$0xff]
      %v627 = vld [vmem:[%s591 + $0xa0] sm:$0xff]
      %v628 = vld [vmem:[%s591 + $0xa8] sm:$0xff]
      %v629 = vld [vmem:[%s591 + $0xb0] sm:$0xff]
      %v630 = vld [vmem:[%s591 + $0xb8] sm:$0xff]
      %v631 = vld [vmem:[%s591 + $0xc0] sm:$0xff]
      %v632 = vld [vmem:[%s591 + $0xc8] sm:$0xff]
      %v633 = vld [vmem:[%s591 + $0xd0] sm:$0xff]
      %v634 = vld [vmem:[%s591 + $0xd8] sm:$0xff]
      %v635 = vld [vmem:[%s591 + $0xe0] sm:$0xff]
      %v636 = vld [vmem:[%s591 + $0xe8] sm:$0xff]
      %v637 = vld [vmem:[%s591 + $0xf0] sm:$0xff]
      %v638 = vld [vmem:[%s591 + $0xf8] sm:$0xff]
      %v639 = vld [vmem:[%s591 + $0x100] sm:$0xff]
      %v640 = vld [vmem:[%s591 + $0x108] sm:$0xff]
      %v641 = vld [vmem:[%s591 + $0x110] sm:$0xff]
      %v642 = vld [vmem:[%s591 + $0x118] sm:$0xff]
      %v643 = vld [vmem:[%s591 + $0x120] sm:$0xff]
      %v644 = vld [vmem:[%s591 + $0x128] sm:$0xff]
      %v645 = vld [vmem:[%s591 + $0x130] sm:$0xff]
      %v646 = vld [vmem:[%s591 + $0x138] sm:$0xff]
      %v647 = vld [vmem:[%s591 + $0x140] sm:$0xff]
      %v648 = vld [vmem:[%s591 + $0x148] sm:$0xff]
      %v649 = vld [vmem:[%s591 + $0x150] sm:$0xff]
      %v650 = vld [vmem:[%s591 + $0x158] sm:$0xff]
      %v651 = vld [vmem:[%s591 + $0x160] sm:$0xff]
      %v652 = vld [vmem:[%s591 + $0x168] sm:$0xff]
      %v653 = vld [vmem:[%s591 + $0x170] sm:$0xff]
      %v654 = vld [vmem:[%s591 + $0x178] sm:$0xff]
      %v655 = vld [vmem:[%s591 + $0x180] sm:$0xff]
      %v656 = vld [vmem:[%s591 + $0x188] sm:$0xff]
      %v657 = vld [vmem:[%s591 + $0x190] sm:$0xff]
      %v658 = vld [vmem:[%s591 + $0x198] sm:$0xff]
      %v659 = vld [vmem:[%s591 + $0x1a0] sm:$0xff]
      %v660 = vld [vmem:[%s591 + $0x1a8] sm:$0xff]
      %v661 = vld [vmem:[%s591 + $0x1b0] sm:$0xff]
      %v662 = vld [vmem:[%s591 + $0x1b8] sm:$0xff]
      %v663 = vld [vmem:[%s591 + $0x1c0] sm:$0xff]
      %v664 = vld [vmem:[%s591 + $0x1c8] sm:$0xff]
      %v665 = vld [vmem:[%s591 + $0x1d0] sm:$0xff]
      %v666 = vld [vmem:[%s591 + $0x1d8] sm:$0xff]
      %v667 = vld [vmem:[%s591 + $0x1e0] sm:$0xff]
      %v668 = vld [vmem:[%s591 + $0x1e8] sm:$0xff]
      %v669 = vld [vmem:[%s591 + $0x1f0] sm:$0xff]
      %v670 = vld [vmem:[%s591 + $0x1f8] sm:$0xff]
      %v671 = vld [vmem:[%s591 + $0x200] sm:$0xff]
      %v672 = vld [vmem:[%s591 + $0x208] sm:$0xff]
      %v673 = vld [vmem:[%s591 + $0x210] sm:$0xff]
      %v674 = vld [vmem:[%s591 + $0x218] sm:$0xff]
      %v675 = vld [vmem:[%s591 + $0x220] sm:$0xff]
      %v676 = vld [vmem:[%s591 + $0x228] sm:$0xff]
      %v677 = vld [vmem:[%s591 + $0x230] sm:$0xff]
      %v678 = vld [vmem:[%s591 + $0x238] sm:$0xff]
      %v679 = vld [vmem:[%s591 + $0x240] sm:$0xff]
      %v680 = vld [vmem:[%s591 + $0x248] sm:$0xff]
      %v681 = vld [vmem:[%s591 + $0x250] sm:$0xff]
      %v682 = vld [vmem:[%s591 + $0x258] sm:$0xff]
      %v683 = vld [vmem:[%s591 + $0x260] sm:$0xff]
      %v684 = vld [vmem:[%s591 + $0x268] sm:$0xff]
      %v685 = vld [vmem:[%s591 + $0x270] sm:$0xff]
      %v686 = vld [vmem:[%s591 + $0x278] sm:$0xff]
      %v687 = vld [vmem:[%s591 + $0x280] sm:$0xff]
      %v688 = vld [vmem:[%s591 + $0x288] sm:$0xff]
      %v689 = vld [vmem:[%s591 + $0x290] sm:$0xff]
      %v690 = vld [vmem:[%s591 + $0x298] sm:$0xff]
      %v691 = vld [vmem:[%s591 + $0x2a0] sm:$0xff]
      %v692 = vld [vmem:[%s591 + $0x2a8] sm:$0xff]
      %v693 = vld [vmem:[%s591 + $0x2b0] sm:$0xff]
      %v694 = vld [vmem:[%s591 + $0x2b8] sm:$0xff]
      %v695 = vld [vmem:[%s591 + $0x2c0] sm:$0xff]
      %v696 = vld [vmem:[%s591 + $0x2c8] sm:$0xff]
      %v697 = vld [vmem:[%s591 + $0x2d0] sm:$0xff]
      %v698 = vld [vmem:[%s591 + $0x2d8] sm:$0xff]
      %v699 = vld [vmem:[%s591 + $0x2e0] sm:$0xff]
      %v700 = vld [vmem:[%s591 + $0x2e8] sm:$0xff]
      %v701 = vld [vmem:[%s591 + $0x2f0] sm:$0xff]
      %v702 = vld [vmem:[%s591 + $0x2f8] sm:$0xff]
      %v703 = vld [vmem:[%s591 + $0x300] sm:$0xff]
      %v704 = vld [vmem:[%s591 + $0x308] sm:$0xff]
      %v705 = vld [vmem:[%s591 + $0x310] sm:$0xff]
      %v706 = vld [vmem:[%s591 + $0x318] sm:$0xff]
      %v707 = vld [vmem:[%s591 + $0x320] sm:$0xff]
      %v708 = vld [vmem:[%s591 + $0x328] sm:$0xff]
      %v709 = vld [vmem:[%s591 + $0x330] sm:$0xff]
      %v710 = vld [vmem:[%s591 + $0x338] sm:$0xff]
      %v711 = vld [vmem:[%s591 + $0x340] sm:$0xff]
      %v712 = vld [vmem:[%s591 + $0x348] sm:$0xff]
      %v713 = vld [vmem:[%s591 + $0x350] sm:$0xff]
      %v714 = vld [vmem:[%s591 + $0x358] sm:$0xff]
      %v715 = vld [vmem:[%s591 + $0x360] sm:$0xff]
      %v716 = vld [vmem:[%s591 + $0x368] sm:$0xff]
      %v717 = vld [vmem:[%s591 + $0x370] sm:$0xff]
      %v718 = vld [vmem:[%s591 + $0x378] sm:$0xff]
      %v719 = vpack.c.bf16 %v614, %v607
      %v720 = vpack.c.bf16 %v615, %v608
      %v721 = vpack.c.bf16 %v616, %v609
      %v722 = vpack.c.bf16 %v617, %v610
      %v723 = vpack.c.bf16 %v618, %v611
      %v724 = vpack.c.bf16 %v619, %v612
      %v725 = vpack.c.bf16 %v620, %v613
      %v726 = vpack.c.bf16 %v628, %v621
      %v727 = vpack.c.bf16 %v629, %v622
      %v728 = vpack.c.bf16 %v630, %v623
      %v729 = vpack.c.bf16 %v631, %v624
      %v730 = vpack.c.bf16 %v632, %v625
      %v731 = vpack.c.bf16 %v633, %v626
      %v732 = vpack.c.bf16 %v634, %v627
      %v733 = vpack.c.bf16 %v642, %v635
      %v734 = vpack.c.bf16 %v643, %v636
      %v735 = vpack.c.bf16 %v644, %v637
      %v736 = vpack.c.bf16 %v645, %v638
      %v737 = vpack.c.bf16 %v646, %v639
      %v738 = vpack.c.bf16 %v647, %v640
      %v739 = vpack.c.bf16 %v648, %v641
      %v740 = vpack.c.bf16 %v656, %v649
      %v741 = vpack.c.bf16 %v657, %v650
      %v742 = vpack.c.bf16 %v658, %v651
      %v743 = vpack.c.bf16 %v659, %v652
      %v744 = vpack.c.bf16 %v660, %v653
      %v745 = vpack.c.bf16 %v661, %v654
      %v746 = vpack.c.bf16 %v662, %v655
      %v747 = vpack.c.bf16 %v670, %v663
      %v748 = vpack.c.bf16 %v671, %v664
      %v749 = vpack.c.bf16 %v672, %v665
      %v750 = vpack.c.bf16 %v673, %v666
      %v751 = vpack.c.bf16 %v674, %v667
      %v752 = vpack.c.bf16 %v675, %v668
      %v753 = vpack.c.bf16 %v676, %v669
      %v754 = vpack.c.bf16 %v684, %v677
      %v755 = vpack.c.bf16 %v685, %v678
      %v756 = vpack.c.bf16 %v686, %v679
      %v757 = vpack.c.bf16 %v687, %v680
      %v758 = vpack.c.bf16 %v688, %v681
      %v759 = vpack.c.bf16 %v689, %v682
      %v760 = vpack.c.bf16 %v690, %v683
      %v761 = vpack.c.bf16 %v698, %v691
      %v762 = vpack.c.bf16 %v699, %v692
      %v763 = vpack.c.bf16 %v700, %v693
      %v764 = vpack.c.bf16 %v701, %v694
      %v765 = vpack.c.bf16 %v702, %v695
      %v766 = vpack.c.bf16 %v703, %v696
      %v767 = vpack.c.bf16 %v704, %v697
      %v768 = vpack.c.bf16 %v712, %v705
      %v769 = vpack.c.bf16 %v713, %v706
      %v770 = vpack.c.bf16 %v714, %v707
      %v771 = vpack.c.bf16 %v715, %v708
      %v772 = vpack.c.bf16 %v716, %v709
      %v773 = vpack.c.bf16 %v717, %v710
      %v774 = vpack.c.bf16 %v718, %v711
      %v775 = vld [vmem:[%s1] sm:$0xff]
      %v776 = vld [vmem:[%s1 + $0x8] sm:$0xff]
      %v777 = vld [vmem:[%s1 + $0x10] sm:$0xff]
      %v778 = vld [vmem:[%s1 + $0x18] sm:$0xff]
      %v779 = vld [vmem:[%s1 + $0x20] sm:$0xff]
      %v780 = vld [vmem:[%s1 + $0x28] sm:$0xff]
      %v781 = vld [vmem:[%s1 + $0x30] sm:$0xff]
      %v782 = vld [vmem:[%s1 + $0x38] sm:$0xff]
      %v783 = vld [vmem:[%s1 + $0x40] sm:$0xff]
      %v784 = vld [vmem:[%s1 + $0x48] sm:$0xff]
      %v785 = vld [vmem:[%s1 + $0x50] sm:$0xff]
      %v786 = vld [vmem:[%s1 + $0x58] sm:$0xff]
      %v787 = vld [vmem:[%s1 + $0x60] sm:$0xff]
      %v788 = vld [vmem:[%s1 + $0x68] sm:$0xff]
      %v789 = vld [vmem:[%s1 + $0x70] sm:$0xff]
      %v790 = vld [vmem:[%s1 + $0x78] sm:$0xff]
      %v791 = vld [vmem:[%s1 + $0x80] sm:$0xff]
      %v792 = vld [vmem:[%s1 + $0x88] sm:$0xff]
      %v793 = vld [vmem:[%s1 + $0x90] sm:$0xff]
      %v794 = vld [vmem:[%s1 + $0x98] sm:$0xff]
      %v795 = vld [vmem:[%s1 + $0xa0] sm:$0xff]
      %v796 = vld [vmem:[%s1 + $0xa8] sm:$0xff]
      %v797 = vld [vmem:[%s1 + $0xb0] sm:$0xff]
      %v798 = vld [vmem:[%s1 + $0xb8] sm:$0xff]
      %v799 = vld [vmem:[%s1 + $0xc0] sm:$0xff]
      %v800 = vld [vmem:[%s1 + $0xc8] sm:$0xff]
      %v801 = vld [vmem:[%s1 + $0xd0] sm:$0xff]
      %v802 = vld [vmem:[%s1 + $0xd8] sm:$0xff]
      %v803 = vld [vmem:[%s1 + $0xe0] sm:$0xff]
      %v804 = vld [vmem:[%s1 + $0xe8] sm:$0xff]
      %v805 = vld [vmem:[%s1 + $0xf0] sm:$0xff]
      %v806 = vld [vmem:[%s1 + $0xf8] sm:$0xff]
      %v807 = vld [vmem:[%s1 + $0x100] sm:$0xff]
      %v808 = vld [vmem:[%s1 + $0x108] sm:$0xff]
      %v809 = vld [vmem:[%s1 + $0x110] sm:$0xff]
      %v810 = vld [vmem:[%s1 + $0x118] sm:$0xff]
      %v811 = vld [vmem:[%s1 + $0x120] sm:$0xff]
      %v812 = vld [vmem:[%s1 + $0x128] sm:$0xff]
      %v813 = vld [vmem:[%s1 + $0x130] sm:$0xff]
      %v814 = vld [vmem:[%s1 + $0x138] sm:$0xff]
      %v815 = vld [vmem:[%s1 + $0x140] sm:$0xff]
      %v816 = vld [vmem:[%s1 + $0x148] sm:$0xff]
      %v817 = vld [vmem:[%s1 + $0x150] sm:$0xff]
      %v818 = vld [vmem:[%s1 + $0x158] sm:$0xff]
      %v819 = vld [vmem:[%s1 + $0x160] sm:$0xff]
      %v820 = vld [vmem:[%s1 + $0x168] sm:$0xff]
      %v821 = vld [vmem:[%s1 + $0x170] sm:$0xff]
      %v822 = vld [vmem:[%s1 + $0x178] sm:$0xff]
      %v823 = vld [vmem:[%s1 + $0x180] sm:$0xff]
      %v824 = vld [vmem:[%s1 + $0x188] sm:$0xff]
      %v825 = vld [vmem:[%s1 + $0x190] sm:$0xff]
      %v826 = vld [vmem:[%s1 + $0x198] sm:$0xff]
      %v827 = vld [vmem:[%s1 + $0x1a0] sm:$0xff]
      %v828 = vld [vmem:[%s1 + $0x1a8] sm:$0xff]
      %v829 = vld [vmem:[%s1 + $0x1b0] sm:$0xff]
      %v830 = vld [vmem:[%s1 + $0x1b8] sm:$0xff]
      %v831 = vld [vmem:[%s1 + $0x1c0] sm:$0xff]
      %v832 = vld [vmem:[%s1 + $0x1c8] sm:$0xff]
      %v833 = vld [vmem:[%s1 + $0x1d0] sm:$0xff]
      %v834 = vld [vmem:[%s1 + $0x1d8] sm:$0xff]
      %v835 = vld [vmem:[%s1 + $0x1e0] sm:$0xff]
      %v836 = vld [vmem:[%s1 + $0x1e8] sm:$0xff]
      %v837 = vld [vmem:[%s1 + $0x1f0] sm:$0xff]
      %v838 = vld [vmem:[%s1 + $0x1f8] sm:$0xff]
      %v839 = vld [vmem:[%s1 + $0x200] sm:$0xff]
      %v840 = vld [vmem:[%s1 + $0x208] sm:$0xff]
      %v841 = vld [vmem:[%s1 + $0x210] sm:$0xff]
      %v842 = vld [vmem:[%s1 + $0x218] sm:$0xff]
      %v843 = vld [vmem:[%s1 + $0x220] sm:$0xff]
      %v844 = vld [vmem:[%s1 + $0x228] sm:$0xff]
      %v845 = vld [vmem:[%s1 + $0x230] sm:$0xff]
      %v846 = vld [vmem:[%s1 + $0x238] sm:$0xff]
      %v847 = vld [vmem:[%s1 + $0x240] sm:$0xff]
      %v848 = vld [vmem:[%s1 + $0x248] sm:$0xff]
      %v849 = vld [vmem:[%s1 + $0x250] sm:$0xff]
      %v850 = vld [vmem:[%s1 + $0x258] sm:$0xff]
      %v851 = vld [vmem:[%s1 + $0x260] sm:$0xff]
      %v852 = vld [vmem:[%s1 + $0x268] sm:$0xff]
      %v853 = vld [vmem:[%s1 + $0x270] sm:$0xff]
      %v854 = vld [vmem:[%s1 + $0x278] sm:$0xff]
      %v855 = vld [vmem:[%s1 + $0x280] sm:$0xff]
      %v856 = vld [vmem:[%s1 + $0x288] sm:$0xff]
      %v857 = vld [vmem:[%s1 + $0x290] sm:$0xff]
      %v858 = vld [vmem:[%s1 + $0x298] sm:$0xff]
      %v859 = vld [vmem:[%s1 + $0x2a0] sm:$0xff]
      %v860 = vld [vmem:[%s1 + $0x2a8] sm:$0xff]
      %v861 = vld [vmem:[%s1 + $0x2b0] sm:$0xff]
      %v862 = vld [vmem:[%s1 + $0x2b8] sm:$0xff]
      %v863 = vld [vmem:[%s1 + $0x2c0] sm:$0xff]
      %v864 = vld [vmem:[%s1 + $0x2c8] sm:$0xff]
      %v865 = vld [vmem:[%s1 + $0x2d0] sm:$0xff]
      %v866 = vld [vmem:[%s1 + $0x2d8] sm:$0xff]
      %v867 = vld [vmem:[%s1 + $0x2e0] sm:$0xff]
      %v868 = vld [vmem:[%s1 + $0x2e8] sm:$0xff]
      %v869 = vld [vmem:[%s1 + $0x2f0] sm:$0xff]
      %v870 = vld [vmem:[%s1 + $0x2f8] sm:$0xff]
      %v871 = vld [vmem:[%s1 + $0x300] sm:$0xff]
      %v872 = vld [vmem:[%s1 + $0x308] sm:$0xff]
      %v873 = vld [vmem:[%s1 + $0x310] sm:$0xff]
      %v874 = vld [vmem:[%s1 + $0x318] sm:$0xff]
      %v875 = vld [vmem:[%s1 + $0x320] sm:$0xff]
      %v876 = vld [vmem:[%s1 + $0x328] sm:$0xff]
      %v877 = vld [vmem:[%s1 + $0x330] sm:$0xff]
      %v878 = vld [vmem:[%s1 + $0x338] sm:$0xff]
      %v879 = vld [vmem:[%s1 + $0x340] sm:$0xff]
      %v880 = vld [vmem:[%s1 + $0x348] sm:$0xff]
      %v881 = vld [vmem:[%s1 + $0x350] sm:$0xff]
      %v882 = vld [vmem:[%s1 + $0x358] sm:$0xff]
      %v883 = vld [vmem:[%s1 + $0x360] sm:$0xff]
      %v884 = vld [vmem:[%s1 + $0x368] sm:$0xff]
      %v885 = vld [vmem:[%s1 + $0x370] sm:$0xff]
      %v886 = vld [vmem:[%s1 + $0x378] sm:$0xff]
      %v887 = vld [vmem:[%s1 + $0x380] sm:$0xff]
      %v888 = vld [vmem:[%s1 + $0x388] sm:$0xff]
      %v889 = vld [vmem:[%s1 + $0x390] sm:$0xff]
      %v890 = vld [vmem:[%s1 + $0x398] sm:$0xff]
      %v891 = vld [vmem:[%s1 + $0x3a0] sm:$0xff]
      %v892 = vld [vmem:[%s1 + $0x3a8] sm:$0xff]
      %v893 = vld [vmem:[%s1 + $0x3b0] sm:$0xff]
      %v894 = vld [vmem:[%s1 + $0x3b8] sm:$0xff]
      %v895 = vld [vmem:[%s1 + $0x3c0] sm:$0xff]
      %v896 = vld [vmem:[%s1 + $0x3c8] sm:$0xff]
      %v897 = vld [vmem:[%s1 + $0x3d0] sm:$0xff]
      %v898 = vld [vmem:[%s1 + $0x3d8] sm:$0xff]
      %v899 = vld [vmem:[%s1 + $0x3e0] sm:$0xff]
      %v900 = vld [vmem:[%s1 + $0x3e8] sm:$0xff]
      %v901 = vld [vmem:[%s1 + $0x3f0] sm:$0xff]
      %v902 = vld [vmem:[%s1 + $0x3f8] sm:$0xff]
      %v903 = vld [vmem:[%s1 + $0x400] sm:$0xff]
      %v904 = vld [vmem:[%s1 + $0x408] sm:$0xff]
      %v905 = vld [vmem:[%s1 + $0x410] sm:$0xff]
      %v906 = vld [vmem:[%s1 + $0x418] sm:$0xff]
      %v907 = vld [vmem:[%s1 + $0x420] sm:$0xff]
      %v908 = vld [vmem:[%s1 + $0x428] sm:$0xff]
      %v909 = vld [vmem:[%s1 + $0x430] sm:$0xff]
      %v910 = vld [vmem:[%s1 + $0x438] sm:$0xff]
      %v911 = vld [vmem:[%s1 + $0x440] sm:$0xff]
      %v912 = vld [vmem:[%s1 + $0x448] sm:$0xff]
      %v913 = vld [vmem:[%s1 + $0x450] sm:$0xff]
      %v914 = vld [vmem:[%s1 + $0x458] sm:$0xff]
      %v915 = vld [vmem:[%s1 + $0x460] sm:$0xff]
      %v916 = vld [vmem:[%s1 + $0x468] sm:$0xff]
      %v917 = vld [vmem:[%s1 + $0x470] sm:$0xff]
      %v918 = vld [vmem:[%s1 + $0x478] sm:$0xff]
      %v919 = vld [vmem:[%s1 + $0x480] sm:$0xff]
      %v920 = vld [vmem:[%s1 + $0x488] sm:$0xff]
      %v921 = vld [vmem:[%s1 + $0x490] sm:$0xff]
      %v922 = vld [vmem:[%s1 + $0x498] sm:$0xff]
      %v923 = vld [vmem:[%s1 + $0x4a0] sm:$0xff]
      %v924 = vld [vmem:[%s1 + $0x4a8] sm:$0xff]
      %v925 = vld [vmem:[%s1 + $0x4b0] sm:$0xff]
      %v926 = vld [vmem:[%s1 + $0x4b8] sm:$0xff]
      %v927 = vld [vmem:[%s1 + $0x4c0] sm:$0xff]
      %v928 = vld [vmem:[%s1 + $0x4c8] sm:$0xff]
      %v929 = vld [vmem:[%s1 + $0x4d0] sm:$0xff]
      %v930 = vld [vmem:[%s1 + $0x4d8] sm:$0xff]
      %v931 = vld [vmem:[%s1 + $0x4e0] sm:$0xff]
      %v932 = vld [vmem:[%s1 + $0x4e8] sm:$0xff]
      %v933 = vld [vmem:[%s1 + $0x4f0] sm:$0xff]
      %v934 = vld [vmem:[%s1 + $0x4f8] sm:$0xff]
      %v935 = vld [vmem:[%s1 + $0x500] sm:$0xff]
      %v936 = vld [vmem:[%s1 + $0x508] sm:$0xff]
      %v937 = vld [vmem:[%s1 + $0x510] sm:$0xff]
      %v938 = vld [vmem:[%s1 + $0x518] sm:$0xff]
      %v939 = vld [vmem:[%s1 + $0x520] sm:$0xff]
      %v940 = vld [vmem:[%s1 + $0x528] sm:$0xff]
      %v941 = vld [vmem:[%s1 + $0x530] sm:$0xff]
      %v942 = vld [vmem:[%s1 + $0x538] sm:$0xff]
      %v943 = vld [vmem:[%s1 + $0x540] sm:$0xff]
      %v944 = vld [vmem:[%s1 + $0x548] sm:$0xff]
      %v945 = vld [vmem:[%s1 + $0x550] sm:$0xff]
      %v946 = vld [vmem:[%s1 + $0x558] sm:$0xff]
      %v947 = vld [vmem:[%s1 + $0x560] sm:$0xff]
      %v948 = vld [vmem:[%s1 + $0x568] sm:$0xff]
      %v949 = vld [vmem:[%s1 + $0x570] sm:$0xff]
      %v950 = vld [vmem:[%s1 + $0x578] sm:$0xff]
      %v951 = vld [vmem:[%s1 + $0x580] sm:$0xff]
      %v952 = vld [vmem:[%s1 + $0x588] sm:$0xff]
      %v953 = vld [vmem:[%s1 + $0x590] sm:$0xff]
      %v954 = vld [vmem:[%s1 + $0x598] sm:$0xff]
      %v955 = vld [vmem:[%s1 + $0x5a0] sm:$0xff]
      %v956 = vld [vmem:[%s1 + $0x5a8] sm:$0xff]
      %v957 = vld [vmem:[%s1 + $0x5b0] sm:$0xff]
      %v958 = vld [vmem:[%s1 + $0x5b8] sm:$0xff]
      %v959 = vld [vmem:[%s1 + $0x5c0] sm:$0xff]
      %v960 = vld [vmem:[%s1 + $0x5c8] sm:$0xff]
      %v961 = vld [vmem:[%s1 + $0x5d0] sm:$0xff]
      %v962 = vld [vmem:[%s1 + $0x5d8] sm:$0xff]
      %v963 = vld [vmem:[%s1 + $0x5e0] sm:$0xff]
      %v964 = vld [vmem:[%s1 + $0x5e8] sm:$0xff]
      %v965 = vld [vmem:[%s1 + $0x5f0] sm:$0xff]
      %v966 = vld [vmem:[%s1 + $0x5f8] sm:$0xff]
      %v967 = vld [vmem:[%s1 + $0x600] sm:$0xff]
      %v968 = vld [vmem:[%s1 + $0x608] sm:$0xff]
      %v969 = vld [vmem:[%s1 + $0x610] sm:$0xff]
      %v970 = vld [vmem:[%s1 + $0x618] sm:$0xff]
      %v971 = vld [vmem:[%s2] sm:$0xf]
      %v973 = vlaneseq
      %v974 = vshrl.u32 %v973, 7
      %v975 = vsub.s32 0, %v974
      %v976 = vrot.slane %v971, %v975
      %v977 = vlaneseq
      %v978 = vshrl.u32 %v977, 7
      %v979 = vsub.s32 1, %v978
      %v980 = vrot.slane %v971, %v979
      %v981 = vlaneseq
      %v982 = vshrl.u32 %v981, 7
      %v983 = vsub.s32 2, %v982
      %v984 = vrot.slane %v971, %v983
      %v985 = vlaneseq
      %v986 = vshrl.u32 %v985, 7
      %v987 = vsub.s32 3, %v986
      %v988 = vrot.slane %v971, %v987
      %v1189 = vunpack.c.l.b16 %v775
      %v1190 = vunpack.c.h.b16 %v775
      %v1191 = vunpack.c.l.b16 %v776
      %v1192 = vunpack.c.h.b16 %v776
      %v1193 = vunpack.c.l.b16 %v777
      %v1194 = vunpack.c.h.b16 %v777
      %v1195 = vunpack.c.l.b16 %v778
      %v1196 = vunpack.c.h.b16 %v778
      %v1197 = vunpack.c.l.b16 %v779
      %v1198 = vunpack.c.h.b16 %v779
      %v1199 = vunpack.c.l.b16 %v780
      %v1200 = vunpack.c.h.b16 %v780
      %v1201 = vunpack.c.l.b16 %v781
      %v1202 = vunpack.c.h.b16 %v781
      %v1203 = vunpack.c.l.b16 %v782
      %v1204 = vunpack.c.h.b16 %v782
      %v1205 = vunpack.c.l.b16 %v783
      %v1206 = vunpack.c.h.b16 %v783
      %v1207 = vunpack.c.l.b16 %v784
      %v1208 = vunpack.c.h.b16 %v784
      %v1209 = vunpack.c.l.b16 %v785
      %v1210 = vunpack.c.h.b16 %v785
      %v1211 = vunpack.c.l.b16 %v786
      %v1212 = vunpack.c.h.b16 %v786
      %v1213 = vunpack.c.l.b16 %v787
      %v1214 = vunpack.c.h.b16 %v787
      %v1215 = vunpack.c.l.b16 %v788
      %v1216 = vunpack.c.h.b16 %v788
      %v1217 = vunpack.c.l.b16 %v789
      %v1218 = vunpack.c.h.b16 %v789
      %v1219 = vunpack.c.l.b16 %v790
      %v1220 = vunpack.c.h.b16 %v790
      %v1221 = vunpack.c.l.b16 %v791
      %v1222 = vunpack.c.h.b16 %v791
      %v1223 = vunpack.c.l.b16 %v792
      %v1224 = vunpack.c.h.b16 %v792
      %v1225 = vunpack.c.l.b16 %v793
      %v1226 = vunpack.c.h.b16 %v793
      %v1227 = vunpack.c.l.b16 %v794
      %v1228 = vunpack.c.h.b16 %v794
      %v1229 = vunpack.c.l.b16 %v795
      %v1230 = vunpack.c.h.b16 %v795
      %v1231 = vunpack.c.l.b16 %v796
      %v1232 = vunpack.c.h.b16 %v796
      %v1233 = vunpack.c.l.b16 %v797
      %v1234 = vunpack.c.h.b16 %v797
      %v1235 = vunpack.c.l.b16 %v798
      %v1236 = vunpack.c.h.b16 %v798
      %v1237 = vunpack.c.l.b16 %v799
      %v1238 = vunpack.c.h.b16 %v799
      %v1239 = vunpack.c.l.b16 %v800
      %v1240 = vunpack.c.h.b16 %v800
      %v1241 = vunpack.c.l.b16 %v801
      %v1242 = vunpack.c.h.b16 %v801
      %v1243 = vunpack.c.l.b16 %v802
      %v1244 = vunpack.c.h.b16 %v802
      %v1245 = vunpack.c.l.b16 %v803
      %v1246 = vunpack.c.h.b16 %v803
      %v1247 = vunpack.c.l.b16 %v804
      %v1248 = vunpack.c.h.b16 %v804
      %v1249 = vunpack.c.l.b16 %v805
      %v1250 = vunpack.c.h.b16 %v805
      %v1251 = vunpack.c.l.b16 %v806
      %v1252 = vunpack.c.h.b16 %v806
      %v1253 = vunpack.c.l.b16 %v807
      %v1254 = vunpack.c.h.b16 %v807
      %v1255 = vunpack.c.l.b16 %v808
      %v1256 = vunpack.c.h.b16 %v808
      %v1257 = vunpack.c.l.b16 %v809
      %v1258 = vunpack.c.h.b16 %v809
      %v1259 = vunpack.c.l.b16 %v810
      %v1260 = vunpack.c.h.b16 %v810
      %v1261 = vunpack.c.l.b16 %v811
      %v1262 = vunpack.c.h.b16 %v811
      %v1263 = vunpack.c.l.b16 %v812
      %v1264 = vunpack.c.h.b16 %v812
      %v1265 = vunpack.c.l.b16 %v813
      %v1266 = vunpack.c.h.b16 %v813
      %v1267 = vunpack.c.l.b16 %v814
      %v1268 = vunpack.c.h.b16 %v814
      %v1269 = vunpack.c.l.b16 %v815
      %v1270 = vunpack.c.h.b16 %v815
      %v1271 = vunpack.c.l.b16 %v816
      %v1272 = vunpack.c.h.b16 %v816
      %v1273 = vunpack.c.l.b16 %v817
      %v1274 = vunpack.c.h.b16 %v817
      %v1275 = vunpack.c.l.b16 %v818
      %v1276 = vunpack.c.h.b16 %v818
      %v1277 = vunpack.c.l.b16 %v819
      %v1278 = vunpack.c.h.b16 %v819
      %v1279 = vunpack.c.l.b16 %v820
      %v1280 = vunpack.c.h.b16 %v820
      %v1281 = vunpack.c.l.b16 %v821
      %v1282 = vunpack.c.h.b16 %v821
      %v1283 = vunpack.c.l.b16 %v822
      %v1284 = vunpack.c.h.b16 %v822
      %v1285 = vunpack.c.l.b16 %v823
      %v1286 = vunpack.c.h.b16 %v823
      %v1287 = vunpack.c.l.b16 %v824
      %v1288 = vunpack.c.h.b16 %v824
      %v1289 = vunpack.c.l.b16 %v825
      %v1290 = vunpack.c.h.b16 %v825
      %v1291 = vunpack.c.l.b16 %v826
      %v1292 = vunpack.c.h.b16 %v826
      %v1293 = vunpack.c.l.b16 %v827
      %v1294 = vunpack.c.h.b16 %v827
      %v1295 = vunpack.c.l.b16 %v828
      %v1296 = vunpack.c.h.b16 %v828
      %v1297 = vunpack.c.l.b16 %v829
      %v1298 = vunpack.c.h.b16 %v829
      %v1299 = vunpack.c.l.b16 %v830
      %v1300 = vunpack.c.h.b16 %v830
      %v1301 = vunpack.c.l.b16 %v831
      %v1302 = vunpack.c.h.b16 %v831
      %v1303 = vunpack.c.l.b16 %v832
      %v1304 = vunpack.c.h.b16 %v832
      %v1305 = vunpack.c.l.b16 %v833
      %v1306 = vunpack.c.h.b16 %v833
      %v1307 = vunpack.c.l.b16 %v834
      %v1308 = vunpack.c.h.b16 %v834
      %v1309 = vunpack.c.l.b16 %v835
      %v1310 = vunpack.c.h.b16 %v835
      %v1311 = vunpack.c.l.b16 %v836
      %v1312 = vunpack.c.h.b16 %v836
      %v1313 = vunpack.c.l.b16 %v837
      %v1314 = vunpack.c.h.b16 %v837
      %v1315 = vunpack.c.l.b16 %v838
      %v1316 = vunpack.c.h.b16 %v838
      %v1317 = vunpack.c.l.b16 %v839
      %v1318 = vunpack.c.h.b16 %v839
      %v1319 = vunpack.c.l.b16 %v840
      %v1320 = vunpack.c.h.b16 %v840
      %v1321 = vunpack.c.l.b16 %v841
      %v1322 = vunpack.c.h.b16 %v841
      %v1323 = vunpack.c.l.b16 %v842
      %v1324 = vunpack.c.h.b16 %v842
      %v1325 = vunpack.c.l.b16 %v843
      %v1326 = vunpack.c.h.b16 %v843
      %v1327 = vunpack.c.l.b16 %v844
      %v1328 = vunpack.c.h.b16 %v844
      %v1329 = vunpack.c.l.b16 %v845
      %v1330 = vunpack.c.h.b16 %v845
      %v1331 = vunpack.c.l.b16 %v846
      %v1332 = vunpack.c.h.b16 %v846
      %v1333 = vunpack.c.l.b16 %v847
      %v1334 = vunpack.c.h.b16 %v847
      %v1335 = vunpack.c.l.b16 %v848
      %v1336 = vunpack.c.h.b16 %v848
      %v1337 = vunpack.c.l.b16 %v849
      %v1338 = vunpack.c.h.b16 %v849
      %v1339 = vunpack.c.l.b16 %v850
      %v1340 = vunpack.c.h.b16 %v850
      %v1341 = vunpack.c.l.b16 %v851
      %v1342 = vunpack.c.h.b16 %v851
      %v1343 = vunpack.c.l.b16 %v852
      %v1344 = vunpack.c.h.b16 %v852
      %v1345 = vunpack.c.l.b16 %v853
      %v1346 = vunpack.c.h.b16 %v853
      %v1347 = vunpack.c.l.b16 %v854
      %v1348 = vunpack.c.h.b16 %v854
      %v1349 = vunpack.c.l.b16 %v855
      %v1350 = vunpack.c.h.b16 %v855
      %v1351 = vunpack.c.l.b16 %v856
      %v1352 = vunpack.c.h.b16 %v856
      %v1353 = vunpack.c.l.b16 %v857
      %v1354 = vunpack.c.h.b16 %v857
      %v1355 = vunpack.c.l.b16 %v858
      %v1356 = vunpack.c.h.b16 %v858
      %v1357 = vunpack.c.l.b16 %v859
      %v1358 = vunpack.c.h.b16 %v859
      %v1359 = vunpack.c.l.b16 %v860
      %v1360 = vunpack.c.h.b16 %v860
      %v1361 = vunpack.c.l.b16 %v861
      %v1362 = vunpack.c.h.b16 %v861
      %v1363 = vunpack.c.l.b16 %v862
      %v1364 = vunpack.c.h.b16 %v862
      %v1365 = vunpack.c.l.b16 %v863
      %v1366 = vunpack.c.h.b16 %v863
      %v1367 = vunpack.c.l.b16 %v864
      %v1368 = vunpack.c.h.b16 %v864
      %v1369 = vunpack.c.l.b16 %v865
      %v1370 = vunpack.c.h.b16 %v865
      %v1371 = vunpack.c.l.b16 %v866
      %v1372 = vunpack.c.h.b16 %v866
      %v1373 = vunpack.c.l.b16 %v867
      %v1374 = vunpack.c.h.b16 %v867
      %v1375 = vunpack.c.l.b16 %v868
      %v1376 = vunpack.c.h.b16 %v868
      %v1377 = vunpack.c.l.b16 %v869
      %v1378 = vunpack.c.h.b16 %v869
      %v1379 = vunpack.c.l.b16 %v870
      %v1380 = vunpack.c.h.b16 %v870
      %v1381 = vunpack.c.l.b16 %v871
      %v1382 = vunpack.c.h.b16 %v871
      %v1383 = vunpack.c.l.b16 %v872
      %v1384 = vunpack.c.h.b16 %v872
      %v1385 = vunpack.c.l.b16 %v873
      %v1386 = vunpack.c.h.b16 %v873
      %v1387 = vunpack.c.l.b16 %v874
      %v1388 = vunpack.c.h.b16 %v874
      %v1389 = vunpack.c.l.b16 %v875
      %v1390 = vunpack.c.h.b16 %v875
      %v1391 = vunpack.c.l.b16 %v876
      %v1392 = vunpack.c.h.b16 %v876
      %v1393 = vunpack.c.l.b16 %v877
      %v1394 = vunpack.c.h.b16 %v877
      %v1395 = vunpack.c.l.b16 %v878
      %v1396 = vunpack.c.h.b16 %v878
      %v1397 = vunpack.c.l.b16 %v879
      %v1398 = vunpack.c.h.b16 %v879
      %v1399 = vunpack.c.l.b16 %v880
      %v1400 = vunpack.c.h.b16 %v880
      %v1401 = vunpack.c.l.b16 %v881
      %v1402 = vunpack.c.h.b16 %v881
      %v1403 = vunpack.c.l.b16 %v882
      %v1404 = vunpack.c.h.b16 %v882
      %v1405 = vunpack.c.l.b16 %v883
      %v1406 = vunpack.c.h.b16 %v883
      %v1407 = vunpack.c.l.b16 %v884
      %v1408 = vunpack.c.h.b16 %v884
      %v1409 = vunpack.c.l.b16 %v885
      %v1410 = vunpack.c.h.b16 %v885
      %v1411 = vunpack.c.l.b16 %v886
      %v1412 = vunpack.c.h.b16 %v886
      %v1413 = vunpack.c.l.b16 %v887
      %v1414 = vunpack.c.h.b16 %v887
      %v1415 = vunpack.c.l.b16 %v888
      %v1416 = vunpack.c.h.b16 %v888
      %v1417 = vunpack.c.l.b16 %v889
      %v1418 = vunpack.c.h.b16 %v889
      %v1419 = vunpack.c.l.b16 %v890
      %v1420 = vunpack.c.h.b16 %v890
      %v1421 = vunpack.c.l.b16 %v891
      %v1422 = vunpack.c.h.b16 %v891
      %v1423 = vunpack.c.l.b16 %v892
      %v1424 = vunpack.c.h.b16 %v892
      %v1425 = vunpack.c.l.b16 %v893
      %v1426 = vunpack.c.h.b16 %v893
      %v1427 = vunpack.c.l.b16 %v894
      %v1428 = vunpack.c.h.b16 %v894
      %v1429 = vunpack.c.l.b16 %v895
      %v1430 = vunpack.c.h.b16 %v895
      %v1431 = vunpack.c.l.b16 %v896
      %v1432 = vunpack.c.h.b16 %v896
      %v1433 = vunpack.c.l.b16 %v897
      %v1434 = vunpack.c.h.b16 %v897
      %v1435 = vunpack.c.l.b16 %v898
      %v1436 = vunpack.c.h.b16 %v898
      %v1437 = vunpack.c.l.b16 %v899
      %v1438 = vunpack.c.h.b16 %v899
      %v1439 = vunpack.c.l.b16 %v900
      %v1440 = vunpack.c.h.b16 %v900
      %v1441 = vunpack.c.l.b16 %v901
      %v1442 = vunpack.c.h.b16 %v901
      %v1443 = vunpack.c.l.b16 %v902
      %v1444 = vunpack.c.h.b16 %v902
      %v1445 = vunpack.c.l.b16 %v903
      %v1446 = vunpack.c.h.b16 %v903
      %v1447 = vunpack.c.l.b16 %v904
      %v1448 = vunpack.c.h.b16 %v904
      %v1449 = vunpack.c.l.b16 %v905
      %v1450 = vunpack.c.h.b16 %v905
      %v1451 = vunpack.c.l.b16 %v906
      %v1452 = vunpack.c.h.b16 %v906
      %v1453 = vunpack.c.l.b16 %v907
      %v1454 = vunpack.c.h.b16 %v907
      %v1455 = vunpack.c.l.b16 %v908
      %v1456 = vunpack.c.h.b16 %v908
      %v1457 = vunpack.c.l.b16 %v909
      %v1458 = vunpack.c.h.b16 %v909
      %v1459 = vunpack.c.l.b16 %v910
      %v1460 = vunpack.c.h.b16 %v910
      %v1461 = vunpack.c.l.b16 %v911
      %v1462 = vunpack.c.h.b16 %v911
      %v1463 = vunpack.c.l.b16 %v912
      %v1464 = vunpack.c.h.b16 %v912
      %v1465 = vunpack.c.l.b16 %v913
      %v1466 = vunpack.c.h.b16 %v913
      %v1467 = vunpack.c.l.b16 %v914
      %v1468 = vunpack.c.h.b16 %v914
      %v1469 = vunpack.c.l.b16 %v915
      %v1470 = vunpack.c.h.b16 %v915
      %v1471 = vunpack.c.l.b16 %v916
      %v1472 = vunpack.c.h.b16 %v916
      %v1473 = vunpack.c.l.b16 %v917
      %v1474 = vunpack.c.h.b16 %v917
      %v1475 = vunpack.c.l.b16 %v918
      %v1476 = vunpack.c.h.b16 %v918
      %v1477 = vunpack.c.l.b16 %v919
      %v1478 = vunpack.c.h.b16 %v919
      %v1479 = vunpack.c.l.b16 %v920
      %v1480 = vunpack.c.h.b16 %v920
      %v1481 = vunpack.c.l.b16 %v921
      %v1482 = vunpack.c.h.b16 %v921
      %v1483 = vunpack.c.l.b16 %v922
      %v1484 = vunpack.c.h.b16 %v922
      %v1485 = vunpack.c.l.b16 %v923
      %v1486 = vunpack.c.h.b16 %v923
      %v1487 = vunpack.c.l.b16 %v924
      %v1488 = vunpack.c.h.b16 %v924
      %v1489 = vunpack.c.l.b16 %v925
      %v1490 = vunpack.c.h.b16 %v925
      %v1491 = vunpack.c.l.b16 %v926
      %v1492 = vunpack.c.h.b16 %v926
      %v1493 = vunpack.c.l.b16 %v927
      %v1494 = vunpack.c.h.b16 %v927
      %v1495 = vunpack.c.l.b16 %v928
      %v1496 = vunpack.c.h.b16 %v928
      %v1497 = vunpack.c.l.b16 %v929
      %v1498 = vunpack.c.h.b16 %v929
      %v1499 = vunpack.c.l.b16 %v930
      %v1500 = vunpack.c.h.b16 %v930
      %v1501 = vunpack.c.l.b16 %v931
      %v1502 = vunpack.c.h.b16 %v931
      %v1503 = vunpack.c.l.b16 %v932
      %v1504 = vunpack.c.h.b16 %v932
      %v1505 = vunpack.c.l.b16 %v933
      %v1506 = vunpack.c.h.b16 %v933
      %v1507 = vunpack.c.l.b16 %v934
      %v1508 = vunpack.c.h.b16 %v934
      %v1509 = vunpack.c.l.b16 %v935
      %v1510 = vunpack.c.h.b16 %v935
      %v1511 = vunpack.c.l.b16 %v936
      %v1512 = vunpack.c.h.b16 %v936
      %v1513 = vunpack.c.l.b16 %v937
      %v1514 = vunpack.c.h.b16 %v937
      %v1515 = vunpack.c.l.b16 %v938
      %v1516 = vunpack.c.h.b16 %v938
      %v1517 = vunpack.c.l.b16 %v939
      %v1518 = vunpack.c.h.b16 %v939
      %v1519 = vunpack.c.l.b16 %v940
      %v1520 = vunpack.c.h.b16 %v940
      %v1521 = vunpack.c.l.b16 %v941
      %v1522 = vunpack.c.h.b16 %v941
      %v1523 = vunpack.c.l.b16 %v942
      %v1524 = vunpack.c.h.b16 %v942
      %v1525 = vunpack.c.l.b16 %v943
      %v1526 = vunpack.c.h.b16 %v943
      %v1527 = vunpack.c.l.b16 %v944
      %v1528 = vunpack.c.h.b16 %v944
      %v1529 = vunpack.c.l.b16 %v945
      %v1530 = vunpack.c.h.b16 %v945
      %v1531 = vunpack.c.l.b16 %v946
      %v1532 = vunpack.c.h.b16 %v946
      %v1533 = vunpack.c.l.b16 %v947
      %v1534 = vunpack.c.h.b16 %v947
      %v1535 = vunpack.c.l.b16 %v948
      %v1536 = vunpack.c.h.b16 %v948
      %v1537 = vunpack.c.l.b16 %v949
      %v1538 = vunpack.c.h.b16 %v949
      %v1539 = vunpack.c.l.b16 %v950
      %v1540 = vunpack.c.h.b16 %v950
      %v1541 = vunpack.c.l.b16 %v951
      %v1542 = vunpack.c.h.b16 %v951
      %v1543 = vunpack.c.l.b16 %v952
      %v1544 = vunpack.c.h.b16 %v952
      %v1545 = vunpack.c.l.b16 %v953
      %v1546 = vunpack.c.h.b16 %v953
      %v1547 = vunpack.c.l.b16 %v954
      %v1548 = vunpack.c.h.b16 %v954
      %v1549 = vunpack.c.l.b16 %v955
      %v1550 = vunpack.c.h.b16 %v955
      %v1551 = vunpack.c.l.b16 %v956
      %v1552 = vunpack.c.h.b16 %v956
      %v1553 = vunpack.c.l.b16 %v957
      %v1554 = vunpack.c.h.b16 %v957
      %v1555 = vunpack.c.l.b16 %v958
      %v1556 = vunpack.c.h.b16 %v958
      %v1557 = vunpack.c.l.b16 %v959
      %v1558 = vunpack.c.h.b16 %v959
      %v1559 = vunpack.c.l.b16 %v960
      %v1560 = vunpack.c.h.b16 %v960
      %v1561 = vunpack.c.l.b16 %v961
      %v1562 = vunpack.c.h.b16 %v961
      %v1563 = vunpack.c.l.b16 %v962
      %v1564 = vunpack.c.h.b16 %v962
      %v1565 = vunpack.c.l.b16 %v963
      %v1566 = vunpack.c.h.b16 %v963
      %v1567 = vunpack.c.l.b16 %v964
      %v1568 = vunpack.c.h.b16 %v964
      %v1569 = vunpack.c.l.b16 %v965
      %v1570 = vunpack.c.h.b16 %v965
      %v1571 = vunpack.c.l.b16 %v966
      %v1572 = vunpack.c.h.b16 %v966
      %v1573 = vunpack.c.l.b16 %v967
      %v1574 = vunpack.c.h.b16 %v967
      %v1575 = vunpack.c.l.b16 %v968
      %v1576 = vunpack.c.h.b16 %v968
      %v1577 = vunpack.c.l.b16 %v969
      %v1578 = vunpack.c.h.b16 %v969
      %v1579 = vunpack.c.l.b16 %v970
      %v1580 = vunpack.c.h.b16 %v970
      %v1581 = vpack.c.b16 %v1193, %v1189
      %v1582 = vpack.c.b16 %v1194, %v1190
      %v1583 = vpack.c.b16 %v1195, %v1191
      %v1584 = vpack.c.b16 %v1196, %v1192
      %v1585 = vpack.c.b16 %v1201, %v1197
      %v1586 = vpack.c.b16 %v1202, %v1198
      %v1587 = vpack.c.b16 %v1203, %v1199
      %v1588 = vpack.c.b16 %v1204, %v1200
      %v1589 = vpack.c.b16 %v1209, %v1205
      %v1590 = vpack.c.b16 %v1210, %v1206
      %v1591 = vpack.c.b16 %v1211, %v1207
      %v1592 = vpack.c.b16 %v1212, %v1208
      %v1593 = vpack.c.b16 %v1217, %v1213
      %v1594 = vpack.c.b16 %v1218, %v1214
      %v1595 = vpack.c.b16 %v1219, %v1215
      %v1596 = vpack.c.b16 %v1220, %v1216
      %v1597 = vpack.c.b16 %v1225, %v1221
      %v1598 = vpack.c.b16 %v1226, %v1222
      %v1599 = vpack.c.b16 %v1227, %v1223
      %v1600 = vpack.c.b16 %v1228, %v1224
      %v1601 = vpack.c.b16 %v1233, %v1229
      %v1602 = vpack.c.b16 %v1234, %v1230
      %v1603 = vpack.c.b16 %v1235, %v1231
      %v1604 = vpack.c.b16 %v1236, %v1232
      %v1605 = vpack.c.b16 %v1241, %v1237
      %v1606 = vpack.c.b16 %v1242, %v1238
      %v1607 = vpack.c.b16 %v1243, %v1239
      %v1608 = vpack.c.b16 %v1244, %v1240
      %v1609 = vpack.c.b16 %v1249, %v1245
      %v1610 = vpack.c.b16 %v1250, %v1246
      %v1611 = vpack.c.b16 %v1251, %v1247
      %v1612 = vpack.c.b16 %v1252, %v1248
      %v1613 = vpack.c.b16 %v1257, %v1253
      %v1614 = vpack.c.b16 %v1258, %v1254
      %v1615 = vpack.c.b16 %v1259, %v1255
      %v1616 = vpack.c.b16 %v1260, %v1256
      %v1617 = vpack.c.b16 %v1265, %v1261
      %v1618 = vpack.c.b16 %v1266, %v1262
      %v1619 = vpack.c.b16 %v1267, %v1263
      %v1620 = vpack.c.b16 %v1268, %v1264
      %v1621 = vpack.c.b16 %v1273, %v1269
      %v1622 = vpack.c.b16 %v1274, %v1270
      %v1623 = vpack.c.b16 %v1275, %v1271
      %v1624 = vpack.c.b16 %v1276, %v1272
      %v1625 = vpack.c.b16 %v1281, %v1277
      %v1626 = vpack.c.b16 %v1282, %v1278
      %v1627 = vpack.c.b16 %v1283, %v1279
      %v1628 = vpack.c.b16 %v1284, %v1280
      %v1629 = vpack.c.b16 %v1289, %v1285
      %v1630 = vpack.c.b16 %v1290, %v1286
      %v1631 = vpack.c.b16 %v1291, %v1287
      %v1632 = vpack.c.b16 %v1292, %v1288
      %v1633 = vpack.c.b16 %v1297, %v1293
      %v1634 = vpack.c.b16 %v1298, %v1294
      %v1635 = vpack.c.b16 %v1299, %v1295
      %v1636 = vpack.c.b16 %v1300, %v1296
      %v1637 = vpack.c.b16 %v1305, %v1301
      %v1638 = vpack.c.b16 %v1306, %v1302
      %v1639 = vpack.c.b16 %v1307, %v1303
      %v1640 = vpack.c.b16 %v1308, %v1304
      %v1641 = vpack.c.b16 %v1313, %v1309
      %v1642 = vpack.c.b16 %v1314, %v1310
      %v1643 = vpack.c.b16 %v1315, %v1311
      %v1644 = vpack.c.b16 %v1316, %v1312
      %v1645 = vpack.c.b16 %v1321, %v1317
      %v1646 = vpack.c.b16 %v1322, %v1318
      %v1647 = vpack.c.b16 %v1323, %v1319
      %v1648 = vpack.c.b16 %v1324, %v1320
      %v1649 = vpack.c.b16 %v1329, %v1325
      %v1650 = vpack.c.b16 %v1330, %v1326
      %v1651 = vpack.c.b16 %v1331, %v1327
      %v1652 = vpack.c.b16 %v1332, %v1328
      %v1653 = vpack.c.b16 %v1337, %v1333
      %v1654 = vpack.c.b16 %v1338, %v1334
      %v1655 = vpack.c.b16 %v1339, %v1335
      %v1656 = vpack.c.b16 %v1340, %v1336
      %v1657 = vpack.c.b16 %v1345, %v1341
      %v1658 = vpack.c.b16 %v1346, %v1342
      %v1659 = vpack.c.b16 %v1347, %v1343
      %v1660 = vpack.c.b16 %v1348, %v1344
      %v1661 = vpack.c.b16 %v1353, %v1349
      %v1662 = vpack.c.b16 %v1354, %v1350
      %v1663 = vpack.c.b16 %v1355, %v1351
      %v1664 = vpack.c.b16 %v1356, %v1352
      %v1665 = vpack.c.b16 %v1361, %v1357
      %v1666 = vpack.c.b16 %v1362, %v1358
      %v1667 = vpack.c.b16 %v1363, %v1359
      %v1668 = vpack.c.b16 %v1364, %v1360
      %v1669 = vpack.c.b16 %v1369, %v1365
      %v1670 = vpack.c.b16 %v1370, %v1366
      %v1671 = vpack.c.b16 %v1371, %v1367
      %v1672 = vpack.c.b16 %v1372, %v1368
      %v1673 = vpack.c.b16 %v1377, %v1373
      %v1674 = vpack.c.b16 %v1378, %v1374
      %v1675 = vpack.c.b16 %v1379, %v1375
      %v1676 = vpack.c.b16 %v1380, %v1376
      %v1677 = vpack.c.b16 %v1385, %v1381
      %v1678 = vpack.c.b16 %v1386, %v1382
      %v1679 = vpack.c.b16 %v1387, %v1383
      %v1680 = vpack.c.b16 %v1388, %v1384
      %v1681 = vpack.c.b16 %v1393, %v1389
      %v1682 = vpack.c.b16 %v1394, %v1390
      %v1683 = vpack.c.b16 %v1395, %v1391
      %v1684 = vpack.c.b16 %v1396, %v1392
      %v1685 = vpack.c.b16 %v1401, %v1397
      %v1686 = vpack.c.b16 %v1402, %v1398
      %v1687 = vpack.c.b16 %v1403, %v1399
      %v1688 = vpack.c.b16 %v1404, %v1400
      %v1689 = vpack.c.b16 %v1409, %v1405
      %v1690 = vpack.c.b16 %v1410, %v1406
      %v1691 = vpack.c.b16 %v1411, %v1407
      %v1692 = vpack.c.b16 %v1412, %v1408
      %v1693 = vpack.c.b16 %v1417, %v1413
      %v1694 = vpack.c.b16 %v1418, %v1414
      %v1695 = vpack.c.b16 %v1419, %v1415
      %v1696 = vpack.c.b16 %v1420, %v1416
      %v1697 = vpack.c.b16 %v1425, %v1421
      %v1698 = vpack.c.b16 %v1426, %v1422
      %v1699 = vpack.c.b16 %v1427, %v1423
      %v1700 = vpack.c.b16 %v1428, %v1424
      %v1701 = vpack.c.b16 %v1433, %v1429
      %v1702 = vpack.c.b16 %v1434, %v1430
      %v1703 = vpack.c.b16 %v1435, %v1431
      %v1704 = vpack.c.b16 %v1436, %v1432
      %v1705 = vpack.c.b16 %v1441, %v1437
      %v1706 = vpack.c.b16 %v1442, %v1438
      %v1707 = vpack.c.b16 %v1443, %v1439
      %v1708 = vpack.c.b16 %v1444, %v1440
      %v1709 = vpack.c.b16 %v1449, %v1445
      %v1710 = vpack.c.b16 %v1450, %v1446
      %v1711 = vpack.c.b16 %v1451, %v1447
      %v1712 = vpack.c.b16 %v1452, %v1448
      %v1713 = vpack.c.b16 %v1457, %v1453
      %v1714 = vpack.c.b16 %v1458, %v1454
      %v1715 = vpack.c.b16 %v1459, %v1455
      %v1716 = vpack.c.b16 %v1460, %v1456
      %v1717 = vpack.c.b16 %v1465, %v1461
      %v1718 = vpack.c.b16 %v1466, %v1462
      %v1719 = vpack.c.b16 %v1467, %v1463
      %v1720 = vpack.c.b16 %v1468, %v1464
      %v1721 = vpack.c.b16 %v1473, %v1469
      %v1722 = vpack.c.b16 %v1474, %v1470
      %v1723 = vpack.c.b16 %v1475, %v1471
      %v1724 = vpack.c.b16 %v1476, %v1472
      %v1725 = vpack.c.b16 %v1481, %v1477
      %v1726 = vpack.c.b16 %v1482, %v1478
      %v1727 = vpack.c.b16 %v1483, %v1479
      %v1728 = vpack.c.b16 %v1484, %v1480
      %v1729 = vpack.c.b16 %v1489, %v1485
      %v1730 = vpack.c.b16 %v1490, %v1486
      %v1731 = vpack.c.b16 %v1491, %v1487
      %v1732 = vpack.c.b16 %v1492, %v1488
      %v1733 = vpack.c.b16 %v1497, %v1493
      %v1734 = vpack.c.b16 %v1498, %v1494
      %v1735 = vpack.c.b16 %v1499, %v1495
      %v1736 = vpack.c.b16 %v1500, %v1496
      %v1737 = vpack.c.b16 %v1505, %v1501
      %v1738 = vpack.c.b16 %v1506, %v1502
      %v1739 = vpack.c.b16 %v1507, %v1503
      %v1740 = vpack.c.b16 %v1508, %v1504
      %v1741 = vpack.c.b16 %v1513, %v1509
      %v1742 = vpack.c.b16 %v1514, %v1510
      %v1743 = vpack.c.b16 %v1515, %v1511
      %v1744 = vpack.c.b16 %v1516, %v1512
      %v1745 = vpack.c.b16 %v1521, %v1517
      %v1746 = vpack.c.b16 %v1522, %v1518
      %v1747 = vpack.c.b16 %v1523, %v1519
      %v1748 = vpack.c.b16 %v1524, %v1520
      %v1749 = vpack.c.b16 %v1529, %v1525
      %v1750 = vpack.c.b16 %v1530, %v1526
      %v1751 = vpack.c.b16 %v1531, %v1527
      %v1752 = vpack.c.b16 %v1532, %v1528
      %v1753 = vpack.c.b16 %v1537, %v1533
      %v1754 = vpack.c.b16 %v1538, %v1534
      %v1755 = vpack.c.b16 %v1539, %v1535
      %v1756 = vpack.c.b16 %v1540, %v1536
      %v1757 = vpack.c.b16 %v1545, %v1541
      %v1758 = vpack.c.b16 %v1546, %v1542
      %v1759 = vpack.c.b16 %v1547, %v1543
      %v1760 = vpack.c.b16 %v1548, %v1544
      %v1761 = vpack.c.b16 %v1553, %v1549
      %v1762 = vpack.c.b16 %v1554, %v1550
      %v1763 = vpack.c.b16 %v1555, %v1551
      %v1764 = vpack.c.b16 %v1556, %v1552
      %v1765 = vpack.c.b16 %v1561, %v1557
      %v1766 = vpack.c.b16 %v1562, %v1558
      %v1767 = vpack.c.b16 %v1563, %v1559
      %v1768 = vpack.c.b16 %v1564, %v1560
      %v1769 = vpack.c.b16 %v1569, %v1565
      %v1770 = vpack.c.b16 %v1570, %v1566
      %v1771 = vpack.c.b16 %v1571, %v1567
      %v1772 = vpack.c.b16 %v1572, %v1568
      %v1773 = vpack.c.b16 %v1577, %v1573
      %v1774 = vpack.c.b16 %v1578, %v1574
      %v1775 = vpack.c.b16 %v1579, %v1575
      %v1776 = vpack.c.b16 %v1580, %v1576
      %vm1973 = vcmask 130048
      %v1975 = vsel %vm1973, %v725, 0
      %v1978 = vsel %vm1973, %v732, 0
      %v1981 = vsel %vm1973, %v739, 0
      %v1984 = vsel %vm1973, %v746, 0
      %v1987 = vsel %vm1973, %v753, 0
      %v1990 = vsel %vm1973, %v760, 0
      %v1993 = vsel %vm1973, %v767, 0
      %v1996 = vsel %vm1973, %v774, 0
      %1998 = vmatprep.subr.bf16.mxu0 %v1582
      %1999 = vmatpush1.bf16.msra.mxu0 %v1581
      %2000 = vmatprep.subr.bf16.mxu0 %v1586
      %2001 = vmatpush1.bf16.msra.mxu0 %v1585
      %2002 = vmatprep.subr.bf16.mxu0 %v1590
      %2003 = vmatpush1.bf16.msra.mxu0 %v1589
      %2004 = vmatprep.subr.bf16.mxu0 %v1594
      %2005 = vmatpush1.bf16.msra.mxu0 %v1593
      %2006 = vmatprep.subr.bf16.mxu0 %v1598
      %2007 = vmatpush1.bf16.msra.mxu0 %v1597
      %2008 = vmatprep.subr.bf16.mxu0 %v1602
      %2009 = vmatpush1.bf16.msra.mxu0 %v1601
      %2010 = vmatprep.subr.bf16.mxu0 %v1606
      %2011 = vmatpush1.bf16.msra.mxu0 %v1605
      %2012 = vmatprep.subr.bf16.mxu0 %v1610
      %2013 = vmatpush1.bf16.msra.mxu0 %v1609
      %2014 = vmatprep.subr.bf16.mxu0 %v1614
      %2015 = vmatpush1.bf16.msra.mxu0 %v1613
      %2016 = vmatprep.subr.bf16.mxu0 %v1618
      %2017 = vmatpush1.bf16.msra.mxu0 %v1617
      %2018 = vmatprep.subr.bf16.mxu0 %v1622
      %2019 = vmatpush1.bf16.msra.mxu0 %v1621
      %2020 = vmatprep.subr.bf16.mxu0 %v1626
      %2021 = vmatpush1.bf16.msra.mxu0 %v1625
      %2022 = vmatprep.subr.bf16.mxu0 %v1630
      %2023 = vmatpush1.bf16.msra.mxu0 %v1629
      %2024 = vmatprep.subr.bf16.mxu0 %v1634
      %2025 = vmatpush1.bf16.msra.mxu0 %v1633
      %2026 = vmatprep.subr.bf16.mxu0 %v1638
      %2027 = vmatpush1.bf16.msra.mxu0 %v1637
      %2028 = vmatprep.subr.bf16.mxu0 %v1642
      %2029 = vmatpush1.bf16.msra.mxu0 %v1641
      %2030 = vmatprep.mubr.bf16.mxu0 %v720
      %2031 = vmatmul.mubr.bf16.gmra.mrb[0].mxu0 %v719
      %v2032 = vpop.f32.mrb[0].mxu0
      %v2033 = vadd.f32 %v976, %v2032
      %v2034 = vpop.f32.mrb[0].mxu0
      %v2035 = vadd.f32 %v980, %v2034
      %v2036 = vpop.f32.mrb[0].mxu0
      %v2037 = vadd.f32 %v976, %v2036
      %v2038 = vpop.f32.mrb[0].mxu0
      %v2039 = vadd.f32 %v980, %v2038
      %2040 = vmatprep.mubr.bf16.mxu0 %v727
      %2041 = vmatmul.mubr.bf16.gmra.mrb[0].mxu0 %v726
      %v2042 = vpop.f32.mrb[0].mxu0
      %v2043 = vadd.f32 %v976, %v2042
      %v2044 = vpop.f32.mrb[0].mxu0
      %v2045 = vadd.f32 %v980, %v2044
      %v2046 = vpop.f32.mrb[0].mxu0
      %v2047 = vadd.f32 %v976, %v2046
      %v2048 = vpop.f32.mrb[0].mxu0
      %v2049 = vadd.f32 %v980, %v2048
      %2050 = vmatprep.mubr.bf16.mxu0 %v734
      %2051 = vmatmul.mubr.bf16.gmra.mrb[0].mxu0 %v733
      %v2052 = vpop.f32.mrb[0].mxu0
      %v2053 = vadd.f32 %v976, %v2052
      %v2054 = vpop.f32.mrb[0].mxu0
      %v2055 = vadd.f32 %v980, %v2054
      %v2056 = vpop.f32.mrb[0].mxu0
      %v2057 = vadd.f32 %v976, %v2056
      %v2058 = vpop.f32.mrb[0].mxu0
      %v2059 = vadd.f32 %v980, %v2058
      %2060 = vmatprep.mubr.bf16.mxu0 %v741
      %2061 = vmatmul.mubr.bf16.gmra.mrb[0].mxu0 %v740
      %v2062 = vpop.f32.mrb[0].mxu0
      %v2063 = vadd.f32 %v976, %v2062
      %v2064 = vpop.f32.mrb[0].mxu0
      %v2065 = vadd.f32 %v980, %v2064
      %v2066 = vpop.f32.mrb[0].mxu0
      %v2067 = vadd.f32 %v976, %v2066
      %v2068 = vpop.f32.mrb[0].mxu0
      %v2069 = vadd.f32 %v980, %v2068
      %2070 = vmatprep.mubr.bf16.mxu0 %v748
      %2071 = vmatmul.mubr.bf16.gmra.mrb[0].mxu0 %v747
      %v2072 = vpop.f32.mrb[0].mxu0
      %v2073 = vadd.f32 %v976, %v2072
      %v2074 = vpop.f32.mrb[0].mxu0
      %v2075 = vadd.f32 %v980, %v2074
      %v2076 = vpop.f32.mrb[0].mxu0
      %v2077 = vadd.f32 %v976, %v2076
      %v2078 = vpop.f32.mrb[0].mxu0
      %v2079 = vadd.f32 %v980, %v2078
      %2080 = vmatprep.mubr.bf16.mxu0 %v755
      %2081 = vmatmul.mubr.bf16.gmra.mrb[0].mxu0 %v754
      %v2082 = vpop.f32.mrb[0].mxu0
      %v2083 = vadd.f32 %v976, %v2082
      %v2084 = vpop.f32.mrb[0].mxu0
      %v2085 = vadd.f32 %v980, %v2084
      %v2086 = vpop.f32.mrb[0].mxu0
      %v2087 = vadd.f32 %v976, %v2086
      %v2088 = vpop.f32.mrb[0].mxu0
      %v2089 = vadd.f32 %v980, %v2088
      %2090 = vmatprep.mubr.bf16.mxu0 %v762
      %2091 = vmatmul.mubr.bf16.gmra.mrb[0].mxu0 %v761
      %v2092 = vpop.f32.mrb[0].mxu0
      %v2093 = vadd.f32 %v976, %v2092
      %v2094 = vpop.f32.mrb[0].mxu0
      %v2095 = vadd.f32 %v980, %v2094
      %v2096 = vpop.f32.mrb[0].mxu0
      %v2097 = vadd.f32 %v976, %v2096
      %v2098 = vpop.f32.mrb[0].mxu0
      %v2099 = vadd.f32 %v980, %v2098
      %2100 = vmatprep.mubr.bf16.mxu0 %v769
      %2101 = vmatmul.mubr.bf16.gmra.mrb[0].mxu0 %v768
      %v2102 = vpop.f32.mrb[0].mxu0
      %v2103 = vadd.f32 %v976, %v2102
      %v2104 = vpop.f32.mrb[0].mxu0
      %v2105 = vadd.f32 %v980, %v2104
      %v2106 = vpop.f32.mrb[0].mxu0
      %v2107 = vadd.f32 %v976, %v2106
      %v2108 = vpop.f32.mrb[0].mxu0
      %v2109 = vadd.f32 %v980, %v2108
      %2110 = vdwg.mxu0
      %2111 = vmatprep.subr.bf16.mxu0 %v1646
      %2112 = vmatpush1.bf16.msra.mxu0 %v1645
      %2113 = vmatprep.subr.bf16.mxu0 %v1650
      %2114 = vmatpush1.bf16.msra.mxu0 %v1649
      %2115 = vmatprep.subr.bf16.mxu0 %v1654
      %2116 = vmatpush1.bf16.msra.mxu0 %v1653
      %2117 = vmatprep.subr.bf16.mxu0 %v1658
      %2118 = vmatpush1.bf16.msra.mxu0 %v1657
      %2119 = vmatprep.subr.bf16.mxu0 %v1662
      %2120 = vmatpush1.bf16.msra.mxu0 %v1661
      %2121 = vmatprep.subr.bf16.mxu0 %v1666
      %2122 = vmatpush1.bf16.msra.mxu0 %v1665
      %2123 = vmatprep.subr.bf16.mxu0 %v1670
      %2124 = vmatpush1.bf16.msra.mxu0 %v1669
      %2125 = vmatprep.subr.bf16.mxu0 %v1674
      %2126 = vmatpush1.bf16.msra.mxu0 %v1673
      %2127 = vmatprep.subr.bf16.mxu0 %v1678
      %2128 = vmatpush1.bf16.msra.mxu0 %v1677
      %2129 = vmatprep.subr.bf16.mxu0 %v1682
      %2130 = vmatpush1.bf16.msra.mxu0 %v1681
      %2131 = vmatprep.subr.bf16.mxu0 %v1686
      %2132 = vmatpush1.bf16.msra.mxu0 %v1685
      %2133 = vmatprep.subr.bf16.mxu0 %v1690
      %2134 = vmatpush1.bf16.msra.mxu0 %v1689
      %2135 = vmatprep.subr.bf16.mxu0 %v1694
      %2136 = vmatpush1.bf16.msra.mxu0 %v1693
      %2137 = vmatprep.subr.bf16.mxu0 %v1698
      %2138 = vmatpush1.bf16.msra.mxu0 %v1697
      %2139 = vmatprep.subr.bf16.mxu0 %v1702
      %2140 = vmatpush1.bf16.msra.mxu0 %v1701
      %2141 = vmatprep.subr.bf16.mxu0 %v1706
      %2142 = vmatpush1.bf16.msra.mxu0 %v1705
      %2143 = vmatprep.mubr.bf16.mxu0 %v722
      %2144 = vmatmul.mubr.bf16.gmra.mrb[0].mxu0 %v721
      %v2145 = vpop.f32.mrb[0].mxu0
      %v2146 = vadd.f32 %v2033, %v2145
      %v2147 = vpop.f32.mrb[0].mxu0
      %v2148 = vadd.f32 %v2035, %v2147
      %v2149 = vpop.f32.mrb[0].mxu0
      %v2150 = vadd.f32 %v2037, %v2149
      %v2151 = vpop.f32.mrb[0].mxu0
      %v2152 = vadd.f32 %v2039, %v2151
      %2153 = vmatprep.mubr.bf16.mxu0 %v729
      %2154 = vmatmul.mubr.bf16.gmra.mrb[0].mxu0 %v728
      %v2155 = vpop.f32.mrb[0].mxu0
      %v2156 = vadd.f32 %v2043, %v2155
      %v2157 = vpop.f32.mrb[0].mxu0
      %v2158 = vadd.f32 %v2045, %v2157
      %v2159 = vpop.f32.mrb[0].mxu0
      %v2160 = vadd.f32 %v2047, %v2159
      %v2161 = vpop.f32.mrb[0].mxu0
      %v2162 = vadd.f32 %v2049, %v2161
      %2163 = vmatprep.mubr.bf16.mxu0 %v736
      %2164 = vmatmul.mubr.bf16.gmra.mrb[0].mxu0 %v735
      %v2165 = vpop.f32.mrb[0].mxu0
      %v2166 = vadd.f32 %v2053, %v2165
      %v2167 = vpop.f32.mrb[0].mxu0
      %v2168 = vadd.f32 %v2055, %v2167
      %v2169 = vpop.f32.mrb[0].mxu0
      %v2170 = vadd.f32 %v2057, %v2169
      %v2171 = vpop.f32.mrb[0].mxu0
      %v2172 = vadd.f32 %v2059, %v2171
      %2173 = vmatprep.mubr.bf16.mxu0 %v743
      %2174 = vmatmul.mubr.bf16.gmra.mrb[0].mxu0 %v742
      %v2175 = vpop.f32.mrb[0].mxu0
      %v2176 = vadd.f32 %v2063, %v2175
      %v2177 = vpop.f32.mrb[0].mxu0
      %v2178 = vadd.f32 %v2065, %v2177
      %v2179 = vpop.f32.mrb[0].mxu0
      %v2180 = vadd.f32 %v2067, %v2179
      %v2181 = vpop.f32.mrb[0].mxu0
      %v2182 = vadd.f32 %v2069, %v2181
      %2183 = vmatprep.mubr.bf16.mxu0 %v750
      %2184 = vmatmul.mubr.bf16.gmra.mrb[0].mxu0 %v749
      %v2185 = vpop.f32.mrb[0].mxu0
      %v2186 = vadd.f32 %v2073, %v2185
      %v2187 = vpop.f32.mrb[0].mxu0
      %v2188 = vadd.f32 %v2075, %v2187
      %v2189 = vpop.f32.mrb[0].mxu0
      %v2190 = vadd.f32 %v2077, %v2189
      %v2191 = vpop.f32.mrb[0].mxu0
      %v2192 = vadd.f32 %v2079, %v2191
      %2193 = vmatprep.mubr.bf16.mxu0 %v757
      %2194 = vmatmul.mubr.bf16.gmra.mrb[0].mxu0 %v756
      %v2195 = vpop.f32.mrb[0].mxu0
      %v2196 = vadd.f32 %v2083, %v2195
      %v2197 = vpop.f32.mrb[0].mxu0
      %v2198 = vadd.f32 %v2085, %v2197
      %v2199 = vpop.f32.mrb[0].mxu0
      %v2200 = vadd.f32 %v2087, %v2199
      %v2201 = vpop.f32.mrb[0].mxu0
      %v2202 = vadd.f32 %v2089, %v2201
      %2203 = vmatprep.mubr.bf16.mxu0 %v764
      %2204 = vmatmul.mubr.bf16.gmra.mrb[0].mxu0 %v763
      %v2205 = vpop.f32.mrb[0].mxu0
      %v2206 = vadd.f32 %v2093, %v2205
      %v2207 = vpop.f32.mrb[0].mxu0
      %v2208 = vadd.f32 %v2095, %v2207
      %v2209 = vpop.f32.mrb[0].mxu0
      %v2210 = vadd.f32 %v2097, %v2209
      %v2211 = vpop.f32.mrb[0].mxu0
      %v2212 = vadd.f32 %v2099, %v2211
      %2213 = vmatprep.mubr.bf16.mxu0 %v771
      %2214 = vmatmul.mubr.bf16.gmra.mrb[0].mxu0 %v770
      %v2215 = vpop.f32.mrb[0].mxu0
      %v2216 = vadd.f32 %v2103, %v2215
      %v2217 = vpop.f32.mrb[0].mxu0
      %v2218 = vadd.f32 %v2105, %v2217
      %v2219 = vpop.f32.mrb[0].mxu0
      %v2220 = vadd.f32 %v2107, %v2219
      %v2221 = vpop.f32.mrb[0].mxu0
      %v2222 = vadd.f32 %v2109, %v2221
      %2223 = vdwg.mxu0
      %2224 = vmatprep.subr.bf16.mxu0 %v1710
      %2225 = vmatpush1.bf16.msra.mxu0 %v1709
      %2226 = vmatprep.subr.bf16.mxu0 %v1714
      %2227 = vmatpush1.bf16.msra.mxu0 %v1713
      %2228 = vmatprep.subr.bf16.mxu0 %v1718
      %2229 = vmatpush1.bf16.msra.mxu0 %v1717
      %2230 = vmatprep.subr.bf16.mxu0 %v1722
      %2231 = vmatpush1.bf16.msra.mxu0 %v1721
      %2232 = vmatprep.subr.bf16.mxu0 %v1726
      %2233 = vmatpush1.bf16.msra.mxu0 %v1725
      %2234 = vmatprep.subr.bf16.mxu0 %v1730
      %2235 = vmatpush1.bf16.msra.mxu0 %v1729
      %2236 = vmatprep.subr.bf16.mxu0 %v1734
      %2237 = vmatpush1.bf16.msra.mxu0 %v1733
      %2238 = vmatprep.subr.bf16.mxu0 %v1738
      %2239 = vmatpush1.bf16.msra.mxu0 %v1737
      %2240 = vmatprep.subr.bf16.mxu0 %v1742
      %2241 = vmatpush1.bf16.msra.mxu0 %v1741
      %2242 = vmatprep.subr.bf16.mxu0 %v1746
      %2243 = vmatpush1.bf16.msra.mxu0 %v1745
      %2244 = vmatprep.subr.bf16.mxu0 %v1750
      %2245 = vmatpush1.bf16.msra.mxu0 %v1749
      %2246 = vmatprep.subr.bf16.mxu0 %v1754
      %2247 = vmatpush1.bf16.msra.mxu0 %v1753
      %2248 = vmatprep.subr.bf16.mxu0 %v1758
      %2249 = vmatpush1.bf16.msra.mxu0 %v1757
      %2250 = vmatprep.subr.bf16.mxu0 %v1762
      %2251 = vmatpush1.bf16.msra.mxu0 %v1761
      %2252 = vmatprep.subr.bf16.mxu0 %v1766
      %2253 = vmatpush1.bf16.msra.mxu0 %v1765
      %2254 = vmatprep.subr.bf16.mxu0 %v1770
      %2255 = vmatpush1.bf16.msra.mxu0 %v1769
      %2256 = vmatprep.mubr.bf16.mxu0 %v724
      %2257 = vmatmul.mubr.bf16.gmra.mrb[0].mxu0 %v723
      %v2258 = vpop.f32.mrb[0].mxu0
      %v2259 = vadd.f32 %v2146, %v2258
      %v2260 = vpop.f32.mrb[0].mxu0
      %v2261 = vadd.f32 %v2148, %v2260
      %v2262 = vpop.f32.mrb[0].mxu0
      %v2263 = vadd.f32 %v2150, %v2262
      %v2264 = vpop.f32.mrb[0].mxu0
      %v2265 = vadd.f32 %v2152, %v2264
      %2266 = vmatprep.mubr.bf16.mxu0 %v731
      %2267 = vmatmul.mubr.bf16.gmra.mrb[0].mxu0 %v730
      %v2268 = vpop.f32.mrb[0].mxu0
      %v2269 = vadd.f32 %v2156, %v2268
      %v2270 = vpop.f32.mrb[0].mxu0
      %v2271 = vadd.f32 %v2158, %v2270
      %v2272 = vpop.f32.mrb[0].mxu0
      %v2273 = vadd.f32 %v2160, %v2272
      %v2274 = vpop.f32.mrb[0].mxu0
      %v2275 = vadd.f32 %v2162, %v2274
      %2276 = vmatprep.mubr.bf16.mxu0 %v738
      %2277 = vmatmul.mubr.bf16.gmra.mrb[0].mxu0 %v737
      %v2278 = vpop.f32.mrb[0].mxu0
      %v2279 = vadd.f32 %v2166, %v2278
      %v2280 = vpop.f32.mrb[0].mxu0
      %v2281 = vadd.f32 %v2168, %v2280
      %v2282 = vpop.f32.mrb[0].mxu0
      %v2283 = vadd.f32 %v2170, %v2282
      %v2284 = vpop.f32.mrb[0].mxu0
      %v2285 = vadd.f32 %v2172, %v2284
      %2286 = vmatprep.mubr.bf16.mxu0 %v745
      %2287 = vmatmul.mubr.bf16.gmra.mrb[0].mxu0 %v744
      %v2288 = vpop.f32.mrb[0].mxu0
      %v2289 = vadd.f32 %v2176, %v2288
      %v2290 = vpop.f32.mrb[0].mxu0
      %v2291 = vadd.f32 %v2178, %v2290
      %v2292 = vpop.f32.mrb[0].mxu0
      %v2293 = vadd.f32 %v2180, %v2292
      %v2294 = vpop.f32.mrb[0].mxu0
      %v2295 = vadd.f32 %v2182, %v2294
      %2296 = vmatprep.mubr.bf16.mxu0 %v752
      %2297 = vmatmul.mubr.bf16.gmra.mrb[0].mxu0 %v751
      %v2298 = vpop.f32.mrb[0].mxu0
      %v2299 = vadd.f32 %v2186, %v2298
      %v2300 = vpop.f32.mrb[0].mxu0
      %v2301 = vadd.f32 %v2188, %v2300
      %v2302 = vpop.f32.mrb[0].mxu0
      %v2303 = vadd.f32 %v2190, %v2302
      %v2304 = vpop.f32.mrb[0].mxu0
      %v2305 = vadd.f32 %v2192, %v2304
      %2306 = vmatprep.mubr.bf16.mxu0 %v759
      %2307 = vmatmul.mubr.bf16.gmra.mrb[0].mxu0 %v758
      %v2308 = vpop.f32.mrb[0].mxu0
      %v2309 = vadd.f32 %v2196, %v2308
      %v2310 = vpop.f32.mrb[0].mxu0
      %v2311 = vadd.f32 %v2198, %v2310
      %v2312 = vpop.f32.mrb[0].mxu0
      %v2313 = vadd.f32 %v2200, %v2312
      %v2314 = vpop.f32.mrb[0].mxu0
      %v2315 = vadd.f32 %v2202, %v2314
      %2316 = vmatprep.mubr.bf16.mxu0 %v766
      %2317 = vmatmul.mubr.bf16.gmra.mrb[0].mxu0 %v765
      %v2318 = vpop.f32.mrb[0].mxu0
      %v2319 = vadd.f32 %v2206, %v2318
      %v2320 = vpop.f32.mrb[0].mxu0
      %v2321 = vadd.f32 %v2208, %v2320
      %v2322 = vpop.f32.mrb[0].mxu0
      %v2323 = vadd.f32 %v2210, %v2322
      %v2324 = vpop.f32.mrb[0].mxu0
      %v2325 = vadd.f32 %v2212, %v2324
      %2326 = vmatprep.mubr.bf16.mxu0 %v773
      %2327 = vmatmul.mubr.bf16.gmra.mrb[0].mxu0 %v772
      %v2328 = vpop.f32.mrb[0].mxu0
      %v2329 = vadd.f32 %v2216, %v2328
      %v2330 = vpop.f32.mrb[0].mxu0
      %v2331 = vadd.f32 %v2218, %v2330
      %v2332 = vpop.f32.mrb[0].mxu0
      %v2333 = vadd.f32 %v2220, %v2332
      %v2334 = vpop.f32.mrb[0].mxu0
      %v2335 = vadd.f32 %v2222, %v2334
      %2336 = vdwg.mxu0
      %2337 = vmatprep.subr.bf16.mxu0 %v1774
      %2338 = vmatpush1.bf16.msra.mxu0 %v1773
      %2339 = vmatprep.subr.bf16.mxu0 0
      %2340 = vmatpush1.bf16.msra.mxu0 0
      %2341 = vmatprep.subr.bf16.mxu0 0
      %2342 = vmatpush1.bf16.msra.mxu0 0
      %2343 = vmatprep.subr.bf16.mxu0 0
      %2344 = vmatpush1.bf16.msra.mxu0 0
      %2345 = vmatprep.subr.bf16.mxu0 0
      %2346 = vmatpush1.bf16.msra.mxu0 0
      %2347 = vmatprep.subr.bf16.mxu0 0
      %2348 = vmatpush1.bf16.msra.mxu0 0
      %2349 = vmatprep.subr.bf16.mxu0 0
      %2350 = vmatpush1.bf16.msra.mxu0 0
      %2351 = vmatprep.subr.bf16.mxu0 0
      %2352 = vmatpush1.bf16.msra.mxu0 0
      %2353 = vmatprep.subr.bf16.mxu0 0
      %2354 = vmatpush1.bf16.msra.mxu0 0
      %2355 = vmatprep.subr.bf16.mxu0 0
      %2356 = vmatpush1.bf16.msra.mxu0 0
      %2357 = vmatprep.subr.bf16.mxu0 0
      %2358 = vmatpush1.bf16.msra.mxu0 0
      %2359 = vmatprep.subr.bf16.mxu0 0
      %2360 = vmatpush1.bf16.msra.mxu0 0
      %2361 = vmatprep.subr.bf16.mxu0 0
      %2362 = vmatpush1.bf16.msra.mxu0 0
      %2363 = vmatprep.subr.bf16.mxu0 0
      %2364 = vmatpush1.bf16.msra.mxu0 0
      %2365 = vmatprep.subr.bf16.mxu0 0
      %2366 = vmatpush1.bf16.msra.mxu0 0
      %2367 = vmatprep.subr.bf16.mxu0 0
      %2368 = vmatpush1.bf16.msra.mxu0 0
      %2369 = vmatprep.mubr.bf16.mxu0 0
      %2370 = vmatmul.mubr.bf16.gmra.mrb[0].mxu0 %v1975
      %v2371 = vpop.f32.mrb[0].mxu0
      %v2372 = vadd.f32 %v2259, %v2371
      %v2373 = vpop.f32.mrb[0].mxu0
      %v2374 = vadd.f32 %v2261, %v2373
      %v2375 = vpop.f32.mrb[0].mxu0
      %v2376 = vadd.f32 %v2263, %v2375
      %v2377 = vpop.f32.mrb[0].mxu0
      %v2378 = vadd.f32 %v2265, %v2377
      %2379 = vmatprep.mubr.bf16.mxu0 0
      %2380 = vmatmul.mubr.bf16.gmra.mrb[0].mxu0 %v1978
      %v2381 = vpop.f32.mrb[0].mxu0
      %v2382 = vadd.f32 %v2269, %v2381
      %v2383 = vpop.f32.mrb[0].mxu0
      %v2384 = vadd.f32 %v2271, %v2383
      %v2385 = vpop.f32.mrb[0].mxu0
      %v2386 = vadd.f32 %v2273, %v2385
      %v2387 = vpop.f32.mrb[0].mxu0
      %v2388 = vadd.f32 %v2275, %v2387
      %2389 = vmatprep.mubr.bf16.mxu0 0
      %2390 = vmatmul.mubr.bf16.gmra.mrb[0].mxu0 %v1981
      %v2391 = vpop.f32.mrb[0].mxu0
      %v2392 = vadd.f32 %v2279, %v2391
      %v2393 = vpop.f32.mrb[0].mxu0
      %v2394 = vadd.f32 %v2281, %v2393
      %v2395 = vpop.f32.mrb[0].mxu0
      %v2396 = vadd.f32 %v2283, %v2395
      %v2397 = vpop.f32.mrb[0].mxu0
      %v2398 = vadd.f32 %v2285, %v2397
      %2399 = vmatprep.mubr.bf16.mxu0 0
      %2400 = vmatmul.mubr.bf16.gmra.mrb[0].mxu0 %v1984
      %v2401 = vpop.f32.mrb[0].mxu0
      %v2402 = vadd.f32 %v2289, %v2401
      %v2403 = vpop.f32.mrb[0].mxu0
      %v2404 = vadd.f32 %v2291, %v2403
      %v2405 = vpop.f32.mrb[0].mxu0
      %v2406 = vadd.f32 %v2293, %v2405
      %v2407 = vpop.f32.mrb[0].mxu0
      %v2408 = vadd.f32 %v2295, %v2407
      %2409 = vmatprep.mubr.bf16.mxu0 0
      %2410 = vmatmul.mubr.bf16.gmra.mrb[0].mxu0 %v1987
      %v2411 = vpop.f32.mrb[0].mxu0
      %v2412 = vadd.f32 %v2299, %v2411
      %v2413 = vpop.f32.mrb[0].mxu0
      %v2414 = vadd.f32 %v2301, %v2413
      %v2415 = vpop.f32.mrb[0].mxu0
      %v2416 = vadd.f32 %v2303, %v2415
      %v2417 = vpop.f32.mrb[0].mxu0
      %v2418 = vadd.f32 %v2305, %v2417
      %2419 = vmatprep.mubr.bf16.mxu0 0
      %2420 = vmatmul.mubr.bf16.gmra.mrb[0].mxu0 %v1990
      %v2421 = vpop.f32.mrb[0].mxu0
      %v2422 = vadd.f32 %v2309, %v2421
      %v2423 = vpop.f32.mrb[0].mxu0
      %v2424 = vadd.f32 %v2311, %v2423
      %v2425 = vpop.f32.mrb[0].mxu0
      %v2426 = vadd.f32 %v2313, %v2425
      %v2427 = vpop.f32.mrb[0].mxu0
      %v2428 = vadd.f32 %v2315, %v2427
      %2429 = vmatprep.mubr.bf16.mxu0 0
      %2430 = vmatmul.mubr.bf16.gmra.mrb[0].mxu0 %v1993
      %v2431 = vpop.f32.mrb[0].mxu0
      %v2432 = vadd.f32 %v2319, %v2431
      %v2433 = vpop.f32.mrb[0].mxu0
      %v2434 = vadd.f32 %v2321, %v2433
      %v2435 = vpop.f32.mrb[0].mxu0
      %v2436 = vadd.f32 %v2323, %v2435
      %v2437 = vpop.f32.mrb[0].mxu0
      %v2438 = vadd.f32 %v2325, %v2437
      %2439 = vmatprep.mubr.bf16.mxu0 0
      %2440 = vmatmul.mubr.bf16.gmra.mrb[0].mxu0 %v1996
      %v2441 = vpop.f32.mrb[0].mxu0
      %v2442 = vadd.f32 %v2329, %v2441
      %v2443 = vpop.f32.mrb[0].mxu0
      %v2444 = vadd.f32 %v2331, %v2443
      %v2445 = vpop.f32.mrb[0].mxu0
      %v2446 = vadd.f32 %v2333, %v2445
      %v2447 = vpop.f32.mrb[0].mxu0
      %v2448 = vadd.f32 %v2335, %v2447
      %2449 = vdwg.mxu0
      %2450 = vmatprep.subr.bf16.mxu0 %v1584
      %2451 = vmatpush1.bf16.msra.mxu0 %v1583
      %2452 = vmatprep.subr.bf16.mxu0 %v1588
      %2453 = vmatpush1.bf16.msra.mxu0 %v1587
      %2454 = vmatprep.subr.bf16.mxu0 %v1592
      %2455 = vmatpush1.bf16.msra.mxu0 %v1591
      %2456 = vmatprep.subr.bf16.mxu0 %v1596
      %2457 = vmatpush1.bf16.msra.mxu0 %v1595
      %2458 = vmatprep.subr.bf16.mxu0 %v1600
      %2459 = vmatpush1.bf16.msra.mxu0 %v1599
      %2460 = vmatprep.subr.bf16.mxu0 %v1604
      %2461 = vmatpush1.bf16.msra.mxu0 %v1603
      %2462 = vmatprep.subr.bf16.mxu0 %v1608
      %2463 = vmatpush1.bf16.msra.mxu0 %v1607
      %2464 = vmatprep.subr.bf16.mxu0 %v1612
      %2465 = vmatpush1.bf16.msra.mxu0 %v1611
      %2466 = vmatprep.subr.bf16.mxu0 %v1616
      %2467 = vmatpush1.bf16.msra.mxu0 %v1615
      %2468 = vmatprep.subr.bf16.mxu0 %v1620
      %2469 = vmatpush1.bf16.msra.mxu0 %v1619
      %2470 = vmatprep.subr.bf16.mxu0 %v1624
      %2471 = vmatpush1.bf16.msra.mxu0 %v1623
      %2472 = vmatprep.subr.bf16.mxu0 %v1628
      %2473 = vmatpush1.bf16.msra.mxu0 %v1627
      %2474 = vmatprep.subr.bf16.mxu0 %v1632
      %2475 = vmatpush1.bf16.msra.mxu0 %v1631
      %2476 = vmatprep.subr.bf16.mxu0 %v1636
      %2477 = vmatpush1.bf16.msra.mxu0 %v1635
      %2478 = vmatprep.subr.bf16.mxu0 %v1640
      %2479 = vmatpush1.bf16.msra.mxu0 %v1639
      %2480 = vmatprep.subr.bf16.mxu0 %v1644
      %2481 = vmatpush1.bf16.msra.mxu0 %v1643
      %2482 = vmatprep.mubr.bf16.mxu0 %v720
      %2483 = vmatmul.mubr.bf16.gmra.mrb[0].mxu0 %v719
      %v2484 = vpop.f32.mrb[0].mxu0
      %v2485 = vadd.f32 %v984, %v2484
      %v2486 = vpop.f32.mrb[0].mxu0
      %v2487 = vadd.f32 %v988, %v2486
      %v2488 = vpop.f32.mrb[0].mxu0
      %v2489 = vadd.f32 %v984, %v2488
      %v2490 = vpop.f32.mrb[0].mxu0
      %v2491 = vadd.f32 %v988, %v2490
      %2492 = vmatprep.mubr.bf16.mxu0 %v727
      %2493 = vmatmul.mubr.bf16.gmra.mrb[0].mxu0 %v726
      %v2494 = vpop.f32.mrb[0].mxu0
      %v2495 = vadd.f32 %v984, %v2494
      %v2496 = vpop.f32.mrb[0].mxu0
      %v2497 = vadd.f32 %v988, %v2496
      %v2498 = vpop.f32.mrb[0].mxu0
      %v2499 = vadd.f32 %v984, %v2498
      %v2500 = vpop.f32.mrb[0].mxu0
      %v2501 = vadd.f32 %v988, %v2500
      %2502 = vmatprep.mubr.bf16.mxu0 %v734
      %2503 = vmatmul.mubr.bf16.gmra.mrb[0].mxu0 %v733
      %v2504 = vpop.f32.mrb[0].mxu0
      %v2505 = vadd.f32 %v984, %v2504
      %v2506 = vpop.f32.mrb[0].mxu0
      %v2507 = vadd.f32 %v988, %v2506
      %v2508 = vpop.f32.mrb[0].mxu0
      %v2509 = vadd.f32 %v984, %v2508
      %v2510 = vpop.f32.mrb[0].mxu0
      %v2511 = vadd.f32 %v988, %v2510
      %2512 = vmatprep.mubr.bf16.mxu0 %v741
      %2513 = vmatmul.mubr.bf16.gmra.mrb[0].mxu0 %v740
      %v2514 = vpop.f32.mrb[0].mxu0
      %v2515 = vadd.f32 %v984, %v2514
      %v2516 = vpop.f32.mrb[0].mxu0
      %v2517 = vadd.f32 %v988, %v2516
      %v2518 = vpop.f32.mrb[0].mxu0
      %v2519 = vadd.f32 %v984, %v2518
      %v2520 = vpop.f32.mrb[0].mxu0
      %v2521 = vadd.f32 %v988, %v2520
      %2522 = vmatprep.mubr.bf16.mxu0 %v748
      %2523 = vmatmul.mubr.bf16.gmra.mrb[0].mxu0 %v747
      %v2524 = vpop.f32.mrb[0].mxu0
      %v2525 = vadd.f32 %v984, %v2524
      %v2526 = vpop.f32.mrb[0].mxu0
      %v2527 = vadd.f32 %v988, %v2526
      %v2528 = vpop.f32.mrb[0].mxu0
      %v2529 = vadd.f32 %v984, %v2528
      %v2530 = vpop.f32.mrb[0].mxu0
      %v2531 = vadd.f32 %v988, %v2530
      %2532 = vmatprep.mubr.bf16.mxu0 %v755
      %2533 = vmatmul.mubr.bf16.gmra.mrb[0].mxu0 %v754
      %v2534 = vpop.f32.mrb[0].mxu0
      %v2535 = vadd.f32 %v984, %v2534
      %v2536 = vpop.f32.mrb[0].mxu0
      %v2537 = vadd.f32 %v988, %v2536
      %v2538 = vpop.f32.mrb[0].mxu0
      %v2539 = vadd.f32 %v984, %v2538
      %v2540 = vpop.f32.mrb[0].mxu0
      %v2541 = vadd.f32 %v988, %v2540
      %2542 = vmatprep.mubr.bf16.mxu0 %v762
      %2543 = vmatmul.mubr.bf16.gmra.mrb[0].mxu0 %v761
      %v2544 = vpop.f32.mrb[0].mxu0
      %v2545 = vadd.f32 %v984, %v2544
      %v2546 = vpop.f32.mrb[0].mxu0
      %v2547 = vadd.f32 %v988, %v2546
      %v2548 = vpop.f32.mrb[0].mxu0
      %v2549 = vadd.f32 %v984, %v2548
      %v2550 = vpop.f32.mrb[0].mxu0
      %v2551 = vadd.f32 %v988, %v2550
      %2552 = vmatprep.mubr.bf16.mxu0 %v769
      %2553 = vmatmul.mubr.bf16.gmra.mrb[0].mxu0 %v768
      %v2554 = vpop.f32.mrb[0].mxu0
      %v2555 = vadd.f32 %v984, %v2554
      %v2556 = vpop.f32.mrb[0].mxu0
      %v2557 = vadd.f32 %v988, %v2556
      %v2558 = vpop.f32.mrb[0].mxu0
      %v2559 = vadd.f32 %v984, %v2558
      %v2560 = vpop.f32.mrb[0].mxu0
      %v2561 = vadd.f32 %v988, %v2560
      %2562 = vdwg.mxu0
      %2563 = vmatprep.subr.bf16.mxu0 %v1648
      %2564 = vmatpush1.bf16.msra.mxu0 %v1647
      %2565 = vmatprep.subr.bf16.mxu0 %v1652
      %2566 = vmatpush1.bf16.msra.mxu0 %v1651
      %2567 = vmatprep.subr.bf16.mxu0 %v1656
      %2568 = vmatpush1.bf16.msra.mxu0 %v1655
      %2569 = vmatprep.subr.bf16.mxu0 %v1660
      %2570 = vmatpush1.bf16.msra.mxu0 %v1659
      %2571 = vmatprep.subr.bf16.mxu0 %v1664
      %2572 = vmatpush1.bf16.msra.mxu0 %v1663
      %2573 = vmatprep.subr.bf16.mxu0 %v1668
      %2574 = vmatpush1.bf16.msra.mxu0 %v1667
      %2575 = vmatprep.subr.bf16.mxu0 %v1672
      %2576 = vmatpush1.bf16.msra.mxu0 %v1671
      %2577 = vmatprep.subr.bf16.mxu0 %v1676
      %2578 = vmatpush1.bf16.msra.mxu0 %v1675
      %2579 = vmatprep.subr.bf16.mxu0 %v1680
      %2580 = vmatpush1.bf16.msra.mxu0 %v1679
      %2581 = vmatprep.subr.bf16.mxu0 %v1684
      %2582 = vmatpush1.bf16.msra.mxu0 %v1683
      %2583 = vmatprep.subr.bf16.mxu0 %v1688
      %2584 = vmatpush1.bf16.msra.mxu0 %v1687
      %2585 = vmatprep.subr.bf16.mxu0 %v1692
      %2586 = vmatpush1.bf16.msra.mxu0 %v1691
      %2587 = vmatprep.subr.bf16.mxu0 %v1696
      %2588 = vmatpush1.bf16.msra.mxu0 %v1695
      %2589 = vmatprep.subr.bf16.mxu0 %v1700
      %2590 = vmatpush1.bf16.msra.mxu0 %v1699
      %2591 = vmatprep.subr.bf16.mxu0 %v1704
      %2592 = vmatpush1.bf16.msra.mxu0 %v1703
      %2593 = vmatprep.subr.bf16.mxu0 %v1708
      %2594 = vmatpush1.bf16.msra.mxu0 %v1707
      %2595 = vmatprep.mubr.bf16.mxu0 %v722
      %2596 = vmatmul.mubr.bf16.gmra.mrb[0].mxu0 %v721
      %v2597 = vpop.f32.mrb[0].mxu0
      %v2598 = vadd.f32 %v2485, %v2597
      %v2599 = vpop.f32.mrb[0].mxu0
      %v2600 = vadd.f32 %v2487, %v2599
      %v2601 = vpop.f32.mrb[0].mxu0
      %v2602 = vadd.f32 %v2489, %v2601
      %v2603 = vpop.f32.mrb[0].mxu0
      %v2604 = vadd.f32 %v2491, %v2603
      %2605 = vmatprep.mubr.bf16.mxu0 %v729
      %2606 = vmatmul.mubr.bf16.gmra.mrb[0].mxu0 %v728
      %v2607 = vpop.f32.mrb[0].mxu0
      %v2608 = vadd.f32 %v2495, %v2607
      %v2609 = vpop.f32.mrb[0].mxu0
      %v2610 = vadd.f32 %v2497, %v2609
      %v2611 = vpop.f32.mrb[0].mxu0
      %v2612 = vadd.f32 %v2499, %v2611
      %v2613 = vpop.f32.mrb[0].mxu0
      %v2614 = vadd.f32 %v2501, %v2613
      %2615 = vmatprep.mubr.bf16.mxu0 %v736
      %2616 = vmatmul.mubr.bf16.gmra.mrb[0].mxu0 %v735
      %v2617 = vpop.f32.mrb[0].mxu0
      %v2618 = vadd.f32 %v2505, %v2617
      %v2619 = vpop.f32.mrb[0].mxu0
      %v2620 = vadd.f32 %v2507, %v2619
      %v2621 = vpop.f32.mrb[0].mxu0
      %v2622 = vadd.f32 %v2509, %v2621
      %v2623 = vpop.f32.mrb[0].mxu0
      %v2624 = vadd.f32 %v2511, %v2623
      %2625 = vmatprep.mubr.bf16.mxu0 %v743
      %2626 = vmatmul.mubr.bf16.gmra.mrb[0].mxu0 %v742
      %v2627 = vpop.f32.mrb[0].mxu0
      %v2628 = vadd.f32 %v2515, %v2627
      %v2629 = vpop.f32.mrb[0].mxu0
      %v2630 = vadd.f32 %v2517, %v2629
      %v2631 = vpop.f32.mrb[0].mxu0
      %v2632 = vadd.f32 %v2519, %v2631
      %v2633 = vpop.f32.mrb[0].mxu0
      %v2634 = vadd.f32 %v2521, %v2633
      %2635 = vmatprep.mubr.bf16.mxu0 %v750
      %2636 = vmatmul.mubr.bf16.gmra.mrb[0].mxu0 %v749
      %v2637 = vpop.f32.mrb[0].mxu0
      %v2638 = vadd.f32 %v2525, %v2637
      %v2639 = vpop.f32.mrb[0].mxu0
      %v2640 = vadd.f32 %v2527, %v2639
      %v2641 = vpop.f32.mrb[0].mxu0
      %v2642 = vadd.f32 %v2529, %v2641
      %v2643 = vpop.f32.mrb[0].mxu0
      %v2644 = vadd.f32 %v2531, %v2643
      %2645 = vmatprep.mubr.bf16.mxu0 %v757
      %2646 = vmatmul.mubr.bf16.gmra.mrb[0].mxu0 %v756
      %v2647 = vpop.f32.mrb[0].mxu0
      %v2648 = vadd.f32 %v2535, %v2647
      %v2649 = vpop.f32.mrb[0].mxu0
      %v2650 = vadd.f32 %v2537, %v2649
      %v2651 = vpop.f32.mrb[0].mxu0
      %v2652 = vadd.f32 %v2539, %v2651
      %v2653 = vpop.f32.mrb[0].mxu0
      %v2654 = vadd.f32 %v2541, %v2653
      %2655 = vmatprep.mubr.bf16.mxu0 %v764
      %2656 = vmatmul.mubr.bf16.gmra.mrb[0].mxu0 %v763
      %v2657 = vpop.f32.mrb[0].mxu0
      %v2658 = vadd.f32 %v2545, %v2657
      %v2659 = vpop.f32.mrb[0].mxu0
      %v2660 = vadd.f32 %v2547, %v2659
      %v2661 = vpop.f32.mrb[0].mxu0
      %v2662 = vadd.f32 %v2549, %v2661
      %v2663 = vpop.f32.mrb[0].mxu0
      %v2664 = vadd.f32 %v2551, %v2663
      %2665 = vmatprep.mubr.bf16.mxu0 %v771
      %2666 = vmatmul.mubr.bf16.gmra.mrb[0].mxu0 %v770
      %v2667 = vpop.f32.mrb[0].mxu0
      %v2668 = vadd.f32 %v2555, %v2667
      %v2669 = vpop.f32.mrb[0].mxu0
      %v2670 = vadd.f32 %v2557, %v2669
      %v2671 = vpop.f32.mrb[0].mxu0
      %v2672 = vadd.f32 %v2559, %v2671
      %v2673 = vpop.f32.mrb[0].mxu0
      %v2674 = vadd.f32 %v2561, %v2673
      %2675 = vdwg.mxu0
      %2676 = vmatprep.subr.bf16.mxu0 %v1712
      %2677 = vmatpush1.bf16.msra.mxu0 %v1711
      %2678 = vmatprep.subr.bf16.mxu0 %v1716
      %2679 = vmatpush1.bf16.msra.mxu0 %v1715
      %2680 = vmatprep.subr.bf16.mxu0 %v1720
      %2681 = vmatpush1.bf16.msra.mxu0 %v1719
      %2682 = vmatprep.subr.bf16.mxu0 %v1724
      %2683 = vmatpush1.bf16.msra.mxu0 %v1723
      %2684 = vmatprep.subr.bf16.mxu0 %v1728
      %2685 = vmatpush1.bf16.msra.mxu0 %v1727
      %2686 = vmatprep.subr.bf16.mxu0 %v1732
      %2687 = vmatpush1.bf16.msra.mxu0 %v1731
      %2688 = vmatprep.subr.bf16.mxu0 %v1736
      %2689 = vmatpush1.bf16.msra.mxu0 %v1735
      %2690 = vmatprep.subr.bf16.mxu0 %v1740
      %2691 = vmatpush1.bf16.msra.mxu0 %v1739
      %2692 = vmatprep.subr.bf16.mxu0 %v1744
      %2693 = vmatpush1.bf16.msra.mxu0 %v1743
      %2694 = vmatprep.subr.bf16.mxu0 %v1748
      %2695 = vmatpush1.bf16.msra.mxu0 %v1747
      %2696 = vmatprep.subr.bf16.mxu0 %v1752
      %2697 = vmatpush1.bf16.msra.mxu0 %v1751
      %2698 = vmatprep.subr.bf16.mxu0 %v1756
      %2699 = vmatpush1.bf16.msra.mxu0 %v1755
      %2700 = vmatprep.subr.bf16.mxu0 %v1760
      %2701 = vmatpush1.bf16.msra.mxu0 %v1759
      %2702 = vmatprep.subr.bf16.mxu0 %v1764
      %2703 = vmatpush1.bf16.msra.mxu0 %v1763
      %2704 = vmatprep.subr.bf16.mxu0 %v1768
      %2705 = vmatpush1.bf16.msra.mxu0 %v1767
      %2706 = vmatprep.subr.bf16.mxu0 %v1772
      %2707 = vmatpush1.bf16.msra.mxu0 %v1771
      %2708 = vmatprep.mubr.bf16.mxu0 %v724
      %2709 = vmatmul.mubr.bf16.gmra.mrb[0].mxu0 %v723
      %v2710 = vpop.f32.mrb[0].mxu0
      %v2711 = vadd.f32 %v2598, %v2710
      %v2712 = vpop.f32.mrb[0].mxu0
      %v2713 = vadd.f32 %v2600, %v2712
      %v2714 = vpop.f32.mrb[0].mxu0
      %v2715 = vadd.f32 %v2602, %v2714
      %v2716 = vpop.f32.mrb[0].mxu0
      %v2717 = vadd.f32 %v2604, %v2716
      %2718 = vmatprep.mubr.bf16.mxu0 %v731
      %2719 = vmatmul.mubr.bf16.gmra.mrb[0].mxu0 %v730
      %v2720 = vpop.f32.mrb[0].mxu0
      %v2721 = vadd.f32 %v2608, %v2720
      %v2722 = vpop.f32.mrb[0].mxu0
      %v2723 = vadd.f32 %v2610, %v2722
      %v2724 = vpop.f32.mrb[0].mxu0
      %v2725 = vadd.f32 %v2612, %v2724
      %v2726 = vpop.f32.mrb[0].mxu0
      %v2727 = vadd.f32 %v2614, %v2726
      %2728 = vmatprep.mubr.bf16.mxu0 %v738
      %2729 = vmatmul.mubr.bf16.gmra.mrb[0].mxu0 %v737
      %v2730 = vpop.f32.mrb[0].mxu0
      %v2731 = vadd.f32 %v2618, %v2730
      %v2732 = vpop.f32.mrb[0].mxu0
      %v2733 = vadd.f32 %v2620, %v2732
      %v2734 = vpop.f32.mrb[0].mxu0
      %v2735 = vadd.f32 %v2622, %v2734
      %v2736 = vpop.f32.mrb[0].mxu0
      %v2737 = vadd.f32 %v2624, %v2736
      %2738 = vmatprep.mubr.bf16.mxu0 %v745
      %2739 = vmatmul.mubr.bf16.gmra.mrb[0].mxu0 %v744
      %v2740 = vpop.f32.mrb[0].mxu0
      %v2741 = vadd.f32 %v2628, %v2740
      %v2742 = vpop.f32.mrb[0].mxu0
      %v2743 = vadd.f32 %v2630, %v2742
      %v2744 = vpop.f32.mrb[0].mxu0
      %v2745 = vadd.f32 %v2632, %v2744
      %v2746 = vpop.f32.mrb[0].mxu0
      %v2747 = vadd.f32 %v2634, %v2746
      %2748 = vmatprep.mubr.bf16.mxu0 %v752
      %2749 = vmatmul.mubr.bf16.gmra.mrb[0].mxu0 %v751
      %v2750 = vpop.f32.mrb[0].mxu0
      %v2751 = vadd.f32 %v2638, %v2750
      %v2752 = vpop.f32.mrb[0].mxu0
      %v2753 = vadd.f32 %v2640, %v2752
      %v2754 = vpop.f32.mrb[0].mxu0
      %v2755 = vadd.f32 %v2642, %v2754
      %v2756 = vpop.f32.mrb[0].mxu0
      %v2757 = vadd.f32 %v2644, %v2756
      %2758 = vmatprep.mubr.bf16.mxu0 %v759
      %2759 = vmatmul.mubr.bf16.gmra.mrb[0].mxu0 %v758
      %v2760 = vpop.f32.mrb[0].mxu0
      %v2761 = vadd.f32 %v2648, %v2760
      %v2762 = vpop.f32.mrb[0].mxu0
      %v2763 = vadd.f32 %v2650, %v2762
      %v2764 = vpop.f32.mrb[0].mxu0
      %v2765 = vadd.f32 %v2652, %v2764
      %v2766 = vpop.f32.mrb[0].mxu0
      %v2767 = vadd.f32 %v2654, %v2766
      %2768 = vmatprep.mubr.bf16.mxu0 %v766
      %2769 = vmatmul.mubr.bf16.gmra.mrb[0].mxu0 %v765
      %v2770 = vpop.f32.mrb[0].mxu0
      %v2771 = vadd.f32 %v2658, %v2770
      %v2772 = vpop.f32.mrb[0].mxu0
      %v2773 = vadd.f32 %v2660, %v2772
      %v2774 = vpop.f32.mrb[0].mxu0
      %v2775 = vadd.f32 %v2662, %v2774
      %v2776 = vpop.f32.mrb[0].mxu0
      %v2777 = vadd.f32 %v2664, %v2776
      %2778 = vmatprep.mubr.bf16.mxu0 %v773
      %2779 = vmatmul.mubr.bf16.gmra.mrb[0].mxu0 %v772
      %v2780 = vpop.f32.mrb[0].mxu0
      %v2781 = vadd.f32 %v2668, %v2780
      %v2782 = vpop.f32.mrb[0].mxu0
      %v2783 = vadd.f32 %v2670, %v2782
      %v2784 = vpop.f32.mrb[0].mxu0
      %v2785 = vadd.f32 %v2672, %v2784
      %v2786 = vpop.f32.mrb[0].mxu0
      %v2787 = vadd.f32 %v2674, %v2786
      %2788 = vdwg.mxu0
      %2789 = vmatprep.subr.bf16.mxu0 %v1776
      %2790 = vmatpush1.bf16.msra.mxu0 %v1775
      %2791 = vmatprep.subr.bf16.mxu0 0
      %2792 = vmatpush1.bf16.msra.mxu0 0
      %2793 = vmatprep.subr.bf16.mxu0 0
      %2794 = vmatpush1.bf16.msra.mxu0 0
      %2795 = vmatprep.subr.bf16.mxu0 0
      %2796 = vmatpush1.bf16.msra.mxu0 0
      %2797 = vmatprep.subr.bf16.mxu0 0
      %2798 = vmatpush1.bf16.msra.mxu0 0
      %2799 = vmatprep.subr.bf16.mxu0 0
      %2800 = vmatpush1.bf16.msra.mxu0 0
      %2801 = vmatprep.subr.bf16.mxu0 0
      %2802 = vmatpush1.bf16.msra.mxu0 0
      %2803 = vmatprep.subr.bf16.mxu0 0
      %2804 = vmatpush1.bf16.msra.mxu0 0
      %2805 = vmatprep.subr.bf16.mxu0 0
      %2806 = vmatpush1.bf16.msra.mxu0 0
      %2807 = vmatprep.subr.bf16.mxu0 0
      %2808 = vmatpush1.bf16.msra.mxu0 0
      %2809 = vmatprep.subr.bf16.mxu0 0
      %2810 = vmatpush1.bf16.msra.mxu0 0
      %2811 = vmatprep.subr.bf16.mxu0 0
      %2812 = vmatpush1.bf16.msra.mxu0 0
      %2813 = vmatprep.subr.bf16.mxu0 0
      %2814 = vmatpush1.bf16.msra.mxu0 0
      %2815 = vmatprep.subr.bf16.mxu0 0
      %2816 = vmatpush1.bf16.msra.mxu0 0
      %2817 = vmatprep.subr.bf16.mxu0 0
      %2818 = vmatpush1.bf16.msra.mxu0 0
      %2819 = vmatprep.subr.bf16.mxu0 0
      %2820 = vmatpush1.bf16.msra.mxu0 0
      %2821 = vmatprep.mubr.bf16.mxu0 0
      %2822 = vmatmul.mubr.bf16.gmra.mrb[0].mxu0 %v1975
      %v2823 = vpop.f32.mrb[0].mxu0
      %v2824 = vadd.f32 %v2711, %v2823
      %v2825 = vpop.f32.mrb[0].mxu0
      %v2826 = vadd.f32 %v2713, %v2825
      %v2827 = vpop.f32.mrb[0].mxu0
      %v2828 = vadd.f32 %v2715, %v2827
      %v2829 = vpop.f32.mrb[0].mxu0
      %v2830 = vadd.f32 %v2717, %v2829
      %2831 = vmatprep.mubr.bf16.mxu0 0
      %2832 = vmatmul.mubr.bf16.gmra.mrb[0].mxu0 %v1978
      %v2833 = vpop.f32.mrb[0].mxu0
      %v2834 = vadd.f32 %v2721, %v2833
      %v2835 = vpop.f32.mrb[0].mxu0
      %v2836 = vadd.f32 %v2723, %v2835
      %v2837 = vpop.f32.mrb[0].mxu0
      %v2838 = vadd.f32 %v2725, %v2837
      %v2839 = vpop.f32.mrb[0].mxu0
      %v2840 = vadd.f32 %v2727, %v2839
      %2841 = vmatprep.mubr.bf16.mxu0 0
      %2842 = vmatmul.mubr.bf16.gmra.mrb[0].mxu0 %v1981
      %v2843 = vpop.f32.mrb[0].mxu0
      %v2844 = vadd.f32 %v2731, %v2843
      %v2845 = vpop.f32.mrb[0].mxu0
      %v2846 = vadd.f32 %v2733, %v2845
      %v2847 = vpop.f32.mrb[0].mxu0
      %v2848 = vadd.f32 %v2735, %v2847
      %v2849 = vpop.f32.mrb[0].mxu0
      %v2850 = vadd.f32 %v2737, %v2849
      %2851 = vmatprep.mubr.bf16.mxu0 0
      %2852 = vmatmul.mubr.bf16.gmra.mrb[0].mxu0 %v1984
      %v2853 = vpop.f32.mrb[0].mxu0
      %v2854 = vadd.f32 %v2741, %v2853
      %v2855 = vpop.f32.mrb[0].mxu0
      %v2856 = vadd.f32 %v2743, %v2855
      %v2857 = vpop.f32.mrb[0].mxu0
      %v2858 = vadd.f32 %v2745, %v2857
      %v2859 = vpop.f32.mrb[0].mxu0
      %v2860 = vadd.f32 %v2747, %v2859
      %2861 = vmatprep.mubr.bf16.mxu0 0
      %2862 = vmatmul.mubr.bf16.gmra.mrb[0].mxu0 %v1987
      %v2863 = vpop.f32.mrb[0].mxu0
      %v2864 = vadd.f32 %v2751, %v2863
      %v2865 = vpop.f32.mrb[0].mxu0
      %v2866 = vadd.f32 %v2753, %v2865
      %v2867 = vpop.f32.mrb[0].mxu0
      %v2868 = vadd.f32 %v2755, %v2867
      %v2869 = vpop.f32.mrb[0].mxu0
      %v2870 = vadd.f32 %v2757, %v2869
      %2871 = vmatprep.mubr.bf16.mxu0 0
      %2872 = vmatmul.mubr.bf16.gmra.mrb[0].mxu0 %v1990
      %v2873 = vpop.f32.mrb[0].mxu0
      %v2874 = vadd.f32 %v2761, %v2873
      %v2875 = vpop.f32.mrb[0].mxu0
      %v2876 = vadd.f32 %v2763, %v2875
      %v2877 = vpop.f32.mrb[0].mxu0
      %v2878 = vadd.f32 %v2765, %v2877
      %v2879 = vpop.f32.mrb[0].mxu0
      %v2880 = vadd.f32 %v2767, %v2879
      %2881 = vmatprep.mubr.bf16.mxu0 0
      %2882 = vmatmul.mubr.bf16.gmra.mrb[0].mxu0 %v1993
      %v2883 = vpop.f32.mrb[0].mxu0
      %v2884 = vadd.f32 %v2771, %v2883
      %v2885 = vpop.f32.mrb[0].mxu0
      %v2886 = vadd.f32 %v2773, %v2885
      %v2887 = vpop.f32.mrb[0].mxu0
      %v2888 = vadd.f32 %v2775, %v2887
      %v2889 = vpop.f32.mrb[0].mxu0
      %v2890 = vadd.f32 %v2777, %v2889
      %2891 = vmatprep.mubr.bf16.mxu0 0
      %2892 = vmatmul.mubr.bf16.gmra.mrb[0].mxu0 %v1996
      %v2893 = vpop.f32.mrb[0].mxu0
      %v2894 = vadd.f32 %v2781, %v2893
      %v2895 = vpop.f32.mrb[0].mxu0
      %v2896 = vadd.f32 %v2783, %v2895
      %v2897 = vpop.f32.mrb[0].mxu0
      %v2898 = vadd.f32 %v2785, %v2897
      %v2899 = vpop.f32.mrb[0].mxu0
      %v2900 = vadd.f32 %v2787, %v2899
      %2901 = vdwg.mxu0
      %v2902 = vmax.f32 %v2372, 0.0
      %v2903 = vmax.f32 %v2374, 0.0
      %v2904 = vmax.f32 %v2824, 0.0
      %v2905 = vmax.f32 %v2826, 0.0
      %v2906 = vmax.f32 %v2376, 0.0
      %v2907 = vmax.f32 %v2378, 0.0
      %v2908 = vmax.f32 %v2828, 0.0
      %v2909 = vmax.f32 %v2830, 0.0
      %v2910 = vmax.f32 %v2382, 0.0
      %v2911 = vmax.f32 %v2384, 0.0
      %v2912 = vmax.f32 %v2834, 0.0
      %v2913 = vmax.f32 %v2836, 0.0
      %v2914 = vmax.f32 %v2386, 0.0
      %v2915 = vmax.f32 %v2388, 0.0
      %v2916 = vmax.f32 %v2838, 0.0
      %v2917 = vmax.f32 %v2840, 0.0
      %v2918 = vmax.f32 %v2392, 0.0
      %v2919 = vmax.f32 %v2394, 0.0
      %v2920 = vmax.f32 %v2844, 0.0
      %v2921 = vmax.f32 %v2846, 0.0
      %v2922 = vmax.f32 %v2396, 0.0
      %v2923 = vmax.f32 %v2398, 0.0
      %v2924 = vmax.f32 %v2848, 0.0
      %v2925 = vmax.f32 %v2850, 0.0
      %v2926 = vmax.f32 %v2402, 0.0
      %v2927 = vmax.f32 %v2404, 0.0
      %v2928 = vmax.f32 %v2854, 0.0
      %v2929 = vmax.f32 %v2856, 0.0
      %v2930 = vmax.f32 %v2406, 0.0
      %v2931 = vmax.f32 %v2408, 0.0
      %v2932 = vmax.f32 %v2858, 0.0
      %v2933 = vmax.f32 %v2860, 0.0
      %v2934 = vmax.f32 %v2412, 0.0
      %v2935 = vmax.f32 %v2414, 0.0
      %v2936 = vmax.f32 %v2864, 0.0
      %v2937 = vmax.f32 %v2866, 0.0
      %v2938 = vmax.f32 %v2416, 0.0
      %v2939 = vmax.f32 %v2418, 0.0
      %v2940 = vmax.f32 %v2868, 0.0
      %v2941 = vmax.f32 %v2870, 0.0
      %v2942 = vmax.f32 %v2422, 0.0
      %v2943 = vmax.f32 %v2424, 0.0
      %v2944 = vmax.f32 %v2874, 0.0
      %v2945 = vmax.f32 %v2876, 0.0
      %v2946 = vmax.f32 %v2426, 0.0
      %v2947 = vmax.f32 %v2428, 0.0
      %v2948 = vmax.f32 %v2878, 0.0
      %v2949 = vmax.f32 %v2880, 0.0
      %v2950 = vmax.f32 %v2432, 0.0
      %v2951 = vmax.f32 %v2434, 0.0
      %v2952 = vmax.f32 %v2884, 0.0
      %v2953 = vmax.f32 %v2886, 0.0
      %v2954 = vmax.f32 %v2436, 0.0
      %v2955 = vmax.f32 %v2438, 0.0
      %v2956 = vmax.f32 %v2888, 0.0
      %v2957 = vmax.f32 %v2890, 0.0
      %v2958 = vmax.f32 %v2442, 0.0
      %v2959 = vmax.f32 %v2444, 0.0
      %v2960 = vmax.f32 %v2894, 0.0
      %v2961 = vmax.f32 %v2896, 0.0
      %v2962 = vmax.f32 %v2446, 0.0
      %v2963 = vmax.f32 %v2448, 0.0
      %v2964 = vmax.f32 %v2898, 0.0
      %v2965 = vmax.f32 %v2900, 0.0
      %v2966 = vpack.c.bf16 %v2906, %v2902
      %v2967 = vpack.c.bf16 %v2907, %v2903
      %v2968 = vpack.c.bf16 %v2908, %v2904
      %v2969 = vpack.c.bf16 %v2909, %v2905
      %v2970 = vpack.c.bf16 %v2914, %v2910
      %v2971 = vpack.c.bf16 %v2915, %v2911
      %v2972 = vpack.c.bf16 %v2916, %v2912
      %v2973 = vpack.c.bf16 %v2917, %v2913
      %v2974 = vpack.c.bf16 %v2922, %v2918
      %v2975 = vpack.c.bf16 %v2923, %v2919
      %v2976 = vpack.c.bf16 %v2924, %v2920
      %v2977 = vpack.c.bf16 %v2925, %v2921
      %v2978 = vpack.c.bf16 %v2930, %v2926
      %v2979 = vpack.c.bf16 %v2931, %v2927
      %v2980 = vpack.c.bf16 %v2932, %v2928
      %v2981 = vpack.c.bf16 %v2933, %v2929
      %v2982 = vpack.c.bf16 %v2938, %v2934
      %v2983 = vpack.c.bf16 %v2939, %v2935
      %v2984 = vpack.c.bf16 %v2940, %v2936
      %v2985 = vpack.c.bf16 %v2941, %v2937
      %v2986 = vpack.c.bf16 %v2946, %v2942
      %v2987 = vpack.c.bf16 %v2947, %v2943
      %v2988 = vpack.c.bf16 %v2948, %v2944
      %v2989 = vpack.c.bf16 %v2949, %v2945
      %v2990 = vpack.c.bf16 %v2954, %v2950
      %v2991 = vpack.c.bf16 %v2955, %v2951
      %v2992 = vpack.c.bf16 %v2956, %v2952
      %v2993 = vpack.c.bf16 %v2957, %v2953
      %v2994 = vpack.c.bf16 %v2962, %v2958
      %v2995 = vpack.c.bf16 %v2963, %v2959
      %v2996 = vpack.c.bf16 %v2964, %v2960
      %v2997 = vpack.c.bf16 %v2965, %v2961
      %v2998 = vld [vmem:[%s3] sm:$0xff]
      %v2999 = vld [vmem:[%s3 + $0x8] sm:$0xff]
      %v3000 = vld [vmem:[%s3 + $0x10] sm:$0xff]
      %v3001 = vld [vmem:[%s3 + $0x18] sm:$0xff]
      %v3002 = vld [vmem:[%s3 + $0x20] sm:$0xff]
      %v3003 = vld [vmem:[%s3 + $0x28] sm:$0xff]
      %v3004 = vld [vmem:[%s3 + $0x30] sm:$0xff]
      %v3005 = vld [vmem:[%s3 + $0x38] sm:$0xff]
      %v3006 = vld [vmem:[%s3 + $0x40] sm:$0xff]
      %v3007 = vld [vmem:[%s3 + $0x48] sm:$0xff]
      %v3008 = vld [vmem:[%s3 + $0x50] sm:$0xff]
      %v3009 = vld [vmem:[%s3 + $0x58] sm:$0xff]
      %v3010 = vld [vmem:[%s3 + $0x60] sm:$0xff]
      %v3011 = vld [vmem:[%s3 + $0x68] sm:$0xff]
      %v3012 = vld [vmem:[%s3 + $0x70] sm:$0xff]
      %v3013 = vld [vmem:[%s3 + $0x78] sm:$0xff]
      %v3014 = vld [vmem:[%s3 + $0x80] sm:$0xff]
      %v3015 = vld [vmem:[%s3 + $0x88] sm:$0xff]
      %v3016 = vld [vmem:[%s3 + $0x90] sm:$0xff]
      %v3017 = vld [vmem:[%s3 + $0x98] sm:$0xff]
      %v3018 = vld [vmem:[%s3 + $0xa0] sm:$0xff]
      %v3019 = vld [vmem:[%s3 + $0xa8] sm:$0xff]
      %v3020 = vld [vmem:[%s3 + $0xb0] sm:$0xff]
      %v3021 = vld [vmem:[%s3 + $0xb8] sm:$0xff]
      %v3022 = vld [vmem:[%s3 + $0xc0] sm:$0xff]
      %v3023 = vld [vmem:[%s3 + $0xc8] sm:$0xff]
      %v3024 = vld [vmem:[%s3 + $0xd0] sm:$0xff]
      %v3025 = vld [vmem:[%s3 + $0xd8] sm:$0xff]
      %v3026 = vld [vmem:[%s3 + $0xe0] sm:$0xff]
      %v3027 = vld [vmem:[%s3 + $0xe8] sm:$0xff]
      %v3028 = vld [vmem:[%s3 + $0xf0] sm:$0xff]
      %v3029 = vld [vmem:[%s3 + $0xf8] sm:$0xff]
      %v3030 = vld [vmem:[%s3 + $0x100] sm:$0xff]
      %v3031 = vld [vmem:[%s3 + $0x108] sm:$0xff]
      %v3032 = vld [vmem:[%s3 + $0x110] sm:$0xff]
      %v3033 = vld [vmem:[%s3 + $0x118] sm:$0xff]
      %v3034 = vld [vmem:[%s3 + $0x120] sm:$0xff]
      %v3035 = vld [vmem:[%s3 + $0x128] sm:$0xff]
      %v3036 = vld [vmem:[%s3 + $0x130] sm:$0xff]
      %v3037 = vld [vmem:[%s3 + $0x138] sm:$0xff]
      %v3038 = vld [vmem:[%s3 + $0x140] sm:$0xff]
      %v3039 = vld [vmem:[%s3 + $0x148] sm:$0xff]
      %v3040 = vld [vmem:[%s3 + $0x150] sm:$0xff]
      %v3041 = vld [vmem:[%s3 + $0x158] sm:$0xff]
      %v3042 = vld [vmem:[%s3 + $0x160] sm:$0xff]
      %v3043 = vld [vmem:[%s3 + $0x168] sm:$0xff]
      %v3044 = vld [vmem:[%s3 + $0x170] sm:$0xff]
      %v3045 = vld [vmem:[%s3 + $0x178] sm:$0xff]
      %v3046 = vld [vmem:[%s3 + $0x180] sm:$0xff]
      %v3047 = vld [vmem:[%s3 + $0x188] sm:$0xff]
      %v3048 = vld [vmem:[%s3 + $0x190] sm:$0xff]
      %v3049 = vld [vmem:[%s3 + $0x198] sm:$0xff]
      %v3050 = vld [vmem:[%s3 + $0x1a0] sm:$0xff]
      %v3051 = vld [vmem:[%s3 + $0x1a8] sm:$0xff]
      %v3052 = vld [vmem:[%s3 + $0x1b0] sm:$0xff]
      %v3053 = vld [vmem:[%s3 + $0x1b8] sm:$0xff]
      %v3054 = vld [vmem:[%s3 + $0x1c0] sm:$0xff]
      %v3055 = vld [vmem:[%s3 + $0x1c8] sm:$0xff]
      %v3056 = vld [vmem:[%s3 + $0x1d0] sm:$0xff]
      %v3057 = vld [vmem:[%s3 + $0x1d8] sm:$0xff]
      %v3058 = vld [vmem:[%s3 + $0x1e0] sm:$0xff]
      %v3059 = vld [vmem:[%s3 + $0x1e8] sm:$0xff]
      %v3060 = vld [vmem:[%s3 + $0x1f0] sm:$0xff]
      %v3061 = vld [vmem:[%s3 + $0x1f8] sm:$0xff]
      %v3062 = vld [vmem:[%s4] sm:$0x3]
      %v3064 = vlaneseq
      %v3065 = vshrl.u32 %v3064, 7
      %v3066 = vsub.s32 0, %v3065
      %v3067 = vrot.slane %v3062, %v3066
      %v3068 = vlaneseq
      %v3069 = vshrl.u32 %v3068, 7
      %v3070 = vsub.s32 1, %v3069
      %v3071 = vrot.slane %v3062, %v3070
      %v3138 = vunpack.c.l.b16 %v2998
      %v3139 = vunpack.c.h.b16 %v2998
      %v3140 = vunpack.c.l.b16 %v2999
      %v3141 = vunpack.c.h.b16 %v2999
      %v3142 = vunpack.c.l.b16 %v3000
      %v3143 = vunpack.c.h.b16 %v3000
      %v3144 = vunpack.c.l.b16 %v3001
      %v3145 = vunpack.c.h.b16 %v3001
      %v3146 = vunpack.c.l.b16 %v3002
      %v3147 = vunpack.c.h.b16 %v3002
      %v3148 = vunpack.c.l.b16 %v3003
      %v3149 = vunpack.c.h.b16 %v3003
      %v3150 = vunpack.c.l.b16 %v3004
      %v3151 = vunpack.c.h.b16 %v3004
      %v3152 = vunpack.c.l.b16 %v3005
      %v3153 = vunpack.c.h.b16 %v3005
      %v3154 = vunpack.c.l.b16 %v3006
      %v3155 = vunpack.c.h.b16 %v3006
      %v3156 = vunpack.c.l.b16 %v3007
      %v3157 = vunpack.c.h.b16 %v3007
      %v3158 = vunpack.c.l.b16 %v3008
      %v3159 = vunpack.c.h.b16 %v3008
      %v3160 = vunpack.c.l.b16 %v3009
      %v3161 = vunpack.c.h.b16 %v3009
      %v3162 = vunpack.c.l.b16 %v3010
      %v3163 = vunpack.c.h.b16 %v3010
      %v3164 = vunpack.c.l.b16 %v3011
      %v3165 = vunpack.c.h.b16 %v3011
      %v3166 = vunpack.c.l.b16 %v3012
      %v3167 = vunpack.c.h.b16 %v3012
      %v3168 = vunpack.c.l.b16 %v3013
      %v3169 = vunpack.c.h.b16 %v3013
      %v3170 = vunpack.c.l.b16 %v3014
      %v3171 = vunpack.c.h.b16 %v3014
      %v3172 = vunpack.c.l.b16 %v3015
      %v3173 = vunpack.c.h.b16 %v3015
      %v3174 = vunpack.c.l.b16 %v3016
      %v3175 = vunpack.c.h.b16 %v3016
      %v3176 = vunpack.c.l.b16 %v3017
      %v3177 = vunpack.c.h.b16 %v3017
      %v3178 = vunpack.c.l.b16 %v3018
      %v3179 = vunpack.c.h.b16 %v3018
      %v3180 = vunpack.c.l.b16 %v3019
      %v3181 = vunpack.c.h.b16 %v3019
      %v3182 = vunpack.c.l.b16 %v3020
      %v3183 = vunpack.c.h.b16 %v3020
      %v3184 = vunpack.c.l.b16 %v3021
      %v3185 = vunpack.c.h.b16 %v3021
      %v3186 = vunpack.c.l.b16 %v3022
      %v3187 = vunpack.c.h.b16 %v3022
      %v3188 = vunpack.c.l.b16 %v3023
      %v3189 = vunpack.c.h.b16 %v3023
      %v3190 = vunpack.c.l.b16 %v3024
      %v3191 = vunpack.c.h.b16 %v3024
      %v3192 = vunpack.c.l.b16 %v3025
      %v3193 = vunpack.c.h.b16 %v3025
      %v3194 = vunpack.c.l.b16 %v3026
      %v3195 = vunpack.c.h.b16 %v3026
      %v3196 = vunpack.c.l.b16 %v3027
      %v3197 = vunpack.c.h.b16 %v3027
      %v3198 = vunpack.c.l.b16 %v3028
      %v3199 = vunpack.c.h.b16 %v3028
      %v3200 = vunpack.c.l.b16 %v3029
      %v3201 = vunpack.c.h.b16 %v3029
      %v3202 = vunpack.c.l.b16 %v3030
      %v3203 = vunpack.c.h.b16 %v3030
      %v3204 = vunpack.c.l.b16 %v3031
      %v3205 = vunpack.c.h.b16 %v3031
      %v3206 = vunpack.c.l.b16 %v3032
      %v3207 = vunpack.c.h.b16 %v3032
      %v3208 = vunpack.c.l.b16 %v3033
      %v3209 = vunpack.c.h.b16 %v3033
      %v3210 = vunpack.c.l.b16 %v3034
      %v3211 = vunpack.c.h.b16 %v3034
      %v3212 = vunpack.c.l.b16 %v3035
      %v3213 = vunpack.c.h.b16 %v3035
      %v3214 = vunpack.c.l.b16 %v3036
      %v3215 = vunpack.c.h.b16 %v3036
      %v3216 = vunpack.c.l.b16 %v3037
      %v3217 = vunpack.c.h.b16 %v3037
      %v3218 = vunpack.c.l.b16 %v3038
      %v3219 = vunpack.c.h.b16 %v3038
      %v3220 = vunpack.c.l.b16 %v3039
      %v3221 = vunpack.c.h.b16 %v3039
      %v3222 = vunpack.c.l.b16 %v3040
      %v3223 = vunpack.c.h.b16 %v3040
      %v3224 = vunpack.c.l.b16 %v3041
      %v3225 = vunpack.c.h.b16 %v3041
      %v3226 = vunpack.c.l.b16 %v3042
      %v3227 = vunpack.c.h.b16 %v3042
      %v3228 = vunpack.c.l.b16 %v3043
      %v3229 = vunpack.c.h.b16 %v3043
      %v3230 = vunpack.c.l.b16 %v3044
      %v3231 = vunpack.c.h.b16 %v3044
      %v3232 = vunpack.c.l.b16 %v3045
      %v3233 = vunpack.c.h.b16 %v3045
      %v3234 = vunpack.c.l.b16 %v3046
      %v3235 = vunpack.c.h.b16 %v3046
      %v3236 = vunpack.c.l.b16 %v3047
      %v3237 = vunpack.c.h.b16 %v3047
      %v3238 = vunpack.c.l.b16 %v3048
      %v3239 = vunpack.c.h.b16 %v3048
      %v3240 = vunpack.c.l.b16 %v3049
      %v3241 = vunpack.c.h.b16 %v3049
      %v3242 = vunpack.c.l.b16 %v3050
      %v3243 = vunpack.c.h.b16 %v3050
      %v3244 = vunpack.c.l.b16 %v3051
      %v3245 = vunpack.c.h.b16 %v3051
      %v3246 = vunpack.c.l.b16 %v3052
      %v3247 = vunpack.c.h.b16 %v3052
      %v3248 = vunpack.c.l.b16 %v3053
      %v3249 = vunpack.c.h.b16 %v3053
      %v3250 = vunpack.c.l.b16 %v3054
      %v3251 = vunpack.c.h.b16 %v3054
      %v3252 = vunpack.c.l.b16 %v3055
      %v3253 = vunpack.c.h.b16 %v3055
      %v3254 = vunpack.c.l.b16 %v3056
      %v3255 = vunpack.c.h.b16 %v3056
      %v3256 = vunpack.c.l.b16 %v3057
      %v3257 = vunpack.c.h.b16 %v3057
      %v3258 = vunpack.c.l.b16 %v3058
      %v3259 = vunpack.c.h.b16 %v3058
      %v3260 = vunpack.c.l.b16 %v3059
      %v3261 = vunpack.c.h.b16 %v3059
      %v3262 = vunpack.c.l.b16 %v3060
      %v3263 = vunpack.c.h.b16 %v3060
      %v3264 = vunpack.c.l.b16 %v3061
      %v3265 = vunpack.c.h.b16 %v3061
      %v3266 = vpack.c.b16 %v3140, %v3138
      %v3267 = vpack.c.b16 %v3141, %v3139
      %v3268 = vpack.c.b16 %v3144, %v3142
      %v3269 = vpack.c.b16 %v3145, %v3143
      %v3270 = vpack.c.b16 %v3148, %v3146
      %v3271 = vpack.c.b16 %v3149, %v3147
      %v3272 = vpack.c.b16 %v3152, %v3150
      %v3273 = vpack.c.b16 %v3153, %v3151
      %v3274 = vpack.c.b16 %v3156, %v3154
      %v3275 = vpack.c.b16 %v3157, %v3155
      %v3276 = vpack.c.b16 %v3160, %v3158
      %v3277 = vpack.c.b16 %v3161, %v3159
      %v3278 = vpack.c.b16 %v3164, %v3162
      %v3279 = vpack.c.b16 %v3165, %v3163
      %v3280 = vpack.c.b16 %v3168, %v3166
      %v3281 = vpack.c.b16 %v3169, %v3167
      %v3282 = vpack.c.b16 %v3172, %v3170
      %v3283 = vpack.c.b16 %v3173, %v3171
      %v3284 = vpack.c.b16 %v3176, %v3174
      %v3285 = vpack.c.b16 %v3177, %v3175
      %v3286 = vpack.c.b16 %v3180, %v3178
      %v3287 = vpack.c.b16 %v3181, %v3179
      %v3288 = vpack.c.b16 %v3184, %v3182
      %v3289 = vpack.c.b16 %v3185, %v3183
      %v3290 = vpack.c.b16 %v3188, %v3186
      %v3291 = vpack.c.b16 %v3189, %v3187
      %v3292 = vpack.c.b16 %v3192, %v3190
      %v3293 = vpack.c.b16 %v3193, %v3191
      %v3294 = vpack.c.b16 %v3196, %v3194
      %v3295 = vpack.c.b16 %v3197, %v3195
      %v3296 = vpack.c.b16 %v3200, %v3198
      %v3297 = vpack.c.b16 %v3201, %v3199
      %v3298 = vpack.c.b16 %v3204, %v3202
      %v3299 = vpack.c.b16 %v3205, %v3203
      %v3300 = vpack.c.b16 %v3208, %v3206
      %v3301 = vpack.c.b16 %v3209, %v3207
      %v3302 = vpack.c.b16 %v3212, %v3210
      %v3303 = vpack.c.b16 %v3213, %v3211
      %v3304 = vpack.c.b16 %v3216, %v3214
      %v3305 = vpack.c.b16 %v3217, %v3215
      %v3306 = vpack.c.b16 %v3220, %v3218
      %v3307 = vpack.c.b16 %v3221, %v3219
      %v3308 = vpack.c.b16 %v3224, %v3222
      %v3309 = vpack.c.b16 %v3225, %v3223
      %v3310 = vpack.c.b16 %v3228, %v3226
      %v3311 = vpack.c.b16 %v3229, %v3227
      %v3312 = vpack.c.b16 %v3232, %v3230
      %v3313 = vpack.c.b16 %v3233, %v3231
      %v3314 = vpack.c.b16 %v3236, %v3234
      %v3315 = vpack.c.b16 %v3237, %v3235
      %v3316 = vpack.c.b16 %v3240, %v3238
      %v3317 = vpack.c.b16 %v3241, %v3239
      %v3318 = vpack.c.b16 %v3244, %v3242
      %v3319 = vpack.c.b16 %v3245, %v3243
      %v3320 = vpack.c.b16 %v3248, %v3246
      %v3321 = vpack.c.b16 %v3249, %v3247
      %v3322 = vpack.c.b16 %v3252, %v3250
      %v3323 = vpack.c.b16 %v3253, %v3251
      %v3324 = vpack.c.b16 %v3256, %v3254
      %v3325 = vpack.c.b16 %v3257, %v3255
      %v3326 = vpack.c.b16 %v3260, %v3258
      %v3327 = vpack.c.b16 %v3261, %v3259
      %v3328 = vpack.c.b16 %v3264, %v3262
      %v3329 = vpack.c.b16 %v3265, %v3263
      %3394 = vmatprep.subr.bf16.mxu0 %v3267
      %3395 = vmatpush1.bf16.msra.mxu0 %v3266
      %3396 = vmatprep.subr.bf16.mxu0 %v3269
      %3397 = vmatpush1.bf16.msra.mxu0 %v3268
      %3398 = vmatprep.subr.bf16.mxu0 %v3271
      %3399 = vmatpush1.bf16.msra.mxu0 %v3270
      %3400 = vmatprep.subr.bf16.mxu0 %v3273
      %3401 = vmatpush1.bf16.msra.mxu0 %v3272
      %3402 = vmatprep.subr.bf16.mxu0 %v3275
      %3403 = vmatpush1.bf16.msra.mxu0 %v3274
      %3404 = vmatprep.subr.bf16.mxu0 %v3277
      %3405 = vmatpush1.bf16.msra.mxu0 %v3276
      %3406 = vmatprep.subr.bf16.mxu0 %v3279
      %3407 = vmatpush1.bf16.msra.mxu0 %v3278
      %3408 = vmatprep.subr.bf16.mxu0 %v3281
      %3409 = vmatpush1.bf16.msra.mxu0 %v3280
      %3410 = vmatprep.subr.bf16.mxu0 %v3283
      %3411 = vmatpush1.bf16.msra.mxu0 %v3282
      %3412 = vmatprep.subr.bf16.mxu0 %v3285
      %3413 = vmatpush1.bf16.msra.mxu0 %v3284
      %3414 = vmatprep.subr.bf16.mxu0 %v3287
      %3415 = vmatpush1.bf16.msra.mxu0 %v3286
      %3416 = vmatprep.subr.bf16.mxu0 %v3289
      %3417 = vmatpush1.bf16.msra.mxu0 %v3288
      %3418 = vmatprep.subr.bf16.mxu0 %v3291
      %3419 = vmatpush1.bf16.msra.mxu0 %v3290
      %3420 = vmatprep.subr.bf16.mxu0 %v3293
      %3421 = vmatpush1.bf16.msra.mxu0 %v3292
      %3422 = vmatprep.subr.bf16.mxu0 %v3295
      %3423 = vmatpush1.bf16.msra.mxu0 %v3294
      %3424 = vmatprep.subr.bf16.mxu0 %v3297
      %3425 = vmatpush1.bf16.msra.mxu0 %v3296
      %3426 = vmatprep.mubr.bf16.mxu0 %v2967
      %3427 = vmatmul.mubr.bf16.gmra.mrb[0].mxu0 %v2966
      %v3428 = vpop.f32.mrb[0].mxu0
      %v3429 = vadd.f32 %v3067, %v3428
      %v3430 = vpop.f32.mrb[0].mxu0
      %v3431 = vadd.f32 %v3071, %v3430
      %v3432 = vpop.f32.mrb[0].mxu0
      %v3433 = vadd.f32 %v3067, %v3432
      %v3434 = vpop.f32.mrb[0].mxu0
      %v3435 = vadd.f32 %v3071, %v3434
      %3436 = vmatprep.mubr.bf16.mxu0 %v2971
      %3437 = vmatmul.mubr.bf16.gmra.mrb[0].mxu0 %v2970
      %v3438 = vpop.f32.mrb[0].mxu0
      %v3439 = vadd.f32 %v3067, %v3438
      %v3440 = vpop.f32.mrb[0].mxu0
      %v3441 = vadd.f32 %v3071, %v3440
      %v3442 = vpop.f32.mrb[0].mxu0
      %v3443 = vadd.f32 %v3067, %v3442
      %v3444 = vpop.f32.mrb[0].mxu0
      %v3445 = vadd.f32 %v3071, %v3444
      %3446 = vmatprep.mubr.bf16.mxu0 %v2975
      %3447 = vmatmul.mubr.bf16.gmra.mrb[0].mxu0 %v2974
      %v3448 = vpop.f32.mrb[0].mxu0
      %v3449 = vadd.f32 %v3067, %v3448
      %v3450 = vpop.f32.mrb[0].mxu0
      %v3451 = vadd.f32 %v3071, %v3450
      %v3452 = vpop.f32.mrb[0].mxu0
      %v3453 = vadd.f32 %v3067, %v3452
      %v3454 = vpop.f32.mrb[0].mxu0
      %v3455 = vadd.f32 %v3071, %v3454
      %3456 = vmatprep.mubr.bf16.mxu0 %v2979
      %3457 = vmatmul.mubr.bf16.gmra.mrb[0].mxu0 %v2978
      %v3458 = vpop.f32.mrb[0].mxu0
      %v3459 = vadd.f32 %v3067, %v3458
      %v3460 = vpop.f32.mrb[0].mxu0
      %v3461 = vadd.f32 %v3071, %v3460
      %v3462 = vpop.f32.mrb[0].mxu0
      %v3463 = vadd.f32 %v3067, %v3462
      %v3464 = vpop.f32.mrb[0].mxu0
      %v3465 = vadd.f32 %v3071, %v3464
      %3466 = vmatprep.mubr.bf16.mxu0 %v2983
      %3467 = vmatmul.mubr.bf16.gmra.mrb[0].mxu0 %v2982
      %v3468 = vpop.f32.mrb[0].mxu0
      %v3469 = vadd.f32 %v3067, %v3468
      %v3470 = vpop.f32.mrb[0].mxu0
      %v3471 = vadd.f32 %v3071, %v3470
      %v3472 = vpop.f32.mrb[0].mxu0
      %v3473 = vadd.f32 %v3067, %v3472
      %v3474 = vpop.f32.mrb[0].mxu0
      %v3475 = vadd.f32 %v3071, %v3474
      %3476 = vmatprep.mubr.bf16.mxu0 %v2987
      %3477 = vmatmul.mubr.bf16.gmra.mrb[0].mxu0 %v2986
      %v3478 = vpop.f32.mrb[0].mxu0
      %v3479 = vadd.f32 %v3067, %v3478
      %v3480 = vpop.f32.mrb[0].mxu0
      %v3481 = vadd.f32 %v3071, %v3480
      %v3482 = vpop.f32.mrb[0].mxu0
      %v3483 = vadd.f32 %v3067, %v3482
      %v3484 = vpop.f32.mrb[0].mxu0
      %v3485 = vadd.f32 %v3071, %v3484
      %3486 = vmatprep.mubr.bf16.mxu0 %v2991
      %3487 = vmatmul.mubr.bf16.gmra.mrb[0].mxu0 %v2990
      %v3488 = vpop.f32.mrb[0].mxu0
      %v3489 = vadd.f32 %v3067, %v3488
      %v3490 = vpop.f32.mrb[0].mxu0
      %v3491 = vadd.f32 %v3071, %v3490
      %v3492 = vpop.f32.mrb[0].mxu0
      %v3493 = vadd.f32 %v3067, %v3492
      %v3494 = vpop.f32.mrb[0].mxu0
      %v3495 = vadd.f32 %v3071, %v3494
      %3496 = vmatprep.mubr.bf16.mxu0 %v2995
      %3497 = vmatmul.mubr.bf16.gmra.mrb[0].mxu0 %v2994
      %v3498 = vpop.f32.mrb[0].mxu0
      %v3499 = vadd.f32 %v3067, %v3498
      %v3500 = vpop.f32.mrb[0].mxu0
      %v3501 = vadd.f32 %v3071, %v3500
      %v3502 = vpop.f32.mrb[0].mxu0
      %v3503 = vadd.f32 %v3067, %v3502
      %v3504 = vpop.f32.mrb[0].mxu0
      %v3505 = vadd.f32 %v3071, %v3504
      %3506 = vdwg.mxu0
      %3507 = vmatprep.subr.bf16.mxu0 %v3299
      %3508 = vmatpush1.bf16.msra.mxu0 %v3298
      %3509 = vmatprep.subr.bf16.mxu0 %v3301
      %3510 = vmatpush1.bf16.msra.mxu0 %v3300
      %3511 = vmatprep.subr.bf16.mxu0 %v3303
      %3512 = vmatpush1.bf16.msra.mxu0 %v3302
      %3513 = vmatprep.subr.bf16.mxu0 %v3305
      %3514 = vmatpush1.bf16.msra.mxu0 %v3304
      %3515 = vmatprep.subr.bf16.mxu0 %v3307
      %3516 = vmatpush1.bf16.msra.mxu0 %v3306
      %3517 = vmatprep.subr.bf16.mxu0 %v3309
      %3518 = vmatpush1.bf16.msra.mxu0 %v3308
      %3519 = vmatprep.subr.bf16.mxu0 %v3311
      %3520 = vmatpush1.bf16.msra.mxu0 %v3310
      %3521 = vmatprep.subr.bf16.mxu0 %v3313
      %3522 = vmatpush1.bf16.msra.mxu0 %v3312
      %3523 = vmatprep.subr.bf16.mxu0 %v3315
      %3524 = vmatpush1.bf16.msra.mxu0 %v3314
      %3525 = vmatprep.subr.bf16.mxu0 %v3317
      %3526 = vmatpush1.bf16.msra.mxu0 %v3316
      %3527 = vmatprep.subr.bf16.mxu0 %v3319
      %3528 = vmatpush1.bf16.msra.mxu0 %v3318
      %3529 = vmatprep.subr.bf16.mxu0 %v3321
      %3530 = vmatpush1.bf16.msra.mxu0 %v3320
      %3531 = vmatprep.subr.bf16.mxu0 %v3323
      %3532 = vmatpush1.bf16.msra.mxu0 %v3322
      %3533 = vmatprep.subr.bf16.mxu0 %v3325
      %3534 = vmatpush1.bf16.msra.mxu0 %v3324
      %3535 = vmatprep.subr.bf16.mxu0 %v3327
      %3536 = vmatpush1.bf16.msra.mxu0 %v3326
      %3537 = vmatprep.subr.bf16.mxu0 %v3329
      %3538 = vmatpush1.bf16.msra.mxu0 %v3328
      %3539 = vmatprep.mubr.bf16.mxu0 %v2969
      %3540 = vmatmul.mubr.bf16.gmra.mrb[0].mxu0 %v2968
      %v3541 = vpop.f32.mrb[0].mxu0
      %v3542 = vadd.f32 %v3429, %v3541
      %v3543 = vpop.f32.mrb[0].mxu0
      %v3544 = vadd.f32 %v3431, %v3543
      %v3545 = vpop.f32.mrb[0].mxu0
      %v3546 = vadd.f32 %v3433, %v3545
      %v3547 = vpop.f32.mrb[0].mxu0
      %v3548 = vadd.f32 %v3435, %v3547
      %3549 = vmatprep.mubr.bf16.mxu0 %v2973
      %3550 = vmatmul.mubr.bf16.gmra.mrb[0].mxu0 %v2972
      %v3551 = vpop.f32.mrb[0].mxu0
      %v3552 = vadd.f32 %v3439, %v3551
      %v3553 = vpop.f32.mrb[0].mxu0
      %v3554 = vadd.f32 %v3441, %v3553
      %v3555 = vpop.f32.mrb[0].mxu0
      %v3556 = vadd.f32 %v3443, %v3555
      %v3557 = vpop.f32.mrb[0].mxu0
      %v3558 = vadd.f32 %v3445, %v3557
      %3559 = vmatprep.mubr.bf16.mxu0 %v2977
      %3560 = vmatmul.mubr.bf16.gmra.mrb[0].mxu0 %v2976
      %v3561 = vpop.f32.mrb[0].mxu0
      %v3562 = vadd.f32 %v3449, %v3561
      %v3563 = vpop.f32.mrb[0].mxu0
      %v3564 = vadd.f32 %v3451, %v3563
      %v3565 = vpop.f32.mrb[0].mxu0
      %v3566 = vadd.f32 %v3453, %v3565
      %v3567 = vpop.f32.mrb[0].mxu0
      %v3568 = vadd.f32 %v3455, %v3567
      %3569 = vmatprep.mubr.bf16.mxu0 %v2981
      %3570 = vmatmul.mubr.bf16.gmra.mrb[0].mxu0 %v2980
      %v3571 = vpop.f32.mrb[0].mxu0
      %v3572 = vadd.f32 %v3459, %v3571
      %v3573 = vpop.f32.mrb[0].mxu0
      %v3574 = vadd.f32 %v3461, %v3573
      %v3575 = vpop.f32.mrb[0].mxu0
      %v3576 = vadd.f32 %v3463, %v3575
      %v3577 = vpop.f32.mrb[0].mxu0
      %v3578 = vadd.f32 %v3465, %v3577
      %3579 = vmatprep.mubr.bf16.mxu0 %v2985
      %3580 = vmatmul.mubr.bf16.gmra.mrb[0].mxu0 %v2984
      %v3581 = vpop.f32.mrb[0].mxu0
      %v3582 = vadd.f32 %v3469, %v3581
      %v3583 = vpop.f32.mrb[0].mxu0
      %v3584 = vadd.f32 %v3471, %v3583
      %v3585 = vpop.f32.mrb[0].mxu0
      %v3586 = vadd.f32 %v3473, %v3585
      %v3587 = vpop.f32.mrb[0].mxu0
      %v3588 = vadd.f32 %v3475, %v3587
      %3589 = vmatprep.mubr.bf16.mxu0 %v2989
      %3590 = vmatmul.mubr.bf16.gmra.mrb[0].mxu0 %v2988
      %v3591 = vpop.f32.mrb[0].mxu0
      %v3592 = vadd.f32 %v3479, %v3591
      %v3593 = vpop.f32.mrb[0].mxu0
      %v3594 = vadd.f32 %v3481, %v3593
      %v3595 = vpop.f32.mrb[0].mxu0
      %v3596 = vadd.f32 %v3483, %v3595
      %v3597 = vpop.f32.mrb[0].mxu0
      %v3598 = vadd.f32 %v3485, %v3597
      %3599 = vmatprep.mubr.bf16.mxu0 %v2993
      %3600 = vmatmul.mubr.bf16.gmra.mrb[0].mxu0 %v2992
      %v3601 = vpop.f32.mrb[0].mxu0
      %v3602 = vadd.f32 %v3489, %v3601
      %v3603 = vpop.f32.mrb[0].mxu0
      %v3604 = vadd.f32 %v3491, %v3603
      %v3605 = vpop.f32.mrb[0].mxu0
      %v3606 = vadd.f32 %v3493, %v3605
      %v3607 = vpop.f32.mrb[0].mxu0
      %v3608 = vadd.f32 %v3495, %v3607
      %3609 = vmatprep.mubr.bf16.mxu0 %v2997
      %3610 = vmatmul.mubr.bf16.gmra.mrb[0].mxu0 %v2996
      %v3611 = vpop.f32.mrb[0].mxu0
      %v3612 = vadd.f32 %v3499, %v3611
      %v3613 = vpop.f32.mrb[0].mxu0
      %v3614 = vadd.f32 %v3501, %v3613
      %v3615 = vpop.f32.mrb[0].mxu0
      %v3616 = vadd.f32 %v3503, %v3615
      %v3617 = vpop.f32.mrb[0].mxu0
      %v3618 = vadd.f32 %v3505, %v3617
      %3619 = vdwg.mxu0
      %v3620 = vmax.f32 %v3542, 0.0
      %v3621 = vmax.f32 %v3544, 0.0
      %v3622 = vmax.f32 %v3546, 0.0
      %v3623 = vmax.f32 %v3548, 0.0
      %v3624 = vmax.f32 %v3552, 0.0
      %v3625 = vmax.f32 %v3554, 0.0
      %v3626 = vmax.f32 %v3556, 0.0
      %v3627 = vmax.f32 %v3558, 0.0
      %v3628 = vmax.f32 %v3562, 0.0
      %v3629 = vmax.f32 %v3564, 0.0
      %v3630 = vmax.f32 %v3566, 0.0
      %v3631 = vmax.f32 %v3568, 0.0
      %v3632 = vmax.f32 %v3572, 0.0
      %v3633 = vmax.f32 %v3574, 0.0
      %v3634 = vmax.f32 %v3576, 0.0
      %v3635 = vmax.f32 %v3578, 0.0
      %v3636 = vmax.f32 %v3582, 0.0
      %v3637 = vmax.f32 %v3584, 0.0
      %v3638 = vmax.f32 %v3586, 0.0
      %v3639 = vmax.f32 %v3588, 0.0
      %v3640 = vmax.f32 %v3592, 0.0
      %v3641 = vmax.f32 %v3594, 0.0
      %v3642 = vmax.f32 %v3596, 0.0
      %v3643 = vmax.f32 %v3598, 0.0
      %v3644 = vmax.f32 %v3602, 0.0
      %v3645 = vmax.f32 %v3604, 0.0
      %v3646 = vmax.f32 %v3606, 0.0
      %v3647 = vmax.f32 %v3608, 0.0
      %v3648 = vmax.f32 %v3612, 0.0
      %v3649 = vmax.f32 %v3614, 0.0
      %v3650 = vmax.f32 %v3616, 0.0
      %v3651 = vmax.f32 %v3618, 0.0
      %v3652 = vpack.c.bf16 %v3622, %v3620
      %v3653 = vpack.c.bf16 %v3623, %v3621
      %v3654 = vpack.c.bf16 %v3626, %v3624
      %v3655 = vpack.c.bf16 %v3627, %v3625
      %v3656 = vpack.c.bf16 %v3630, %v3628
      %v3657 = vpack.c.bf16 %v3631, %v3629
      %v3658 = vpack.c.bf16 %v3634, %v3632
      %v3659 = vpack.c.bf16 %v3635, %v3633
      %v3660 = vpack.c.bf16 %v3638, %v3636
      %v3661 = vpack.c.bf16 %v3639, %v3637
      %v3662 = vpack.c.bf16 %v3642, %v3640
      %v3663 = vpack.c.bf16 %v3643, %v3641
      %v3664 = vpack.c.bf16 %v3646, %v3644
      %v3665 = vpack.c.bf16 %v3647, %v3645
      %v3666 = vpack.c.bf16 %v3650, %v3648
      %v3667 = vpack.c.bf16 %v3651, %v3649
      %v3668 = vld [vmem:[%s5] sm:$0xf]
      %v3669 = vld [vmem:[%s5 + $0x4] sm:$0xf]
      %v3670 = vld [vmem:[%s5 + $0x8] sm:$0xf]
      %v3671 = vld [vmem:[%s5 + $0xc] sm:$0xf]
      %v3672 = vld [vmem:[%s5 + $0x10] sm:$0xf]
      %v3673 = vld [vmem:[%s5 + $0x14] sm:$0xf]
      %v3674 = vld [vmem:[%s5 + $0x18] sm:$0xf]
      %v3675 = vld [vmem:[%s5 + $0x1c] sm:$0xf]
      %v3676 = vld [vmem:[%s5 + $0x20] sm:$0xf]
      %v3677 = vld [vmem:[%s5 + $0x24] sm:$0xf]
      %v3678 = vld [vmem:[%s5 + $0x28] sm:$0xf]
      %v3679 = vld [vmem:[%s5 + $0x2c] sm:$0xf]
      %v3680 = vld [vmem:[%s5 + $0x30] sm:$0xf]
      %v3681 = vld [vmem:[%s5 + $0x34] sm:$0xf]
      %v3682 = vld [vmem:[%s5 + $0x38] sm:$0xf]
      %v3683 = vld [vmem:[%s5 + $0x3c] sm:$0xf]
      %v3684 = vld [vmem:[%s5 + $0x40] sm:$0xf]
      %v3685 = vld [vmem:[%s5 + $0x44] sm:$0xf]
      %v3686 = vld [vmem:[%s5 + $0x48] sm:$0xf]
      %v3687 = vld [vmem:[%s5 + $0x4c] sm:$0xf]
      %v3688 = vld [vmem:[%s5 + $0x50] sm:$0xf]
      %v3689 = vld [vmem:[%s5 + $0x54] sm:$0xf]
      %v3690 = vld [vmem:[%s5 + $0x58] sm:$0xf]
      %v3691 = vld [vmem:[%s5 + $0x5c] sm:$0xf]
      %v3692 = vld [vmem:[%s5 + $0x60] sm:$0xf]
      %v3693 = vld [vmem:[%s5 + $0x64] sm:$0xf]
      %v3694 = vld [vmem:[%s5 + $0x68] sm:$0xf]
      %v3695 = vld [vmem:[%s5 + $0x6c] sm:$0xf]
      %v3696 = vld [vmem:[%s5 + $0x70] sm:$0xf]
      %v3697 = vld [vmem:[%s5 + $0x74] sm:$0xf]
      %v3698 = vld [vmem:[%s5 + $0x78] sm:$0xf]
      %v3699 = vld [vmem:[%s5 + $0x7c] sm:$0xf]
      %v3700 = vld [vmem:[%s6] sm:$0x1]
      %v3702 = vlaneseq
      %v3703 = vshrl.u32 %v3702, 7
      %v3704 = vsub.s32 0, %v3703
      %v3705 = vrot.slane %v3700, %v3704
      %v3739 = vunpack.c.l.b16 %v3668
      %v3740 = vunpack.c.l.b16 %v3669
      %v3741 = vunpack.c.l.b16 %v3670
      %v3742 = vunpack.c.l.b16 %v3671
      %v3743 = vunpack.c.l.b16 %v3672
      %v3744 = vunpack.c.l.b16 %v3673
      %v3745 = vunpack.c.l.b16 %v3674
      %v3746 = vunpack.c.l.b16 %v3675
      %v3747 = vunpack.c.l.b16 %v3676
      %v3748 = vunpack.c.l.b16 %v3677
      %v3749 = vunpack.c.l.b16 %v3678
      %v3750 = vunpack.c.l.b16 %v3679
      %v3751 = vunpack.c.l.b16 %v3680
      %v3752 = vunpack.c.l.b16 %v3681
      %v3753 = vunpack.c.l.b16 %v3682
      %v3754 = vunpack.c.l.b16 %v3683
      %v3755 = vunpack.c.l.b16 %v3684
      %v3756 = vunpack.c.l.b16 %v3685
      %v3757 = vunpack.c.l.b16 %v3686
      %v3758 = vunpack.c.l.b16 %v3687
      %v3759 = vunpack.c.l.b16 %v3688
      %v3760 = vunpack.c.l.b16 %v3689
      %v3761 = vunpack.c.l.b16 %v3690
      %v3762 = vunpack.c.l.b16 %v3691
      %v3763 = vunpack.c.l.b16 %v3692
      %v3764 = vunpack.c.l.b16 %v3693
      %v3765 = vunpack.c.l.b16 %v3694
      %v3766 = vunpack.c.l.b16 %v3695
      %v3767 = vunpack.c.l.b16 %v3696
      %v3768 = vunpack.c.l.b16 %v3697
      %v3769 = vunpack.c.l.b16 %v3698
      %v3770 = vunpack.c.l.b16 %v3699
      %v3771 = vpack.c.b16 %v3740, %v3739
      %v3772 = vpack.c.b16 %v3742, %v3741
      %v3773 = vpack.c.b16 %v3744, %v3743
      %v3774 = vpack.c.b16 %v3746, %v3745
      %v3775 = vpack.c.b16 %v3748, %v3747
      %v3776 = vpack.c.b16 %v3750, %v3749
      %v3777 = vpack.c.b16 %v3752, %v3751
      %v3778 = vpack.c.b16 %v3754, %v3753
      %v3779 = vpack.c.b16 %v3756, %v3755
      %v3780 = vpack.c.b16 %v3758, %v3757
      %v3781 = vpack.c.b16 %v3760, %v3759
      %v3782 = vpack.c.b16 %v3762, %v3761
      %v3783 = vpack.c.b16 %v3764, %v3763
      %v3784 = vpack.c.b16 %v3766, %v3765
      %v3785 = vpack.c.b16 %v3768, %v3767
      %v3786 = vpack.c.b16 %v3770, %v3769
      %3803 = vmatprep.subr.bf16.mxu0 0
      %3804 = vmatpush1.bf16.msra.mxu0 %v3771
      %3805 = vmatprep.subr.bf16.mxu0 0
      %3806 = vmatpush1.bf16.msra.mxu0 %v3772
      %3807 = vmatprep.subr.bf16.mxu0 0
      %3808 = vmatpush1.bf16.msra.mxu0 %v3773
      %3809 = vmatprep.subr.bf16.mxu0 0
      %3810 = vmatpush1.bf16.msra.mxu0 %v3774
      %3811 = vmatprep.subr.bf16.mxu0 0
      %3812 = vmatpush1.bf16.msra.mxu0 %v3775
      %3813 = vmatprep.subr.bf16.mxu0 0
      %3814 = vmatpush1.bf16.msra.mxu0 %v3776
      %3815 = vmatprep.subr.bf16.mxu0 0
      %3816 = vmatpush1.bf16.msra.mxu0 %v3777
      %3817 = vmatprep.subr.bf16.mxu0 0
      %3818 = vmatpush1.bf16.msra.mxu0 %v3778
      %3819 = vmatprep.subr.bf16.mxu0 0
      %3820 = vmatpush1.bf16.msra.mxu0 %v3779
      %3821 = vmatprep.subr.bf16.mxu0 0
      %3822 = vmatpush1.bf16.msra.mxu0 %v3780
      %3823 = vmatprep.subr.bf16.mxu0 0
      %3824 = vmatpush1.bf16.msra.mxu0 %v3781
      %3825 = vmatprep.subr.bf16.mxu0 0
      %3826 = vmatpush1.bf16.msra.mxu0 %v3782
      %3827 = vmatprep.subr.bf16.mxu0 0
      %3828 = vmatpush1.bf16.msra.mxu0 %v3783
      %3829 = vmatprep.subr.bf16.mxu0 0
      %3830 = vmatpush1.bf16.msra.mxu0 %v3784
      %3831 = vmatprep.subr.bf16.mxu0 0
      %3832 = vmatpush1.bf16.msra.mxu0 %v3785
      %3833 = vmatprep.subr.bf16.mxu0 0
      %3834 = vmatpush1.bf16.msra.mxu0 %v3786
      %3835 = vmatprep.mubr.bf16.mxu0 %v3653
      %3836 = vmatmul.mubr.bf16.gmra.mrb[0].mxu0 %v3652
      %v3837 = vpop.f32.mrb[0].mxu0
      %v3838 = vadd.f32 %v3705, %v3837
      %v3839 = vpop.f32.mrb[0].mxu0
      %v3840 = vpop.f32.mrb[0].mxu0
      %v3841 = vadd.f32 %v3705, %v3840
      %v3842 = vpop.f32.mrb[0].mxu0
      %3843 = vmatprep.mubr.bf16.mxu0 %v3655
      %3844 = vmatmul.mubr.bf16.gmra.mrb[0].mxu0 %v3654
      %v3845 = vpop.f32.mrb[0].mxu0
      %v3846 = vadd.f32 %v3705, %v3845
      %v3847 = vpop.f32.mrb[0].mxu0
      %v3848 = vpop.f32.mrb[0].mxu0
      %v3849 = vadd.f32 %v3705, %v3848
      %v3850 = vpop.f32.mrb[0].mxu0
      %3851 = vmatprep.mubr.bf16.mxu0 %v3657
      %3852 = vmatmul.mubr.bf16.gmra.mrb[0].mxu0 %v3656
      %v3853 = vpop.f32.mrb[0].mxu0
      %v3854 = vadd.f32 %v3705, %v3853
      %v3855 = vpop.f32.mrb[0].mxu0
      %v3856 = vpop.f32.mrb[0].mxu0
      %v3857 = vadd.f32 %v3705, %v3856
      %v3858 = vpop.f32.mrb[0].mxu0
      %3859 = vmatprep.mubr.bf16.mxu0 %v3659
      %3860 = vmatmul.mubr.bf16.gmra.mrb[0].mxu0 %v3658
      %v3861 = vpop.f32.mrb[0].mxu0
      %v3862 = vadd.f32 %v3705, %v3861
      %v3863 = vpop.f32.mrb[0].mxu0
      %v3864 = vpop.f32.mrb[0].mxu0
      %v3865 = vadd.f32 %v3705, %v3864
      %v3866 = vpop.f32.mrb[0].mxu0
      %3867 = vmatprep.mubr.bf16.mxu0 %v3661
      %3868 = vmatmul.mubr.bf16.gmra.mrb[0].mxu0 %v3660
      %v3869 = vpop.f32.mrb[0].mxu0
      %v3870 = vadd.f32 %v3705, %v3869
      %v3871 = vpop.f32.mrb[0].mxu0
      %v3872 = vpop.f32.mrb[0].mxu0
      %v3873 = vadd.f32 %v3705, %v3872
      %v3874 = vpop.f32.mrb[0].mxu0
      %3875 = vmatprep.mubr.bf16.mxu0 %v3663
      %3876 = vmatmul.mubr.bf16.gmra.mrb[0].mxu0 %v3662
      %v3877 = vpop.f32.mrb[0].mxu0
      %v3878 = vadd.f32 %v3705, %v3877
      %v3879 = vpop.f32.mrb[0].mxu0
      %v3880 = vpop.f32.mrb[0].mxu0
      %v3881 = vadd.f32 %v3705, %v3880
      %v3882 = vpop.f32.mrb[0].mxu0
      %3883 = vmatprep.mubr.bf16.mxu0 %v3665
      %3884 = vmatmul.mubr.bf16.gmra.mrb[0].mxu0 %v3664
      %v3885 = vpop.f32.mrb[0].mxu0
      %v3886 = vadd.f32 %v3705, %v3885
      %v3887 = vpop.f32.mrb[0].mxu0
      %v3888 = vpop.f32.mrb[0].mxu0
      %v3889 = vadd.f32 %v3705, %v3888
      %v3890 = vpop.f32.mrb[0].mxu0
      %3891 = vmatprep.mubr.bf16.mxu0 %v3667
      %3892 = vmatmul.mubr.bf16.gmra.mrb[0].mxu0 %v3666
      %v3893 = vpop.f32.mrb[0].mxu0
      %v3894 = vadd.f32 %v3705, %v3893
      %v3895 = vpop.f32.mrb[0].mxu0
      %v3896 = vpop.f32.mrb[0].mxu0
      %v3897 = vadd.f32 %v3705, %v3896
      %v3898 = vpop.f32.mrb[0].mxu0
      %3899 = vdwg.mxu0
      %v3900 = vmax.f32 %v3838, 0.0
      %v3901 = vmax.f32 %v3841, 0.0
      %v3902 = vmax.f32 %v3846, 0.0
      %v3903 = vmax.f32 %v3849, 0.0
      %v3904 = vmax.f32 %v3854, 0.0
      %v3905 = vmax.f32 %v3857, 0.0
      %v3906 = vmax.f32 %v3862, 0.0
      %v3907 = vmax.f32 %v3865, 0.0
      %v3908 = vmax.f32 %v3870, 0.0
      %v3909 = vmax.f32 %v3873, 0.0
      %v3910 = vmax.f32 %v3878, 0.0
      %v3911 = vmax.f32 %v3881, 0.0
      %v3912 = vmax.f32 %v3886, 0.0
      %v3913 = vmax.f32 %v3889, 0.0
      %v3914 = vmax.f32 %v3894, 0.0
      %v3915 = vmax.f32 %v3897, 0.0
      %v3916 = vpack.c.bf16 %v3901, %v3900
      %v3917 = vpack.c.bf16 %v3903, %v3902
      %v3918 = vpack.c.bf16 %v3905, %v3904
      %v3919 = vpack.c.bf16 %v3907, %v3906
      %v3920 = vpack.c.bf16 %v3909, %v3908
      %v3921 = vpack.c.bf16 %v3911, %v3910
      %v3922 = vpack.c.bf16 %v3913, %v3912
      %v3923 = vpack.c.bf16 %v3915, %v3914
      %v3924 = vld [vmem:[%s7] sm:$0xf]
      %v3925 = vld [vmem:[%s7 + $0x4] sm:$0xf]
      %v3926 = vld [vmem:[%s7 + $0x8] sm:$0xf]
      %v3927 = vld [vmem:[%s7 + $0xc] sm:$0xf]
      %v3928 = vld [vmem:[%s7 + $0x10] sm:$0xf]
      %v3929 = vld [vmem:[%s7 + $0x14] sm:$0xf]
      %v3930 = vld [vmem:[%s7 + $0x18] sm:$0xf]
      %v3931 = vld [vmem:[%s7 + $0x1c] sm:$0xf]
      %v3932 = vld [vmem:[%s7 + $0x20] sm:$0xf]
      %v3933 = vld [vmem:[%s7 + $0x24] sm:$0xf]
      %v3934 = vld [vmem:[%s7 + $0x28] sm:$0xf]
      %v3935 = vld [vmem:[%s7 + $0x2c] sm:$0xf]
      %v3936 = vld [vmem:[%s7 + $0x30] sm:$0xf]
      %v3937 = vld [vmem:[%s7 + $0x34] sm:$0xf]
      %v3938 = vld [vmem:[%s7 + $0x38] sm:$0xf]
      %v3939 = vld [vmem:[%s7 + $0x3c] sm:$0xf]
      %v3940 = vld [vmem:[%s8] sm:$0x1]
      %v3942 = vlaneseq
      %v3943 = vshrl.u32 %v3942, 7
      %v3944 = vsub.s32 0, %v3943
      %v3945 = vrot.slane %v3940, %v3944
      %v3963 = vunpack.c.l.b16 %v3924
      %v3964 = vunpack.c.l.b16 %v3925
      %v3965 = vunpack.c.l.b16 %v3926
      %v3966 = vunpack.c.l.b16 %v3927
      %v3967 = vunpack.c.l.b16 %v3928
      %v3968 = vunpack.c.l.b16 %v3929
      %v3969 = vunpack.c.l.b16 %v3930
      %v3970 = vunpack.c.l.b16 %v3931
      %v3971 = vunpack.c.l.b16 %v3932
      %v3972 = vunpack.c.l.b16 %v3933
      %v3973 = vunpack.c.l.b16 %v3934
      %v3974 = vunpack.c.l.b16 %v3935
      %v3975 = vunpack.c.l.b16 %v3936
      %v3976 = vunpack.c.l.b16 %v3937
      %v3977 = vunpack.c.l.b16 %v3938
      %v3978 = vunpack.c.l.b16 %v3939
      %v3979 = vpack.c.b16 %v3964, %v3963
      %v3980 = vpack.c.b16 %v3966, %v3965
      %v3981 = vpack.c.b16 %v3968, %v3967
      %v3982 = vpack.c.b16 %v3970, %v3969
      %v3983 = vpack.c.b16 %v3972, %v3971
      %v3984 = vpack.c.b16 %v3974, %v3973
      %v3985 = vpack.c.b16 %v3976, %v3975
      %v3986 = vpack.c.b16 %v3978, %v3977
      %3995 = vmatprep.subr.bf16.mxu0 0
      %3996 = vmatpush1.bf16.msra.mxu0 %v3979
      %3997 = vmatprep.subr.bf16.mxu0 0
      %3998 = vmatpush1.bf16.msra.mxu0 %v3980
      %3999 = vmatprep.subr.bf16.mxu0 0
      %4000 = vmatpush1.bf16.msra.mxu0 %v3981
      %4001 = vmatprep.subr.bf16.mxu0 0
      %4002 = vmatpush1.bf16.msra.mxu0 %v3982
      %4003 = vmatprep.subr.bf16.mxu0 0
      %4004 = vmatpush1.bf16.msra.mxu0 %v3983
      %4005 = vmatprep.subr.bf16.mxu0 0
      %4006 = vmatpush1.bf16.msra.mxu0 %v3984
      %4007 = vmatprep.subr.bf16.mxu0 0
      %4008 = vmatpush1.bf16.msra.mxu0 %v3985
      %4009 = vmatprep.subr.bf16.mxu0 0
      %4010 = vmatpush1.bf16.msra.mxu0 %v3986
      %4011 = vmatprep.subr.bf16.mxu0 0
      %4012 = vmatpush1.bf16.msra.mxu0 0
      %4013 = vmatprep.subr.bf16.mxu0 0
      %4014 = vmatpush1.bf16.msra.mxu0 0
      %4015 = vmatprep.subr.bf16.mxu0 0
      %4016 = vmatpush1.bf16.msra.mxu0 0
      %4017 = vmatprep.subr.bf16.mxu0 0
      %4018 = vmatpush1.bf16.msra.mxu0 0
      %4019 = vmatprep.subr.bf16.mxu0 0
      %4020 = vmatpush1.bf16.msra.mxu0 0
      %4021 = vmatprep.subr.bf16.mxu0 0
      %4022 = vmatpush1.bf16.msra.mxu0 0
      %4023 = vmatprep.subr.bf16.mxu0 0
      %4024 = vmatpush1.bf16.msra.mxu0 0
      %4025 = vmatprep.subr.bf16.mxu0 0
      %4026 = vmatpush1.bf16.msra.mxu0 0
      %4027 = vmatprep.mubr.bf16.mxu0 0
      %4028 = vmatmul.mubr.bf16.gmra.mrb[0].mxu0 %v3916
      %v4029 = vpop.f32.mrb[0].mxu0
      %v4030 = vadd.f32 %v3945, %v4029
      %v4031 = vpop.f32.mrb[0].mxu0
      %v4032 = vpop.f32.mrb[0].mxu0
      %v4033 = vadd.f32 %v3945, %v4032
      %v4034 = vpop.f32.mrb[0].mxu0
      %4035 = vmatprep.mubr.bf16.mxu0 0
      %4036 = vmatmul.mubr.bf16.gmra.mrb[0].mxu0 %v3917
      %v4037 = vpop.f32.mrb[0].mxu0
      %v4038 = vadd.f32 %v3945, %v4037
      %v4039 = vpop.f32.mrb[0].mxu0
      %v4040 = vpop.f32.mrb[0].mxu0
      %v4041 = vadd.f32 %v3945, %v4040
      %v4042 = vpop.f32.mrb[0].mxu0
      %4043 = vmatprep.mubr.bf16.mxu0 0
      %4044 = vmatmul.mubr.bf16.gmra.mrb[0].mxu0 %v3918
      %v4045 = vpop.f32.mrb[0].mxu0
      %v4046 = vadd.f32 %v3945, %v4045
      %v4047 = vpop.f32.mrb[0].mxu0
      %v4048 = vpop.f32.mrb[0].mxu0
      %v4049 = vadd.f32 %v3945, %v4048
      %v4050 = vpop.f32.mrb[0].mxu0
      %4051 = vmatprep.mubr.bf16.mxu0 0
      %4052 = vmatmul.mubr.bf16.gmra.mrb[0].mxu0 %v3919
      %v4053 = vpop.f32.mrb[0].mxu0
      %v4054 = vadd.f32 %v3945, %v4053
      %v4055 = vpop.f32.mrb[0].mxu0
      %v4056 = vpop.f32.mrb[0].mxu0
      %v4057 = vadd.f32 %v3945, %v4056
      %v4058 = vpop.f32.mrb[0].mxu0
      %4059 = vmatprep.mubr.bf16.mxu0 0
      %4060 = vmatmul.mubr.bf16.gmra.mrb[0].mxu0 %v3920
      %v4061 = vpop.f32.mrb[0].mxu0
      %v4062 = vadd.f32 %v3945, %v4061
      %v4063 = vpop.f32.mrb[0].mxu0
      %v4064 = vpop.f32.mrb[0].mxu0
      %v4065 = vadd.f32 %v3945, %v4064
      %v4066 = vpop.f32.mrb[0].mxu0
      %4067 = vmatprep.mubr.bf16.mxu0 0
      %4068 = vmatmul.mubr.bf16.gmra.mrb[0].mxu0 %v3921
      %v4069 = vpop.f32.mrb[0].mxu0
      %v4070 = vadd.f32 %v3945, %v4069
      %v4071 = vpop.f32.mrb[0].mxu0
      %v4072 = vpop.f32.mrb[0].mxu0
      %v4073 = vadd.f32 %v3945, %v4072
      %v4074 = vpop.f32.mrb[0].mxu0
      %4075 = vmatprep.mubr.bf16.mxu0 0
      %4076 = vmatmul.mubr.bf16.gmra.mrb[0].mxu0 %v3922
      %v4077 = vpop.f32.mrb[0].mxu0
      %v4078 = vadd.f32 %v3945, %v4077
      %v4079 = vpop.f32.mrb[0].mxu0
      %v4080 = vpop.f32.mrb[0].mxu0
      %v4081 = vadd.f32 %v3945, %v4080
      %v4082 = vpop.f32.mrb[0].mxu0
      %4083 = vmatprep.mubr.bf16.mxu0 0
      %4084 = vmatmul.mubr.bf16.gmra.mrb[0].mxu0 %v3923
      %v4085 = vpop.f32.mrb[0].mxu0
      %v4086 = vadd.f32 %v3945, %v4085
      %v4087 = vpop.f32.mrb[0].mxu0
      %v4088 = vpop.f32.mrb[0].mxu0
      %v4089 = vadd.f32 %v3945, %v4088
      %v4090 = vpop.f32.mrb[0].mxu0
      %4091 = vdwg.mxu0
      %v4092 = vld [vmem:[%s597] sm:$0xff]
      %v4093 = vld [vmem:[%s597 + $0x8] sm:$0xff]
      %v4094 = vld [vmem:[%s597 + $0x10] sm:$0xff]
      %v4095 = vld [vmem:[%s597 + $0x18] sm:$0xff]
      %v4096 = vld [vmem:[%s597 + $0x20] sm:$0xff]
      %v4097 = vld [vmem:[%s597 + $0x28] sm:$0xff]
      %v4098 = vld [vmem:[%s597 + $0x30] sm:$0xff]
      %v4099 = vld [vmem:[%s597 + $0x38] sm:$0xff]
      %v4100 = vld [vmem:[%s597 + $0x40] sm:$0xff]
      %v4101 = vld [vmem:[%s597 + $0x48] sm:$0xff]
      %v4102 = vld [vmem:[%s597 + $0x50] sm:$0xff]
      %v4103 = vld [vmem:[%s597 + $0x58] sm:$0xff]
      %v4104 = vld [vmem:[%s597 + $0x60] sm:$0xff]
      %v4105 = vld [vmem:[%s597 + $0x68] sm:$0xff]
      %v4106 = vld [vmem:[%s597 + $0x70] sm:$0xff]
      %v4107 = vld [vmem:[%s597 + $0x78] sm:$0xff]
      %v4108 = vmul.f32 %v4030, 0.5
      %v4109 = vmul.f32 %v4033, 0.5
      %v4110 = vmul.f32 %v4038, 0.5
      %v4111 = vmul.f32 %v4041, 0.5
      %v4112 = vmul.f32 %v4046, 0.5
      %v4113 = vmul.f32 %v4049, 0.5
      %v4114 = vmul.f32 %v4054, 0.5
      %v4115 = vmul.f32 %v4057, 0.5
      %v4116 = vmul.f32 %v4062, 0.5
      %v4117 = vmul.f32 %v4065, 0.5
      %v4118 = vmul.f32 %v4070, 0.5
      %v4119 = vmul.f32 %v4073, 0.5
      %v4120 = vmul.f32 %v4078, 0.5
      %v4121 = vmul.f32 %v4081, 0.5
      %v4122 = vmul.f32 %v4086, 0.5
      %v4123 = vmul.f32 %v4089, 0.5
      %v4124 = vmul.f32 %v4108, 1.442695
      %v4125 = vpow.pop %v4124
      %v4126 = vmul.f32 %v4109, 1.442695
      %v4127 = vpow.pop %v4126
      %v4128 = vmul.f32 %v4110, 1.442695
      %v4129 = vpow.pop %v4128
      %v4130 = vmul.f32 %v4111, 1.442695
      %v4131 = vpow.pop %v4130
      %v4132 = vmul.f32 %v4112, 1.442695
      %v4133 = vpow.pop %v4132
      %v4134 = vmul.f32 %v4113, 1.442695
      %v4135 = vpow.pop %v4134
      %v4136 = vmul.f32 %v4114, 1.442695
      %v4137 = vpow.pop %v4136
      %v4138 = vmul.f32 %v4115, 1.442695
      %v4139 = vpow.pop %v4138
      %v4140 = vmul.f32 %v4116, 1.442695
      %v4141 = vpow.pop %v4140
      %v4142 = vmul.f32 %v4117, 1.442695
      %v4143 = vpow.pop %v4142
      %v4144 = vmul.f32 %v4118, 1.442695
      %v4145 = vpow.pop %v4144
      %v4146 = vmul.f32 %v4119, 1.442695
      %v4147 = vpow.pop %v4146
      %v4148 = vmul.f32 %v4120, 1.442695
      %v4149 = vpow.pop %v4148
      %v4150 = vmul.f32 %v4121, 1.442695
      %v4151 = vpow.pop %v4150
      %v4152 = vmul.f32 %v4122, 1.442695
      %v4153 = vpow.pop %v4152
      %v4154 = vmul.f32 %v4123, 1.442695
      %v4155 = vpow.pop %v4154
      %4172 = vrot.lane.b32.xlu0 %v4125, 126
      %v4173 = vpop.permute.xlu0 %4172
      %4174 = vrot.lane.b32.xlu0 %v4127, 126
      %v4175 = vpop.permute.xlu0 %4174
      %4176 = vrot.lane.b32.xlu0 %v4129, 126
      %v4177 = vpop.permute.xlu0 %4176
      %4178 = vrot.lane.b32.xlu0 %v4131, 126
      %v4179 = vpop.permute.xlu0 %4178
      %4180 = vrot.lane.b32.xlu0 %v4133, 126
      %v4181 = vpop.permute.xlu0 %4180
      %4182 = vrot.lane.b32.xlu0 %v4135, 126
      %v4183 = vpop.permute.xlu0 %4182
      %4184 = vrot.lane.b32.xlu0 %v4137, 126
      %v4185 = vpop.permute.xlu0 %4184
      %4186 = vrot.lane.b32.xlu0 %v4139, 126
      %v4187 = vpop.permute.xlu0 %4186
      %4188 = vrot.lane.b32.xlu0 %v4141, 126
      %v4189 = vpop.permute.xlu0 %4188
      %4190 = vrot.lane.b32.xlu0 %v4143, 126
      %v4191 = vpop.permute.xlu0 %4190
      %4192 = vrot.lane.b32.xlu0 %v4145, 126
      %v4193 = vpop.permute.xlu0 %4192
      %4194 = vrot.lane.b32.xlu0 %v4147, 126
      %v4195 = vpop.permute.xlu0 %4194
      %4196 = vrot.lane.b32.xlu0 %v4149, 126
      %v4197 = vpop.permute.xlu0 %4196
      %4198 = vrot.lane.b32.xlu0 %v4151, 126
      %v4199 = vpop.permute.xlu0 %4198
      %4200 = vrot.lane.b32.xlu0 %v4153, 126
      %v4201 = vpop.permute.xlu0 %4200
      %4202 = vrot.lane.b32.xlu0 %v4155, 126
      %v4203 = vpop.permute.xlu0 %4202
      %v4220 = vmul.f32 %v4092, %v4173
      %v4221 = vmul.f32 %v4093, %v4175
      %v4222 = vmul.f32 %v4094, %v4177
      %v4223 = vmul.f32 %v4095, %v4179
      %v4224 = vmul.f32 %v4096, %v4181
      %v4225 = vmul.f32 %v4097, %v4183
      %v4226 = vmul.f32 %v4098, %v4185
      %v4227 = vmul.f32 %v4099, %v4187
      %v4228 = vmul.f32 %v4100, %v4189
      %v4229 = vmul.f32 %v4101, %v4191
      %v4230 = vmul.f32 %v4102, %v4193
      %v4231 = vmul.f32 %v4103, %v4195
      %v4232 = vmul.f32 %v4104, %v4197
      %v4233 = vmul.f32 %v4105, %v4199
      %v4234 = vmul.f32 %v4106, %v4201
      %v4235 = vmul.f32 %v4107, %v4203
      %v4236 = vadd.f32 %v4030, %v4220
      %v4237 = vadd.f32 %v4033, %v4221
      %v4238 = vadd.f32 %v4038, %v4222
      %v4239 = vadd.f32 %v4041, %v4223
      %v4240 = vadd.f32 %v4046, %v4224
      %v4241 = vadd.f32 %v4049, %v4225
      %v4242 = vadd.f32 %v4054, %v4226
      %v4243 = vadd.f32 %v4057, %v4227
      %v4244 = vadd.f32 %v4062, %v4228
      %v4245 = vadd.f32 %v4065, %v4229
      %v4246 = vadd.f32 %v4070, %v4230
      %v4247 = vadd.f32 %v4073, %v4231
      %v4248 = vadd.f32 %v4078, %v4232
      %v4249 = vadd.f32 %v4081, %v4233
      %v4250 = vadd.f32 %v4086, %v4234
      %v4251 = vadd.f32 %v4089, %v4235
      %v4252 = vld [vmem:[%s10] sm:$0x1]
      %4254 = vset.pattern.permute.xlu0 0
      %4255 = vperm.xlu0 %4254, %v4236
      %v4256 = vpop.permute.xlu0 %4255
      %4259 = vset.pattern.permute.xlu0 0
      %4260 = vperm.xlu0 %4259, %v4237
      %v4261 = vpop.permute.xlu0 %4260
      %4264 = vset.pattern.permute.xlu0 0
      %4265 = vperm.xlu0 %4264, %v4238
      %v4266 = vpop.permute.xlu0 %4265
      %4269 = vset.pattern.permute.xlu0 0
      %4270 = vperm.xlu0 %4269, %v4239
      %v4271 = vpop.permute.xlu0 %4270
      %4274 = vset.pattern.permute.xlu0 0
      %4275 = vperm.xlu0 %4274, %v4240
      %v4276 = vpop.permute.xlu0 %4275
      %4279 = vset.pattern.permute.xlu0 0
      %4280 = vperm.xlu0 %4279, %v4241
      %v4281 = vpop.permute.xlu0 %4280
      %4284 = vset.pattern.permute.xlu0 0
      %4285 = vperm.xlu0 %4284, %v4242
      %v4286 = vpop.permute.xlu0 %4285
      %4289 = vset.pattern.permute.xlu0 0
      %4290 = vperm.xlu0 %4289, %v4243
      %v4291 = vpop.permute.xlu0 %4290
      %4294 = vset.pattern.permute.xlu0 0
      %4295 = vperm.xlu0 %4294, %v4244
      %v4296 = vpop.permute.xlu0 %4295
      %4299 = vset.pattern.permute.xlu0 0
      %4300 = vperm.xlu0 %4299, %v4245
      %v4301 = vpop.permute.xlu0 %4300
      %4304 = vset.pattern.permute.xlu0 0
      %4305 = vperm.xlu0 %4304, %v4246
      %v4306 = vpop.permute.xlu0 %4305
      %4309 = vset.pattern.permute.xlu0 0
      %4310 = vperm.xlu0 %4309, %v4247
      %v4311 = vpop.permute.xlu0 %4310
      %4314 = vset.pattern.permute.xlu0 0
      %4315 = vperm.xlu0 %4314, %v4248
      %v4316 = vpop.permute.xlu0 %4315
      %4319 = vset.pattern.permute.xlu0 0
      %4320 = vperm.xlu0 %4319, %v4249
      %v4321 = vpop.permute.xlu0 %4320
      %4324 = vset.pattern.permute.xlu0 0
      %4325 = vperm.xlu0 %4324, %v4250
      %v4326 = vpop.permute.xlu0 %4325
      %4329 = vset.pattern.permute.xlu0 0
      %4330 = vperm.xlu0 %4329, %v4251
      %v4331 = vpop.permute.xlu0 %4330
      %v4333 = vlaneseq
      %v4334 = vshrl.u32 %v4333, 7
      %v4335 = vsub.s32 0, %v4334
      %v4336 = vrot.slane %v4252, %v4335
      %v4337 = vmul.f32 %v4256, %v4336
      %v4338 = vmul.f32 %v4261, %v4336
      %v4339 = vmul.f32 %v4266, %v4336
      %v4340 = vmul.f32 %v4271, %v4336
      %v4341 = vmul.f32 %v4276, %v4336
      %v4342 = vmul.f32 %v4281, %v4336
      %v4343 = vmul.f32 %v4286, %v4336
      %v4344 = vmul.f32 %v4291, %v4336
      %v4345 = vmul.f32 %v4296, %v4336
      %v4346 = vmul.f32 %v4301, %v4336
      %v4347 = vmul.f32 %v4306, %v4336
      %v4348 = vmul.f32 %v4311, %v4336
      %v4349 = vmul.f32 %v4316, %v4336
      %v4350 = vmul.f32 %v4321, %v4336
      %v4351 = vmul.f32 %v4326, %v4336
      %v4352 = vmul.f32 %v4331, %v4336
      %v4353 = vld [vmem:[%s10 + $0x1] sm:$0x1]
      %4354 = vset.pattern.permute.xlu0 1
      %4355 = vperm.xlu0 %4354, %v4236
      %v4356 = vpop.permute.xlu0 %4355
      %4358 = vset.pattern.permute.xlu0 1
      %4359 = vperm.xlu0 %4358, %v4237
      %v4360 = vpop.permute.xlu0 %4359
      %4362 = vset.pattern.permute.xlu0 1
      %4363 = vperm.xlu0 %4362, %v4238
      %v4364 = vpop.permute.xlu0 %4363
      %4366 = vset.pattern.permute.xlu0 1
      %4367 = vperm.xlu0 %4366, %v4239
      %v4368 = vpop.permute.xlu0 %4367
      %4370 = vset.pattern.permute.xlu0 1
      %4371 = vperm.xlu0 %4370, %v4240
      %v4372 = vpop.permute.xlu0 %4371
      %4374 = vset.pattern.permute.xlu0 1
      %4375 = vperm.xlu0 %4374, %v4241
      %v4376 = vpop.permute.xlu0 %4375
      %4378 = vset.pattern.permute.xlu0 1
      %4379 = vperm.xlu0 %4378, %v4242
      %v4380 = vpop.permute.xlu0 %4379
      %4382 = vset.pattern.permute.xlu0 1
      %4383 = vperm.xlu0 %4382, %v4243
      %v4384 = vpop.permute.xlu0 %4383
      %4386 = vset.pattern.permute.xlu0 1
      %4387 = vperm.xlu0 %4386, %v4244
      %v4388 = vpop.permute.xlu0 %4387
      %4390 = vset.pattern.permute.xlu0 1
      %4391 = vperm.xlu0 %4390, %v4245
      %v4392 = vpop.permute.xlu0 %4391
      %4394 = vset.pattern.permute.xlu0 1
      %4395 = vperm.xlu0 %4394, %v4246
      %v4396 = vpop.permute.xlu0 %4395
      %4398 = vset.pattern.permute.xlu0 1
      %4399 = vperm.xlu0 %4398, %v4247
      %v4400 = vpop.permute.xlu0 %4399
      %4402 = vset.pattern.permute.xlu0 1
      %4403 = vperm.xlu0 %4402, %v4248
      %v4404 = vpop.permute.xlu0 %4403
      %4406 = vset.pattern.permute.xlu0 1
      %4407 = vperm.xlu0 %4406, %v4249
      %v4408 = vpop.permute.xlu0 %4407
      %4410 = vset.pattern.permute.xlu0 1
      %4411 = vperm.xlu0 %4410, %v4250
      %v4412 = vpop.permute.xlu0 %4411
      %4414 = vset.pattern.permute.xlu0 1
      %4415 = vperm.xlu0 %4414, %v4251
      %v4416 = vpop.permute.xlu0 %4415
      %v4418 = vlaneseq
      %v4419 = vshrl.u32 %v4418, 7
      %v4420 = vsub.s32 0, %v4419
      %v4421 = vrot.slane %v4353, %v4420
      %v4422 = vmul.f32 %v4356, %v4421
      %v4423 = vmul.f32 %v4360, %v4421
      %v4424 = vmul.f32 %v4364, %v4421
      %v4425 = vmul.f32 %v4368, %v4421
      %v4426 = vmul.f32 %v4372, %v4421
      %v4427 = vmul.f32 %v4376, %v4421
      %v4428 = vmul.f32 %v4380, %v4421
      %v4429 = vmul.f32 %v4384, %v4421
      %v4430 = vmul.f32 %v4388, %v4421
      %v4431 = vmul.f32 %v4392, %v4421
      %v4432 = vmul.f32 %v4396, %v4421
      %v4433 = vmul.f32 %v4400, %v4421
      %v4434 = vmul.f32 %v4404, %v4421
      %v4435 = vmul.f32 %v4408, %v4421
      %v4436 = vmul.f32 %v4412, %v4421
      %v4437 = vmul.f32 %v4416, %v4421
      %v4438 = vadd.f32 %v4337, %v4422
      %v4439 = vadd.f32 %v4338, %v4423
      %v4440 = vadd.f32 %v4339, %v4424
      %v4441 = vadd.f32 %v4340, %v4425
      %v4442 = vadd.f32 %v4341, %v4426
      %v4443 = vadd.f32 %v4342, %v4427
      %v4444 = vadd.f32 %v4343, %v4428
      %v4445 = vadd.f32 %v4344, %v4429
      %v4446 = vadd.f32 %v4345, %v4430
      %v4447 = vadd.f32 %v4346, %v4431
      %v4448 = vadd.f32 %v4347, %v4432
      %v4449 = vadd.f32 %v4348, %v4433
      %v4450 = vadd.f32 %v4349, %v4434
      %v4451 = vadd.f32 %v4350, %v4435
      %v4452 = vadd.f32 %v4351, %v4436
      %v4453 = vadd.f32 %v4352, %v4437
      %v4454 = vld [vmem:[%s11] sm:$0x1]
      %v4456 = vlaneseq
      %v4457 = vshrl.u32 %v4456, 7
      %v4458 = vsub.s32 0, %v4457
      %v4459 = vrot.slane %v4454, %v4458
      %v4461 = vadd.f32 %v4438, %v4459
      %v4462 = vadd.f32 %v4439, %v4459
      %v4463 = vadd.f32 %v4440, %v4459
      %v4464 = vadd.f32 %v4441, %v4459
      %v4465 = vadd.f32 %v4442, %v4459
      %v4466 = vadd.f32 %v4443, %v4459
      %v4467 = vadd.f32 %v4444, %v4459
      %v4468 = vadd.f32 %v4445, %v4459
      %v4469 = vadd.f32 %v4446, %v4459
      %v4470 = vadd.f32 %v4447, %v4459
      %v4471 = vadd.f32 %v4448, %v4459
      %v4472 = vadd.f32 %v4449, %v4459
      %v4473 = vadd.f32 %v4450, %v4459
      %v4474 = vadd.f32 %v4451, %v4459
      %v4475 = vadd.f32 %v4452, %v4459
      %v4476 = vadd.f32 %v4453, %v4459
      %v4477 = vmax.f32 %v4461, 0.0
      %v4478 = vmax.f32 %v4462, 0.0
      %v4479 = vmax.f32 %v4463, 0.0
      %v4480 = vmax.f32 %v4464, 0.0
      %v4481 = vmax.f32 %v4465, 0.0
      %v4482 = vmax.f32 %v4466, 0.0
      %v4483 = vmax.f32 %v4467, 0.0
      %v4484 = vmax.f32 %v4468, 0.0
      %v4485 = vmax.f32 %v4469, 0.0
      %v4486 = vmax.f32 %v4470, 0.0
      %v4487 = vmax.f32 %v4471, 0.0
      %v4488 = vmax.f32 %v4472, 0.0
      %v4489 = vmax.f32 %v4473, 0.0
      %v4490 = vmax.f32 %v4474, 0.0
      %v4491 = vmax.f32 %v4475, 0.0
      %v4492 = vmax.f32 %v4476, 0.0
      %v4493 = vpack.c.bf16 %v4478, %v4477
      %v4494 = vpack.c.bf16 %v4480, %v4479
      %v4495 = vpack.c.bf16 %v4482, %v4481
      %v4496 = vpack.c.bf16 %v4484, %v4483
      %v4497 = vpack.c.bf16 %v4486, %v4485
      %v4498 = vpack.c.bf16 %v4488, %v4487
      %v4499 = vpack.c.bf16 %v4490, %v4489
      %v4500 = vpack.c.bf16 %v4492, %v4491
      %v4501 = vld [vmem:[%s12] sm:$0xff]
      %v4502 = vld [vmem:[%s12 + $0x8] sm:$0xff]
      %v4503 = vld [vmem:[%s12 + $0x10] sm:$0xff]
      %v4504 = vld [vmem:[%s12 + $0x18] sm:$0xff]
      %v4505 = vld [vmem:[%s12 + $0x20] sm:$0xff]
      %v4506 = vld [vmem:[%s12 + $0x28] sm:$0xff]
      %v4507 = vld [vmem:[%s12 + $0x30] sm:$0xff]
      %v4508 = vld [vmem:[%s12 + $0x38] sm:$0xff]
      %v4509 = vld [vmem:[%s12 + $0x40] sm:$0xff]
      %v4510 = vld [vmem:[%s12 + $0x48] sm:$0xff]
      %v4511 = vld [vmem:[%s12 + $0x50] sm:$0xff]
      %v4512 = vld [vmem:[%s12 + $0x58] sm:$0xff]
      %v4513 = vld [vmem:[%s12 + $0x60] sm:$0xff]
      %v4514 = vld [vmem:[%s12 + $0x68] sm:$0xff]
      %v4515 = vld [vmem:[%s12 + $0x70] sm:$0xff]
      %v4516 = vld [vmem:[%s12 + $0x78] sm:$0xff]
      %v4517 = vld [vmem:[%s13] sm:$0x3]
      %v4519 = vlaneseq
      %v4520 = vshrl.u32 %v4519, 7
      %v4521 = vsub.s32 0, %v4520
      %v4522 = vrot.slane %v4517, %v4521
      %v4523 = vlaneseq
      %v4524 = vshrl.u32 %v4523, 7
      %v4525 = vsub.s32 1, %v4524
      %v4526 = vrot.slane %v4517, %v4525
      %v4545 = vunpack.c.l.b16 %v4501
      %v4546 = vunpack.c.h.b16 %v4501
      %v4547 = vunpack.c.l.b16 %v4502
      %v4548 = vunpack.c.h.b16 %v4502
      %v4549 = vunpack.c.l.b16 %v4503
      %v4550 = vunpack.c.h.b16 %v4503
      %v4551 = vunpack.c.l.b16 %v4504
      %v4552 = vunpack.c.h.b16 %v4504
      %v4553 = vunpack.c.l.b16 %v4505
      %v4554 = vunpack.c.h.b16 %v4505
      %v4555 = vunpack.c.l.b16 %v4506
      %v4556 = vunpack.c.h.b16 %v4506
      %v4557 = vunpack.c.l.b16 %v4507
      %v4558 = vunpack.c.h.b16 %v4507
      %v4559 = vunpack.c.l.b16 %v4508
      %v4560 = vunpack.c.h.b16 %v4508
      %v4561 = vunpack.c.l.b16 %v4509
      %v4562 = vunpack.c.h.b16 %v4509
      %v4563 = vunpack.c.l.b16 %v4510
      %v4564 = vunpack.c.h.b16 %v4510
      %v4565 = vunpack.c.l.b16 %v4511
      %v4566 = vunpack.c.h.b16 %v4511
      %v4567 = vunpack.c.l.b16 %v4512
      %v4568 = vunpack.c.h.b16 %v4512
      %v4569 = vunpack.c.l.b16 %v4513
      %v4570 = vunpack.c.h.b16 %v4513
      %v4571 = vunpack.c.l.b16 %v4514
      %v4572 = vunpack.c.h.b16 %v4514
      %v4573 = vunpack.c.l.b16 %v4515
      %v4574 = vunpack.c.h.b16 %v4515
      %v4575 = vunpack.c.l.b16 %v4516
      %v4576 = vunpack.c.h.b16 %v4516
      %v4577 = vpack.c.b16 %v4547, %v4545
      %v4578 = vpack.c.b16 %v4548, %v4546
      %v4579 = vpack.c.b16 %v4551, %v4549
      %v4580 = vpack.c.b16 %v4552, %v4550
      %v4581 = vpack.c.b16 %v4555, %v4553
      %v4582 = vpack.c.b16 %v4556, %v4554
      %v4583 = vpack.c.b16 %v4559, %v4557
      %v4584 = vpack.c.b16 %v4560, %v4558
      %v4585 = vpack.c.b16 %v4563, %v4561
      %v4586 = vpack.c.b16 %v4564, %v4562
      %v4587 = vpack.c.b16 %v4567, %v4565
      %v4588 = vpack.c.b16 %v4568, %v4566
      %v4589 = vpack.c.b16 %v4571, %v4569
      %v4590 = vpack.c.b16 %v4572, %v4570
      %v4591 = vpack.c.b16 %v4575, %v4573
      %v4592 = vpack.c.b16 %v4576, %v4574
      %4609 = vmatprep.subr.bf16.mxu0 %v4578
      %4610 = vmatpush1.bf16.msra.mxu0 %v4577
      %4611 = vmatprep.subr.bf16.mxu0 %v4580
      %4612 = vmatpush1.bf16.msra.mxu0 %v4579
      %4613 = vmatprep.subr.bf16.mxu0 %v4582
      %4614 = vmatpush1.bf16.msra.mxu0 %v4581
      %4615 = vmatprep.subr.bf16.mxu0 %v4584
      %4616 = vmatpush1.bf16.msra.mxu0 %v4583
      %4617 = vmatprep.subr.bf16.mxu0 %v4586
      %4618 = vmatpush1.bf16.msra.mxu0 %v4585
      %4619 = vmatprep.subr.bf16.mxu0 %v4588
      %4620 = vmatpush1.bf16.msra.mxu0 %v4587
      %4621 = vmatprep.subr.bf16.mxu0 %v4590
      %4622 = vmatpush1.bf16.msra.mxu0 %v4589
      %4623 = vmatprep.subr.bf16.mxu0 %v4592
      %4624 = vmatpush1.bf16.msra.mxu0 %v4591
      %4625 = vmatprep.subr.bf16.mxu0 0
      %4626 = vmatpush1.bf16.msra.mxu0 0
      %4627 = vmatprep.subr.bf16.mxu0 0
      %4628 = vmatpush1.bf16.msra.mxu0 0
      %4629 = vmatprep.subr.bf16.mxu0 0
      %4630 = vmatpush1.bf16.msra.mxu0 0
      %4631 = vmatprep.subr.bf16.mxu0 0
      %4632 = vmatpush1.bf16.msra.mxu0 0
      %4633 = vmatprep.subr.bf16.mxu0 0
      %4634 = vmatpush1.bf16.msra.mxu0 0
      %4635 = vmatprep.subr.bf16.mxu0 0
      %4636 = vmatpush1.bf16.msra.mxu0 0
      %4637 = vmatprep.subr.bf16.mxu0 0
      %4638 = vmatpush1.bf16.msra.mxu0 0
      %4639 = vmatprep.subr.bf16.mxu0 0
      %4640 = vmatpush1.bf16.msra.mxu0 0
      %4641 = vmatprep.mubr.bf16.mxu0 0
      %4642 = vmatmul.mubr.bf16.gmra.mrb[0].mxu0 %v4493
      %v4643 = vpop.f32.mrb[0].mxu0
      %v4644 = vadd.f32 %v4522, %v4643
      %v4645 = vpop.f32.mrb[0].mxu0
      %v4646 = vadd.f32 %v4526, %v4645
      %v4647 = vpop.f32.mrb[0].mxu0
      %v4648 = vadd.f32 %v4522, %v4647
      %v4649 = vpop.f32.mrb[0].mxu0
      %v4650 = vadd.f32 %v4526, %v4649
      %4651 = vmatprep.mubr.bf16.mxu0 0
      %4652 = vmatmul.mubr.bf16.gmra.mrb[0].mxu0 %v4494
      %v4653 = vpop.f32.mrb[0].mxu0
      %v4654 = vadd.f32 %v4522, %v4653
      %v4655 = vpop.f32.mrb[0].mxu0
      %v4656 = vadd.f32 %v4526, %v4655
      %v4657 = vpop.f32.mrb[0].mxu0
      %v4658 = vadd.f32 %v4522, %v4657
      %v4659 = vpop.f32.mrb[0].mxu0
      %v4660 = vadd.f32 %v4526, %v4659
      %4661 = vmatprep.mubr.bf16.mxu0 0
      %4662 = vmatmul.mubr.bf16.gmra.mrb[0].mxu0 %v4495
      %v4663 = vpop.f32.mrb[0].mxu0
      %v4664 = vadd.f32 %v4522, %v4663
      %v4665 = vpop.f32.mrb[0].mxu0
      %v4666 = vadd.f32 %v4526, %v4665
      %v4667 = vpop.f32.mrb[0].mxu0
      %v4668 = vadd.f32 %v4522, %v4667
      %v4669 = vpop.f32.mrb[0].mxu0
      %v4670 = vadd.f32 %v4526, %v4669
      %4671 = vmatprep.mubr.bf16.mxu0 0
      %4672 = vmatmul.mubr.bf16.gmra.mrb[0].mxu0 %v4496
      %v4673 = vpop.f32.mrb[0].mxu0
      %v4674 = vadd.f32 %v4522, %v4673
      %v4675 = vpop.f32.mrb[0].mxu0
      %v4676 = vadd.f32 %v4526, %v4675
      %v4677 = vpop.f32.mrb[0].mxu0
      %v4678 = vadd.f32 %v4522, %v4677
      %v4679 = vpop.f32.mrb[0].mxu0
      %v4680 = vadd.f32 %v4526, %v4679
      %4681 = vmatprep.mubr.bf16.mxu0 0
      %4682 = vmatmul.mubr.bf16.gmra.mrb[0].mxu0 %v4497
      %v4683 = vpop.f32.mrb[0].mxu0
      %v4684 = vadd.f32 %v4522, %v4683
      %v4685 = vpop.f32.mrb[0].mxu0
      %v4686 = vadd.f32 %v4526, %v4685
      %v4687 = vpop.f32.mrb[0].mxu0
      %v4688 = vadd.f32 %v4522, %v4687
      %v4689 = vpop.f32.mrb[0].mxu0
      %v4690 = vadd.f32 %v4526, %v4689
      %4691 = vmatprep.mubr.bf16.mxu0 0
      %4692 = vmatmul.mubr.bf16.gmra.mrb[0].mxu0 %v4498
      %v4693 = vpop.f32.mrb[0].mxu0
      %v4694 = vadd.f32 %v4522, %v4693
      %v4695 = vpop.f32.mrb[0].mxu0
      %v4696 = vadd.f32 %v4526, %v4695
      %v4697 = vpop.f32.mrb[0].mxu0
      %v4698 = vadd.f32 %v4522, %v4697
      %v4699 = vpop.f32.mrb[0].mxu0
      %v4700 = vadd.f32 %v4526, %v4699
      %4701 = vmatprep.mubr.bf16.mxu0 0
      %4702 = vmatmul.mubr.bf16.gmra.mrb[0].mxu0 %v4499
      %v4703 = vpop.f32.mrb[0].mxu0
      %v4704 = vadd.f32 %v4522, %v4703
      %v4705 = vpop.f32.mrb[0].mxu0
      %v4706 = vadd.f32 %v4526, %v4705
      %v4707 = vpop.f32.mrb[0].mxu0
      %v4708 = vadd.f32 %v4522, %v4707
      %v4709 = vpop.f32.mrb[0].mxu0
      %v4710 = vadd.f32 %v4526, %v4709
      %4711 = vmatprep.mubr.bf16.mxu0 0
      %4712 = vmatmul.mubr.bf16.gmra.mrb[0].mxu0 %v4500
      %v4713 = vpop.f32.mrb[0].mxu0
      %v4714 = vadd.f32 %v4522, %v4713
      %v4715 = vpop.f32.mrb[0].mxu0
      %v4716 = vadd.f32 %v4526, %v4715
      %v4717 = vpop.f32.mrb[0].mxu0
      %v4718 = vadd.f32 %v4522, %v4717
      %v4719 = vpop.f32.mrb[0].mxu0
      %v4720 = vadd.f32 %v4526, %v4719
      %4721 = vdwg.mxu0
      %v4722 = vmax.f32 %v4644, 0.0
      %v4723 = vmax.f32 %v4646, 0.0
      %v4724 = vmax.f32 %v4648, 0.0
      %v4725 = vmax.f32 %v4650, 0.0
      %v4726 = vmax.f32 %v4654, 0.0
      %v4727 = vmax.f32 %v4656, 0.0
      %v4728 = vmax.f32 %v4658, 0.0
      %v4729 = vmax.f32 %v4660, 0.0
      %v4730 = vmax.f32 %v4664, 0.0
      %v4731 = vmax.f32 %v4666, 0.0
      %v4732 = vmax.f32 %v4668, 0.0
      %v4733 = vmax.f32 %v4670, 0.0
      %v4734 = vmax.f32 %v4674, 0.0
      %v4735 = vmax.f32 %v4676, 0.0
      %v4736 = vmax.f32 %v4678, 0.0
      %v4737 = vmax.f32 %v4680, 0.0
      %v4738 = vmax.f32 %v4684, 0.0
      %v4739 = vmax.f32 %v4686, 0.0
      %v4740 = vmax.f32 %v4688, 0.0
      %v4741 = vmax.f32 %v4690, 0.0
      %v4742 = vmax.f32 %v4694, 0.0
      %v4743 = vmax.f32 %v4696, 0.0
      %v4744 = vmax.f32 %v4698, 0.0
      %v4745 = vmax.f32 %v4700, 0.0
      %v4746 = vmax.f32 %v4704, 0.0
      %v4747 = vmax.f32 %v4706, 0.0
      %v4748 = vmax.f32 %v4708, 0.0
      %v4749 = vmax.f32 %v4710, 0.0
      %v4750 = vmax.f32 %v4714, 0.0
      %v4751 = vmax.f32 %v4716, 0.0
      %v4752 = vmax.f32 %v4718, 0.0
      %v4753 = vmax.f32 %v4720, 0.0
      %v4754 = vpack.c.bf16 %v4724, %v4722
      %v4755 = vpack.c.bf16 %v4725, %v4723
      %v4756 = vpack.c.bf16 %v4728, %v4726
      %v4757 = vpack.c.bf16 %v4729, %v4727
      %v4758 = vpack.c.bf16 %v4732, %v4730
      %v4759 = vpack.c.bf16 %v4733, %v4731
      %v4760 = vpack.c.bf16 %v4736, %v4734
      %v4761 = vpack.c.bf16 %v4737, %v4735
      %v4762 = vpack.c.bf16 %v4740, %v4738
      %v4763 = vpack.c.bf16 %v4741, %v4739
      %v4764 = vpack.c.bf16 %v4744, %v4742
      %v4765 = vpack.c.bf16 %v4745, %v4743
      %v4766 = vpack.c.bf16 %v4748, %v4746
      %v4767 = vpack.c.bf16 %v4749, %v4747
      %v4768 = vpack.c.bf16 %v4752, %v4750
      %v4769 = vpack.c.bf16 %v4753, %v4751
      %v4770 = vld [vmem:[%s14] sm:$0xff]
      %v4771 = vld [vmem:[%s14 + $0x8] sm:$0xff]
      %v4772 = vld [vmem:[%s14 + $0x10] sm:$0xff]
      %v4773 = vld [vmem:[%s14 + $0x18] sm:$0xff]
      %v4774 = vld [vmem:[%s14 + $0x20] sm:$0xff]
      %v4775 = vld [vmem:[%s14 + $0x28] sm:$0xff]
      %v4776 = vld [vmem:[%s14 + $0x30] sm:$0xff]
      %v4777 = vld [vmem:[%s14 + $0x38] sm:$0xff]
      %v4778 = vld [vmem:[%s14 + $0x40] sm:$0xff]
      %v4779 = vld [vmem:[%s14 + $0x48] sm:$0xff]
      %v4780 = vld [vmem:[%s14 + $0x50] sm:$0xff]
      %v4781 = vld [vmem:[%s14 + $0x58] sm:$0xff]
      %v4782 = vld [vmem:[%s14 + $0x60] sm:$0xff]
      %v4783 = vld [vmem:[%s14 + $0x68] sm:$0xff]
      %v4784 = vld [vmem:[%s14 + $0x70] sm:$0xff]
      %v4785 = vld [vmem:[%s14 + $0x78] sm:$0xff]
      %v4786 = vld [vmem:[%s14 + $0x80] sm:$0xff]
      %v4787 = vld [vmem:[%s14 + $0x88] sm:$0xff]
      %v4788 = vld [vmem:[%s14 + $0x90] sm:$0xff]
      %v4789 = vld [vmem:[%s14 + $0x98] sm:$0xff]
      %v4790 = vld [vmem:[%s14 + $0xa0] sm:$0xff]
      %v4791 = vld [vmem:[%s14 + $0xa8] sm:$0xff]
      %v4792 = vld [vmem:[%s14 + $0xb0] sm:$0xff]
      %v4793 = vld [vmem:[%s14 + $0xb8] sm:$0xff]
      %v4794 = vld [vmem:[%s14 + $0xc0] sm:$0xff]
      %v4795 = vld [vmem:[%s14 + $0xc8] sm:$0xff]
      %v4796 = vld [vmem:[%s14 + $0xd0] sm:$0xff]
      %v4797 = vld [vmem:[%s14 + $0xd8] sm:$0xff]
      %v4798 = vld [vmem:[%s14 + $0xe0] sm:$0xff]
      %v4799 = vld [vmem:[%s14 + $0xe8] sm:$0xff]
      %v4800 = vld [vmem:[%s14 + $0xf0] sm:$0xff]
      %v4801 = vld [vmem:[%s14 + $0xf8] sm:$0xff]
      %v4802 = vld [vmem:[%s14 + $0x100] sm:$0xff]
      %v4803 = vld [vmem:[%s14 + $0x108] sm:$0xff]
      %v4804 = vld [vmem:[%s14 + $0x110] sm:$0xff]
      %v4805 = vld [vmem:[%s14 + $0x118] sm:$0xff]
      %v4806 = vld [vmem:[%s14 + $0x120] sm:$0xff]
      %v4807 = vld [vmem:[%s14 + $0x128] sm:$0xff]
      %v4808 = vld [vmem:[%s14 + $0x130] sm:$0xff]
      %v4809 = vld [vmem:[%s14 + $0x138] sm:$0xff]
      %v4810 = vld [vmem:[%s14 + $0x140] sm:$0xff]
      %v4811 = vld [vmem:[%s14 + $0x148] sm:$0xff]
      %v4812 = vld [vmem:[%s14 + $0x150] sm:$0xff]
      %v4813 = vld [vmem:[%s14 + $0x158] sm:$0xff]
      %v4814 = vld [vmem:[%s14 + $0x160] sm:$0xff]
      %v4815 = vld [vmem:[%s14 + $0x168] sm:$0xff]
      %v4816 = vld [vmem:[%s14 + $0x170] sm:$0xff]
      %v4817 = vld [vmem:[%s14 + $0x178] sm:$0xff]
      %v4818 = vld [vmem:[%s14 + $0x180] sm:$0xff]
      %v4819 = vld [vmem:[%s14 + $0x188] sm:$0xff]
      %v4820 = vld [vmem:[%s14 + $0x190] sm:$0xff]
      %v4821 = vld [vmem:[%s14 + $0x198] sm:$0xff]
      %v4822 = vld [vmem:[%s14 + $0x1a0] sm:$0xff]
      %v4823 = vld [vmem:[%s14 + $0x1a8] sm:$0xff]
      %v4824 = vld [vmem:[%s14 + $0x1b0] sm:$0xff]
      %v4825 = vld [vmem:[%s14 + $0x1b8] sm:$0xff]
      %v4826 = vld [vmem:[%s14 + $0x1c0] sm:$0xff]
      %v4827 = vld [vmem:[%s14 + $0x1c8] sm:$0xff]
      %v4828 = vld [vmem:[%s14 + $0x1d0] sm:$0xff]
      %v4829 = vld [vmem:[%s14 + $0x1d8] sm:$0xff]
      %v4830 = vld [vmem:[%s14 + $0x1e0] sm:$0xff]
      %v4831 = vld [vmem:[%s14 + $0x1e8] sm:$0xff]
      %v4832 = vld [vmem:[%s14 + $0x1f0] sm:$0xff]
      %v4833 = vld [vmem:[%s14 + $0x1f8] sm:$0xff]
      %v4834 = vld [vmem:[%s15] sm:$0xf]
      %v4836 = vlaneseq
      %v4837 = vshrl.u32 %v4836, 7
      %v4838 = vsub.s32 0, %v4837
      %v4839 = vrot.slane %v4834, %v4838
      %v4840 = vlaneseq
      %v4841 = vshrl.u32 %v4840, 7
      %v4842 = vsub.s32 1, %v4841
      %v4843 = vrot.slane %v4834, %v4842
      %v4844 = vlaneseq
      %v4845 = vshrl.u32 %v4844, 7
      %v4846 = vsub.s32 2, %v4845
      %v4847 = vrot.slane %v4834, %v4846
      %v4848 = vlaneseq
      %v4849 = vshrl.u32 %v4848, 7
      %v4850 = vsub.s32 3, %v4849
      %v4851 = vrot.slane %v4834, %v4850
      %v4920 = vunpack.c.l.b16 %v4770
      %v4921 = vunpack.c.h.b16 %v4770
      %v4922 = vunpack.c.l.b16 %v4771
      %v4923 = vunpack.c.h.b16 %v4771
      %v4924 = vunpack.c.l.b16 %v4772
      %v4925 = vunpack.c.h.b16 %v4772
      %v4926 = vunpack.c.l.b16 %v4773
      %v4927 = vunpack.c.h.b16 %v4773
      %v4928 = vunpack.c.l.b16 %v4774
      %v4929 = vunpack.c.h.b16 %v4774
      %v4930 = vunpack.c.l.b16 %v4775
      %v4931 = vunpack.c.h.b16 %v4775
      %v4932 = vunpack.c.l.b16 %v4776
      %v4933 = vunpack.c.h.b16 %v4776
      %v4934 = vunpack.c.l.b16 %v4777
      %v4935 = vunpack.c.h.b16 %v4777
      %v4936 = vunpack.c.l.b16 %v4778
      %v4937 = vunpack.c.h.b16 %v4778
      %v4938 = vunpack.c.l.b16 %v4779
      %v4939 = vunpack.c.h.b16 %v4779
      %v4940 = vunpack.c.l.b16 %v4780
      %v4941 = vunpack.c.h.b16 %v4780
      %v4942 = vunpack.c.l.b16 %v4781
      %v4943 = vunpack.c.h.b16 %v4781
      %v4944 = vunpack.c.l.b16 %v4782
      %v4945 = vunpack.c.h.b16 %v4782
      %v4946 = vunpack.c.l.b16 %v4783
      %v4947 = vunpack.c.h.b16 %v4783
      %v4948 = vunpack.c.l.b16 %v4784
      %v4949 = vunpack.c.h.b16 %v4784
      %v4950 = vunpack.c.l.b16 %v4785
      %v4951 = vunpack.c.h.b16 %v4785
      %v4952 = vunpack.c.l.b16 %v4786
      %v4953 = vunpack.c.h.b16 %v4786
      %v4954 = vunpack.c.l.b16 %v4787
      %v4955 = vunpack.c.h.b16 %v4787
      %v4956 = vunpack.c.l.b16 %v4788
      %v4957 = vunpack.c.h.b16 %v4788
      %v4958 = vunpack.c.l.b16 %v4789
      %v4959 = vunpack.c.h.b16 %v4789
      %v4960 = vunpack.c.l.b16 %v4790
      %v4961 = vunpack.c.h.b16 %v4790
      %v4962 = vunpack.c.l.b16 %v4791
      %v4963 = vunpack.c.h.b16 %v4791
      %v4964 = vunpack.c.l.b16 %v4792
      %v4965 = vunpack.c.h.b16 %v4792
      %v4966 = vunpack.c.l.b16 %v4793
      %v4967 = vunpack.c.h.b16 %v4793
      %v4968 = vunpack.c.l.b16 %v4794
      %v4969 = vunpack.c.h.b16 %v4794
      %v4970 = vunpack.c.l.b16 %v4795
      %v4971 = vunpack.c.h.b16 %v4795
      %v4972 = vunpack.c.l.b16 %v4796
      %v4973 = vunpack.c.h.b16 %v4796
      %v4974 = vunpack.c.l.b16 %v4797
      %v4975 = vunpack.c.h.b16 %v4797
      %v4976 = vunpack.c.l.b16 %v4798
      %v4977 = vunpack.c.h.b16 %v4798
      %v4978 = vunpack.c.l.b16 %v4799
      %v4979 = vunpack.c.h.b16 %v4799
      %v4980 = vunpack.c.l.b16 %v4800
      %v4981 = vunpack.c.h.b16 %v4800
      %v4982 = vunpack.c.l.b16 %v4801
      %v4983 = vunpack.c.h.b16 %v4801
      %v4984 = vunpack.c.l.b16 %v4802
      %v4985 = vunpack.c.h.b16 %v4802
      %v4986 = vunpack.c.l.b16 %v4803
      %v4987 = vunpack.c.h.b16 %v4803
      %v4988 = vunpack.c.l.b16 %v4804
      %v4989 = vunpack.c.h.b16 %v4804
      %v4990 = vunpack.c.l.b16 %v4805
      %v4991 = vunpack.c.h.b16 %v4805
      %v4992 = vunpack.c.l.b16 %v4806
      %v4993 = vunpack.c.h.b16 %v4806
      %v4994 = vunpack.c.l.b16 %v4807
      %v4995 = vunpack.c.h.b16 %v4807
      %v4996 = vunpack.c.l.b16 %v4808
      %v4997 = vunpack.c.h.b16 %v4808
      %v4998 = vunpack.c.l.b16 %v4809
      %v4999 = vunpack.c.h.b16 %v4809
      %v5000 = vunpack.c.l.b16 %v4810
      %v5001 = vunpack.c.h.b16 %v4810
      %v5002 = vunpack.c.l.b16 %v4811
      %v5003 = vunpack.c.h.b16 %v4811
      %v5004 = vunpack.c.l.b16 %v4812
      %v5005 = vunpack.c.h.b16 %v4812
      %v5006 = vunpack.c.l.b16 %v4813
      %v5007 = vunpack.c.h.b16 %v4813
      %v5008 = vunpack.c.l.b16 %v4814
      %v5009 = vunpack.c.h.b16 %v4814
      %v5010 = vunpack.c.l.b16 %v4815
      %v5011 = vunpack.c.h.b16 %v4815
      %v5012 = vunpack.c.l.b16 %v4816
      %v5013 = vunpack.c.h.b16 %v4816
      %v5014 = vunpack.c.l.b16 %v4817
      %v5015 = vunpack.c.h.b16 %v4817
      %v5016 = vunpack.c.l.b16 %v4818
      %v5017 = vunpack.c.h.b16 %v4818
      %v5018 = vunpack.c.l.b16 %v4819
      %v5019 = vunpack.c.h.b16 %v4819
      %v5020 = vunpack.c.l.b16 %v4820
      %v5021 = vunpack.c.h.b16 %v4820
      %v5022 = vunpack.c.l.b16 %v4821
      %v5023 = vunpack.c.h.b16 %v4821
      %v5024 = vunpack.c.l.b16 %v4822
      %v5025 = vunpack.c.h.b16 %v4822
      %v5026 = vunpack.c.l.b16 %v4823
      %v5027 = vunpack.c.h.b16 %v4823
      %v5028 = vunpack.c.l.b16 %v4824
      %v5029 = vunpack.c.h.b16 %v4824
      %v5030 = vunpack.c.l.b16 %v4825
      %v5031 = vunpack.c.h.b16 %v4825
      %v5032 = vunpack.c.l.b16 %v4826
      %v5033 = vunpack.c.h.b16 %v4826
      %v5034 = vunpack.c.l.b16 %v4827
      %v5035 = vunpack.c.h.b16 %v4827
      %v5036 = vunpack.c.l.b16 %v4828
      %v5037 = vunpack.c.h.b16 %v4828
      %v5038 = vunpack.c.l.b16 %v4829
      %v5039 = vunpack.c.h.b16 %v4829
      %v5040 = vunpack.c.l.b16 %v4830
      %v5041 = vunpack.c.h.b16 %v4830
      %v5042 = vunpack.c.l.b16 %v4831
      %v5043 = vunpack.c.h.b16 %v4831
      %v5044 = vunpack.c.l.b16 %v4832
      %v5045 = vunpack.c.h.b16 %v4832
      %v5046 = vunpack.c.l.b16 %v4833
      %v5047 = vunpack.c.h.b16 %v4833
      %v5048 = vpack.c.b16 %v4924, %v4920
      %v5049 = vpack.c.b16 %v4925, %v4921
      %v5050 = vpack.c.b16 %v4926, %v4922
      %v5051 = vpack.c.b16 %v4927, %v4923
      %v5052 = vpack.c.b16 %v4932, %v4928
      %v5053 = vpack.c.b16 %v4933, %v4929
      %v5054 = vpack.c.b16 %v4934, %v4930
      %v5055 = vpack.c.b16 %v4935, %v4931
      %v5056 = vpack.c.b16 %v4940, %v4936
      %v5057 = vpack.c.b16 %v4941, %v4937
      %v5058 = vpack.c.b16 %v4942, %v4938
      %v5059 = vpack.c.b16 %v4943, %v4939
      %v5060 = vpack.c.b16 %v4948, %v4944
      %v5061 = vpack.c.b16 %v4949, %v4945
      %v5062 = vpack.c.b16 %v4950, %v4946
      %v5063 = vpack.c.b16 %v4951, %v4947
      %v5064 = vpack.c.b16 %v4956, %v4952
      %v5065 = vpack.c.b16 %v4957, %v4953
      %v5066 = vpack.c.b16 %v4958, %v4954
      %v5067 = vpack.c.b16 %v4959, %v4955
      %v5068 = vpack.c.b16 %v4964, %v4960
      %v5069 = vpack.c.b16 %v4965, %v4961
      %v5070 = vpack.c.b16 %v4966, %v4962
      %v5071 = vpack.c.b16 %v4967, %v4963
      %v5072 = vpack.c.b16 %v4972, %v4968
      %v5073 = vpack.c.b16 %v4973, %v4969
      %v5074 = vpack.c.b16 %v4974, %v4970
      %v5075 = vpack.c.b16 %v4975, %v4971
      %v5076 = vpack.c.b16 %v4980, %v4976
      %v5077 = vpack.c.b16 %v4981, %v4977
      %v5078 = vpack.c.b16 %v4982, %v4978
      %v5079 = vpack.c.b16 %v4983, %v4979
      %v5080 = vpack.c.b16 %v4988, %v4984
      %v5081 = vpack.c.b16 %v4989, %v4985
      %v5082 = vpack.c.b16 %v4990, %v4986
      %v5083 = vpack.c.b16 %v4991, %v4987
      %v5084 = vpack.c.b16 %v4996, %v4992
      %v5085 = vpack.c.b16 %v4997, %v4993
      %v5086 = vpack.c.b16 %v4998, %v4994
      %v5087 = vpack.c.b16 %v4999, %v4995
      %v5088 = vpack.c.b16 %v5004, %v5000
      %v5089 = vpack.c.b16 %v5005, %v5001
      %v5090 = vpack.c.b16 %v5006, %v5002
      %v5091 = vpack.c.b16 %v5007, %v5003
      %v5092 = vpack.c.b16 %v5012, %v5008
      %v5093 = vpack.c.b16 %v5013, %v5009
      %v5094 = vpack.c.b16 %v5014, %v5010
      %v5095 = vpack.c.b16 %v5015, %v5011
      %v5096 = vpack.c.b16 %v5020, %v5016
      %v5097 = vpack.c.b16 %v5021, %v5017
      %v5098 = vpack.c.b16 %v5022, %v5018
      %v5099 = vpack.c.b16 %v5023, %v5019
      %v5100 = vpack.c.b16 %v5028, %v5024
      %v5101 = vpack.c.b16 %v5029, %v5025
      %v5102 = vpack.c.b16 %v5030, %v5026
      %v5103 = vpack.c.b16 %v5031, %v5027
      %v5104 = vpack.c.b16 %v5036, %v5032
      %v5105 = vpack.c.b16 %v5037, %v5033
      %v5106 = vpack.c.b16 %v5038, %v5034
      %v5107 = vpack.c.b16 %v5039, %v5035
      %v5108 = vpack.c.b16 %v5044, %v5040
      %v5109 = vpack.c.b16 %v5045, %v5041
      %v5110 = vpack.c.b16 %v5046, %v5042
      %v5111 = vpack.c.b16 %v5047, %v5043
      %5176 = vmatprep.subr.bf16.mxu0 %v5049
      %5177 = vmatpush1.bf16.msra.mxu0 %v5048
      %5178 = vmatprep.subr.bf16.mxu0 %v5053
      %5179 = vmatpush1.bf16.msra.mxu0 %v5052
      %5180 = vmatprep.subr.bf16.mxu0 %v5057
      %5181 = vmatpush1.bf16.msra.mxu0 %v5056
      %5182 = vmatprep.subr.bf16.mxu0 %v5061
      %5183 = vmatpush1.bf16.msra.mxu0 %v5060
      %5184 = vmatprep.subr.bf16.mxu0 %v5065
      %5185 = vmatpush1.bf16.msra.mxu0 %v5064
      %5186 = vmatprep.subr.bf16.mxu0 %v5069
      %5187 = vmatpush1.bf16.msra.mxu0 %v5068
      %5188 = vmatprep.subr.bf16.mxu0 %v5073
      %5189 = vmatpush1.bf16.msra.mxu0 %v5072
      %5190 = vmatprep.subr.bf16.mxu0 %v5077
      %5191 = vmatpush1.bf16.msra.mxu0 %v5076
      %5192 = vmatprep.subr.bf16.mxu0 %v5081
      %5193 = vmatpush1.bf16.msra.mxu0 %v5080
      %5194 = vmatprep.subr.bf16.mxu0 %v5085
      %5195 = vmatpush1.bf16.msra.mxu0 %v5084
      %5196 = vmatprep.subr.bf16.mxu0 %v5089
      %5197 = vmatpush1.bf16.msra.mxu0 %v5088
      %5198 = vmatprep.subr.bf16.mxu0 %v5093
      %5199 = vmatpush1.bf16.msra.mxu0 %v5092
      %5200 = vmatprep.subr.bf16.mxu0 %v5097
      %5201 = vmatpush1.bf16.msra.mxu0 %v5096
      %5202 = vmatprep.subr.bf16.mxu0 %v5101
      %5203 = vmatpush1.bf16.msra.mxu0 %v5100
      %5204 = vmatprep.subr.bf16.mxu0 %v5105
      %5205 = vmatpush1.bf16.msra.mxu0 %v5104
      %5206 = vmatprep.subr.bf16.mxu0 %v5109
      %5207 = vmatpush1.bf16.msra.mxu0 %v5108
      %5208 = vmatprep.mubr.bf16.mxu0 %v4755
      %5209 = vmatmul.mubr.bf16.gmra.mrb[0].mxu0 %v4754
      %v5210 = vpop.f32.mrb[0].mxu0
      %v5211 = vadd.f32 %v4839, %v5210
      %v5212 = vpop.f32.mrb[0].mxu0
      %v5213 = vadd.f32 %v4843, %v5212
      %v5214 = vpop.f32.mrb[0].mxu0
      %v5215 = vadd.f32 %v4839, %v5214
      %v5216 = vpop.f32.mrb[0].mxu0
      %v5217 = vadd.f32 %v4843, %v5216
      %5218 = vmatprep.mubr.bf16.mxu0 %v4757
      %5219 = vmatmul.mubr.bf16.gmra.mrb[0].mxu0 %v4756
      %v5220 = vpop.f32.mrb[0].mxu0
      %v5221 = vadd.f32 %v4839, %v5220
      %v5222 = vpop.f32.mrb[0].mxu0
      %v5223 = vadd.f32 %v4843, %v5222
      %v5224 = vpop.f32.mrb[0].mxu0
      %v5225 = vadd.f32 %v4839, %v5224
      %v5226 = vpop.f32.mrb[0].mxu0
      %v5227 = vadd.f32 %v4843, %v5226
      %5228 = vmatprep.mubr.bf16.mxu0 %v4759
      %5229 = vmatmul.mubr.bf16.gmra.mrb[0].mxu0 %v4758
      %v5230 = vpop.f32.mrb[0].mxu0
      %v5231 = vadd.f32 %v4839, %v5230
      %v5232 = vpop.f32.mrb[0].mxu0
      %v5233 = vadd.f32 %v4843, %v5232
      %v5234 = vpop.f32.mrb[0].mxu0
      %v5235 = vadd.f32 %v4839, %v5234
      %v5236 = vpop.f32.mrb[0].mxu0
      %v5237 = vadd.f32 %v4843, %v5236
      %5238 = vmatprep.mubr.bf16.mxu0 %v4761
      %5239 = vmatmul.mubr.bf16.gmra.mrb[0].mxu0 %v4760
      %v5240 = vpop.f32.mrb[0].mxu0
      %v5241 = vadd.f32 %v4839, %v5240
      %v5242 = vpop.f32.mrb[0].mxu0
      %v5243 = vadd.f32 %v4843, %v5242
      %v5244 = vpop.f32.mrb[0].mxu0
      %v5245 = vadd.f32 %v4839, %v5244
      %v5246 = vpop.f32.mrb[0].mxu0
      %v5247 = vadd.f32 %v4843, %v5246
      %5248 = vmatprep.mubr.bf16.mxu0 %v4763
      %5249 = vmatmul.mubr.bf16.gmra.mrb[0].mxu0 %v4762
      %v5250 = vpop.f32.mrb[0].mxu0
      %v5251 = vadd.f32 %v4839, %v5250
      %v5252 = vpop.f32.mrb[0].mxu0
      %v5253 = vadd.f32 %v4843, %v5252
      %v5254 = vpop.f32.mrb[0].mxu0
      %v5255 = vadd.f32 %v4839, %v5254
      %v5256 = vpop.f32.mrb[0].mxu0
      %v5257 = vadd.f32 %v4843, %v5256
      %5258 = vmatprep.mubr.bf16.mxu0 %v4765
      %5259 = vmatmul.mubr.bf16.gmra.mrb[0].mxu0 %v4764
      %v5260 = vpop.f32.mrb[0].mxu0
      %v5261 = vadd.f32 %v4839, %v5260
      %v5262 = vpop.f32.mrb[0].mxu0
      %v5263 = vadd.f32 %v4843, %v5262
      %v5264 = vpop.f32.mrb[0].mxu0
      %v5265 = vadd.f32 %v4839, %v5264
      %v5266 = vpop.f32.mrb[0].mxu0
      %v5267 = vadd.f32 %v4843, %v5266
      %5268 = vmatprep.mubr.bf16.mxu0 %v4767
      %5269 = vmatmul.mubr.bf16.gmra.mrb[0].mxu0 %v4766
      %v5270 = vpop.f32.mrb[0].mxu0
      %v5271 = vadd.f32 %v4839, %v5270
      %v5272 = vpop.f32.mrb[0].mxu0
      %v5273 = vadd.f32 %v4843, %v5272
      %v5274 = vpop.f32.mrb[0].mxu0
      %v5275 = vadd.f32 %v4839, %v5274
      %v5276 = vpop.f32.mrb[0].mxu0
      %v5277 = vadd.f32 %v4843, %v5276
      %5278 = vmatprep.mubr.bf16.mxu0 %v4769
      %5279 = vmatmul.mubr.bf16.gmra.mrb[0].mxu0 %v4768
      %v5280 = vpop.f32.mrb[0].mxu0
      %v5281 = vadd.f32 %v4839, %v5280
      %v5282 = vpop.f32.mrb[0].mxu0
      %v5283 = vadd.f32 %v4843, %v5282
      %v5284 = vpop.f32.mrb[0].mxu0
      %v5285 = vadd.f32 %v4839, %v5284
      %v5286 = vpop.f32.mrb[0].mxu0
      %v5287 = vadd.f32 %v4843, %v5286
      %5288 = vdwg.mxu0
      %5289 = vmatprep.subr.bf16.mxu0 %v5051
      %5290 = vmatpush1.bf16.msra.mxu0 %v5050
      %5291 = vmatprep.subr.bf16.mxu0 %v5055
      %5292 = vmatpush1.bf16.msra.mxu0 %v5054
      %5293 = vmatprep.subr.bf16.mxu0 %v5059
      %5294 = vmatpush1.bf16.msra.mxu0 %v5058
      %5295 = vmatprep.subr.bf16.mxu0 %v5063
      %5296 = vmatpush1.bf16.msra.mxu0 %v5062
      %5297 = vmatprep.subr.bf16.mxu0 %v5067
      %5298 = vmatpush1.bf16.msra.mxu0 %v5066
      %5299 = vmatprep.subr.bf16.mxu0 %v5071
      %5300 = vmatpush1.bf16.msra.mxu0 %v5070
      %5301 = vmatprep.subr.bf16.mxu0 %v5075
      %5302 = vmatpush1.bf16.msra.mxu0 %v5074
      %5303 = vmatprep.subr.bf16.mxu0 %v5079
      %5304 = vmatpush1.bf16.msra.mxu0 %v5078
      %5305 = vmatprep.subr.bf16.mxu0 %v5083
      %5306 = vmatpush1.bf16.msra.mxu0 %v5082
      %5307 = vmatprep.subr.bf16.mxu0 %v5087
      %5308 = vmatpush1.bf16.msra.mxu0 %v5086
      %5309 = vmatprep.subr.bf16.mxu0 %v5091
      %5310 = vmatpush1.bf16.msra.mxu0 %v5090
      %5311 = vmatprep.subr.bf16.mxu0 %v5095
      %5312 = vmatpush1.bf16.msra.mxu0 %v5094
      %5313 = vmatprep.subr.bf16.mxu0 %v5099
      %5314 = vmatpush1.bf16.msra.mxu0 %v5098
      %5315 = vmatprep.subr.bf16.mxu0 %v5103
      %5316 = vmatpush1.bf16.msra.mxu0 %v5102
      %5317 = vmatprep.subr.bf16.mxu0 %v5107
      %5318 = vmatpush1.bf16.msra.mxu0 %v5106
      %5319 = vmatprep.subr.bf16.mxu0 %v5111
      %5320 = vmatpush1.bf16.msra.mxu0 %v5110
      %5321 = vmatprep.mubr.bf16.mxu0 %v4755
      %5322 = vmatmul.mubr.bf16.gmra.mrb[0].mxu0 %v4754
      %v5323 = vpop.f32.mrb[0].mxu0
      %v5324 = vadd.f32 %v4847, %v5323
      %v5325 = vpop.f32.mrb[0].mxu0
      %v5326 = vadd.f32 %v4851, %v5325
      %v5327 = vpop.f32.mrb[0].mxu0
      %v5328 = vadd.f32 %v4847, %v5327
      %v5329 = vpop.f32.mrb[0].mxu0
      %v5330 = vadd.f32 %v4851, %v5329
      %5331 = vmatprep.mubr.bf16.mxu0 %v4757
      %5332 = vmatmul.mubr.bf16.gmra.mrb[0].mxu0 %v4756
      %v5333 = vpop.f32.mrb[0].mxu0
      %v5334 = vadd.f32 %v4847, %v5333
      %v5335 = vpop.f32.mrb[0].mxu0
      %v5336 = vadd.f32 %v4851, %v5335
      %v5337 = vpop.f32.mrb[0].mxu0
      %v5338 = vadd.f32 %v4847, %v5337
      %v5339 = vpop.f32.mrb[0].mxu0
      %v5340 = vadd.f32 %v4851, %v5339
      %5341 = vmatprep.mubr.bf16.mxu0 %v4759
      %5342 = vmatmul.mubr.bf16.gmra.mrb[0].mxu0 %v4758
      %v5343 = vpop.f32.mrb[0].mxu0
      %v5344 = vadd.f32 %v4847, %v5343
      %v5345 = vpop.f32.mrb[0].mxu0
      %v5346 = vadd.f32 %v4851, %v5345
      %v5347 = vpop.f32.mrb[0].mxu0
      %v5348 = vadd.f32 %v4847, %v5347
      %v5349 = vpop.f32.mrb[0].mxu0
      %v5350 = vadd.f32 %v4851, %v5349
      %5351 = vmatprep.mubr.bf16.mxu0 %v4761
      %5352 = vmatmul.mubr.bf16.gmra.mrb[0].mxu0 %v4760
      %v5353 = vpop.f32.mrb[0].mxu0
      %v5354 = vadd.f32 %v4847, %v5353
      %v5355 = vpop.f32.mrb[0].mxu0
      %v5356 = vadd.f32 %v4851, %v5355
      %v5357 = vpop.f32.mrb[0].mxu0
      %v5358 = vadd.f32 %v4847, %v5357
      %v5359 = vpop.f32.mrb[0].mxu0
      %v5360 = vadd.f32 %v4851, %v5359
      %5361 = vmatprep.mubr.bf16.mxu0 %v4763
      %5362 = vmatmul.mubr.bf16.gmra.mrb[0].mxu0 %v4762
      %v5363 = vpop.f32.mrb[0].mxu0
      %v5364 = vadd.f32 %v4847, %v5363
      %v5365 = vpop.f32.mrb[0].mxu0
      %v5366 = vadd.f32 %v4851, %v5365
      %v5367 = vpop.f32.mrb[0].mxu0
      %v5368 = vadd.f32 %v4847, %v5367
      %v5369 = vpop.f32.mrb[0].mxu0
      %v5370 = vadd.f32 %v4851, %v5369
      %5371 = vmatprep.mubr.bf16.mxu0 %v4765
      %5372 = vmatmul.mubr.bf16.gmra.mrb[0].mxu0 %v4764
      %v5373 = vpop.f32.mrb[0].mxu0
      %v5374 = vadd.f32 %v4847, %v5373
      %v5375 = vpop.f32.mrb[0].mxu0
      %v5376 = vadd.f32 %v4851, %v5375
      %v5377 = vpop.f32.mrb[0].mxu0
      %v5378 = vadd.f32 %v4847, %v5377
      %v5379 = vpop.f32.mrb[0].mxu0
      %v5380 = vadd.f32 %v4851, %v5379
      %5381 = vmatprep.mubr.bf16.mxu0 %v4767
      %5382 = vmatmul.mubr.bf16.gmra.mrb[0].mxu0 %v4766
      %v5383 = vpop.f32.mrb[0].mxu0
      %v5384 = vadd.f32 %v4847, %v5383
      %v5385 = vpop.f32.mrb[0].mxu0
      %v5386 = vadd.f32 %v4851, %v5385
      %v5387 = vpop.f32.mrb[0].mxu0
      %v5388 = vadd.f32 %v4847, %v5387
      %v5389 = vpop.f32.mrb[0].mxu0
      %v5390 = vadd.f32 %v4851, %v5389
      %5391 = vmatprep.mubr.bf16.mxu0 %v4769
      %5392 = vmatmul.mubr.bf16.gmra.mrb[0].mxu0 %v4768
      %v5393 = vpop.f32.mrb[0].mxu0
      %v5394 = vadd.f32 %v4847, %v5393
      %v5395 = vpop.f32.mrb[0].mxu0
      %v5396 = vadd.f32 %v4851, %v5395
      %v5397 = vpop.f32.mrb[0].mxu0
      %v5398 = vadd.f32 %v4847, %v5397
      %v5399 = vpop.f32.mrb[0].mxu0
      %v5400 = vadd.f32 %v4851, %v5399
      %5401 = vdwg.mxu0
      %v5402 = vmax.f32 %v5211, 0.0
      %v5403 = vmax.f32 %v5213, 0.0
      %v5404 = vmax.f32 %v5324, 0.0
      %v5405 = vmax.f32 %v5326, 0.0
      %v5406 = vmax.f32 %v5215, 0.0
      %v5407 = vmax.f32 %v5217, 0.0
      %v5408 = vmax.f32 %v5328, 0.0
      %v5409 = vmax.f32 %v5330, 0.0
      %v5410 = vmax.f32 %v5221, 0.0
      %v5411 = vmax.f32 %v5223, 0.0
      %v5412 = vmax.f32 %v5334, 0.0
      %v5413 = vmax.f32 %v5336, 0.0
      %v5414 = vmax.f32 %v5225, 0.0
      %v5415 = vmax.f32 %v5227, 0.0
      %v5416 = vmax.f32 %v5338, 0.0
      %v5417 = vmax.f32 %v5340, 0.0
      %v5418 = vmax.f32 %v5231, 0.0
      %v5419 = vmax.f32 %v5233, 0.0
      %v5420 = vmax.f32 %v5344, 0.0
      %v5421 = vmax.f32 %v5346, 0.0
      %v5422 = vmax.f32 %v5235, 0.0
      %v5423 = vmax.f32 %v5237, 0.0
      %v5424 = vmax.f32 %v5348, 0.0
      %v5425 = vmax.f32 %v5350, 0.0
      %v5426 = vmax.f32 %v5241, 0.0
      %v5427 = vmax.f32 %v5243, 0.0
      %v5428 = vmax.f32 %v5354, 0.0
      %v5429 = vmax.f32 %v5356, 0.0
      %v5430 = vmax.f32 %v5245, 0.0
      %v5431 = vmax.f32 %v5247, 0.0
      %v5432 = vmax.f32 %v5358, 0.0
      %v5433 = vmax.f32 %v5360, 0.0
      %v5434 = vmax.f32 %v5251, 0.0
      %v5435 = vmax.f32 %v5253, 0.0
      %v5436 = vmax.f32 %v5364, 0.0
      %v5437 = vmax.f32 %v5366, 0.0
      %v5438 = vmax.f32 %v5255, 0.0
      %v5439 = vmax.f32 %v5257, 0.0
      %v5440 = vmax.f32 %v5368, 0.0
      %v5441 = vmax.f32 %v5370, 0.0
      %v5442 = vmax.f32 %v5261, 0.0
      %v5443 = vmax.f32 %v5263, 0.0
      %v5444 = vmax.f32 %v5374, 0.0
      %v5445 = vmax.f32 %v5376, 0.0
      %v5446 = vmax.f32 %v5265, 0.0
      %v5447 = vmax.f32 %v5267, 0.0
      %v5448 = vmax.f32 %v5378, 0.0
      %v5449 = vmax.f32 %v5380, 0.0
      %v5450 = vmax.f32 %v5271, 0.0
      %v5451 = vmax.f32 %v5273, 0.0
      %v5452 = vmax.f32 %v5384, 0.0
      %v5453 = vmax.f32 %v5386, 0.0
      %v5454 = vmax.f32 %v5275, 0.0
      %v5455 = vmax.f32 %v5277, 0.0
      %v5456 = vmax.f32 %v5388, 0.0
      %v5457 = vmax.f32 %v5390, 0.0
      %v5458 = vmax.f32 %v5281, 0.0
      %v5459 = vmax.f32 %v5283, 0.0
      %v5460 = vmax.f32 %v5394, 0.0
      %v5461 = vmax.f32 %v5396, 0.0
      %v5462 = vmax.f32 %v5285, 0.0
      %v5463 = vmax.f32 %v5287, 0.0
      %v5464 = vmax.f32 %v5398, 0.0
      %v5465 = vmax.f32 %v5400, 0.0
      %v5466 = vpack.c.bf16 %v5406, %v5402
      %v5467 = vpack.c.bf16 %v5407, %v5403
      %v5468 = vpack.c.bf16 %v5408, %v5404
      %v5469 = vpack.c.bf16 %v5409, %v5405
      %v5470 = vpack.c.bf16 %v5414, %v5410
      %v5471 = vpack.c.bf16 %v5415, %v5411
      %v5472 = vpack.c.bf16 %v5416, %v5412
      %v5473 = vpack.c.bf16 %v5417, %v5413
      %v5474 = vpack.c.bf16 %v5422, %v5418
      %v5475 = vpack.c.bf16 %v5423, %v5419
      %v5476 = vpack.c.bf16 %v5424, %v5420
      %v5477 = vpack.c.bf16 %v5425, %v5421
      %v5478 = vpack.c.bf16 %v5430, %v5426
      %v5479 = vpack.c.bf16 %v5431, %v5427
      %v5480 = vpack.c.bf16 %v5432, %v5428
      %v5481 = vpack.c.bf16 %v5433, %v5429
      %v5482 = vpack.c.bf16 %v5438, %v5434
      %v5483 = vpack.c.bf16 %v5439, %v5435
      %v5484 = vpack.c.bf16 %v5440, %v5436
      %v5485 = vpack.c.bf16 %v5441, %v5437
      %v5486 = vpack.c.bf16 %v5446, %v5442
      %v5487 = vpack.c.bf16 %v5447, %v5443
      %v5488 = vpack.c.bf16 %v5448, %v5444
      %v5489 = vpack.c.bf16 %v5449, %v5445
      %v5490 = vpack.c.bf16 %v5454, %v5450
      %v5491 = vpack.c.bf16 %v5455, %v5451
      %v5492 = vpack.c.bf16 %v5456, %v5452
      %v5493 = vpack.c.bf16 %v5457, %v5453
      %v5494 = vpack.c.bf16 %v5462, %v5458
      %v5495 = vpack.c.bf16 %v5463, %v5459
      %v5496 = vpack.c.bf16 %v5464, %v5460
      %v5497 = vpack.c.bf16 %v5465, %v5461
      %v5498 = vld [vmem:[%s16] sm:$0xff]
      %v5499 = vld [vmem:[%s16 + $0x8] sm:$0xff]
      %v5500 = vld [vmem:[%s16 + $0x10] sm:$0xff]
      %v5501 = vld [vmem:[%s16 + $0x18] sm:$0xf]
      %v5502 = vld [vmem:[%s16 + $0x1c] sm:$0xff]
      %v5503 = vld [vmem:[%s16 + $0x24] sm:$0xff]
      %v5504 = vld [vmem:[%s16 + $0x2c] sm:$0xff]
      %v5505 = vld [vmem:[%s16 + $0x34] sm:$0xf]
      %v5506 = vld [vmem:[%s16 + $0x38] sm:$0xff]
      %v5507 = vld [vmem:[%s16 + $0x40] sm:$0xff]
      %v5508 = vld [vmem:[%s16 + $0x48] sm:$0xff]
      %v5509 = vld [vmem:[%s16 + $0x50] sm:$0xf]
      %v5510 = vld [vmem:[%s16 + $0x54] sm:$0xff]
      %v5511 = vld [vmem:[%s16 + $0x5c] sm:$0xff]
      %v5512 = vld [vmem:[%s16 + $0x64] sm:$0xff]
      %v5513 = vld [vmem:[%s16 + $0x6c] sm:$0xf]
      %v5514 = vld [vmem:[%s16 + $0x70] sm:$0xff]
      %v5515 = vld [vmem:[%s16 + $0x78] sm:$0xff]
      %v5516 = vld [vmem:[%s16 + $0x80] sm:$0xff]
      %v5517 = vld [vmem:[%s16 + $0x88] sm:$0xf]
      %v5518 = vld [vmem:[%s16 + $0x8c] sm:$0xff]
      %v5519 = vld [vmem:[%s16 + $0x94] sm:$0xff]
      %v5520 = vld [vmem:[%s16 + $0x9c] sm:$0xff]
      %v5521 = vld [vmem:[%s16 + $0xa4] sm:$0xf]
      %v5522 = vld [vmem:[%s16 + $0xa8] sm:$0xff]
      %v5523 = vld [vmem:[%s16 + $0xb0] sm:$0xff]
      %v5524 = vld [vmem:[%s16 + $0xb8] sm:$0xff]
      %v5525 = vld [vmem:[%s16 + $0xc0] sm:$0xf]
      %v5526 = vld [vmem:[%s16 + $0xc4] sm:$0xff]
      %v5527 = vld [vmem:[%s16 + $0xcc] sm:$0xff]
      %v5528 = vld [vmem:[%s16 + $0xd4] sm:$0xff]
      %v5529 = vld [vmem:[%s16 + $0xdc] sm:$0xf]
      %v5530 = vld [vmem:[%s16 + $0xe0] sm:$0xff]
      %v5531 = vld [vmem:[%s16 + $0xe8] sm:$0xff]
      %v5532 = vld [vmem:[%s16 + $0xf0] sm:$0xff]
      %v5533 = vld [vmem:[%s16 + $0xf8] sm:$0xf]
      %v5534 = vld [vmem:[%s16 + $0xfc] sm:$0xff]
      %v5535 = vld [vmem:[%s16 + $0x104] sm:$0xff]
      %v5536 = vld [vmem:[%s16 + $0x10c] sm:$0xff]
      %v5537 = vld [vmem:[%s16 + $0x114] sm:$0xf]
      %v5538 = vld [vmem:[%s16 + $0x118] sm:$0xff]
      %v5539 = vld [vmem:[%s16 + $0x120] sm:$0xff]
      %v5540 = vld [vmem:[%s16 + $0x128] sm:$0xff]
      %v5541 = vld [vmem:[%s16 + $0x130] sm:$0xf]
      %v5542 = vld [vmem:[%s16 + $0x134] sm:$0xff]
      %v5543 = vld [vmem:[%s16 + $0x13c] sm:$0xff]
      %v5544 = vld [vmem:[%s16 + $0x144] sm:$0xff]
      %v5545 = vld [vmem:[%s16 + $0x14c] sm:$0xf]
      %v5546 = vld [vmem:[%s16 + $0x150] sm:$0xff]
      %v5547 = vld [vmem:[%s16 + $0x158] sm:$0xff]
      %v5548 = vld [vmem:[%s16 + $0x160] sm:$0xff]
      %v5549 = vld [vmem:[%s16 + $0x168] sm:$0xf]
      %v5550 = vld [vmem:[%s16 + $0x16c] sm:$0xff]
      %v5551 = vld [vmem:[%s16 + $0x174] sm:$0xff]
      %v5552 = vld [vmem:[%s16 + $0x17c] sm:$0xff]
      %v5553 = vld [vmem:[%s16 + $0x184] sm:$0xf]
      %v5554 = vld [vmem:[%s16 + $0x188] sm:$0xff]
      %v5555 = vld [vmem:[%s16 + $0x190] sm:$0xff]
      %v5556 = vld [vmem:[%s16 + $0x198] sm:$0xff]
      %v5557 = vld [vmem:[%s16 + $0x1a0] sm:$0xf]
      %v5558 = vld [vmem:[%s16 + $0x1a4] sm:$0xff]
      %v5559 = vld [vmem:[%s16 + $0x1ac] sm:$0xff]
      %v5560 = vld [vmem:[%s16 + $0x1b4] sm:$0xff]
      %v5561 = vld [vmem:[%s16 + $0x1bc] sm:$0xf]
      %v5562 = vld [vmem:[%s16 + $0x1c0] sm:$0xff]
      %v5563 = vld [vmem:[%s16 + $0x1c8] sm:$0xff]
      %v5564 = vld [vmem:[%s16 + $0x1d0] sm:$0xff]
      %v5565 = vld [vmem:[%s16 + $0x1d8] sm:$0xf]
      %v5566 = vld [vmem:[%s16 + $0x1dc] sm:$0xff]
      %v5567 = vld [vmem:[%s16 + $0x1e4] sm:$0xff]
      %v5568 = vld [vmem:[%s16 + $0x1ec] sm:$0xff]
      %v5569 = vld [vmem:[%s16 + $0x1f4] sm:$0xf]
      %v5570 = vld [vmem:[%s16 + $0x1f8] sm:$0xff]
      %v5571 = vld [vmem:[%s16 + $0x200] sm:$0xff]
      %v5572 = vld [vmem:[%s16 + $0x208] sm:$0xff]
      %v5573 = vld [vmem:[%s16 + $0x210] sm:$0xf]
      %v5574 = vld [vmem:[%s16 + $0x214] sm:$0xff]
      %v5575 = vld [vmem:[%s16 + $0x21c] sm:$0xff]
      %v5576 = vld [vmem:[%s16 + $0x224] sm:$0xff]
      %v5577 = vld [vmem:[%s16 + $0x22c] sm:$0xf]
      %v5578 = vld [vmem:[%s16 + $0x230] sm:$0xff]
      %v5579 = vld [vmem:[%s16 + $0x238] sm:$0xff]
      %v5580 = vld [vmem:[%s16 + $0x240] sm:$0xff]
      %v5581 = vld [vmem:[%s16 + $0x248] sm:$0xf]
      %v5582 = vld [vmem:[%s16 + $0x24c] sm:$0xff]
      %v5583 = vld [vmem:[%s16 + $0x254] sm:$0xff]
      %v5584 = vld [vmem:[%s16 + $0x25c] sm:$0xff]
      %v5585 = vld [vmem:[%s16 + $0x264] sm:$0xf]
      %v5586 = vld [vmem:[%s16 + $0x268] sm:$0xff]
      %v5587 = vld [vmem:[%s16 + $0x270] sm:$0xff]
      %v5588 = vld [vmem:[%s16 + $0x278] sm:$0xff]
      %v5589 = vld [vmem:[%s16 + $0x280] sm:$0xf]
      %v5590 = vld [vmem:[%s16 + $0x284] sm:$0xff]
      %v5591 = vld [vmem:[%s16 + $0x28c] sm:$0xff]
      %v5592 = vld [vmem:[%s16 + $0x294] sm:$0xff]
      %v5593 = vld [vmem:[%s16 + $0x29c] sm:$0xf]
      %v5594 = vld [vmem:[%s16 + $0x2a0] sm:$0xff]
      %v5595 = vld [vmem:[%s16 + $0x2a8] sm:$0xff]
      %v5596 = vld [vmem:[%s16 + $0x2b0] sm:$0xff]
      %v5597 = vld [vmem:[%s16 + $0x2b8] sm:$0xf]
      %v5598 = vld [vmem:[%s16 + $0x2bc] sm:$0xff]
      %v5599 = vld [vmem:[%s16 + $0x2c4] sm:$0xff]
      %v5600 = vld [vmem:[%s16 + $0x2cc] sm:$0xff]
      %v5601 = vld [vmem:[%s16 + $0x2d4] sm:$0xf]
      %v5602 = vld [vmem:[%s16 + $0x2d8] sm:$0xff]
      %v5603 = vld [vmem:[%s16 + $0x2e0] sm:$0xff]
      %v5604 = vld [vmem:[%s16 + $0x2e8] sm:$0xff]
      %v5605 = vld [vmem:[%s16 + $0x2f0] sm:$0xf]
      %v5606 = vld [vmem:[%s16 + $0x2f4] sm:$0xff]
      %v5607 = vld [vmem:[%s16 + $0x2fc] sm:$0xff]
      %v5608 = vld [vmem:[%s16 + $0x304] sm:$0xff]
      %v5609 = vld [vmem:[%s16 + $0x30c] sm:$0xf]
      %v5610 = vld [vmem:[%s16 + $0x310] sm:$0xff]
      %v5611 = vld [vmem:[%s16 + $0x318] sm:$0xff]
      %v5612 = vld [vmem:[%s16 + $0x320] sm:$0xff]
      %v5613 = vld [vmem:[%s16 + $0x328] sm:$0xf]
      %v5614 = vld [vmem:[%s16 + $0x32c] sm:$0xff]
      %v5615 = vld [vmem:[%s16 + $0x334] sm:$0xff]
      %v5616 = vld [vmem:[%s16 + $0x33c] sm:$0xff]
      %v5617 = vld [vmem:[%s16 + $0x344] sm:$0xf]
      %v5618 = vld [vmem:[%s16 + $0x348] sm:$0xff]
      %v5619 = vld [vmem:[%s16 + $0x350] sm:$0xff]
      %v5620 = vld [vmem:[%s16 + $0x358] sm:$0xff]
      %v5621 = vld [vmem:[%s16 + $0x360] sm:$0xf]
      %v5622 = vld [vmem:[%s16 + $0x364] sm:$0xff]
      %v5623 = vld [vmem:[%s16 + $0x36c] sm:$0xff]
      %v5624 = vld [vmem:[%s16 + $0x374] sm:$0xff]
      %v5625 = vld [vmem:[%s16 + $0x37c] sm:$0xf]
      %v5626 = vld [vmem:[%s16 + $0x380] sm:$0xff]
      %v5627 = vld [vmem:[%s16 + $0x388] sm:$0xff]
      %v5628 = vld [vmem:[%s16 + $0x390] sm:$0xff]
      %v5629 = vld [vmem:[%s16 + $0x398] sm:$0xf]
      %v5630 = vld [vmem:[%s16 + $0x39c] sm:$0xff]
      %v5631 = vld [vmem:[%s16 + $0x3a4] sm:$0xff]
      %v5632 = vld [vmem:[%s16 + $0x3ac] sm:$0xff]
      %v5633 = vld [vmem:[%s16 + $0x3b4] sm:$0xf]
      %v5634 = vld [vmem:[%s16 + $0x3b8] sm:$0xff]
      %v5635 = vld [vmem:[%s16 + $0x3c0] sm:$0xff]
      %v5636 = vld [vmem:[%s16 + $0x3c8] sm:$0xff]
      %v5637 = vld [vmem:[%s16 + $0x3d0] sm:$0xf]
      %v5638 = vld [vmem:[%s16 + $0x3d4] sm:$0xff]
      %v5639 = vld [vmem:[%s16 + $0x3dc] sm:$0xff]
      %v5640 = vld [vmem:[%s16 + $0x3e4] sm:$0xff]
      %v5641 = vld [vmem:[%s16 + $0x3ec] sm:$0xf]
      %v5642 = vld [vmem:[%s16 + $0x3f0] sm:$0xff]
      %v5643 = vld [vmem:[%s16 + $0x3f8] sm:$0xff]
      %v5644 = vld [vmem:[%s16 + $0x400] sm:$0xff]
      %v5645 = vld [vmem:[%s16 + $0x408] sm:$0xf]
      %v5646 = vld [vmem:[%s16 + $0x40c] sm:$0xff]
      %v5647 = vld [vmem:[%s16 + $0x414] sm:$0xff]
      %v5648 = vld [vmem:[%s16 + $0x41c] sm:$0xff]
      %v5649 = vld [vmem:[%s16 + $0x424] sm:$0xf]
      %v5650 = vld [vmem:[%s16 + $0x428] sm:$0xff]
      %v5651 = vld [vmem:[%s16 + $0x430] sm:$0xff]
      %v5652 = vld [vmem:[%s16 + $0x438] sm:$0xff]
      %v5653 = vld [vmem:[%s16 + $0x440] sm:$0xf]
      %v5654 = vld [vmem:[%s16 + $0x444] sm:$0xff]
      %v5655 = vld [vmem:[%s16 + $0x44c] sm:$0xff]
      %v5656 = vld [vmem:[%s16 + $0x454] sm:$0xff]
      %v5657 = vld [vmem:[%s16 + $0x45c] sm:$0xf]
      %v5658 = vld [vmem:[%s16 + $0x460] sm:$0xff]
      %v5659 = vld [vmem:[%s16 + $0x468] sm:$0xff]
      %v5660 = vld [vmem:[%s16 + $0x470] sm:$0xff]
      %v5661 = vld [vmem:[%s16 + $0x478] sm:$0xf]
      %v5662 = vld [vmem:[%s16 + $0x47c] sm:$0xff]
      %v5663 = vld [vmem:[%s16 + $0x484] sm:$0xff]
      %v5664 = vld [vmem:[%s16 + $0x48c] sm:$0xff]
      %v5665 = vld [vmem:[%s16 + $0x494] sm:$0xf]
      %v5666 = vld [vmem:[%s16 + $0x498] sm:$0xff]
      %v5667 = vld [vmem:[%s16 + $0x4a0] sm:$0xff]
      %v5668 = vld [vmem:[%s16 + $0x4a8] sm:$0xff]
      %v5669 = vld [vmem:[%s16 + $0x4b0] sm:$0xf]
      %v5670 = vld [vmem:[%s16 + $0x4b4] sm:$0xff]
      %v5671 = vld [vmem:[%s16 + $0x4bc] sm:$0xff]
      %v5672 = vld [vmem:[%s16 + $0x4c4] sm:$0xff]
      %v5673 = vld [vmem:[%s16 + $0x4cc] sm:$0xf]
      %v5674 = vld [vmem:[%s16 + $0x4d0] sm:$0xff]
      %v5675 = vld [vmem:[%s16 + $0x4d8] sm:$0xff]
      %v5676 = vld [vmem:[%s16 + $0x4e0] sm:$0xff]
      %v5677 = vld [vmem:[%s16 + $0x4e8] sm:$0xf]
      %v5678 = vld [vmem:[%s16 + $0x4ec] sm:$0xff]
      %v5679 = vld [vmem:[%s16 + $0x4f4] sm:$0xff]
      %v5680 = vld [vmem:[%s16 + $0x4fc] sm:$0xff]
      %v5681 = vld [vmem:[%s16 + $0x504] sm:$0xf]
      %v5682 = vld [vmem:[%s16 + $0x508] sm:$0xff]
      %v5683 = vld [vmem:[%s16 + $0x510] sm:$0xff]
      %v5684 = vld [vmem:[%s16 + $0x518] sm:$0xff]
      %v5685 = vld [vmem:[%s16 + $0x520] sm:$0xf]
      %v5686 = vld [vmem:[%s16 + $0x524] sm:$0xff]
      %v5687 = vld [vmem:[%s16 + $0x52c] sm:$0xff]
      %v5688 = vld [vmem:[%s16 + $0x534] sm:$0xff]
      %v5689 = vld [vmem:[%s16 + $0x53c] sm:$0xf]
      %v5690 = vld [vmem:[%s16 + $0x540] sm:$0xff]
      %v5691 = vld [vmem:[%s16 + $0x548] sm:$0xff]
      %v5692 = vld [vmem:[%s16 + $0x550] sm:$0xff]
      %v5693 = vld [vmem:[%s16 + $0x558] sm:$0xf]
      %v5694 = vld [vmem:[%s16 + $0x55c] sm:$0xff]
      %v5695 = vld [vmem:[%s16 + $0x564] sm:$0xff]
      %v5696 = vld [vmem:[%s16 + $0x56c] sm:$0xff]
      %v5697 = vld [vmem:[%s16 + $0x574] sm:$0xf]
      %v5698 = vld [vmem:[%s16 + $0x578] sm:$0xff]
      %v5699 = vld [vmem:[%s16 + $0x580] sm:$0xff]
      %v5700 = vld [vmem:[%s16 + $0x588] sm:$0xff]
      %v5701 = vld [vmem:[%s16 + $0x590] sm:$0xf]
      %v5702 = vld [vmem:[%s16 + $0x594] sm:$0xff]
      %v5703 = vld [vmem:[%s16 + $0x59c] sm:$0xff]
      %v5704 = vld [vmem:[%s16 + $0x5a4] sm:$0xff]
      %v5705 = vld [vmem:[%s16 + $0x5ac] sm:$0xf]
      %v5706 = vld [vmem:[%s16 + $0x5b0] sm:$0xff]
      %v5707 = vld [vmem:[%s16 + $0x5b8] sm:$0xff]
      %v5708 = vld [vmem:[%s16 + $0x5c0] sm:$0xff]
      %v5709 = vld [vmem:[%s16 + $0x5c8] sm:$0xf]
      %v5710 = vld [vmem:[%s16 + $0x5cc] sm:$0xff]
      %v5711 = vld [vmem:[%s16 + $0x5d4] sm:$0xff]
      %v5712 = vld [vmem:[%s16 + $0x5dc] sm:$0xff]
      %v5713 = vld [vmem:[%s16 + $0x5e4] sm:$0xf]
      %v5714 = vld [vmem:[%s16 + $0x5e8] sm:$0xff]
      %v5715 = vld [vmem:[%s16 + $0x5f0] sm:$0xff]
      %v5716 = vld [vmem:[%s16 + $0x5f8] sm:$0xff]
      %v5717 = vld [vmem:[%s16 + $0x600] sm:$0xf]
      %v5718 = vld [vmem:[%s16 + $0x604] sm:$0xff]
      %v5719 = vld [vmem:[%s16 + $0x60c] sm:$0xff]
      %v5720 = vld [vmem:[%s16 + $0x614] sm:$0xff]
      %v5721 = vld [vmem:[%s16 + $0x61c] sm:$0xf]
      %v5722 = vld [vmem:[%s16 + $0x620] sm:$0xff]
      %v5723 = vld [vmem:[%s16 + $0x628] sm:$0xff]
      %v5724 = vld [vmem:[%s16 + $0x630] sm:$0xff]
      %v5725 = vld [vmem:[%s16 + $0x638] sm:$0xf]
      %v5726 = vld [vmem:[%s16 + $0x63c] sm:$0xff]
      %v5727 = vld [vmem:[%s16 + $0x644] sm:$0xff]
      %v5728 = vld [vmem:[%s16 + $0x64c] sm:$0xff]
      %v5729 = vld [vmem:[%s16 + $0x654] sm:$0xf]
      %v5730 = vld [vmem:[%s16 + $0x658] sm:$0xff]
      %v5731 = vld [vmem:[%s16 + $0x660] sm:$0xff]
      %v5732 = vld [vmem:[%s16 + $0x668] sm:$0xff]
      %v5733 = vld [vmem:[%s16 + $0x670] sm:$0xf]
      %v5734 = vld [vmem:[%s16 + $0x674] sm:$0xff]
      %v5735 = vld [vmem:[%s16 + $0x67c] sm:$0xff]
      %v5736 = vld [vmem:[%s16 + $0x684] sm:$0xff]
      %v5737 = vld [vmem:[%s16 + $0x68c] sm:$0xf]
      %v5738 = vld [vmem:[%s16 + $0x690] sm:$0xff]
      %v5739 = vld [vmem:[%s16 + $0x698] sm:$0xff]
      %v5740 = vld [vmem:[%s16 + $0x6a0] sm:$0xff]
      %v5741 = vld [vmem:[%s16 + $0x6a8] sm:$0xf]
      %v5742 = vld [vmem:[%s16 + $0x6ac] sm:$0xff]
      %v5743 = vld [vmem:[%s16 + $0x6b4] sm:$0xff]
      %v5744 = vld [vmem:[%s16 + $0x6bc] sm:$0xff]
      %v5745 = vld [vmem:[%s16 + $0x6c4] sm:$0xf]
      %v5746 = vld [vmem:[%s16 + $0x6c8] sm:$0xff]
      %v5747 = vld [vmem:[%s16 + $0x6d0] sm:$0xff]
      %v5748 = vld [vmem:[%s16 + $0x6d8] sm:$0xff]
      %v5749 = vld [vmem:[%s16 + $0x6e0] sm:$0xf]
      %v5750 = vld [vmem:[%s16 + $0x6e4] sm:$0xff]
      %v5751 = vld [vmem:[%s16 + $0x6ec] sm:$0xff]
      %v5752 = vld [vmem:[%s16 + $0x6f4] sm:$0xff]
      %v5753 = vld [vmem:[%s16 + $0x6fc] sm:$0xf]
      %v5754 = vld [vmem:[%s17] sm:$0x7f]
      %v5756 = vlaneseq
      %v5757 = vshrl.u32 %v5756, 7
      %v5758 = vsub.s32 0, %v5757
      %v5759 = vrot.slane %v5754, %v5758
      %v5760 = vlaneseq
      %v5761 = vshrl.u32 %v5760, 7
      %v5762 = vsub.s32 1, %v5761
      %v5763 = vrot.slane %v5754, %v5762
      %v5764 = vlaneseq
      %v5765 = vshrl.u32 %v5764, 7
      %v5766 = vsub.s32 2, %v5765
      %v5767 = vrot.slane %v5754, %v5766
      %v5768 = vlaneseq
      %v5769 = vshrl.u32 %v5768, 7
      %v5770 = vsub.s32 3, %v5769
      %v5771 = vrot.slane %v5754, %v5770
      %v5772 = vlaneseq
      %v5773 = vshrl.u32 %v5772, 7
      %v5774 = vsub.s32 4, %v5773
      %v5775 = vrot.slane %v5754, %v5774
      %v5776 = vlaneseq
      %v5777 = vshrl.u32 %v5776, 7
      %v5778 = vsub.s32 5, %v5777
      %v5779 = vrot.slane %v5754, %v5778
      %v5780 = vlaneseq
      %v5781 = vshrl.u32 %v5780, 7
      %v5782 = vsub.s32 6, %v5781
      %v5783 = vrot.slane %v5754, %v5782
      %v6047 = vunpack.c.l.b16 %v5498
      %v6048 = vunpack.c.h.b16 %v5498
      %v6049 = vunpack.c.l.b16 %v5499
      %v6050 = vunpack.c.h.b16 %v5499
      %v6051 = vunpack.c.l.b16 %v5500
      %v6052 = vunpack.c.h.b16 %v5500
      %v6053 = vunpack.c.l.b16 %v5501
      %v6054 = vunpack.c.l.b16 %v5502
      %v6055 = vunpack.c.h.b16 %v5502
      %v6056 = vunpack.c.l.b16 %v5503
      %v6057 = vunpack.c.h.b16 %v5503
      %v6058 = vunpack.c.l.b16 %v5504
      %v6059 = vunpack.c.h.b16 %v5504
      %v6060 = vunpack.c.l.b16 %v5505
      %v6061 = vunpack.c.l.b16 %v5506
      %v6062 = vunpack.c.h.b16 %v5506
      %v6063 = vunpack.c.l.b16 %v5507
      %v6064 = vunpack.c.h.b16 %v5507
      %v6065 = vunpack.c.l.b16 %v5508
      %v6066 = vunpack.c.h.b16 %v5508
      %v6067 = vunpack.c.l.b16 %v5509
      %v6068 = vunpack.c.l.b16 %v5510
      %v6069 = vunpack.c.h.b16 %v5510
      %v6070 = vunpack.c.l.b16 %v5511
      %v6071 = vunpack.c.h.b16 %v5511
      %v6072 = vunpack.c.l.b16 %v5512
      %v6073 = vunpack.c.h.b16 %v5512
      %v6074 = vunpack.c.l.b16 %v5513
      %v6075 = vunpack.c.l.b16 %v5514
      %v6076 = vunpack.c.h.b16 %v5514
      %v6077 = vunpack.c.l.b16 %v5515
      %v6078 = vunpack.c.h.b16 %v5515
      %v6079 = vunpack.c.l.b16 %v5516
      %v6080 = vunpack.c.h.b16 %v5516
      %v6081 = vunpack.c.l.b16 %v5517
      %v6082 = vunpack.c.l.b16 %v5518
      %v6083 = vunpack.c.h.b16 %v5518
      %v6084 = vunpack.c.l.b16 %v5519
      %v6085 = vunpack.c.h.b16 %v5519
      %v6086 = vunpack.c.l.b16 %v5520
      %v6087 = vunpack.c.h.b16 %v5520
      %v6088 = vunpack.c.l.b16 %v5521
      %v6089 = vunpack.c.l.b16 %v5522
      %v6090 = vunpack.c.h.b16 %v5522
      %v6091 = vunpack.c.l.b16 %v5523
      %v6092 = vunpack.c.h.b16 %v5523
      %v6093 = vunpack.c.l.b16 %v5524
      %v6094 = vunpack.c.h.b16 %v5524
      %v6095 = vunpack.c.l.b16 %v5525
      %v6096 = vunpack.c.l.b16 %v5526
      %v6097 = vunpack.c.h.b16 %v5526
      %v6098 = vunpack.c.l.b16 %v5527
      %v6099 = vunpack.c.h.b16 %v5527
      %v6100 = vunpack.c.l.b16 %v5528
      %v6101 = vunpack.c.h.b16 %v5528
      %v6102 = vunpack.c.l.b16 %v5529
      %v6103 = vunpack.c.l.b16 %v5530
      %v6104 = vunpack.c.h.b16 %v5530
      %v6105 = vunpack.c.l.b16 %v5531
      %v6106 = vunpack.c.h.b16 %v5531
      %v6107 = vunpack.c.l.b16 %v5532
      %v6108 = vunpack.c.h.b16 %v5532
      %v6109 = vunpack.c.l.b16 %v5533
      %v6110 = vunpack.c.l.b16 %v5534
      %v6111 = vunpack.c.h.b16 %v5534
      %v6112 = vunpack.c.l.b16 %v5535
      %v6113 = vunpack.c.h.b16 %v5535
      %v6114 = vunpack.c.l.b16 %v5536
      %v6115 = vunpack.c.h.b16 %v5536
      %v6116 = vunpack.c.l.b16 %v5537
      %v6117 = vunpack.c.l.b16 %v5538
      %v6118 = vunpack.c.h.b16 %v5538
      %v6119 = vunpack.c.l.b16 %v5539
      %v6120 = vunpack.c.h.b16 %v5539
      %v6121 = vunpack.c.l.b16 %v5540
      %v6122 = vunpack.c.h.b16 %v5540
      %v6123 = vunpack.c.l.b16 %v5541
      %v6124 = vunpack.c.l.b16 %v5542
      %v6125 = vunpack.c.h.b16 %v5542
      %v6126 = vunpack.c.l.b16 %v5543
      %v6127 = vunpack.c.h.b16 %v5543
      %v6128 = vunpack.c.l.b16 %v5544
      %v6129 = vunpack.c.h.b16 %v5544
      %v6130 = vunpack.c.l.b16 %v5545
      %v6131 = vunpack.c.l.b16 %v5546
      %v6132 = vunpack.c.h.b16 %v5546
      %v6133 = vunpack.c.l.b16 %v5547
      %v6134 = vunpack.c.h.b16 %v5547
      %v6135 = vunpack.c.l.b16 %v5548
      %v6136 = vunpack.c.h.b16 %v5548
      %v6137 = vunpack.c.l.b16 %v5549
      %v6138 = vunpack.c.l.b16 %v5550
      %v6139 = vunpack.c.h.b16 %v5550
      %v6140 = vunpack.c.l.b16 %v5551
      %v6141 = vunpack.c.h.b16 %v5551
      %v6142 = vunpack.c.l.b16 %v5552
      %v6143 = vunpack.c.h.b16 %v5552
      %v6144 = vunpack.c.l.b16 %v5553
      %v6145 = vunpack.c.l.b16 %v5554
      %v6146 = vunpack.c.h.b16 %v5554
      %v6147 = vunpack.c.l.b16 %v5555
      %v6148 = vunpack.c.h.b16 %v5555
      %v6149 = vunpack.c.l.b16 %v5556
      %v6150 = vunpack.c.h.b16 %v5556
      %v6151 = vunpack.c.l.b16 %v5557
      %v6152 = vunpack.c.l.b16 %v5558
      %v6153 = vunpack.c.h.b16 %v5558
      %v6154 = vunpack.c.l.b16 %v5559
      %v6155 = vunpack.c.h.b16 %v5559
      %v6156 = vunpack.c.l.b16 %v5560
      %v6157 = vunpack.c.h.b16 %v5560
      %v6158 = vunpack.c.l.b16 %v5561
      %v6159 = vunpack.c.l.b16 %v5562
      %v6160 = vunpack.c.h.b16 %v5562
      %v6161 = vunpack.c.l.b16 %v5563
      %v6162 = vunpack.c.h.b16 %v5563
      %v6163 = vunpack.c.l.b16 %v5564
      %v6164 = vunpack.c.h.b16 %v5564
      %v6165 = vunpack.c.l.b16 %v5565
      %v6166 = vunpack.c.l.b16 %v5566
      %v6167 = vunpack.c.h.b16 %v5566
      %v6168 = vunpack.c.l.b16 %v5567
      %v6169 = vunpack.c.h.b16 %v5567
      %v6170 = vunpack.c.l.b16 %v5568
      %v6171 = vunpack.c.h.b16 %v5568
      %v6172 = vunpack.c.l.b16 %v5569
      %v6173 = vunpack.c.l.b16 %v5570
      %v6174 = vunpack.c.h.b16 %v5570
      %v6175 = vunpack.c.l.b16 %v5571
      %v6176 = vunpack.c.h.b16 %v5571
      %v6177 = vunpack.c.l.b16 %v5572
      %v6178 = vunpack.c.h.b16 %v5572
      %v6179 = vunpack.c.l.b16 %v5573
      %v6180 = vunpack.c.l.b16 %v5574
      %v6181 = vunpack.c.h.b16 %v5574
      %v6182 = vunpack.c.l.b16 %v5575
      %v6183 = vunpack.c.h.b16 %v5575
      %v6184 = vunpack.c.l.b16 %v5576
      %v6185 = vunpack.c.h.b16 %v5576
      %v6186 = vunpack.c.l.b16 %v5577
      %v6187 = vunpack.c.l.b16 %v5578
      %v6188 = vunpack.c.h.b16 %v5578
      %v6189 = vunpack.c.l.b16 %v5579
      %v6190 = vunpack.c.h.b16 %v5579
      %v6191 = vunpack.c.l.b16 %v5580
      %v6192 = vunpack.c.h.b16 %v5580
      %v6193 = vunpack.c.l.b16 %v5581
      %v6194 = vunpack.c.l.b16 %v5582
      %v6195 = vunpack.c.h.b16 %v5582
      %v6196 = vunpack.c.l.b16 %v5583
      %v6197 = vunpack.c.h.b16 %v5583
      %v6198 = vunpack.c.l.b16 %v5584
      %v6199 = vunpack.c.h.b16 %v5584
      %v6200 = vunpack.c.l.b16 %v5585
      %v6201 = vunpack.c.l.b16 %v5586
      %v6202 = vunpack.c.h.b16 %v5586
      %v6203 = vunpack.c.l.b16 %v5587
      %v6204 = vunpack.c.h.b16 %v5587
      %v6205 = vunpack.c.l.b16 %v5588
      %v6206 = vunpack.c.h.b16 %v5588
      %v6207 = vunpack.c.l.b16 %v5589
      %v6208 = vunpack.c.l.b16 %v5590
      %v6209 = vunpack.c.h.b16 %v5590
      %v6210 = vunpack.c.l.b16 %v5591
      %v6211 = vunpack.c.h.b16 %v5591
      %v6212 = vunpack.c.l.b16 %v5592
      %v6213 = vunpack.c.h.b16 %v5592
      %v6214 = vunpack.c.l.b16 %v5593
      %v6215 = vunpack.c.l.b16 %v5594
      %v6216 = vunpack.c.h.b16 %v5594
      %v6217 = vunpack.c.l.b16 %v5595
      %v6218 = vunpack.c.h.b16 %v5595
      %v6219 = vunpack.c.l.b16 %v5596
      %v6220 = vunpack.c.h.b16 %v5596
      %v6221 = vunpack.c.l.b16 %v5597
      %v6222 = vunpack.c.l.b16 %v5598
      %v6223 = vunpack.c.h.b16 %v5598
      %v6224 = vunpack.c.l.b16 %v5599
      %v6225 = vunpack.c.h.b16 %v5599
      %v6226 = vunpack.c.l.b16 %v5600
      %v6227 = vunpack.c.h.b16 %v5600
      %v6228 = vunpack.c.l.b16 %v5601
      %v6229 = vunpack.c.l.b16 %v5602
      %v6230 = vunpack.c.h.b16 %v5602
      %v6231 = vunpack.c.l.b16 %v5603
      %v6232 = vunpack.c.h.b16 %v5603
      %v6233 = vunpack.c.l.b16 %v5604
      %v6234 = vunpack.c.h.b16 %v5604
      %v6235 = vunpack.c.l.b16 %v5605
      %v6236 = vunpack.c.l.b16 %v5606
      %v6237 = vunpack.c.h.b16 %v5606
      %v6238 = vunpack.c.l.b16 %v5607
      %v6239 = vunpack.c.h.b16 %v5607
      %v6240 = vunpack.c.l.b16 %v5608
      %v6241 = vunpack.c.h.b16 %v5608
      %v6242 = vunpack.c.l.b16 %v5609
      %v6243 = vunpack.c.l.b16 %v5610
      %v6244 = vunpack.c.h.b16 %v5610
      %v6245 = vunpack.c.l.b16 %v5611
      %v6246 = vunpack.c.h.b16 %v5611
      %v6247 = vunpack.c.l.b16 %v5612
      %v6248 = vunpack.c.h.b16 %v5612
      %v6249 = vunpack.c.l.b16 %v5613
      %v6250 = vunpack.c.l.b16 %v5614
      %v6251 = vunpack.c.h.b16 %v5614
      %v6252 = vunpack.c.l.b16 %v5615
      %v6253 = vunpack.c.h.b16 %v5615
      %v6254 = vunpack.c.l.b16 %v5616
      %v6255 = vunpack.c.h.b16 %v5616
      %v6256 = vunpack.c.l.b16 %v5617
      %v6257 = vunpack.c.l.b16 %v5618
      %v6258 = vunpack.c.h.b16 %v5618
      %v6259 = vunpack.c.l.b16 %v5619
      %v6260 = vunpack.c.h.b16 %v5619
      %v6261 = vunpack.c.l.b16 %v5620
      %v6262 = vunpack.c.h.b16 %v5620
      %v6263 = vunpack.c.l.b16 %v5621
      %v6264 = vunpack.c.l.b16 %v5622
      %v6265 = vunpack.c.h.b16 %v5622
      %v6266 = vunpack.c.l.b16 %v5623
      %v6267 = vunpack.c.h.b16 %v5623
      %v6268 = vunpack.c.l.b16 %v5624
      %v6269 = vunpack.c.h.b16 %v5624
      %v6270 = vunpack.c.l.b16 %v5625
      %v6271 = vunpack.c.l.b16 %v5626
      %v6272 = vunpack.c.h.b16 %v5626
      %v6273 = vunpack.c.l.b16 %v5627
      %v6274 = vunpack.c.h.b16 %v5627
      %v6275 = vunpack.c.l.b16 %v5628
      %v6276 = vunpack.c.h.b16 %v5628
      %v6277 = vunpack.c.l.b16 %v5629
      %v6278 = vunpack.c.l.b16 %v5630
      %v6279 = vunpack.c.h.b16 %v5630
      %v6280 = vunpack.c.l.b16 %v5631
      %v6281 = vunpack.c.h.b16 %v5631
      %v6282 = vunpack.c.l.b16 %v5632
      %v6283 = vunpack.c.h.b16 %v5632
      %v6284 = vunpack.c.l.b16 %v5633
      %v6285 = vunpack.c.l.b16 %v5634
      %v6286 = vunpack.c.h.b16 %v5634
      %v6287 = vunpack.c.l.b16 %v5635
      %v6288 = vunpack.c.h.b16 %v5635
      %v6289 = vunpack.c.l.b16 %v5636
      %v6290 = vunpack.c.h.b16 %v5636
      %v6291 = vunpack.c.l.b16 %v5637
      %v6292 = vunpack.c.l.b16 %v5638
      %v6293 = vunpack.c.h.b16 %v5638
      %v6294 = vunpack.c.l.b16 %v5639
      %v6295 = vunpack.c.h.b16 %v5639
      %v6296 = vunpack.c.l.b16 %v5640
      %v6297 = vunpack.c.h.b16 %v5640
      %v6298 = vunpack.c.l.b16 %v5641
      %v6299 = vunpack.c.l.b16 %v5642
      %v6300 = vunpack.c.h.b16 %v5642
      %v6301 = vunpack.c.l.b16 %v5643
      %v6302 = vunpack.c.h.b16 %v5643
      %v6303 = vunpack.c.l.b16 %v5644
      %v6304 = vunpack.c.h.b16 %v5644
      %v6305 = vunpack.c.l.b16 %v5645
      %v6306 = vunpack.c.l.b16 %v5646
      %v6307 = vunpack.c.h.b16 %v5646
      %v6308 = vunpack.c.l.b16 %v5647
      %v6309 = vunpack.c.h.b16 %v5647
      %v6310 = vunpack.c.l.b16 %v5648
      %v6311 = vunpack.c.h.b16 %v5648
      %v6312 = vunpack.c.l.b16 %v5649
      %v6313 = vunpack.c.l.b16 %v5650
      %v6314 = vunpack.c.h.b16 %v5650
      %v6315 = vunpack.c.l.b16 %v5651
      %v6316 = vunpack.c.h.b16 %v5651
      %v6317 = vunpack.c.l.b16 %v5652
      %v6318 = vunpack.c.h.b16 %v5652
      %v6319 = vunpack.c.l.b16 %v5653
      %v6320 = vunpack.c.l.b16 %v5654
      %v6321 = vunpack.c.h.b16 %v5654
      %v6322 = vunpack.c.l.b16 %v5655
      %v6323 = vunpack.c.h.b16 %v5655
      %v6324 = vunpack.c.l.b16 %v5656
      %v6325 = vunpack.c.h.b16 %v5656
      %v6326 = vunpack.c.l.b16 %v5657
      %v6327 = vunpack.c.l.b16 %v5658
      %v6328 = vunpack.c.h.b16 %v5658
      %v6329 = vunpack.c.l.b16 %v5659
      %v6330 = vunpack.c.h.b16 %v5659
      %v6331 = vunpack.c.l.b16 %v5660
      %v6332 = vunpack.c.h.b16 %v5660
      %v6333 = vunpack.c.l.b16 %v5661
      %v6334 = vunpack.c.l.b16 %v5662
      %v6335 = vunpack.c.h.b16 %v5662
      %v6336 = vunpack.c.l.b16 %v5663
      %v6337 = vunpack.c.h.b16 %v5663
      %v6338 = vunpack.c.l.b16 %v5664
      %v6339 = vunpack.c.h.b16 %v5664
      %v6340 = vunpack.c.l.b16 %v5665
      %v6341 = vunpack.c.l.b16 %v5666
      %v6342 = vunpack.c.h.b16 %v5666
      %v6343 = vunpack.c.l.b16 %v5667
      %v6344 = vunpack.c.h.b16 %v5667
      %v6345 = vunpack.c.l.b16 %v5668
      %v6346 = vunpack.c.h.b16 %v5668
      %v6347 = vunpack.c.l.b16 %v5669
      %v6348 = vunpack.c.l.b16 %v5670
      %v6349 = vunpack.c.h.b16 %v5670
      %v6350 = vunpack.c.l.b16 %v5671
      %v6351 = vunpack.c.h.b16 %v5671
      %v6352 = vunpack.c.l.b16 %v5672
      %v6353 = vunpack.c.h.b16 %v5672
      %v6354 = vunpack.c.l.b16 %v5673
      %v6355 = vunpack.c.l.b16 %v5674
      %v6356 = vunpack.c.h.b16 %v5674
      %v6357 = vunpack.c.l.b16 %v5675
      %v6358 = vunpack.c.h.b16 %v5675
      %v6359 = vunpack.c.l.b16 %v5676
      %v6360 = vunpack.c.h.b16 %v5676
      %v6361 = vunpack.c.l.b16 %v5677
      %v6362 = vunpack.c.l.b16 %v5678
      %v6363 = vunpack.c.h.b16 %v5678
      %v6364 = vunpack.c.l.b16 %v5679
      %v6365 = vunpack.c.h.b16 %v5679
      %v6366 = vunpack.c.l.b16 %v5680
      %v6367 = vunpack.c.h.b16 %v5680
      %v6368 = vunpack.c.l.b16 %v5681
      %v6369 = vunpack.c.l.b16 %v5682
      %v6370 = vunpack.c.h.b16 %v5682
      %v6371 = vunpack.c.l.b16 %v5683
      %v6372 = vunpack.c.h.b16 %v5683
      %v6373 = vunpack.c.l.b16 %v5684
      %v6374 = vunpack.c.h.b16 %v5684
      %v6375 = vunpack.c.l.b16 %v5685
      %v6376 = vunpack.c.l.b16 %v5686
      %v6377 = vunpack.c.h.b16 %v5686
      %v6378 = vunpack.c.l.b16 %v5687
      %v6379 = vunpack.c.h.b16 %v5687
      %v6380 = vunpack.c.l.b16 %v5688
      %v6381 = vunpack.c.h.b16 %v5688
      %v6382 = vunpack.c.l.b16 %v5689
      %v6383 = vunpack.c.l.b16 %v5690
      %v6384 = vunpack.c.h.b16 %v5690
      %v6385 = vunpack.c.l.b16 %v5691
      %v6386 = vunpack.c.h.b16 %v5691
      %v6387 = vunpack.c.l.b16 %v5692
      %v6388 = vunpack.c.h.b16 %v5692
      %v6389 = vunpack.c.l.b16 %v5693
      %v6390 = vunpack.c.l.b16 %v5694
      %v6391 = vunpack.c.h.b16 %v5694
      %v6392 = vunpack.c.l.b16 %v5695
      %v6393 = vunpack.c.h.b16 %v5695
      %v6394 = vunpack.c.l.b16 %v5696
      %v6395 = vunpack.c.h.b16 %v5696
      %v6396 = vunpack.c.l.b16 %v5697
      %v6397 = vunpack.c.l.b16 %v5698
      %v6398 = vunpack.c.h.b16 %v5698
      %v6399 = vunpack.c.l.b16 %v5699
      %v6400 = vunpack.c.h.b16 %v5699
      %v6401 = vunpack.c.l.b16 %v5700
      %v6402 = vunpack.c.h.b16 %v5700
      %v6403 = vunpack.c.l.b16 %v5701
      %v6404 = vunpack.c.l.b16 %v5702
      %v6405 = vunpack.c.h.b16 %v5702
      %v6406 = vunpack.c.l.b16 %v5703
      %v6407 = vunpack.c.h.b16 %v5703
      %v6408 = vunpack.c.l.b16 %v5704
      %v6409 = vunpack.c.h.b16 %v5704
      %v6410 = vunpack.c.l.b16 %v5705
      %v6411 = vunpack.c.l.b16 %v5706
      %v6412 = vunpack.c.h.b16 %v5706
      %v6413 = vunpack.c.l.b16 %v5707
      %v6414 = vunpack.c.h.b16 %v5707
      %v6415 = vunpack.c.l.b16 %v5708
      %v6416 = vunpack.c.h.b16 %v5708
      %v6417 = vunpack.c.l.b16 %v5709
      %v6418 = vunpack.c.l.b16 %v5710
      %v6419 = vunpack.c.h.b16 %v5710
      %v6420 = vunpack.c.l.b16 %v5711
      %v6421 = vunpack.c.h.b16 %v5711
      %v6422 = vunpack.c.l.b16 %v5712
      %v6423 = vunpack.c.h.b16 %v5712
      %v6424 = vunpack.c.l.b16 %v5713
      %v6425 = vunpack.c.l.b16 %v5714
      %v6426 = vunpack.c.h.b16 %v5714
      %v6427 = vunpack.c.l.b16 %v5715
      %v6428 = vunpack.c.h.b16 %v5715
      %v6429 = vunpack.c.l.b16 %v5716
      %v6430 = vunpack.c.h.b16 %v5716
      %v6431 = vunpack.c.l.b16 %v5717
      %v6432 = vunpack.c.l.b16 %v5718
      %v6433 = vunpack.c.h.b16 %v5718
      %v6434 = vunpack.c.l.b16 %v5719
      %v6435 = vunpack.c.h.b16 %v5719
      %v6436 = vunpack.c.l.b16 %v5720
      %v6437 = vunpack.c.h.b16 %v5720
      %v6438 = vunpack.c.l.b16 %v5721
      %v6439 = vunpack.c.l.b16 %v5722
      %v6440 = vunpack.c.h.b16 %v5722
      %v6441 = vunpack.c.l.b16 %v5723
      %v6442 = vunpack.c.h.b16 %v5723
      %v6443 = vunpack.c.l.b16 %v5724
      %v6444 = vunpack.c.h.b16 %v5724
      %v6445 = vunpack.c.l.b16 %v5725
      %v6446 = vunpack.c.l.b16 %v5726
      %v6447 = vunpack.c.h.b16 %v5726
      %v6448 = vunpack.c.l.b16 %v5727
      %v6449 = vunpack.c.h.b16 %v5727
      %v6450 = vunpack.c.l.b16 %v5728
      %v6451 = vunpack.c.h.b16 %v5728
      %v6452 = vunpack.c.l.b16 %v5729
      %v6453 = vunpack.c.l.b16 %v5730
      %v6454 = vunpack.c.h.b16 %v5730
      %v6455 = vunpack.c.l.b16 %v5731
      %v6456 = vunpack.c.h.b16 %v5731
      %v6457 = vunpack.c.l.b16 %v5732
      %v6458 = vunpack.c.h.b16 %v5732
      %v6459 = vunpack.c.l.b16 %v5733
      %v6460 = vunpack.c.l.b16 %v5734
      %v6461 = vunpack.c.h.b16 %v5734
      %v6462 = vunpack.c.l.b16 %v5735
      %v6463 = vunpack.c.h.b16 %v5735
      %v6464 = vunpack.c.l.b16 %v5736
      %v6465 = vunpack.c.h.b16 %v5736
      %v6466 = vunpack.c.l.b16 %v5737
      %v6467 = vunpack.c.l.b16 %v5738
      %v6468 = vunpack.c.h.b16 %v5738
      %v6469 = vunpack.c.l.b16 %v5739
      %v6470 = vunpack.c.h.b16 %v5739
      %v6471 = vunpack.c.l.b16 %v5740
      %v6472 = vunpack.c.h.b16 %v5740
      %v6473 = vunpack.c.l.b16 %v5741
      %v6474 = vunpack.c.l.b16 %v5742
      %v6475 = vunpack.c.h.b16 %v5742
      %v6476 = vunpack.c.l.b16 %v5743
      %v6477 = vunpack.c.h.b16 %v5743
      %v6478 = vunpack.c.l.b16 %v5744
      %v6479 = vunpack.c.h.b16 %v5744
      %v6480 = vunpack.c.l.b16 %v5745
      %v6481 = vunpack.c.l.b16 %v5746
      %v6482 = vunpack.c.h.b16 %v5746
      %v6483 = vunpack.c.l.b16 %v5747
      %v6484 = vunpack.c.h.b16 %v5747
      %v6485 = vunpack.c.l.b16 %v5748
      %v6486 = vunpack.c.h.b16 %v5748
      %v6487 = vunpack.c.l.b16 %v5749
      %v6488 = vunpack.c.l.b16 %v5750
      %v6489 = vunpack.c.h.b16 %v5750
      %v6490 = vunpack.c.l.b16 %v5751
      %v6491 = vunpack.c.h.b16 %v5751
      %v6492 = vunpack.c.l.b16 %v5752
      %v6493 = vunpack.c.h.b16 %v5752
      %v6494 = vunpack.c.l.b16 %v5753
      %v6495 = vpack.c.b16 %v6054, %v6047
      %v6496 = vpack.c.b16 %v6055, %v6048
      %v6497 = vpack.c.b16 %v6056, %v6049
      %v6498 = vpack.c.b16 %v6057, %v6050
      %v6499 = vpack.c.b16 %v6058, %v6051
      %v6500 = vpack.c.b16 %v6059, %v6052
      %v6501 = vpack.c.b16 %v6060, %v6053
      %v6502 = vpack.c.b16 %v6068, %v6061
      %v6503 = vpack.c.b16 %v6069, %v6062
      %v6504 = vpack.c.b16 %v6070, %v6063
      %v6505 = vpack.c.b16 %v6071, %v6064
      %v6506 = vpack.c.b16 %v6072, %v6065
      %v6507 = vpack.c.b16 %v6073, %v6066
      %v6508 = vpack.c.b16 %v6074, %v6067
      %v6509 = vpack.c.b16 %v6082, %v6075
      %v6510 = vpack.c.b16 %v6083, %v6076
      %v6511 = vpack.c.b16 %v6084, %v6077
      %v6512 = vpack.c.b16 %v6085, %v6078
      %v6513 = vpack.c.b16 %v6086, %v6079
      %v6514 = vpack.c.b16 %v6087, %v6080
      %v6515 = vpack.c.b16 %v6088, %v6081
      %v6516 = vpack.c.b16 %v6096, %v6089
      %v6517 = vpack.c.b16 %v6097, %v6090
      %v6518 = vpack.c.b16 %v6098, %v6091
      %v6519 = vpack.c.b16 %v6099, %v6092
      %v6520 = vpack.c.b16 %v6100, %v6093
      %v6521 = vpack.c.b16 %v6101, %v6094
      %v6522 = vpack.c.b16 %v6102, %v6095
      %v6523 = vpack.c.b16 %v6110, %v6103
      %v6524 = vpack.c.b16 %v6111, %v6104
      %v6525 = vpack.c.b16 %v6112, %v6105
      %v6526 = vpack.c.b16 %v6113, %v6106
      %v6527 = vpack.c.b16 %v6114, %v6107
      %v6528 = vpack.c.b16 %v6115, %v6108
      %v6529 = vpack.c.b16 %v6116, %v6109
      %v6530 = vpack.c.b16 %v6124, %v6117
      %v6531 = vpack.c.b16 %v6125, %v6118
      %v6532 = vpack.c.b16 %v6126, %v6119
      %v6533 = vpack.c.b16 %v6127, %v6120
      %v6534 = vpack.c.b16 %v6128, %v6121
      %v6535 = vpack.c.b16 %v6129, %v6122
      %v6536 = vpack.c.b16 %v6130, %v6123
      %v6537 = vpack.c.b16 %v6138, %v6131
      %v6538 = vpack.c.b16 %v6139, %v6132
      %v6539 = vpack.c.b16 %v6140, %v6133
      %v6540 = vpack.c.b16 %v6141, %v6134
      %v6541 = vpack.c.b16 %v6142, %v6135
      %v6542 = vpack.c.b16 %v6143, %v6136
      %v6543 = vpack.c.b16 %v6144, %v6137
      %v6544 = vpack.c.b16 %v6152, %v6145
      %v6545 = vpack.c.b16 %v6153, %v6146
      %v6546 = vpack.c.b16 %v6154, %v6147
      %v6547 = vpack.c.b16 %v6155, %v6148
      %v6548 = vpack.c.b16 %v6156, %v6149
      %v6549 = vpack.c.b16 %v6157, %v6150
      %v6550 = vpack.c.b16 %v6158, %v6151
      %v6551 = vpack.c.b16 %v6166, %v6159
      %v6552 = vpack.c.b16 %v6167, %v6160
      %v6553 = vpack.c.b16 %v6168, %v6161
      %v6554 = vpack.c.b16 %v6169, %v6162
      %v6555 = vpack.c.b16 %v6170, %v6163
      %v6556 = vpack.c.b16 %v6171, %v6164
      %v6557 = vpack.c.b16 %v6172, %v6165
      %v6558 = vpack.c.b16 %v6180, %v6173
      %v6559 = vpack.c.b16 %v6181, %v6174
      %v6560 = vpack.c.b16 %v6182, %v6175
      %v6561 = vpack.c.b16 %v6183, %v6176
      %v6562 = vpack.c.b16 %v6184, %v6177
      %v6563 = vpack.c.b16 %v6185, %v6178
      %v6564 = vpack.c.b16 %v6186, %v6179
      %v6565 = vpack.c.b16 %v6194, %v6187
      %v6566 = vpack.c.b16 %v6195, %v6188
      %v6567 = vpack.c.b16 %v6196, %v6189
      %v6568 = vpack.c.b16 %v6197, %v6190
      %v6569 = vpack.c.b16 %v6198, %v6191
      %v6570 = vpack.c.b16 %v6199, %v6192
      %v6571 = vpack.c.b16 %v6200, %v6193
      %v6572 = vpack.c.b16 %v6208, %v6201
      %v6573 = vpack.c.b16 %v6209, %v6202
      %v6574 = vpack.c.b16 %v6210, %v6203
      %v6575 = vpack.c.b16 %v6211, %v6204
      %v6576 = vpack.c.b16 %v6212, %v6205
      %v6577 = vpack.c.b16 %v6213, %v6206
      %v6578 = vpack.c.b16 %v6214, %v6207
      %v6579 = vpack.c.b16 %v6222, %v6215
      %v6580 = vpack.c.b16 %v6223, %v6216
      %v6581 = vpack.c.b16 %v6224, %v6217
      %v6582 = vpack.c.b16 %v6225, %v6218
      %v6583 = vpack.c.b16 %v6226, %v6219
      %v6584 = vpack.c.b16 %v6227, %v6220
      %v6585 = vpack.c.b16 %v6228, %v6221
      %v6586 = vpack.c.b16 %v6236, %v6229
      %v6587 = vpack.c.b16 %v6237, %v6230
      %v6588 = vpack.c.b16 %v6238, %v6231
      %v6589 = vpack.c.b16 %v6239, %v6232
      %v6590 = vpack.c.b16 %v6240, %v6233
      %v6591 = vpack.c.b16 %v6241, %v6234
      %v6592 = vpack.c.b16 %v6242, %v6235
      %v6593 = vpack.c.b16 %v6250, %v6243
      %v6594 = vpack.c.b16 %v6251, %v6244
      %v6595 = vpack.c.b16 %v6252, %v6245
      %v6596 = vpack.c.b16 %v6253, %v6246
      %v6597 = vpack.c.b16 %v6254, %v6247
      %v6598 = vpack.c.b16 %v6255, %v6248
      %v6599 = vpack.c.b16 %v6256, %v6249
      %v6600 = vpack.c.b16 %v6264, %v6257
      %v6601 = vpack.c.b16 %v6265, %v6258
      %v6602 = vpack.c.b16 %v6266, %v6259
      %v6603 = vpack.c.b16 %v6267, %v6260
      %v6604 = vpack.c.b16 %v6268, %v6261
      %v6605 = vpack.c.b16 %v6269, %v6262
      %v6606 = vpack.c.b16 %v6270, %v6263
      %v6607 = vpack.c.b16 %v6278, %v6271
      %v6608 = vpack.c.b16 %v6279, %v6272
      %v6609 = vpack.c.b16 %v6280, %v6273
      %v6610 = vpack.c.b16 %v6281, %v6274
      %v6611 = vpack.c.b16 %v6282, %v6275
      %v6612 = vpack.c.b16 %v6283, %v6276
      %v6613 = vpack.c.b16 %v6284, %v6277
      %v6614 = vpack.c.b16 %v6292, %v6285
      %v6615 = vpack.c.b16 %v6293, %v6286
      %v6616 = vpack.c.b16 %v6294, %v6287
      %v6617 = vpack.c.b16 %v6295, %v6288
      %v6618 = vpack.c.b16 %v6296, %v6289
      %v6619 = vpack.c.b16 %v6297, %v6290
      %v6620 = vpack.c.b16 %v6298, %v6291
      %v6621 = vpack.c.b16 %v6306, %v6299
      %v6622 = vpack.c.b16 %v6307, %v6300
      %v6623 = vpack.c.b16 %v6308, %v6301
      %v6624 = vpack.c.b16 %v6309, %v6302
      %v6625 = vpack.c.b16 %v6310, %v6303
      %v6626 = vpack.c.b16 %v6311, %v6304
      %v6627 = vpack.c.b16 %v6312, %v6305
      %v6628 = vpack.c.b16 %v6320, %v6313
      %v6629 = vpack.c.b16 %v6321, %v6314
      %v6630 = vpack.c.b16 %v6322, %v6315
      %v6631 = vpack.c.b16 %v6323, %v6316
      %v6632 = vpack.c.b16 %v6324, %v6317
      %v6633 = vpack.c.b16 %v6325, %v6318
      %v6634 = vpack.c.b16 %v6326, %v6319
      %v6635 = vpack.c.b16 %v6334, %v6327
      %v6636 = vpack.c.b16 %v6335, %v6328
      %v6637 = vpack.c.b16 %v6336, %v6329
      %v6638 = vpack.c.b16 %v6337, %v6330
      %v6639 = vpack.c.b16 %v6338, %v6331
      %v6640 = vpack.c.b16 %v6339, %v6332
      %v6641 = vpack.c.b16 %v6340, %v6333
      %v6642 = vpack.c.b16 %v6348, %v6341
      %v6643 = vpack.c.b16 %v6349, %v6342
      %v6644 = vpack.c.b16 %v6350, %v6343
      %v6645 = vpack.c.b16 %v6351, %v6344
      %v6646 = vpack.c.b16 %v6352, %v6345
      %v6647 = vpack.c.b16 %v6353, %v6346
      %v6648 = vpack.c.b16 %v6354, %v6347
      %v6649 = vpack.c.b16 %v6362, %v6355
      %v6650 = vpack.c.b16 %v6363, %v6356
      %v6651 = vpack.c.b16 %v6364, %v6357
      %v6652 = vpack.c.b16 %v6365, %v6358
      %v6653 = vpack.c.b16 %v6366, %v6359
      %v6654 = vpack.c.b16 %v6367, %v6360
      %v6655 = vpack.c.b16 %v6368, %v6361
      %v6656 = vpack.c.b16 %v6376, %v6369
      %v6657 = vpack.c.b16 %v6377, %v6370
      %v6658 = vpack.c.b16 %v6378, %v6371
      %v6659 = vpack.c.b16 %v6379, %v6372
      %v6660 = vpack.c.b16 %v6380, %v6373
      %v6661 = vpack.c.b16 %v6381, %v6374
      %v6662 = vpack.c.b16 %v6382, %v6375
      %v6663 = vpack.c.b16 %v6390, %v6383
      %v6664 = vpack.c.b16 %v6391, %v6384
      %v6665 = vpack.c.b16 %v6392, %v6385
      %v6666 = vpack.c.b16 %v6393, %v6386
      %v6667 = vpack.c.b16 %v6394, %v6387
      %v6668 = vpack.c.b16 %v6395, %v6388
      %v6669 = vpack.c.b16 %v6396, %v6389
      %v6670 = vpack.c.b16 %v6404, %v6397
      %v6671 = vpack.c.b16 %v6405, %v6398
      %v6672 = vpack.c.b16 %v6406, %v6399
      %v6673 = vpack.c.b16 %v6407, %v6400
      %v6674 = vpack.c.b16 %v6408, %v6401
      %v6675 = vpack.c.b16 %v6409, %v6402
      %v6676 = vpack.c.b16 %v6410, %v6403
      %v6677 = vpack.c.b16 %v6418, %v6411
      %v6678 = vpack.c.b16 %v6419, %v6412
      %v6679 = vpack.c.b16 %v6420, %v6413
      %v6680 = vpack.c.b16 %v6421, %v6414
      %v6681 = vpack.c.b16 %v6422, %v6415
      %v6682 = vpack.c.b16 %v6423, %v6416
      %v6683 = vpack.c.b16 %v6424, %v6417
      %v6684 = vpack.c.b16 %v6432, %v6425
      %v6685 = vpack.c.b16 %v6433, %v6426
      %v6686 = vpack.c.b16 %v6434, %v6427
      %v6687 = vpack.c.b16 %v6435, %v6428
      %v6688 = vpack.c.b16 %v6436, %v6429
      %v6689 = vpack.c.b16 %v6437, %v6430
      %v6690 = vpack.c.b16 %v6438, %v6431
      %v6691 = vpack.c.b16 %v6446, %v6439
      %v6692 = vpack.c.b16 %v6447, %v6440
      %v6693 = vpack.c.b16 %v6448, %v6441
      %v6694 = vpack.c.b16 %v6449, %v6442
      %v6695 = vpack.c.b16 %v6450, %v6443
      %v6696 = vpack.c.b16 %v6451, %v6444
      %v6697 = vpack.c.b16 %v6452, %v6445
      %v6698 = vpack.c.b16 %v6460, %v6453
      %v6699 = vpack.c.b16 %v6461, %v6454
      %v6700 = vpack.c.b16 %v6462, %v6455
      %v6701 = vpack.c.b16 %v6463, %v6456
      %v6702 = vpack.c.b16 %v6464, %v6457
      %v6703 = vpack.c.b16 %v6465, %v6458
      %v6704 = vpack.c.b16 %v6466, %v6459
      %v6705 = vpack.c.b16 %v6474, %v6467
      %v6706 = vpack.c.b16 %v6475, %v6468
      %v6707 = vpack.c.b16 %v6476, %v6469
      %v6708 = vpack.c.b16 %v6477, %v6470
      %v6709 = vpack.c.b16 %v6478, %v6471
      %v6710 = vpack.c.b16 %v6479, %v6472
      %v6711 = vpack.c.b16 %v6480, %v6473
      %v6712 = vpack.c.b16 %v6488, %v6481
      %v6713 = vpack.c.b16 %v6489, %v6482
      %v6714 = vpack.c.b16 %v6490, %v6483
      %v6715 = vpack.c.b16 %v6491, %v6484
      %v6716 = vpack.c.b16 %v6492, %v6485
      %v6717 = vpack.c.b16 %v6493, %v6486
      %v6718 = vpack.c.b16 %v6494, %v6487
      %6943 = vmatprep.subr.bf16.mxu0 %v6496
      %6944 = vmatpush1.bf16.msra.mxu0 %v6495
      %6945 = vmatprep.subr.bf16.mxu0 %v6503
      %6946 = vmatpush1.bf16.msra.mxu0 %v6502
      %6947 = vmatprep.subr.bf16.mxu0 %v6510
      %6948 = vmatpush1.bf16.msra.mxu0 %v6509
      %6949 = vmatprep.subr.bf16.mxu0 %v6517
      %6950 = vmatpush1.bf16.msra.mxu0 %v6516
      %6951 = vmatprep.subr.bf16.mxu0 %v6524
      %6952 = vmatpush1.bf16.msra.mxu0 %v6523
      %6953 = vmatprep.subr.bf16.mxu0 %v6531
      %6954 = vmatpush1.bf16.msra.mxu0 %v6530
      %6955 = vmatprep.subr.bf16.mxu0 %v6538
      %6956 = vmatpush1.bf16.msra.mxu0 %v6537
      %6957 = vmatprep.subr.bf16.mxu0 %v6545
      %6958 = vmatpush1.bf16.msra.mxu0 %v6544
      %6959 = vmatprep.subr.bf16.mxu0 %v6552
      %6960 = vmatpush1.bf16.msra.mxu0 %v6551
      %6961 = vmatprep.subr.bf16.mxu0 %v6559
      %6962 = vmatpush1.bf16.msra.mxu0 %v6558
      %6963 = vmatprep.subr.bf16.mxu0 %v6566
      %6964 = vmatpush1.bf16.msra.mxu0 %v6565
      %6965 = vmatprep.subr.bf16.mxu0 %v6573
      %6966 = vmatpush1.bf16.msra.mxu0 %v6572
      %6967 = vmatprep.subr.bf16.mxu0 %v6580
      %6968 = vmatpush1.bf16.msra.mxu0 %v6579
      %6969 = vmatprep.subr.bf16.mxu0 %v6587
      %6970 = vmatpush1.bf16.msra.mxu0 %v6586
      %6971 = vmatprep.subr.bf16.mxu0 %v6594
      %6972 = vmatpush1.bf16.msra.mxu0 %v6593
      %6973 = vmatprep.subr.bf16.mxu0 %v6601
      %6974 = vmatpush1.bf16.msra.mxu0 %v6600
      %6975 = vmatprep.mubr.bf16.mxu0 %v5467
      %6976 = vmatmul.mubr.bf16.gmra.mrb[0].mxu0 %v5466
      %v6977 = vpop.f32.mrb[0].mxu0
      %v6978 = vadd.f32 %v5759, %v6977
      %v6979 = vpop.f32.mrb[0].mxu0
      %v6980 = vadd.f32 %v5763, %v6979
      %v6981 = vpop.f32.mrb[0].mxu0
      %v6982 = vadd.f32 %v5759, %v6981
      %v6983 = vpop.f32.mrb[0].mxu0
      %v6984 = vadd.f32 %v5763, %v6983
      %6985 = vmatprep.mubr.bf16.mxu0 %v5471
      %6986 = vmatmul.mubr.bf16.gmra.mrb[0].mxu0 %v5470
      %v6987 = vpop.f32.mrb[0].mxu0
      %v6988 = vadd.f32 %v5759, %v6987
      %v6989 = vpop.f32.mrb[0].mxu0
      %v6990 = vadd.f32 %v5763, %v6989
      %v6991 = vpop.f32.mrb[0].mxu0
      %v6992 = vadd.f32 %v5759, %v6991
      %v6993 = vpop.f32.mrb[0].mxu0
      %v6994 = vadd.f32 %v5763, %v6993
      %6995 = vmatprep.mubr.bf16.mxu0 %v5475
      %6996 = vmatmul.mubr.bf16.gmra.mrb[0].mxu0 %v5474
      %v6997 = vpop.f32.mrb[0].mxu0
      %v6998 = vadd.f32 %v5759, %v6997
      %v6999 = vpop.f32.mrb[0].mxu0
      %v7000 = vadd.f32 %v5763, %v6999
      %v7001 = vpop.f32.mrb[0].mxu0
      %v7002 = vadd.f32 %v5759, %v7001
      %v7003 = vpop.f32.mrb[0].mxu0
      %v7004 = vadd.f32 %v5763, %v7003
      %7005 = vmatprep.mubr.bf16.mxu0 %v5479
      %7006 = vmatmul.mubr.bf16.gmra.mrb[0].mxu0 %v5478
      %v7007 = vpop.f32.mrb[0].mxu0
      %v7008 = vadd.f32 %v5759, %v7007
      %v7009 = vpop.f32.mrb[0].mxu0
      %v7010 = vadd.f32 %v5763, %v7009
      %v7011 = vpop.f32.mrb[0].mxu0
      %v7012 = vadd.f32 %v5759, %v7011
      %v7013 = vpop.f32.mrb[0].mxu0
      %v7014 = vadd.f32 %v5763, %v7013
      %7015 = vmatprep.mubr.bf16.mxu0 %v5483
      %7016 = vmatmul.mubr.bf16.gmra.mrb[0].mxu0 %v5482
      %v7017 = vpop.f32.mrb[0].mxu0
      %v7018 = vadd.f32 %v5759, %v7017
      %v7019 = vpop.f32.mrb[0].mxu0
      %v7020 = vadd.f32 %v5763, %v7019
      %v7021 = vpop.f32.mrb[0].mxu0
      %v7022 = vadd.f32 %v5759, %v7021
      %v7023 = vpop.f32.mrb[0].mxu0
      %v7024 = vadd.f32 %v5763, %v7023
      %7025 = vmatprep.mubr.bf16.mxu0 %v5487
      %7026 = vmatmul.mubr.bf16.gmra.mrb[0].mxu0 %v5486
      %v7027 = vpop.f32.mrb[0].mxu0
      %v7028 = vadd.f32 %v5759, %v7027
      %v7029 = vpop.f32.mrb[0].mxu0
      %v7030 = vadd.f32 %v5763, %v7029
      %v7031 = vpop.f32.mrb[0].mxu0
      %v7032 = vadd.f32 %v5759, %v7031
      %v7033 = vpop.f32.mrb[0].mxu0
      %v7034 = vadd.f32 %v5763, %v7033
      %7035 = vmatprep.mubr.bf16.mxu0 %v5491
      %7036 = vmatmul.mubr.bf16.gmra.mrb[0].mxu0 %v5490
      %v7037 = vpop.f32.mrb[0].mxu0
      %v7038 = vadd.f32 %v5759, %v7037
      %v7039 = vpop.f32.mrb[0].mxu0
      %v7040 = vadd.f32 %v5763, %v7039
      %v7041 = vpop.f32.mrb[0].mxu0
      %v7042 = vadd.f32 %v5759, %v7041
      %v7043 = vpop.f32.mrb[0].mxu0
      %v7044 = vadd.f32 %v5763, %v7043
      %7045 = vmatprep.mubr.bf16.mxu0 %v5495
      %7046 = vmatmul.mubr.bf16.gmra.mrb[0].mxu0 %v5494
      %v7047 = vpop.f32.mrb[0].mxu0
      %v7048 = vadd.f32 %v5759, %v7047
      %v7049 = vpop.f32.mrb[0].mxu0
      %v7050 = vadd.f32 %v5763, %v7049
      %v7051 = vpop.f32.mrb[0].mxu0
      %v7052 = vadd.f32 %v5759, %v7051
      %v7053 = vpop.f32.mrb[0].mxu0
      %v7054 = vadd.f32 %v5763, %v7053
      %7055 = vdwg.mxu0
      %7056 = vmatprep.subr.bf16.mxu0 %v6608
      %7057 = vmatpush1.bf16.msra.mxu0 %v6607
      %7058 = vmatprep.subr.bf16.mxu0 %v6615
      %7059 = vmatpush1.bf16.msra.mxu0 %v6614
      %7060 = vmatprep.subr.bf16.mxu0 %v6622
      %7061 = vmatpush1.bf16.msra.mxu0 %v6621
      %7062 = vmatprep.subr.bf16.mxu0 %v6629
      %7063 = vmatpush1.bf16.msra.mxu0 %v6628
      %7064 = vmatprep.subr.bf16.mxu0 %v6636
      %7065 = vmatpush1.bf16.msra.mxu0 %v6635
      %7066 = vmatprep.subr.bf16.mxu0 %v6643
      %7067 = vmatpush1.bf16.msra.mxu0 %v6642
      %7068 = vmatprep.subr.bf16.mxu0 %v6650
      %7069 = vmatpush1.bf16.msra.mxu0 %v6649
      %7070 = vmatprep.subr.bf16.mxu0 %v6657
      %7071 = vmatpush1.bf16.msra.mxu0 %v6656
      %7072 = vmatprep.subr.bf16.mxu0 %v6664
      %7073 = vmatpush1.bf16.msra.mxu0 %v6663
      %7074 = vmatprep.subr.bf16.mxu0 %v6671
      %7075 = vmatpush1.bf16.msra.mxu0 %v6670
      %7076 = vmatprep.subr.bf16.mxu0 %v6678
      %7077 = vmatpush1.bf16.msra.mxu0 %v6677
      %7078 = vmatprep.subr.bf16.mxu0 %v6685
      %7079 = vmatpush1.bf16.msra.mxu0 %v6684
      %7080 = vmatprep.subr.bf16.mxu0 %v6692
      %7081 = vmatpush1.bf16.msra.mxu0 %v6691
      %7082 = vmatprep.subr.bf16.mxu0 %v6699
      %7083 = vmatpush1.bf16.msra.mxu0 %v6698
      %7084 = vmatprep.subr.bf16.mxu0 %v6706
      %7085 = vmatpush1.bf16.msra.mxu0 %v6705
      %7086 = vmatprep.subr.bf16.mxu0 %v6713
      %7087 = vmatpush1.bf16.msra.mxu0 %v6712
      %7088 = vmatprep.mubr.bf16.mxu0 %v5469
      %7089 = vmatmul.mubr.bf16.gmra.mrb[0].mxu0 %v5468
      %v7090 = vpop.f32.mrb[0].mxu0
      %v7091 = vadd.f32 %v6978, %v7090
      %v7092 = vpop.f32.mrb[0].mxu0
      %v7093 = vadd.f32 %v6980, %v7092
      %v7094 = vpop.f32.mrb[0].mxu0
      %v7095 = vadd.f32 %v6982, %v7094
      %v7096 = vpop.f32.mrb[0].mxu0
      %v7097 = vadd.f32 %v6984, %v7096
      %7098 = vmatprep.mubr.bf16.mxu0 %v5473
      %7099 = vmatmul.mubr.bf16.gmra.mrb[0].mxu0 %v5472
      %v7100 = vpop.f32.mrb[0].mxu0
      %v7101 = vadd.f32 %v6988, %v7100
      %v7102 = vpop.f32.mrb[0].mxu0
      %v7103 = vadd.f32 %v6990, %v7102
      %v7104 = vpop.f32.mrb[0].mxu0
      %v7105 = vadd.f32 %v6992, %v7104
      %v7106 = vpop.f32.mrb[0].mxu0
      %v7107 = vadd.f32 %v6994, %v7106
      %7108 = vmatprep.mubr.bf16.mxu0 %v5477
      %7109 = vmatmul.mubr.bf16.gmra.mrb[0].mxu0 %v5476
      %v7110 = vpop.f32.mrb[0].mxu0
      %v7111 = vadd.f32 %v6998, %v7110
      %v7112 = vpop.f32.mrb[0].mxu0
      %v7113 = vadd.f32 %v7000, %v7112
      %v7114 = vpop.f32.mrb[0].mxu0
      %v7115 = vadd.f32 %v7002, %v7114
      %v7116 = vpop.f32.mrb[0].mxu0
      %v7117 = vadd.f32 %v7004, %v7116
      %7118 = vmatprep.mubr.bf16.mxu0 %v5481
      %7119 = vmatmul.mubr.bf16.gmra.mrb[0].mxu0 %v5480
      %v7120 = vpop.f32.mrb[0].mxu0
      %v7121 = vadd.f32 %v7008, %v7120
      %v7122 = vpop.f32.mrb[0].mxu0
      %v7123 = vadd.f32 %v7010, %v7122
      %v7124 = vpop.f32.mrb[0].mxu0
      %v7125 = vadd.f32 %v7012, %v7124
      %v7126 = vpop.f32.mrb[0].mxu0
      %v7127 = vadd.f32 %v7014, %v7126
      %7128 = vmatprep.mubr.bf16.mxu0 %v5485
      %7129 = vmatmul.mubr.bf16.gmra.mrb[0].mxu0 %v5484
      %v7130 = vpop.f32.mrb[0].mxu0
      %v7131 = vadd.f32 %v7018, %v7130
      %v7132 = vpop.f32.mrb[0].mxu0
      %v7133 = vadd.f32 %v7020, %v7132
      %v7134 = vpop.f32.mrb[0].mxu0
      %v7135 = vadd.f32 %v7022, %v7134
      %v7136 = vpop.f32.mrb[0].mxu0
      %v7137 = vadd.f32 %v7024, %v7136
      %7138 = vmatprep.mubr.bf16.mxu0 %v5489
      %7139 = vmatmul.mubr.bf16.gmra.mrb[0].mxu0 %v5488
      %v7140 = vpop.f32.mrb[0].mxu0
      %v7141 = vadd.f32 %v7028, %v7140
      %v7142 = vpop.f32.mrb[0].mxu0
      %v7143 = vadd.f32 %v7030, %v7142
      %v7144 = vpop.f32.mrb[0].mxu0
      %v7145 = vadd.f32 %v7032, %v7144
      %v7146 = vpop.f32.mrb[0].mxu0
      %v7147 = vadd.f32 %v7034, %v7146
      %7148 = vmatprep.mubr.bf16.mxu0 %v5493
      %7149 = vmatmul.mubr.bf16.gmra.mrb[0].mxu0 %v5492
      %v7150 = vpop.f32.mrb[0].mxu0
      %v7151 = vadd.f32 %v7038, %v7150
      %v7152 = vpop.f32.mrb[0].mxu0
      %v7153 = vadd.f32 %v7040, %v7152
      %v7154 = vpop.f32.mrb[0].mxu0
      %v7155 = vadd.f32 %v7042, %v7154
      %v7156 = vpop.f32.mrb[0].mxu0
      %v7157 = vadd.f32 %v7044, %v7156
      %7158 = vmatprep.mubr.bf16.mxu0 %v5497
      %7159 = vmatmul.mubr.bf16.gmra.mrb[0].mxu0 %v5496
      %v7160 = vpop.f32.mrb[0].mxu0
      %v7161 = vadd.f32 %v7048, %v7160
      %v7162 = vpop.f32.mrb[0].mxu0
      %v7163 = vadd.f32 %v7050, %v7162
      %v7164 = vpop.f32.mrb[0].mxu0
      %v7165 = vadd.f32 %v7052, %v7164
      %v7166 = vpop.f32.mrb[0].mxu0
      %v7167 = vadd.f32 %v7054, %v7166
      %7168 = vdwg.mxu0
      %7169 = vmatprep.subr.bf16.mxu0 %v6498
      %7170 = vmatpush1.bf16.msra.mxu0 %v6497
      %7171 = vmatprep.subr.bf16.mxu0 %v6505
      %7172 = vmatpush1.bf16.msra.mxu0 %v6504
      %7173 = vmatprep.subr.bf16.mxu0 %v6512
      %7174 = vmatpush1.bf16.msra.mxu0 %v6511
      %7175 = vmatprep.subr.bf16.mxu0 %v6519
      %7176 = vmatpush1.bf16.msra.mxu0 %v6518
      %7177 = vmatprep.subr.bf16.mxu0 %v6526
      %7178 = vmatpush1.bf16.msra.mxu0 %v6525
      %7179 = vmatprep.subr.bf16.mxu0 %v6533
      %7180 = vmatpush1.bf16.msra.mxu0 %v6532
      %7181 = vmatprep.subr.bf16.mxu0 %v6540
      %7182 = vmatpush1.bf16.msra.mxu0 %v6539
      %7183 = vmatprep.subr.bf16.mxu0 %v6547
      %7184 = vmatpush1.bf16.msra.mxu0 %v6546
      %7185 = vmatprep.subr.bf16.mxu0 %v6554
      %7186 = vmatpush1.bf16.msra.mxu0 %v6553
      %7187 = vmatprep.subr.bf16.mxu0 %v6561
      %7188 = vmatpush1.bf16.msra.mxu0 %v6560
      %7189 = vmatprep.subr.bf16.mxu0 %v6568
      %7190 = vmatpush1.bf16.msra.mxu0 %v6567
      %7191 = vmatprep.subr.bf16.mxu0 %v6575
      %7192 = vmatpush1.bf16.msra.mxu0 %v6574
      %7193 = vmatprep.subr.bf16.mxu0 %v6582
      %7194 = vmatpush1.bf16.msra.mxu0 %v6581
      %7195 = vmatprep.subr.bf16.mxu0 %v6589
      %7196 = vmatpush1.bf16.msra.mxu0 %v6588
      %7197 = vmatprep.subr.bf16.mxu0 %v6596
      %7198 = vmatpush1.bf16.msra.mxu0 %v6595
      %7199 = vmatprep.subr.bf16.mxu0 %v6603
      %7200 = vmatpush1.bf16.msra.mxu0 %v6602
      %7201 = vmatprep.mubr.bf16.mxu0 %v5467
      %7202 = vmatmul.mubr.bf16.gmra.mrb[0].mxu0 %v5466
      %v7203 = vpop.f32.mrb[0].mxu0
      %v7204 = vadd.f32 %v5767, %v7203
      %v7205 = vpop.f32.mrb[0].mxu0
      %v7206 = vadd.f32 %v5771, %v7205
      %v7207 = vpop.f32.mrb[0].mxu0
      %v7208 = vadd.f32 %v5767, %v7207
      %v7209 = vpop.f32.mrb[0].mxu0
      %v7210 = vadd.f32 %v5771, %v7209
      %7211 = vmatprep.mubr.bf16.mxu0 %v5471
      %7212 = vmatmul.mubr.bf16.gmra.mrb[0].mxu0 %v5470
      %v7213 = vpop.f32.mrb[0].mxu0
      %v7214 = vadd.f32 %v5767, %v7213
      %v7215 = vpop.f32.mrb[0].mxu0
      %v7216 = vadd.f32 %v5771, %v7215
      %v7217 = vpop.f32.mrb[0].mxu0
      %v7218 = vadd.f32 %v5767, %v7217
      %v7219 = vpop.f32.mrb[0].mxu0
      %v7220 = vadd.f32 %v5771, %v7219
      %7221 = vmatprep.mubr.bf16.mxu0 %v5475
      %7222 = vmatmul.mubr.bf16.gmra.mrb[0].mxu0 %v5474
      %v7223 = vpop.f32.mrb[0].mxu0
      %v7224 = vadd.f32 %v5767, %v7223
      %v7225 = vpop.f32.mrb[0].mxu0
      %v7226 = vadd.f32 %v5771, %v7225
      %v7227 = vpop.f32.mrb[0].mxu0
      %v7228 = vadd.f32 %v5767, %v7227
      %v7229 = vpop.f32.mrb[0].mxu0
      %v7230 = vadd.f32 %v5771, %v7229
      %7231 = vmatprep.mubr.bf16.mxu0 %v5479
      %7232 = vmatmul.mubr.bf16.gmra.mrb[0].mxu0 %v5478
      %v7233 = vpop.f32.mrb[0].mxu0
      %v7234 = vadd.f32 %v5767, %v7233
      %v7235 = vpop.f32.mrb[0].mxu0
      %v7236 = vadd.f32 %v5771, %v7235
      %v7237 = vpop.f32.mrb[0].mxu0
      %v7238 = vadd.f32 %v5767, %v7237
      %v7239 = vpop.f32.mrb[0].mxu0
      %v7240 = vadd.f32 %v5771, %v7239
      %7241 = vmatprep.mubr.bf16.mxu0 %v5483
      %7242 = vmatmul.mubr.bf16.gmra.mrb[0].mxu0 %v5482
      %v7243 = vpop.f32.mrb[0].mxu0
      %v7244 = vadd.f32 %v5767, %v7243
      %v7245 = vpop.f32.mrb[0].mxu0
      %v7246 = vadd.f32 %v5771, %v7245
      %v7247 = vpop.f32.mrb[0].mxu0
      %v7248 = vadd.f32 %v5767, %v7247
      %v7249 = vpop.f32.mrb[0].mxu0
      %v7250 = vadd.f32 %v5771, %v7249
      %7251 = vmatprep.mubr.bf16.mxu0 %v5487
      %7252 = vmatmul.mubr.bf16.gmra.mrb[0].mxu0 %v5486
      %v7253 = vpop.f32.mrb[0].mxu0
      %v7254 = vadd.f32 %v5767, %v7253
      %v7255 = vpop.f32.mrb[0].mxu0
      %v7256 = vadd.f32 %v5771, %v7255
      %v7257 = vpop.f32.mrb[0].mxu0
      %v7258 = vadd.f32 %v5767, %v7257
      %v7259 = vpop.f32.mrb[0].mxu0
      %v7260 = vadd.f32 %v5771, %v7259
      %7261 = vmatprep.mubr.bf16.mxu0 %v5491
      %7262 = vmatmul.mubr.bf16.gmra.mrb[0].mxu0 %v5490
      %v7263 = vpop.f32.mrb[0].mxu0
      %v7264 = vadd.f32 %v5767, %v7263
      %v7265 = vpop.f32.mrb[0].mxu0
      %v7266 = vadd.f32 %v5771, %v7265
      %v7267 = vpop.f32.mrb[0].mxu0
      %v7268 = vadd.f32 %v5767, %v7267
      %v7269 = vpop.f32.mrb[0].mxu0
      %v7270 = vadd.f32 %v5771, %v7269
      %7271 = vmatprep.mubr.bf16.mxu0 %v5495
      %7272 = vmatmul.mubr.bf16.gmra.mrb[0].mxu0 %v5494
      %v7273 = vpop.f32.mrb[0].mxu0
      %v7274 = vadd.f32 %v5767, %v7273
      %v7275 = vpop.f32.mrb[0].mxu0
      %v7276 = vadd.f32 %v5771, %v7275
      %v7277 = vpop.f32.mrb[0].mxu0
      %v7278 = vadd.f32 %v5767, %v7277
      %v7279 = vpop.f32.mrb[0].mxu0
      %v7280 = vadd.f32 %v5771, %v7279
      %7281 = vdwg.mxu0
      %7282 = vmatprep.subr.bf16.mxu0 %v6610
      %7283 = vmatpush1.bf16.msra.mxu0 %v6609
      %7284 = vmatprep.subr.bf16.mxu0 %v6617
      %7285 = vmatpush1.bf16.msra.mxu0 %v6616
      %7286 = vmatprep.subr.bf16.mxu0 %v6624
      %7287 = vmatpush1.bf16.msra.mxu0 %v6623
      %7288 = vmatprep.subr.bf16.mxu0 %v6631
      %7289 = vmatpush1.bf16.msra.mxu0 %v6630
      %7290 = vmatprep.subr.bf16.mxu0 %v6638
      %7291 = vmatpush1.bf16.msra.mxu0 %v6637
      %7292 = vmatprep.subr.bf16.mxu0 %v6645
      %7293 = vmatpush1.bf16.msra.mxu0 %v6644
      %7294 = vmatprep.subr.bf16.mxu0 %v6652
      %7295 = vmatpush1.bf16.msra.mxu0 %v6651
      %7296 = vmatprep.subr.bf16.mxu0 %v6659
      %7297 = vmatpush1.bf16.msra.mxu0 %v6658
      %7298 = vmatprep.subr.bf16.mxu0 %v6666
      %7299 = vmatpush1.bf16.msra.mxu0 %v6665
      %7300 = vmatprep.subr.bf16.mxu0 %v6673
      %7301 = vmatpush1.bf16.msra.mxu0 %v6672
      %7302 = vmatprep.subr.bf16.mxu0 %v6680
      %7303 = vmatpush1.bf16.msra.mxu0 %v6679
      %7304 = vmatprep.subr.bf16.mxu0 %v6687
      %7305 = vmatpush1.bf16.msra.mxu0 %v6686
      %7306 = vmatprep.subr.bf16.mxu0 %v6694
      %7307 = vmatpush1.bf16.msra.mxu0 %v6693
      %7308 = vmatprep.subr.bf16.mxu0 %v6701
      %7309 = vmatpush1.bf16.msra.mxu0 %v6700
      %7310 = vmatprep.subr.bf16.mxu0 %v6708
      %7311 = vmatpush1.bf16.msra.mxu0 %v6707
      %7312 = vmatprep.subr.bf16.mxu0 %v6715
      %7313 = vmatpush1.bf16.msra.mxu0 %v6714
      %7314 = vmatprep.mubr.bf16.mxu0 %v5469
      %7315 = vmatmul.mubr.bf16.gmra.mrb[0].mxu0 %v5468
      %v7316 = vpop.f32.mrb[0].mxu0
      %v7317 = vadd.f32 %v7204, %v7316
      %v7318 = vpop.f32.mrb[0].mxu0
      %v7319 = vadd.f32 %v7206, %v7318
      %v7320 = vpop.f32.mrb[0].mxu0
      %v7321 = vadd.f32 %v7208, %v7320
      %v7322 = vpop.f32.mrb[0].mxu0
      %v7323 = vadd.f32 %v7210, %v7322
      %7324 = vmatprep.mubr.bf16.mxu0 %v5473
      %7325 = vmatmul.mubr.bf16.gmra.mrb[0].mxu0 %v5472
      %v7326 = vpop.f32.mrb[0].mxu0
      %v7327 = vadd.f32 %v7214, %v7326
      %v7328 = vpop.f32.mrb[0].mxu0
      %v7329 = vadd.f32 %v7216, %v7328
      %v7330 = vpop.f32.mrb[0].mxu0
      %v7331 = vadd.f32 %v7218, %v7330
      %v7332 = vpop.f32.mrb[0].mxu0
      %v7333 = vadd.f32 %v7220, %v7332
      %7334 = vmatprep.mubr.bf16.mxu0 %v5477
      %7335 = vmatmul.mubr.bf16.gmra.mrb[0].mxu0 %v5476
      %v7336 = vpop.f32.mrb[0].mxu0
      %v7337 = vadd.f32 %v7224, %v7336
      %v7338 = vpop.f32.mrb[0].mxu0
      %v7339 = vadd.f32 %v7226, %v7338
      %v7340 = vpop.f32.mrb[0].mxu0
      %v7341 = vadd.f32 %v7228, %v7340
      %v7342 = vpop.f32.mrb[0].mxu0
      %v7343 = vadd.f32 %v7230, %v7342
      %7344 = vmatprep.mubr.bf16.mxu0 %v5481
      %7345 = vmatmul.mubr.bf16.gmra.mrb[0].mxu0 %v5480
      %v7346 = vpop.f32.mrb[0].mxu0
      %v7347 = vadd.f32 %v7234, %v7346
      %v7348 = vpop.f32.mrb[0].mxu0
      %v7349 = vadd.f32 %v7236, %v7348
      %v7350 = vpop.f32.mrb[0].mxu0
      %v7351 = vadd.f32 %v7238, %v7350
      %v7352 = vpop.f32.mrb[0].mxu0
      %v7353 = vadd.f32 %v7240, %v7352
      %7354 = vmatprep.mubr.bf16.mxu0 %v5485
      %7355 = vmatmul.mubr.bf16.gmra.mrb[0].mxu0 %v5484
      %v7356 = vpop.f32.mrb[0].mxu0
      %v7357 = vadd.f32 %v7244, %v7356
      %v7358 = vpop.f32.mrb[0].mxu0
      %v7359 = vadd.f32 %v7246, %v7358
      %v7360 = vpop.f32.mrb[0].mxu0
      %v7361 = vadd.f32 %v7248, %v7360
      %v7362 = vpop.f32.mrb[0].mxu0
      %v7363 = vadd.f32 %v7250, %v7362
      %7364 = vmatprep.mubr.bf16.mxu0 %v5489
      %7365 = vmatmul.mubr.bf16.gmra.mrb[0].mxu0 %v5488
      %v7366 = vpop.f32.mrb[0].mxu0
      %v7367 = vadd.f32 %v7254, %v7366
      %v7368 = vpop.f32.mrb[0].mxu0
      %v7369 = vadd.f32 %v7256, %v7368
      %v7370 = vpop.f32.mrb[0].mxu0
      %v7371 = vadd.f32 %v7258, %v7370
      %v7372 = vpop.f32.mrb[0].mxu0
      %v7373 = vadd.f32 %v7260, %v7372
      %7374 = vmatprep.mubr.bf16.mxu0 %v5493
      %7375 = vmatmul.mubr.bf16.gmra.mrb[0].mxu0 %v5492
      %v7376 = vpop.f32.mrb[0].mxu0
      %v7377 = vadd.f32 %v7264, %v7376
      %v7378 = vpop.f32.mrb[0].mxu0
      %v7379 = vadd.f32 %v7266, %v7378
      %v7380 = vpop.f32.mrb[0].mxu0
      %v7381 = vadd.f32 %v7268, %v7380
      %v7382 = vpop.f32.mrb[0].mxu0
      %v7383 = vadd.f32 %v7270, %v7382
      %7384 = vmatprep.mubr.bf16.mxu0 %v5497
      %7385 = vmatmul.mubr.bf16.gmra.mrb[0].mxu0 %v5496
      %v7386 = vpop.f32.mrb[0].mxu0
      %v7387 = vadd.f32 %v7274, %v7386
      %v7388 = vpop.f32.mrb[0].mxu0
      %v7389 = vadd.f32 %v7276, %v7388
      %v7390 = vpop.f32.mrb[0].mxu0
      %v7391 = vadd.f32 %v7278, %v7390
      %v7392 = vpop.f32.mrb[0].mxu0
      %v7393 = vadd.f32 %v7280, %v7392
      %7394 = vdwg.mxu0
      %7395 = vmatprep.subr.bf16.mxu0 %v6500
      %7396 = vmatpush1.bf16.msra.mxu0 %v6499
      %7397 = vmatprep.subr.bf16.mxu0 %v6507
      %7398 = vmatpush1.bf16.msra.mxu0 %v6506
      %7399 = vmatprep.subr.bf16.mxu0 %v6514
      %7400 = vmatpush1.bf16.msra.mxu0 %v6513
      %7401 = vmatprep.subr.bf16.mxu0 %v6521
      %7402 = vmatpush1.bf16.msra.mxu0 %v6520
      %7403 = vmatprep.subr.bf16.mxu0 %v6528
      %7404 = vmatpush1.bf16.msra.mxu0 %v6527
      %7405 = vmatprep.subr.bf16.mxu0 %v6535
      %7406 = vmatpush1.bf16.msra.mxu0 %v6534
      %7407 = vmatprep.subr.bf16.mxu0 %v6542
      %7408 = vmatpush1.bf16.msra.mxu0 %v6541
      %7409 = vmatprep.subr.bf16.mxu0 %v6549
      %7410 = vmatpush1.bf16.msra.mxu0 %v6548
      %7411 = vmatprep.subr.bf16.mxu0 %v6556
      %7412 = vmatpush1.bf16.msra.mxu0 %v6555
      %7413 = vmatprep.subr.bf16.mxu0 %v6563
      %7414 = vmatpush1.bf16.msra.mxu0 %v6562
      %7415 = vmatprep.subr.bf16.mxu0 %v6570
      %7416 = vmatpush1.bf16.msra.mxu0 %v6569
      %7417 = vmatprep.subr.bf16.mxu0 %v6577
      %7418 = vmatpush1.bf16.msra.mxu0 %v6576
      %7419 = vmatprep.subr.bf16.mxu0 %v6584
      %7420 = vmatpush1.bf16.msra.mxu0 %v6583
      %7421 = vmatprep.subr.bf16.mxu0 %v6591
      %7422 = vmatpush1.bf16.msra.mxu0 %v6590
      %7423 = vmatprep.subr.bf16.mxu0 %v6598
      %7424 = vmatpush1.bf16.msra.mxu0 %v6597
      %7425 = vmatprep.subr.bf16.mxu0 %v6605
      %7426 = vmatpush1.bf16.msra.mxu0 %v6604
      %7427 = vmatprep.mubr.bf16.mxu0 %v5467
      %7428 = vmatmul.mubr.bf16.gmra.mrb[0].mxu0 %v5466
      %v7429 = vpop.f32.mrb[0].mxu0
      %v7430 = vadd.f32 %v5775, %v7429
      %v7431 = vpop.f32.mrb[0].mxu0
      %v7432 = vadd.f32 %v5779, %v7431
      %v7433 = vpop.f32.mrb[0].mxu0
      %v7434 = vadd.f32 %v5775, %v7433
      %v7435 = vpop.f32.mrb[0].mxu0
      %v7436 = vadd.f32 %v5779, %v7435
      %7437 = vmatprep.mubr.bf16.mxu0 %v5471
      %7438 = vmatmul.mubr.bf16.gmra.mrb[0].mxu0 %v5470
      %v7439 = vpop.f32.mrb[0].mxu0
      %v7440 = vadd.f32 %v5775, %v7439
      %v7441 = vpop.f32.mrb[0].mxu0
      %v7442 = vadd.f32 %v5779, %v7441
      %v7443 = vpop.f32.mrb[0].mxu0
      %v7444 = vadd.f32 %v5775, %v7443
      %v7445 = vpop.f32.mrb[0].mxu0
      %v7446 = vadd.f32 %v5779, %v7445
      %7447 = vmatprep.mubr.bf16.mxu0 %v5475
      %7448 = vmatmul.mubr.bf16.gmra.mrb[0].mxu0 %v5474
      %v7449 = vpop.f32.mrb[0].mxu0
      %v7450 = vadd.f32 %v5775, %v7449
      %v7451 = vpop.f32.mrb[0].mxu0
      %v7452 = vadd.f32 %v5779, %v7451
      %v7453 = vpop.f32.mrb[0].mxu0
      %v7454 = vadd.f32 %v5775, %v7453
      %v7455 = vpop.f32.mrb[0].mxu0
      %v7456 = vadd.f32 %v5779, %v7455
      %7457 = vmatprep.mubr.bf16.mxu0 %v5479
      %7458 = vmatmul.mubr.bf16.gmra.mrb[0].mxu0 %v5478
      %v7459 = vpop.f32.mrb[0].mxu0
      %v7460 = vadd.f32 %v5775, %v7459
      %v7461 = vpop.f32.mrb[0].mxu0
      %v7462 = vadd.f32 %v5779, %v7461
      %v7463 = vpop.f32.mrb[0].mxu0
      %v7464 = vadd.f32 %v5775, %v7463
      %v7465 = vpop.f32.mrb[0].mxu0
      %v7466 = vadd.f32 %v5779, %v7465
      %7467 = vmatprep.mubr.bf16.mxu0 %v5483
      %7468 = vmatmul.mubr.bf16.gmra.mrb[0].mxu0 %v5482
      %v7469 = vpop.f32.mrb[0].mxu0
      %v7470 = vadd.f32 %v5775, %v7469
      %v7471 = vpop.f32.mrb[0].mxu0
      %v7472 = vadd.f32 %v5779, %v7471
      %v7473 = vpop.f32.mrb[0].mxu0
      %v7474 = vadd.f32 %v5775, %v7473
      %v7475 = vpop.f32.mrb[0].mxu0
      %v7476 = vadd.f32 %v5779, %v7475
      %7477 = vmatprep.mubr.bf16.mxu0 %v5487
      %7478 = vmatmul.mubr.bf16.gmra.mrb[0].mxu0 %v5486
      %v7479 = vpop.f32.mrb[0].mxu0
      %v7480 = vadd.f32 %v5775, %v7479
      %v7481 = vpop.f32.mrb[0].mxu0
      %v7482 = vadd.f32 %v5779, %v7481
      %v7483 = vpop.f32.mrb[0].mxu0
      %v7484 = vadd.f32 %v5775, %v7483
      %v7485 = vpop.f32.mrb[0].mxu0
      %v7486 = vadd.f32 %v5779, %v7485
      %7487 = vmatprep.mubr.bf16.mxu0 %v5491
      %7488 = vmatmul.mubr.bf16.gmra.mrb[0].mxu0 %v5490
      %v7489 = vpop.f32.mrb[0].mxu0
      %v7490 = vadd.f32 %v5775, %v7489
      %v7491 = vpop.f32.mrb[0].mxu0
      %v7492 = vadd.f32 %v5779, %v7491
      %v7493 = vpop.f32.mrb[0].mxu0
      %v7494 = vadd.f32 %v5775, %v7493
      %v7495 = vpop.f32.mrb[0].mxu0
      %v7496 = vadd.f32 %v5779, %v7495
      %7497 = vmatprep.mubr.bf16.mxu0 %v5495
      %7498 = vmatmul.mubr.bf16.gmra.mrb[0].mxu0 %v5494
      %v7499 = vpop.f32.mrb[0].mxu0
      %v7500 = vadd.f32 %v5775, %v7499
      %v7501 = vpop.f32.mrb[0].mxu0
      %v7502 = vadd.f32 %v5779, %v7501
      %v7503 = vpop.f32.mrb[0].mxu0
      %v7504 = vadd.f32 %v5775, %v7503
      %v7505 = vpop.f32.mrb[0].mxu0
      %v7506 = vadd.f32 %v5779, %v7505
      %7507 = vdwg.mxu0
      %7508 = vmatprep.subr.bf16.mxu0 %v6612
      %7509 = vmatpush1.bf16.msra.mxu0 %v6611
      %7510 = vmatprep.subr.bf16.mxu0 %v6619
      %7511 = vmatpush1.bf16.msra.mxu0 %v6618
      %7512 = vmatprep.subr.bf16.mxu0 %v6626
      %7513 = vmatpush1.bf16.msra.mxu0 %v6625
      %7514 = vmatprep.subr.bf16.mxu0 %v6633
      %7515 = vmatpush1.bf16.msra.mxu0 %v6632
      %7516 = vmatprep.subr.bf16.mxu0 %v6640
      %7517 = vmatpush1.bf16.msra.mxu0 %v6639
      %7518 = vmatprep.subr.bf16.mxu0 %v6647
      %7519 = vmatpush1.bf16.msra.mxu0 %v6646
      %7520 = vmatprep.subr.bf16.mxu0 %v6654
      %7521 = vmatpush1.bf16.msra.mxu0 %v6653
      %7522 = vmatprep.subr.bf16.mxu0 %v6661
      %7523 = vmatpush1.bf16.msra.mxu0 %v6660
      %7524 = vmatprep.subr.bf16.mxu0 %v6668
      %7525 = vmatpush1.bf16.msra.mxu0 %v6667
      %7526 = vmatprep.subr.bf16.mxu0 %v6675
      %7527 = vmatpush1.bf16.msra.mxu0 %v6674
      %7528 = vmatprep.subr.bf16.mxu0 %v6682
      %7529 = vmatpush1.bf16.msra.mxu0 %v6681
      %7530 = vmatprep.subr.bf16.mxu0 %v6689
      %7531 = vmatpush1.bf16.msra.mxu0 %v6688
      %7532 = vmatprep.subr.bf16.mxu0 %v6696
      %7533 = vmatpush1.bf16.msra.mxu0 %v6695
      %7534 = vmatprep.subr.bf16.mxu0 %v6703
      %7535 = vmatpush1.bf16.msra.mxu0 %v6702
      %7536 = vmatprep.subr.bf16.mxu0 %v6710
      %7537 = vmatpush1.bf16.msra.mxu0 %v6709
      %7538 = vmatprep.subr.bf16.mxu0 %v6717
      %7539 = vmatpush1.bf16.msra.mxu0 %v6716
      %7540 = vmatprep.mubr.bf16.mxu0 %v5469
      %7541 = vmatmul.mubr.bf16.gmra.mrb[0].mxu0 %v5468
      %v7542 = vpop.f32.mrb[0].mxu0
      %v7543 = vadd.f32 %v7430, %v7542
      %v7544 = vpop.f32.mrb[0].mxu0
      %v7545 = vadd.f32 %v7432, %v7544
      %v7546 = vpop.f32.mrb[0].mxu0
      %v7547 = vadd.f32 %v7434, %v7546
      %v7548 = vpop.f32.mrb[0].mxu0
      %v7549 = vadd.f32 %v7436, %v7548
      %7550 = vmatprep.mubr.bf16.mxu0 %v5473
      %7551 = vmatmul.mubr.bf16.gmra.mrb[0].mxu0 %v5472
      %v7552 = vpop.f32.mrb[0].mxu0
      %v7553 = vadd.f32 %v7440, %v7552
      %v7554 = vpop.f32.mrb[0].mxu0
      %v7555 = vadd.f32 %v7442, %v7554
      %v7556 = vpop.f32.mrb[0].mxu0
      %v7557 = vadd.f32 %v7444, %v7556
      %v7558 = vpop.f32.mrb[0].mxu0
      %v7559 = vadd.f32 %v7446, %v7558
      %7560 = vmatprep.mubr.bf16.mxu0 %v5477
      %7561 = vmatmul.mubr.bf16.gmra.mrb[0].mxu0 %v5476
      %v7562 = vpop.f32.mrb[0].mxu0
      %v7563 = vadd.f32 %v7450, %v7562
      %v7564 = vpop.f32.mrb[0].mxu0
      %v7565 = vadd.f32 %v7452, %v7564
      %v7566 = vpop.f32.mrb[0].mxu0
      %v7567 = vadd.f32 %v7454, %v7566
      %v7568 = vpop.f32.mrb[0].mxu0
      %v7569 = vadd.f32 %v7456, %v7568
      %7570 = vmatprep.mubr.bf16.mxu0 %v5481
      %7571 = vmatmul.mubr.bf16.gmra.mrb[0].mxu0 %v5480
      %v7572 = vpop.f32.mrb[0].mxu0
      %v7573 = vadd.f32 %v7460, %v7572
      %v7574 = vpop.f32.mrb[0].mxu0
      %v7575 = vadd.f32 %v7462, %v7574
      %v7576 = vpop.f32.mrb[0].mxu0
      %v7577 = vadd.f32 %v7464, %v7576
      %v7578 = vpop.f32.mrb[0].mxu0
      %v7579 = vadd.f32 %v7466, %v7578
      %7580 = vmatprep.mubr.bf16.mxu0 %v5485
      %7581 = vmatmul.mubr.bf16.gmra.mrb[0].mxu0 %v5484
      %v7582 = vpop.f32.mrb[0].mxu0
      %v7583 = vadd.f32 %v7470, %v7582
      %v7584 = vpop.f32.mrb[0].mxu0
      %v7585 = vadd.f32 %v7472, %v7584
      %v7586 = vpop.f32.mrb[0].mxu0
      %v7587 = vadd.f32 %v7474, %v7586
      %v7588 = vpop.f32.mrb[0].mxu0
      %v7589 = vadd.f32 %v7476, %v7588
      %7590 = vmatprep.mubr.bf16.mxu0 %v5489
      %7591 = vmatmul.mubr.bf16.gmra.mrb[0].mxu0 %v5488
      %v7592 = vpop.f32.mrb[0].mxu0
      %v7593 = vadd.f32 %v7480, %v7592
      %v7594 = vpop.f32.mrb[0].mxu0
      %v7595 = vadd.f32 %v7482, %v7594
      %v7596 = vpop.f32.mrb[0].mxu0
      %v7597 = vadd.f32 %v7484, %v7596
      %v7598 = vpop.f32.mrb[0].mxu0
      %v7599 = vadd.f32 %v7486, %v7598
      %7600 = vmatprep.mubr.bf16.mxu0 %v5493
      %7601 = vmatmul.mubr.bf16.gmra.mrb[0].mxu0 %v5492
      %v7602 = vpop.f32.mrb[0].mxu0
      %v7603 = vadd.f32 %v7490, %v7602
      %v7604 = vpop.f32.mrb[0].mxu0
      %v7605 = vadd.f32 %v7492, %v7604
      %v7606 = vpop.f32.mrb[0].mxu0
      %v7607 = vadd.f32 %v7494, %v7606
      %v7608 = vpop.f32.mrb[0].mxu0
      %v7609 = vadd.f32 %v7496, %v7608
      %7610 = vmatprep.mubr.bf16.mxu0 %v5497
      %7611 = vmatmul.mubr.bf16.gmra.mrb[0].mxu0 %v5496
      %v7612 = vpop.f32.mrb[0].mxu0
      %v7613 = vadd.f32 %v7500, %v7612
      %v7614 = vpop.f32.mrb[0].mxu0
      %v7615 = vadd.f32 %v7502, %v7614
      %v7616 = vpop.f32.mrb[0].mxu0
      %v7617 = vadd.f32 %v7504, %v7616
      %v7618 = vpop.f32.mrb[0].mxu0
      %v7619 = vadd.f32 %v7506, %v7618
      %7620 = vdwg.mxu0
      %7621 = vmatprep.subr.bf16.mxu0 0
      %7622 = vmatpush1.bf16.msra.mxu0 %v6501
      %7623 = vmatprep.subr.bf16.mxu0 0
      %7624 = vmatpush1.bf16.msra.mxu0 %v6508
      %7625 = vmatprep.subr.bf16.mxu0 0
      %7626 = vmatpush1.bf16.msra.mxu0 %v6515
      %7627 = vmatprep.subr.bf16.mxu0 0
      %7628 = vmatpush1.bf16.msra.mxu0 %v6522
      %7629 = vmatprep.subr.bf16.mxu0 0
      %7630 = vmatpush1.bf16.msra.mxu0 %v6529
      %7631 = vmatprep.subr.bf16.mxu0 0
      %7632 = vmatpush1.bf16.msra.mxu0 %v6536
      %7633 = vmatprep.subr.bf16.mxu0 0
      %7634 = vmatpush1.bf16.msra.mxu0 %v6543
      %7635 = vmatprep.subr.bf16.mxu0 0
      %7636 = vmatpush1.bf16.msra.mxu0 %v6550
      %7637 = vmatprep.subr.bf16.mxu0 0
      %7638 = vmatpush1.bf16.msra.mxu0 %v6557
      %7639 = vmatprep.subr.bf16.mxu0 0
      %7640 = vmatpush1.bf16.msra.mxu0 %v6564
      %7641 = vmatprep.subr.bf16.mxu0 0
      %7642 = vmatpush1.bf16.msra.mxu0 %v6571
      %7643 = vmatprep.subr.bf16.mxu0 0
      %7644 = vmatpush1.bf16.msra.mxu0 %v6578
      %7645 = vmatprep.subr.bf16.mxu0 0
      %7646 = vmatpush1.bf16.msra.mxu0 %v6585
      %7647 = vmatprep.subr.bf16.mxu0 0
      %7648 = vmatpush1.bf16.msra.mxu0 %v6592
      %7649 = vmatprep.subr.bf16.mxu0 0
      %7650 = vmatpush1.bf16.msra.mxu0 %v6599
      %7651 = vmatprep.subr.bf16.mxu0 0
      %7652 = vmatpush1.bf16.msra.mxu0 %v6606
      %7653 = vmatprep.mubr.bf16.mxu0 %v5467
      %7654 = vmatmul.mubr.bf16.gmra.mrb[0].mxu0 %v5466
      %v7655 = vpop.f32.mrb[0].mxu0
      %v7656 = vadd.f32 %v5783, %v7655
      %v7657 = vpop.f32.mrb[0].mxu0
      %v7658 = vpop.f32.mrb[0].mxu0
      %v7659 = vadd.f32 %v5783, %v7658
      %v7660 = vpop.f32.mrb[0].mxu0
      %7661 = vmatprep.mubr.bf16.mxu0 %v5471
      %7662 = vmatmul.mubr.bf16.gmra.mrb[0].mxu0 %v5470
      %v7663 = vpop.f32.mrb[0].mxu0
      %v7664 = vadd.f32 %v5783, %v7663
      %v7665 = vpop.f32.mrb[0].mxu0
      %v7666 = vpop.f32.mrb[0].mxu0
      %v7667 = vadd.f32 %v5783, %v7666
      %v7668 = vpop.f32.mrb[0].mxu0
      %7669 = vmatprep.mubr.bf16.mxu0 %v5475
      %7670 = vmatmul.mubr.bf16.gmra.mrb[0].mxu0 %v5474
      %v7671 = vpop.f32.mrb[0].mxu0
      %v7672 = vadd.f32 %v5783, %v7671
      %v7673 = vpop.f32.mrb[0].mxu0
      %v7674 = vpop.f32.mrb[0].mxu0
      %v7675 = vadd.f32 %v5783, %v7674
      %v7676 = vpop.f32.mrb[0].mxu0
      %7677 = vmatprep.mubr.bf16.mxu0 %v5479
      %7678 = vmatmul.mubr.bf16.gmra.mrb[0].mxu0 %v5478
      %v7679 = vpop.f32.mrb[0].mxu0
      %v7680 = vadd.f32 %v5783, %v7679
      %v7681 = vpop.f32.mrb[0].mxu0
      %v7682 = vpop.f32.mrb[0].mxu0
      %v7683 = vadd.f32 %v5783, %v7682
      %v7684 = vpop.f32.mrb[0].mxu0
      %7685 = vmatprep.mubr.bf16.mxu0 %v5483
      %7686 = vmatmul.mubr.bf16.gmra.mrb[0].mxu0 %v5482
      %v7687 = vpop.f32.mrb[0].mxu0
      %v7688 = vadd.f32 %v5783, %v7687
      %v7689 = vpop.f32.mrb[0].mxu0
      %v7690 = vpop.f32.mrb[0].mxu0
      %v7691 = vadd.f32 %v5783, %v7690
      %v7692 = vpop.f32.mrb[0].mxu0
      %7693 = vmatprep.mubr.bf16.mxu0 %v5487
      %7694 = vmatmul.mubr.bf16.gmra.mrb[0].mxu0 %v5486
      %v7695 = vpop.f32.mrb[0].mxu0
      %v7696 = vadd.f32 %v5783, %v7695
      %v7697 = vpop.f32.mrb[0].mxu0
      %v7698 = vpop.f32.mrb[0].mxu0
      %v7699 = vadd.f32 %v5783, %v7698
      %v7700 = vpop.f32.mrb[0].mxu0
      %7701 = vmatprep.mubr.bf16.mxu0 %v5491
      %7702 = vmatmul.mubr.bf16.gmra.mrb[0].mxu0 %v5490
      %v7703 = vpop.f32.mrb[0].mxu0
      %v7704 = vadd.f32 %v5783, %v7703
      %v7705 = vpop.f32.mrb[0].mxu0
      %v7706 = vpop.f32.mrb[0].mxu0
      %v7707 = vadd.f32 %v5783, %v7706
      %v7708 = vpop.f32.mrb[0].mxu0
      %7709 = vmatprep.mubr.bf16.mxu0 %v5495
      %7710 = vmatmul.mubr.bf16.gmra.mrb[0].mxu0 %v5494
      %v7711 = vpop.f32.mrb[0].mxu0
      %v7712 = vadd.f32 %v5783, %v7711
      %v7713 = vpop.f32.mrb[0].mxu0
      %v7714 = vpop.f32.mrb[0].mxu0
      %v7715 = vadd.f32 %v5783, %v7714
      %v7716 = vpop.f32.mrb[0].mxu0
      %7717 = vdwg.mxu0
      %7718 = vmatprep.subr.bf16.mxu0 0
      %7719 = vmatpush1.bf16.msra.mxu0 %v6613
      %7720 = vmatprep.subr.bf16.mxu0 0
      %7721 = vmatpush1.bf16.msra.mxu0 %v6620
      %7722 = vmatprep.subr.bf16.mxu0 0
      %7723 = vmatpush1.bf16.msra.mxu0 %v6627
      %7724 = vmatprep.subr.bf16.mxu0 0
      %7725 = vmatpush1.bf16.msra.mxu0 %v6634
      %7726 = vmatprep.subr.bf16.mxu0 0
      %7727 = vmatpush1.bf16.msra.mxu0 %v6641
      %7728 = vmatprep.subr.bf16.mxu0 0
      %7729 = vmatpush1.bf16.msra.mxu0 %v6648
      %7730 = vmatprep.subr.bf16.mxu0 0
      %7731 = vmatpush1.bf16.msra.mxu0 %v6655
      %7732 = vmatprep.subr.bf16.mxu0 0
      %7733 = vmatpush1.bf16.msra.mxu0 %v6662
      %7734 = vmatprep.subr.bf16.mxu0 0
      %7735 = vmatpush1.bf16.msra.mxu0 %v6669
      %7736 = vmatprep.subr.bf16.mxu0 0
      %7737 = vmatpush1.bf16.msra.mxu0 %v6676
      %7738 = vmatprep.subr.bf16.mxu0 0
      %7739 = vmatpush1.bf16.msra.mxu0 %v6683
      %7740 = vmatprep.subr.bf16.mxu0 0
      %7741 = vmatpush1.bf16.msra.mxu0 %v6690
      %7742 = vmatprep.subr.bf16.mxu0 0
      %7743 = vmatpush1.bf16.msra.mxu0 %v6697
      %7744 = vmatprep.subr.bf16.mxu0 0
      %7745 = vmatpush1.bf16.msra.mxu0 %v6704
      %7746 = vmatprep.subr.bf16.mxu0 0
      %7747 = vmatpush1.bf16.msra.mxu0 %v6711
      %7748 = vmatprep.subr.bf16.mxu0 0
      %7749 = vmatpush1.bf16.msra.mxu0 %v6718
      %7750 = vmatprep.mubr.bf16.mxu0 %v5469
      %7751 = vmatmul.mubr.bf16.gmra.mrb[0].mxu0 %v5468
      %v7752 = vpop.f32.mrb[0].mxu0
      %v7753 = vadd.f32 %v7656, %v7752
      %v7754 = vpop.f32.mrb[0].mxu0
      %v7755 = vpop.f32.mrb[0].mxu0
      %v7756 = vadd.f32 %v7659, %v7755
      %v7757 = vpop.f32.mrb[0].mxu0
      %7758 = vmatprep.mubr.bf16.mxu0 %v5473
      %7759 = vmatmul.mubr.bf16.gmra.mrb[0].mxu0 %v5472
      %v7760 = vpop.f32.mrb[0].mxu0
      %v7761 = vadd.f32 %v7664, %v7760
      %v7762 = vpop.f32.mrb[0].mxu0
      %v7763 = vpop.f32.mrb[0].mxu0
      %v7764 = vadd.f32 %v7667, %v7763
      %v7765 = vpop.f32.mrb[0].mxu0
      %7766 = vmatprep.mubr.bf16.mxu0 %v5477
      %7767 = vmatmul.mubr.bf16.gmra.mrb[0].mxu0 %v5476
      %v7768 = vpop.f32.mrb[0].mxu0
      %v7769 = vadd.f32 %v7672, %v7768
      %v7770 = vpop.f32.mrb[0].mxu0
      %v7771 = vpop.f32.mrb[0].mxu0
      %v7772 = vadd.f32 %v7675, %v7771
      %v7773 = vpop.f32.mrb[0].mxu0
      %7774 = vmatprep.mubr.bf16.mxu0 %v5481
      %7775 = vmatmul.mubr.bf16.gmra.mrb[0].mxu0 %v5480
      %v7776 = vpop.f32.mrb[0].mxu0
      %v7777 = vadd.f32 %v7680, %v7776
      %v7778 = vpop.f32.mrb[0].mxu0
      %v7779 = vpop.f32.mrb[0].mxu0
      %v7780 = vadd.f32 %v7683, %v7779
      %v7781 = vpop.f32.mrb[0].mxu0
      %7782 = vmatprep.mubr.bf16.mxu0 %v5485
      %7783 = vmatmul.mubr.bf16.gmra.mrb[0].mxu0 %v5484
      %v7784 = vpop.f32.mrb[0].mxu0
      %v7785 = vadd.f32 %v7688, %v7784
      %v7786 = vpop.f32.mrb[0].mxu0
      %v7787 = vpop.f32.mrb[0].mxu0
      %v7788 = vadd.f32 %v7691, %v7787
      %v7789 = vpop.f32.mrb[0].mxu0
      %7790 = vmatprep.mubr.bf16.mxu0 %v5489
      %7791 = vmatmul.mubr.bf16.gmra.mrb[0].mxu0 %v5488
      %v7792 = vpop.f32.mrb[0].mxu0
      %v7793 = vadd.f32 %v7696, %v7792
      %v7794 = vpop.f32.mrb[0].mxu0
      %v7795 = vpop.f32.mrb[0].mxu0
      %v7796 = vadd.f32 %v7699, %v7795
      %v7797 = vpop.f32.mrb[0].mxu0
      %7798 = vmatprep.mubr.bf16.mxu0 %v5493
      %7799 = vmatmul.mubr.bf16.gmra.mrb[0].mxu0 %v5492
      %v7800 = vpop.f32.mrb[0].mxu0
      %v7801 = vadd.f32 %v7704, %v7800
      %v7802 = vpop.f32.mrb[0].mxu0
      %v7803 = vpop.f32.mrb[0].mxu0
      %v7804 = vadd.f32 %v7707, %v7803
      %v7805 = vpop.f32.mrb[0].mxu0
      %7806 = vmatprep.mubr.bf16.mxu0 %v5497
      %7807 = vmatmul.mubr.bf16.gmra.mrb[0].mxu0 %v5496
      %v7808 = vpop.f32.mrb[0].mxu0
      %v7809 = vadd.f32 %v7712, %v7808
      %v7810 = vpop.f32.mrb[0].mxu0
      %v7811 = vpop.f32.mrb[0].mxu0
      %v7812 = vadd.f32 %v7715, %v7811
      %v7813 = vpop.f32.mrb[0].mxu0
      %7814 = vdwg.mxu0
      %v7815 = vxor.u32 %v7091, 2147483648
      %v7816 = vxor.u32 %v7093, 2147483648
      %v7817 = vxor.u32 %v7317, 2147483648
      %v7818 = vxor.u32 %v7319, 2147483648
      %v7819 = vxor.u32 %v7543, 2147483648
      %v7820 = vxor.u32 %v7545, 2147483648
      %v7821 = vxor.u32 %v7753, 2147483648
      %v7822 = vxor.u32 %v7095, 2147483648
      %v7823 = vxor.u32 %v7097, 2147483648
      %v7824 = vxor.u32 %v7321, 2147483648
      %v7825 = vxor.u32 %v7323, 2147483648
      %v7826 = vxor.u32 %v7547, 2147483648
      %v7827 = vxor.u32 %v7549, 2147483648
      %v7828 = vxor.u32 %v7756, 2147483648
      %v7829 = vxor.u32 %v7101, 2147483648
      %v7830 = vxor.u32 %v7103, 2147483648
      %v7831 = vxor.u32 %v7327, 2147483648
      %v7832 = vxor.u32 %v7329, 2147483648
      %v7833 = vxor.u32 %v7553, 2147483648
      %v7834 = vxor.u32 %v7555, 2147483648
      %v7835 = vxor.u32 %v7761, 2147483648
      %v7836 = vxor.u32 %v7105, 2147483648
      %v7837 = vxor.u32 %v7107, 2147483648
      %v7838 = vxor.u32 %v7331, 2147483648
      %v7839 = vxor.u32 %v7333, 2147483648
      %v7840 = vxor.u32 %v7557, 2147483648
      %v7841 = vxor.u32 %v7559, 2147483648
      %v7842 = vxor.u32 %v7764, 2147483648
      %v7843 = vxor.u32 %v7111, 2147483648
      %v7844 = vxor.u32 %v7113, 2147483648
      %v7845 = vxor.u32 %v7337, 2147483648
      %v7846 = vxor.u32 %v7339, 2147483648
      %v7847 = vxor.u32 %v7563, 2147483648
      %v7848 = vxor.u32 %v7565, 2147483648
      %v7849 = vxor.u32 %v7769, 2147483648
      %v7850 = vxor.u32 %v7115, 2147483648
      %v7851 = vxor.u32 %v7117, 2147483648
      %v7852 = vxor.u32 %v7341, 2147483648
      %v7853 = vxor.u32 %v7343, 2147483648
      %v7854 = vxor.u32 %v7567, 2147483648
      %v7855 = vxor.u32 %v7569, 2147483648
      %v7856 = vxor.u32 %v7772, 2147483648
      %v7857 = vxor.u32 %v7121, 2147483648
      %v7858 = vxor.u32 %v7123, 2147483648
      %v7859 = vxor.u32 %v7347, 2147483648
      %v7860 = vxor.u32 %v7349, 2147483648
      %v7861 = vxor.u32 %v7573, 2147483648
      %v7862 = vxor.u32 %v7575, 2147483648
      %v7863 = vxor.u32 %v7777, 2147483648
      %v7864 = vxor.u32 %v7125, 2147483648
      %v7865 = vxor.u32 %v7127, 2147483648
      %v7866 = vxor.u32 %v7351, 2147483648
      %v7867 = vxor.u32 %v7353, 2147483648
      %v7868 = vxor.u32 %v7577, 2147483648
      %v7869 = vxor.u32 %v7579, 2147483648
      %v7870 = vxor.u32 %v7780, 2147483648
      %v7871 = vxor.u32 %v7131, 2147483648
      %v7872 = vxor.u32 %v7133, 2147483648
      %v7873 = vxor.u32 %v7357, 2147483648
      %v7874 = vxor.u32 %v7359, 2147483648
      %v7875 = vxor.u32 %v7583, 2147483648
      %v7876 = vxor.u32 %v7585, 2147483648
      %v7877 = vxor.u32 %v7785, 2147483648
      %v7878 = vxor.u32 %v7135, 2147483648
      %v7879 = vxor.u32 %v7137, 2147483648
      %v7880 = vxor.u32 %v7361, 2147483648
      %v7881 = vxor.u32 %v7363, 2147483648
      %v7882 = vxor.u32 %v7587, 2147483648
      %v7883 = vxor.u32 %v7589, 2147483648
      %v7884 = vxor.u32 %v7788, 2147483648
      %v7885 = vxor.u32 %v7141, 2147483648
      %v7886 = vxor.u32 %v7143, 2147483648
      %v7887 = vxor.u32 %v7367, 2147483648
      %v7888 = vxor.u32 %v7369, 2147483648
      %v7889 = vxor.u32 %v7593, 2147483648
      %v7890 = vxor.u32 %v7595, 2147483648
      %v7891 = vxor.u32 %v7793, 2147483648
      %v7892 = vxor.u32 %v7145, 2147483648
      %v7893 = vxor.u32 %v7147, 2147483648
      %v7894 = vxor.u32 %v7371, 2147483648
      %v7895 = vxor.u32 %v7373, 2147483648
      %v7896 = vxor.u32 %v7597, 2147483648
      %v7897 = vxor.u32 %v7599, 2147483648
      %v7898 = vxor.u32 %v7796, 2147483648
      %v7899 = vxor.u32 %v7151, 2147483648
      %v7900 = vxor.u32 %v7153, 2147483648
      %v7901 = vxor.u32 %v7377, 2147483648
      %v7902 = vxor.u32 %v7379, 2147483648
      %v7903 = vxor.u32 %v7603, 2147483648
      %v7904 = vxor.u32 %v7605, 2147483648
      %v7905 = vxor.u32 %v7801, 2147483648
      %v7906 = vxor.u32 %v7155, 2147483648
      %v7907 = vxor.u32 %v7157, 2147483648
      %v7908 = vxor.u32 %v7381, 2147483648
      %v7909 = vxor.u32 %v7383, 2147483648
      %v7910 = vxor.u32 %v7607, 2147483648
      %v7911 = vxor.u32 %v7609, 2147483648
      %v7912 = vxor.u32 %v7804, 2147483648
      %v7913 = vxor.u32 %v7161, 2147483648
      %v7914 = vxor.u32 %v7163, 2147483648
      %v7915 = vxor.u32 %v7387, 2147483648
      %v7916 = vxor.u32 %v7389, 2147483648
      %v7917 = vxor.u32 %v7613, 2147483648
      %v7918 = vxor.u32 %v7615, 2147483648
      %v7919 = vxor.u32 %v7809, 2147483648
      %v7920 = vxor.u32 %v7165, 2147483648
      %v7921 = vxor.u32 %v7167, 2147483648
      %v7922 = vxor.u32 %v7391, 2147483648
      %v7923 = vxor.u32 %v7393, 2147483648
      %v7924 = vxor.u32 %v7617, 2147483648
      %v7925 = vxor.u32 %v7619, 2147483648
      %v7926 = vxor.u32 %v7812, 2147483648
      %v7927 = vmul.f32 %v7815, 1.442695
      %v7928 = vpow.pop %v7927
      %v7929 = vmul.f32 %v7816, 1.442695
      %v7930 = vpow.pop %v7929
      %v7931 = vmul.f32 %v7817, 1.442695
      %v7932 = vpow.pop %v7931
      %v7933 = vmul.f32 %v7818, 1.442695
      %v7934 = vpow.pop %v7933
      %v7935 = vmul.f32 %v7819, 1.442695
      %v7936 = vpow.pop %v7935
      %v7937 = vmul.f32 %v7820, 1.442695
      %v7938 = vpow.pop %v7937
      %v7939 = vmul.f32 %v7821, 1.442695
      %v7940 = vpow.pop %v7939
      %v7941 = vmul.f32 %v7822, 1.442695
      %v7942 = vpow.pop %v7941
      %v7943 = vmul.f32 %v7823, 1.442695
      %v7944 = vpow.pop %v7943
      %v7945 = vmul.f32 %v7824, 1.442695
      %v7946 = vpow.pop %v7945
      %v7947 = vmul.f32 %v7825, 1.442695
      %v7948 = vpow.pop %v7947
      %v7949 = vmul.f32 %v7826, 1.442695
      %v7950 = vpow.pop %v7949
      %v7951 = vmul.f32 %v7827, 1.442695
      %v7952 = vpow.pop %v7951
      %v7953 = vmul.f32 %v7828, 1.442695
      %v7954 = vpow.pop %v7953
      %v7955 = vmul.f32 %v7829, 1.442695
      %v7956 = vpow.pop %v7955
      %v7957 = vmul.f32 %v7830, 1.442695
      %v7958 = vpow.pop %v7957
      %v7959 = vmul.f32 %v7831, 1.442695
      %v7960 = vpow.pop %v7959
      %v7961 = vmul.f32 %v7832, 1.442695
      %v7962 = vpow.pop %v7961
      %v7963 = vmul.f32 %v7833, 1.442695
      %v7964 = vpow.pop %v7963
      %v7965 = vmul.f32 %v7834, 1.442695
      %v7966 = vpow.pop %v7965
      %v7967 = vmul.f32 %v7835, 1.442695
      %v7968 = vpow.pop %v7967
      %v7969 = vmul.f32 %v7836, 1.442695
      %v7970 = vpow.pop %v7969
      %v7971 = vmul.f32 %v7837, 1.442695
      %v7972 = vpow.pop %v7971
      %v7973 = vmul.f32 %v7838, 1.442695
      %v7974 = vpow.pop %v7973
      %v7975 = vmul.f32 %v7839, 1.442695
      %v7976 = vpow.pop %v7975
      %v7977 = vmul.f32 %v7840, 1.442695
      %v7978 = vpow.pop %v7977
      %v7979 = vmul.f32 %v7841, 1.442695
      %v7980 = vpow.pop %v7979
      %v7981 = vmul.f32 %v7842, 1.442695
      %v7982 = vpow.pop %v7981
      %v7983 = vmul.f32 %v7843, 1.442695
      %v7984 = vpow.pop %v7983
      %v7985 = vmul.f32 %v7844, 1.442695
      %v7986 = vpow.pop %v7985
      %v7987 = vmul.f32 %v7845, 1.442695
      %v7988 = vpow.pop %v7987
      %v7989 = vmul.f32 %v7846, 1.442695
      %v7990 = vpow.pop %v7989
      %v7991 = vmul.f32 %v7847, 1.442695
      %v7992 = vpow.pop %v7991
      %v7993 = vmul.f32 %v7848, 1.442695
      %v7994 = vpow.pop %v7993
      %v7995 = vmul.f32 %v7849, 1.442695
      %v7996 = vpow.pop %v7995
      %v7997 = vmul.f32 %v7850, 1.442695
      %v7998 = vpow.pop %v7997
      %v7999 = vmul.f32 %v7851, 1.442695
      %v8000 = vpow.pop %v7999
      %v8001 = vmul.f32 %v7852, 1.442695
      %v8002 = vpow.pop %v8001
      %v8003 = vmul.f32 %v7853, 1.442695
      %v8004 = vpow.pop %v8003
      %v8005 = vmul.f32 %v7854, 1.442695
      %v8006 = vpow.pop %v8005
      %v8007 = vmul.f32 %v7855, 1.442695
      %v8008 = vpow.pop %v8007
      %v8009 = vmul.f32 %v7856, 1.442695
      %v8010 = vpow.pop %v8009
      %v8011 = vmul.f32 %v7857, 1.442695
      %v8012 = vpow.pop %v8011
      %v8013 = vmul.f32 %v7858, 1.442695
      %v8014 = vpow.pop %v8013
      %v8015 = vmul.f32 %v7859, 1.442695
      %v8016 = vpow.pop %v8015
      %v8017 = vmul.f32 %v7860, 1.442695
      %v8018 = vpow.pop %v8017
      %v8019 = vmul.f32 %v7861, 1.442695
      %v8020 = vpow.pop %v8019
      %v8021 = vmul.f32 %v7862, 1.442695
      %v8022 = vpow.pop %v8021
      %v8023 = vmul.f32 %v7863, 1.442695
      %v8024 = vpow.pop %v8023
      %v8025 = vmul.f32 %v7864, 1.442695
      %v8026 = vpow.pop %v8025
      %v8027 = vmul.f32 %v7865, 1.442695
      %v8028 = vpow.pop %v8027
      %v8029 = vmul.f32 %v7866, 1.442695
      %v8030 = vpow.pop %v8029
      %v8031 = vmul.f32 %v7867, 1.442695
      %v8032 = vpow.pop %v8031
      %v8033 = vmul.f32 %v7868, 1.442695
      %v8034 = vpow.pop %v8033
      %v8035 = vmul.f32 %v7869, 1.442695
      %v8036 = vpow.pop %v8035
      %v8037 = vmul.f32 %v7870, 1.442695
      %v8038 = vpow.pop %v8037
      %v8039 = vmul.f32 %v7871, 1.442695
      %v8040 = vpow.pop %v8039
      %v8041 = vmul.f32 %v7872, 1.442695
      %v8042 = vpow.pop %v8041
      %v8043 = vmul.f32 %v7873, 1.442695
      %v8044 = vpow.pop %v8043
      %v8045 = vmul.f32 %v7874, 1.442695
      %v8046 = vpow.pop %v8045
      %v8047 = vmul.f32 %v7875, 1.442695
      %v8048 = vpow.pop %v8047
      %v8049 = vmul.f32 %v7876, 1.442695
      %v8050 = vpow.pop %v8049
      %v8051 = vmul.f32 %v7877, 1.442695
      %v8052 = vpow.pop %v8051
      %v8053 = vmul.f32 %v7878, 1.442695
      %v8054 = vpow.pop %v8053
      %v8055 = vmul.f32 %v7879, 1.442695
      %v8056 = vpow.pop %v8055
      %v8057 = vmul.f32 %v7880, 1.442695
      %v8058 = vpow.pop %v8057
      %v8059 = vmul.f32 %v7881, 1.442695
      %v8060 = vpow.pop %v8059
      %v8061 = vmul.f32 %v7882, 1.442695
      %v8062 = vpow.pop %v8061
      %v8063 = vmul.f32 %v7883, 1.442695
      %v8064 = vpow.pop %v8063
      %v8065 = vmul.f32 %v7884, 1.442695
      %v8066 = vpow.pop %v8065
      %v8067 = vmul.f32 %v7885, 1.442695
      %v8068 = vpow.pop %v8067
      %v8069 = vmul.f32 %v7886, 1.442695
      %v8070 = vpow.pop %v8069
      %v8071 = vmul.f32 %v7887, 1.442695
      %v8072 = vpow.pop %v8071
      %v8073 = vmul.f32 %v7888, 1.442695
      %v8074 = vpow.pop %v8073
      %v8075 = vmul.f32 %v7889, 1.442695
      %v8076 = vpow.pop %v8075
      %v8077 = vmul.f32 %v7890, 1.442695
      %v8078 = vpow.pop %v8077
      %v8079 = vmul.f32 %v7891, 1.442695
      %v8080 = vpow.pop %v8079
      %v8081 = vmul.f32 %v7892, 1.442695
      %v8082 = vpow.pop %v8081
      %v8083 = vmul.f32 %v7893, 1.442695
      %v8084 = vpow.pop %v8083
      %v8085 = vmul.f32 %v7894, 1.442695
      %v8086 = vpow.pop %v8085
      %v8087 = vmul.f32 %v7895, 1.442695
      %v8088 = vpow.pop %v8087
      %v8089 = vmul.f32 %v7896, 1.442695
      %v8090 = vpow.pop %v8089
      %v8091 = vmul.f32 %v7897, 1.442695
      %v8092 = vpow.pop %v8091
      %v8093 = vmul.f32 %v7898, 1.442695
      %v8094 = vpow.pop %v8093
      %v8095 = vmul.f32 %v7899, 1.442695
      %v8096 = vpow.pop %v8095
      %v8097 = vmul.f32 %v7900, 1.442695
      %v8098 = vpow.pop %v8097
      %v8099 = vmul.f32 %v7901, 1.442695
      %v8100 = vpow.pop %v8099
      %v8101 = vmul.f32 %v7902, 1.442695
      %v8102 = vpow.pop %v8101
      %v8103 = vmul.f32 %v7903, 1.442695
      %v8104 = vpow.pop %v8103
      %v8105 = vmul.f32 %v7904, 1.442695
      %v8106 = vpow.pop %v8105
      %v8107 = vmul.f32 %v7905, 1.442695
      %v8108 = vpow.pop %v8107
      %v8109 = vmul.f32 %v7906, 1.442695
      %v8110 = vpow.pop %v8109
      %v8111 = vmul.f32 %v7907, 1.442695
      %v8112 = vpow.pop %v8111
      %v8113 = vmul.f32 %v7908, 1.442695
      %v8114 = vpow.pop %v8113
      %v8115 = vmul.f32 %v7909, 1.442695
      %v8116 = vpow.pop %v8115
      %v8117 = vmul.f32 %v7910, 1.442695
      %v8118 = vpow.pop %v8117
      %v8119 = vmul.f32 %v7911, 1.442695
      %v8120 = vpow.pop %v8119
      %v8121 = vmul.f32 %v7912, 1.442695
      %v8122 = vpow.pop %v8121
      %v8123 = vmul.f32 %v7913, 1.442695
      %v8124 = vpow.pop %v8123
      %v8125 = vmul.f32 %v7914, 1.442695
      %v8126 = vpow.pop %v8125
      %v8127 = vmul.f32 %v7915, 1.442695
      %v8128 = vpow.pop %v8127
      %v8129 = vmul.f32 %v7916, 1.442695
      %v8130 = vpow.pop %v8129
      %v8131 = vmul.f32 %v7917, 1.442695
      %v8132 = vpow.pop %v8131
      %v8133 = vmul.f32 %v7918, 1.442695
      %v8134 = vpow.pop %v8133
      %v8135 = vmul.f32 %v7919, 1.442695
      %v8136 = vpow.pop %v8135
      %v8137 = vmul.f32 %v7920, 1.442695
      %v8138 = vpow.pop %v8137
      %v8139 = vmul.f32 %v7921, 1.442695
      %v8140 = vpow.pop %v8139
      %v8141 = vmul.f32 %v7922, 1.442695
      %v8142 = vpow.pop %v8141
      %v8143 = vmul.f32 %v7923, 1.442695
      %v8144 = vpow.pop %v8143
      %v8145 = vmul.f32 %v7924, 1.442695
      %v8146 = vpow.pop %v8145
      %v8147 = vmul.f32 %v7925, 1.442695
      %v8148 = vpow.pop %v8147
      %v8149 = vmul.f32 %v7926, 1.442695
      %v8150 = vpow.pop %v8149
      %v8151 = vadd.f32 %v7928, 1.0
      %v8152 = vadd.f32 %v7930, 1.0
      %v8153 = vadd.f32 %v7932, 1.0
      %v8154 = vadd.f32 %v7934, 1.0
      %v8155 = vadd.f32 %v7936, 1.0
      %v8156 = vadd.f32 %v7938, 1.0
      %v8157 = vadd.f32 %v7940, 1.0
      %v8158 = vadd.f32 %v7942, 1.0
      %v8159 = vadd.f32 %v7944, 1.0
      %v8160 = vadd.f32 %v7946, 1.0
      %v8161 = vadd.f32 %v7948, 1.0
      %v8162 = vadd.f32 %v7950, 1.0
      %v8163 = vadd.f32 %v7952, 1.0
      %v8164 = vadd.f32 %v7954, 1.0
      %v8165 = vadd.f32 %v7956, 1.0
      %v8166 = vadd.f32 %v7958, 1.0
      %v8167 = vadd.f32 %v7960, 1.0
      %v8168 = vadd.f32 %v7962, 1.0
      %v8169 = vadd.f32 %v7964, 1.0
      %v8170 = vadd.f32 %v7966, 1.0
      %v8171 = vadd.f32 %v7968, 1.0
      %v8172 = vadd.f32 %v7970, 1.0
      %v8173 = vadd.f32 %v7972, 1.0
      %v8174 = vadd.f32 %v7974, 1.0
      %v8175 = vadd.f32 %v7976, 1.0
      %v8176 = vadd.f32 %v7978, 1.0
      %v8177 = vadd.f32 %v7980, 1.0
      %v8178 = vadd.f32 %v7982, 1.0
      %v8179 = vadd.f32 %v7984, 1.0
      %v8180 = vadd.f32 %v7986, 1.0
      %v8181 = vadd.f32 %v7988, 1.0
      %v8182 = vadd.f32 %v7990, 1.0
      %v8183 = vadd.f32 %v7992, 1.0
      %v8184 = vadd.f32 %v7994, 1.0
      %v8185 = vadd.f32 %v7996, 1.0
      %v8186 = vadd.f32 %v7998, 1.0
      %v8187 = vadd.f32 %v8000, 1.0
      %v8188 = vadd.f32 %v8002, 1.0
      %v8189 = vadd.f32 %v8004, 1.0
      %v8190 = vadd.f32 %v8006, 1.0
      %v8191 = vadd.f32 %v8008, 1.0
      %v8192 = vadd.f32 %v8010, 1.0
      %v8193 = vadd.f32 %v8012, 1.0
      %v8194 = vadd.f32 %v8014, 1.0
      %v8195 = vadd.f32 %v8016, 1.0
      %v8196 = vadd.f32 %v8018, 1.0
      %v8197 = vadd.f32 %v8020, 1.0
      %v8198 = vadd.f32 %v8022, 1.0
      %v8199 = vadd.f32 %v8024, 1.0
      %v8200 = vadd.f32 %v8026, 1.0
      %v8201 = vadd.f32 %v8028, 1.0
      %v8202 = vadd.f32 %v8030, 1.0
      %v8203 = vadd.f32 %v8032, 1.0
      %v8204 = vadd.f32 %v8034, 1.0
      %v8205 = vadd.f32 %v8036, 1.0
      %v8206 = vadd.f32 %v8038, 1.0
      %v8207 = vadd.f32 %v8040, 1.0
      %v8208 = vadd.f32 %v8042, 1.0
      %v8209 = vadd.f32 %v8044, 1.0
      %v8210 = vadd.f32 %v8046, 1.0
      %v8211 = vadd.f32 %v8048, 1.0
      %v8212 = vadd.f32 %v8050, 1.0
      %v8213 = vadd.f32 %v8052, 1.0
      %v8214 = vadd.f32 %v8054, 1.0
      %v8215 = vadd.f32 %v8056, 1.0
      %v8216 = vadd.f32 %v8058, 1.0
      %v8217 = vadd.f32 %v8060, 1.0
      %v8218 = vadd.f32 %v8062, 1.0
      %v8219 = vadd.f32 %v8064, 1.0
      %v8220 = vadd.f32 %v8066, 1.0
      %v8221 = vadd.f32 %v8068, 1.0
      %v8222 = vadd.f32 %v8070, 1.0
      %v8223 = vadd.f32 %v8072, 1.0
      %v8224 = vadd.f32 %v8074, 1.0
      %v8225 = vadd.f32 %v8076, 1.0
      %v8226 = vadd.f32 %v8078, 1.0
      %v8227 = vadd.f32 %v8080, 1.0
      %v8228 = vadd.f32 %v8082, 1.0
      %v8229 = vadd.f32 %v8084, 1.0
      %v8230 = vadd.f32 %v8086, 1.0
      %v8231 = vadd.f32 %v8088, 1.0
      %v8232 = vadd.f32 %v8090, 1.0
      %v8233 = vadd.f32 %v8092, 1.0
      %v8234 = vadd.f32 %v8094, 1.0
      %v8235 = vadd.f32 %v8096, 1.0
      %v8236 = vadd.f32 %v8098, 1.0
      %v8237 = vadd.f32 %v8100, 1.0
      %v8238 = vadd.f32 %v8102, 1.0
      %v8239 = vadd.f32 %v8104, 1.0
      %v8240 = vadd.f32 %v8106, 1.0
      %v8241 = vadd.f32 %v8108, 1.0
      %v8242 = vadd.f32 %v8110, 1.0
      %v8243 = vadd.f32 %v8112, 1.0
      %v8244 = vadd.f32 %v8114, 1.0
      %v8245 = vadd.f32 %v8116, 1.0
      %v8246 = vadd.f32 %v8118, 1.0
      %v8247 = vadd.f32 %v8120, 1.0
      %v8248 = vadd.f32 %v8122, 1.0
      %v8249 = vadd.f32 %v8124, 1.0
      %v8250 = vadd.f32 %v8126, 1.0
      %v8251 = vadd.f32 %v8128, 1.0
      %v8252 = vadd.f32 %v8130, 1.0
      %v8253 = vadd.f32 %v8132, 1.0
      %v8254 = vadd.f32 %v8134, 1.0
      %v8255 = vadd.f32 %v8136, 1.0
      %v8256 = vadd.f32 %v8138, 1.0
      %v8257 = vadd.f32 %v8140, 1.0
      %v8258 = vadd.f32 %v8142, 1.0
      %v8259 = vadd.f32 %v8144, 1.0
      %v8260 = vadd.f32 %v8146, 1.0
      %v8261 = vadd.f32 %v8148, 1.0
      %v8262 = vadd.f32 %v8150, 1.0
      %v8263 = vrcp.pop %v8151
      %v8264 = vmul.f32 1.0, %v8263
      %v8265 = vrcp.pop %v8152
      %v8266 = vmul.f32 1.0, %v8265
      %v8267 = vrcp.pop %v8153
      %v8268 = vmul.f32 1.0, %v8267
      %v8269 = vrcp.pop %v8154
      %v8270 = vmul.f32 1.0, %v8269
      %v8271 = vrcp.pop %v8155
      %v8272 = vmul.f32 1.0, %v8271
      %v8273 = vrcp.pop %v8156
      %v8274 = vmul.f32 1.0, %v8273
      %v8275 = vrcp.pop %v8157
      %v8276 = vmul.f32 1.0, %v8275
      %v8277 = vrcp.pop %v8158
      %v8278 = vmul.f32 1.0, %v8277
      %v8279 = vrcp.pop %v8159
      %v8280 = vmul.f32 1.0, %v8279
      %v8281 = vrcp.pop %v8160
      %v8282 = vmul.f32 1.0, %v8281
      %v8283 = vrcp.pop %v8161
      %v8284 = vmul.f32 1.0, %v8283
      %v8285 = vrcp.pop %v8162
      %v8286 = vmul.f32 1.0, %v8285
      %v8287 = vrcp.pop %v8163
      %v8288 = vmul.f32 1.0, %v8287
      %v8289 = vrcp.pop %v8164
      %v8290 = vmul.f32 1.0, %v8289
      %v8291 = vrcp.pop %v8165
      %v8292 = vmul.f32 1.0, %v8291
      %v8293 = vrcp.pop %v8166
      %v8294 = vmul.f32 1.0, %v8293
      %v8295 = vrcp.pop %v8167
      %v8296 = vmul.f32 1.0, %v8295
      %v8297 = vrcp.pop %v8168
      %v8298 = vmul.f32 1.0, %v8297
      %v8299 = vrcp.pop %v8169
      %v8300 = vmul.f32 1.0, %v8299
      %v8301 = vrcp.pop %v8170
      %v8302 = vmul.f32 1.0, %v8301
      %v8303 = vrcp.pop %v8171
      %v8304 = vmul.f32 1.0, %v8303
      %v8305 = vrcp.pop %v8172
      %v8306 = vmul.f32 1.0, %v8305
      %v8307 = vrcp.pop %v8173
      %v8308 = vmul.f32 1.0, %v8307
      %v8309 = vrcp.pop %v8174
      %v8310 = vmul.f32 1.0, %v8309
      %v8311 = vrcp.pop %v8175
      %v8312 = vmul.f32 1.0, %v8311
      %v8313 = vrcp.pop %v8176
      %v8314 = vmul.f32 1.0, %v8313
      %v8315 = vrcp.pop %v8177
      %v8316 = vmul.f32 1.0, %v8315
      %v8317 = vrcp.pop %v8178
      %v8318 = vmul.f32 1.0, %v8317
      %v8319 = vrcp.pop %v8179
      %v8320 = vmul.f32 1.0, %v8319
      %v8321 = vrcp.pop %v8180
      %v8322 = vmul.f32 1.0, %v8321
      %v8323 = vrcp.pop %v8181
      %v8324 = vmul.f32 1.0, %v8323
      %v8325 = vrcp.pop %v8182
      %v8326 = vmul.f32 1.0, %v8325
      %v8327 = vrcp.pop %v8183
      %v8328 = vmul.f32 1.0, %v8327
      %v8329 = vrcp.pop %v8184
      %v8330 = vmul.f32 1.0, %v8329
      %v8331 = vrcp.pop %v8185
      %v8332 = vmul.f32 1.0, %v8331
      %v8333 = vrcp.pop %v8186
      %v8334 = vmul.f32 1.0, %v8333
      %v8335 = vrcp.pop %v8187
      %v8336 = vmul.f32 1.0, %v8335
      %v8337 = vrcp.pop %v8188
      %v8338 = vmul.f32 1.0, %v8337
      %v8339 = vrcp.pop %v8189
      %v8340 = vmul.f32 1.0, %v8339
      %v8341 = vrcp.pop %v8190
      %v8342 = vmul.f32 1.0, %v8341
      %v8343 = vrcp.pop %v8191
      %v8344 = vmul.f32 1.0, %v8343
      %v8345 = vrcp.pop %v8192
      %v8346 = vmul.f32 1.0, %v8345
      %v8347 = vrcp.pop %v8193
      %v8348 = vmul.f32 1.0, %v8347
      %v8349 = vrcp.pop %v8194
      %v8350 = vmul.f32 1.0, %v8349
      %v8351 = vrcp.pop %v8195
      %v8352 = vmul.f32 1.0, %v8351
      %v8353 = vrcp.pop %v8196
      %v8354 = vmul.f32 1.0, %v8353
      %v8355 = vrcp.pop %v8197
      %v8356 = vmul.f32 1.0, %v8355
      %v8357 = vrcp.pop %v8198
      %v8358 = vmul.f32 1.0, %v8357
      %v8359 = vrcp.pop %v8199
      %v8360 = vmul.f32 1.0, %v8359
      %v8361 = vrcp.pop %v8200
      %v8362 = vmul.f32 1.0, %v8361
      %v8363 = vrcp.pop %v8201
      %v8364 = vmul.f32 1.0, %v8363
      %v8365 = vrcp.pop %v8202
      %v8366 = vmul.f32 1.0, %v8365
      %v8367 = vrcp.pop %v8203
      %v8368 = vmul.f32 1.0, %v8367
      %v8369 = vrcp.pop %v8204
      %v8370 = vmul.f32 1.0, %v8369
      %v8371 = vrcp.pop %v8205
      %v8372 = vmul.f32 1.0, %v8371
      %v8373 = vrcp.pop %v8206
      %v8374 = vmul.f32 1.0, %v8373
      %v8375 = vrcp.pop %v8207
      %v8376 = vmul.f32 1.0, %v8375
      %v8377 = vrcp.pop %v8208
      %v8378 = vmul.f32 1.0, %v8377
      %v8379 = vrcp.pop %v8209
      %v8380 = vmul.f32 1.0, %v8379
      %v8381 = vrcp.pop %v8210
      %v8382 = vmul.f32 1.0, %v8381
      %v8383 = vrcp.pop %v8211
      %v8384 = vmul.f32 1.0, %v8383
      %v8385 = vrcp.pop %v8212
      %v8386 = vmul.f32 1.0, %v8385
      %v8387 = vrcp.pop %v8213
      %v8388 = vmul.f32 1.0, %v8387
      %v8389 = vrcp.pop %v8214
      %v8390 = vmul.f32 1.0, %v8389
      %v8391 = vrcp.pop %v8215
      %v8392 = vmul.f32 1.0, %v8391
      %v8393 = vrcp.pop %v8216
      %v8394 = vmul.f32 1.0, %v8393
      %v8395 = vrcp.pop %v8217
      %v8396 = vmul.f32 1.0, %v8395
      %v8397 = vrcp.pop %v8218
      %v8398 = vmul.f32 1.0, %v8397
      %v8399 = vrcp.pop %v8219
      %v8400 = vmul.f32 1.0, %v8399
      %v8401 = vrcp.pop %v8220
      %v8402 = vmul.f32 1.0, %v8401
      %v8403 = vrcp.pop %v8221
      %v8404 = vmul.f32 1.0, %v8403
      %v8405 = vrcp.pop %v8222
      %v8406 = vmul.f32 1.0, %v8405
      %v8407 = vrcp.pop %v8223
      %v8408 = vmul.f32 1.0, %v8407
      %v8409 = vrcp.pop %v8224
      %v8410 = vmul.f32 1.0, %v8409
      %v8411 = vrcp.pop %v8225
      %v8412 = vmul.f32 1.0, %v8411
      %v8413 = vrcp.pop %v8226
      %v8414 = vmul.f32 1.0, %v8413
      %v8415 = vrcp.pop %v8227
      %v8416 = vmul.f32 1.0, %v8415
      %v8417 = vrcp.pop %v8228
      %v8418 = vmul.f32 1.0, %v8417
      %v8419 = vrcp.pop %v8229
      %v8420 = vmul.f32 1.0, %v8419
      %v8421 = vrcp.pop %v8230
      %v8422 = vmul.f32 1.0, %v8421
      %v8423 = vrcp.pop %v8231
      %v8424 = vmul.f32 1.0, %v8423
      %v8425 = vrcp.pop %v8232
      %v8426 = vmul.f32 1.0, %v8425
      %v8427 = vrcp.pop %v8233
      %v8428 = vmul.f32 1.0, %v8427
      %v8429 = vrcp.pop %v8234
      %v8430 = vmul.f32 1.0, %v8429
      %v8431 = vrcp.pop %v8235
      %v8432 = vmul.f32 1.0, %v8431
      %v8433 = vrcp.pop %v8236
      %v8434 = vmul.f32 1.0, %v8433
      %v8435 = vrcp.pop %v8237
      %v8436 = vmul.f32 1.0, %v8435
      %v8437 = vrcp.pop %v8238
      %v8438 = vmul.f32 1.0, %v8437
      %v8439 = vrcp.pop %v8239
      %v8440 = vmul.f32 1.0, %v8439
      %v8441 = vrcp.pop %v8240
      %v8442 = vmul.f32 1.0, %v8441
      %v8443 = vrcp.pop %v8241
      %v8444 = vmul.f32 1.0, %v8443
      %v8445 = vrcp.pop %v8242
      %v8446 = vmul.f32 1.0, %v8445
      %v8447 = vrcp.pop %v8243
      %v8448 = vmul.f32 1.0, %v8447
      %v8449 = vrcp.pop %v8244
      %v8450 = vmul.f32 1.0, %v8449
      %v8451 = vrcp.pop %v8245
      %v8452 = vmul.f32 1.0, %v8451
      %v8453 = vrcp.pop %v8246
      %v8454 = vmul.f32 1.0, %v8453
      %v8455 = vrcp.pop %v8247
      %v8456 = vmul.f32 1.0, %v8455
      %v8457 = vrcp.pop %v8248
      %v8458 = vmul.f32 1.0, %v8457
      %v8459 = vrcp.pop %v8249
      %v8460 = vmul.f32 1.0, %v8459
      %v8461 = vrcp.pop %v8250
      %v8462 = vmul.f32 1.0, %v8461
      %v8463 = vrcp.pop %v8251
      %v8464 = vmul.f32 1.0, %v8463
      %v8465 = vrcp.pop %v8252
      %v8466 = vmul.f32 1.0, %v8465
      %v8467 = vrcp.pop %v8253
      %v8468 = vmul.f32 1.0, %v8467
      %v8469 = vrcp.pop %v8254
      %v8470 = vmul.f32 1.0, %v8469
      %v8471 = vrcp.pop %v8255
      %v8472 = vmul.f32 1.0, %v8471
      %v8473 = vrcp.pop %v8256
      %v8474 = vmul.f32 1.0, %v8473
      %v8475 = vrcp.pop %v8257
      %v8476 = vmul.f32 1.0, %v8475
      %v8477 = vrcp.pop %v8258
      %v8478 = vmul.f32 1.0, %v8477
      %v8479 = vrcp.pop %v8259
      %v8480 = vmul.f32 1.0, %v8479
      %v8481 = vrcp.pop %v8260
      %v8482 = vmul.f32 1.0, %v8481
      %v8483 = vrcp.pop %v8261
      %v8484 = vmul.f32 1.0, %v8483
      %v8485 = vrcp.pop %v8262
      %v8486 = vmul.f32 1.0, %v8485
      %8487 = vst [vmem:[%s604] sm:$0xff] %v8264
      %8488 = vst [vmem:[%s604 + $0x8] sm:$0xff] %v8266
      %8489 = vst [vmem:[%s604 + $0x10] sm:$0xff] %v8268
      %8490 = vst [vmem:[%s604 + $0x18] sm:$0xff] %v8270
      %8491 = vst [vmem:[%s604 + $0x20] sm:$0xff] %v8272
      %8492 = vst [vmem:[%s604 + $0x28] sm:$0xff] %v8274
      %8493 = vst.msk [vmem:[%s604 + $0x30] sm:$0xff] %vm1973, %v8276
      %8494 = vst [vmem:[%s604 + $0x38] sm:$0xff] %v8278
      %8495 = vst [vmem:[%s604 + $0x40] sm:$0xff] %v8280
      %8496 = vst [vmem:[%s604 + $0x48] sm:$0xff] %v8282
      %8497 = vst [vmem:[%s604 + $0x50] sm:$0xff] %v8284
      %8498 = vst [vmem:[%s604 + $0x58] sm:$0xff] %v8286
      %8499 = vst [vmem:[%s604 + $0x60] sm:$0xff] %v8288
      %8500 = vst.msk [vmem:[%s604 + $0x68] sm:$0xff] %vm1973, %v8290
      %8501 = vst [vmem:[%s604 + $0x70] sm:$0xff] %v8292
      %8502 = vst [vmem:[%s604 + $0x78] sm:$0xff] %v8294
      %8503 = vst [vmem:[%s604 + $0x80] sm:$0xff] %v8296
      %8504 = vst [vmem:[%s604 + $0x88] sm:$0xff] %v8298
      %8505 = vst [vmem:[%s604 + $0x90] sm:$0xff] %v8300
      %8506 = vst [vmem:[%s604 + $0x98] sm:$0xff] %v8302
      %8507 = vst.msk [vmem:[%s604 + $0xa0] sm:$0xff] %vm1973, %v8304
      %8508 = vst [vmem:[%s604 + $0xa8] sm:$0xff] %v8306
      %8509 = vst [vmem:[%s604 + $0xb0] sm:$0xff] %v8308
      %8510 = vst [vmem:[%s604 + $0xb8] sm:$0xff] %v8310
      %8511 = vst [vmem:[%s604 + $0xc0] sm:$0xff] %v8312
      %8512 = vst [vmem:[%s604 + $0xc8] sm:$0xff] %v8314
      %8513 = vst [vmem:[%s604 + $0xd0] sm:$0xff] %v8316
      %8514 = vst.msk [vmem:[%s604 + $0xd8] sm:$0xff] %vm1973, %v8318
      %8515 = vst [vmem:[%s604 + $0xe0] sm:$0xff] %v8320
      %8516 = vst [vmem:[%s604 + $0xe8] sm:$0xff] %v8322
      %8517 = vst [vmem:[%s604 + $0xf0] sm:$0xff] %v8324
      %8518 = vst [vmem:[%s604 + $0xf8] sm:$0xff] %v8326
      %8519 = vst [vmem:[%s604 + $0x100] sm:$0xff] %v8328
      %8520 = vst [vmem:[%s604 + $0x108] sm:$0xff] %v8330
      %8521 = vst.msk [vmem:[%s604 + $0x110] sm:$0xff] %vm1973, %v8332
      %8522 = vst [vmem:[%s604 + $0x118] sm:$0xff] %v8334
      %8523 = vst [vmem:[%s604 + $0x120] sm:$0xff] %v8336
      %8524 = vst [vmem:[%s604 + $0x128] sm:$0xff] %v8338
      %8525 = vst [vmem:[%s604 + $0x130] sm:$0xff] %v8340
      %8526 = vst [vmem:[%s604 + $0x138] sm:$0xff] %v8342
      %8527 = vst [vmem:[%s604 + $0x140] sm:$0xff] %v8344
      %8528 = vst.msk [vmem:[%s604 + $0x148] sm:$0xff] %vm1973, %v8346
      %8529 = vst [vmem:[%s604 + $0x150] sm:$0xff] %v8348
      %8530 = vst [vmem:[%s604 + $0x158] sm:$0xff] %v8350
      %8531 = vst [vmem:[%s604 + $0x160] sm:$0xff] %v8352
      %8532 = vst [vmem:[%s604 + $0x168] sm:$0xff] %v8354
      %8533 = vst [vmem:[%s604 + $0x170] sm:$0xff] %v8356
      %8534 = vst [vmem:[%s604 + $0x178] sm:$0xff] %v8358
      %8535 = vst.msk [vmem:[%s604 + $0x180] sm:$0xff] %vm1973, %v8360
      %8536 = vst [vmem:[%s604 + $0x188] sm:$0xff] %v8362
      %8537 = vst [vmem:[%s604 + $0x190] sm:$0xff] %v8364
      %8538 = vst [vmem:[%s604 + $0x198] sm:$0xff] %v8366
      %8539 = vst [vmem:[%s604 + $0x1a0] sm:$0xff] %v8368
      %8540 = vst [vmem:[%s604 + $0x1a8] sm:$0xff] %v8370
      %8541 = vst [vmem:[%s604 + $0x1b0] sm:$0xff] %v8372
      %8542 = vst.msk [vmem:[%s604 + $0x1b8] sm:$0xff] %vm1973, %v8374
      %8543 = vst [vmem:[%s604 + $0x1c0] sm:$0xff] %v8376
      %8544 = vst [vmem:[%s604 + $0x1c8] sm:$0xff] %v8378
      %8545 = vst [vmem:[%s604 + $0x1d0] sm:$0xff] %v8380
      %8546 = vst [vmem:[%s604 + $0x1d8] sm:$0xff] %v8382
      %8547 = vst [vmem:[%s604 + $0x1e0] sm:$0xff] %v8384
      %8548 = vst [vmem:[%s604 + $0x1e8] sm:$0xff] %v8386
      %8549 = vst.msk [vmem:[%s604 + $0x1f0] sm:$0xff] %vm1973, %v8388
      %8550 = vst [vmem:[%s604 + $0x1f8] sm:$0xff] %v8390
      %8551 = vst [vmem:[%s604 + $0x200] sm:$0xff] %v8392
      %8552 = vst [vmem:[%s604 + $0x208] sm:$0xff] %v8394
      %8553 = vst [vmem:[%s604 + $0x210] sm:$0xff] %v8396
      %8554 = vst [vmem:[%s604 + $0x218] sm:$0xff] %v8398
      %8555 = vst [vmem:[%s604 + $0x220] sm:$0xff] %v8400
      %8556 = vst.msk [vmem:[%s604 + $0x228] sm:$0xff] %vm1973, %v8402
      %8557 = vst [vmem:[%s604 + $0x230] sm:$0xff] %v8404
      %8558 = vst [vmem:[%s604 + $0x238] sm:$0xff] %v8406
      %8559 = vst [vmem:[%s604 + $0x240] sm:$0xff] %v8408
      %8560 = vst [vmem:[%s604 + $0x248] sm:$0xff] %v8410
      %8561 = vst [vmem:[%s604 + $0x250] sm:$0xff] %v8412
      %8562 = vst [vmem:[%s604 + $0x258] sm:$0xff] %v8414
      %8563 = vst.msk [vmem:[%s604 + $0x260] sm:$0xff] %vm1973, %v8416
      %8564 = vst [vmem:[%s604 + $0x268] sm:$0xff] %v8418
      %8565 = vst [vmem:[%s604 + $0x270] sm:$0xff] %v8420
      %8566 = vst [vmem:[%s604 + $0x278] sm:$0xff] %v8422
      %8567 = vst [vmem:[%s604 + $0x280] sm:$0xff] %v8424
      %8568 = vst [vmem:[%s604 + $0x288] sm:$0xff] %v8426
      %8569 = vst [vmem:[%s604 + $0x290] sm:$0xff] %v8428
      %8570 = vst.msk [vmem:[%s604 + $0x298] sm:$0xff] %vm1973, %v8430
      %8571 = vst [vmem:[%s604 + $0x2a0] sm:$0xff] %v8432
      %8572 = vst [vmem:[%s604 + $0x2a8] sm:$0xff] %v8434
      %8573 = vst [vmem:[%s604 + $0x2b0] sm:$0xff] %v8436
      %8574 = vst [vmem:[%s604 + $0x2b8] sm:$0xff] %v8438
      %8575 = vst [vmem:[%s604 + $0x2c0] sm:$0xff] %v8440
      %8576 = vst [vmem:[%s604 + $0x2c8] sm:$0xff] %v8442
      %8577 = vst.msk [vmem:[%s604 + $0x2d0] sm:$0xff] %vm1973, %v8444
      %8578 = vst [vmem:[%s604 + $0x2d8] sm:$0xff] %v8446
      %8579 = vst [vmem:[%s604 + $0x2e0] sm:$0xff] %v8448
      %8580 = vst [vmem:[%s604 + $0x2e8] sm:$0xff] %v8450
      %8581 = vst [vmem:[%s604 + $0x2f0] sm:$0xff] %v8452
      %8582 = vst [vmem:[%s604 + $0x2f8] sm:$0xff] %v8454
      %8583 = vst [vmem:[%s604 + $0x300] sm:$0xff] %v8456
      %8584 = vst.msk [vmem:[%s604 + $0x308] sm:$0xff] %vm1973, %v8458
      %8585 = vst [vmem:[%s604 + $0x310] sm:$0xff] %v8460
      %8586 = vst [vmem:[%s604 + $0x318] sm:$0xff] %v8462
      %8587 = vst [vmem:[%s604 + $0x320] sm:$0xff] %v8464
      %8588 = vst [vmem:[%s604 + $0x328] sm:$0xff] %v8466
      %8589 = vst [vmem:[%s604 + $0x330] sm:$0xff] %v8468
      %8590 = vst [vmem:[%s604 + $0x338] sm:$0xff] %v8470
      %8591 = vst.msk [vmem:[%s604 + $0x340] sm:$0xff] %vm1973, %v8472
      %8592 = vst [vmem:[%s604 + $0x348] sm:$0xff] %v8474
      %8593 = vst [vmem:[%s604 + $0x350] sm:$0xff] %v8476
      %8594 = vst [vmem:[%s604 + $0x358] sm:$0xff] %v8478
      %8595 = vst [vmem:[%s604 + $0x360] sm:$0xff] %v8480
      %8596 = vst [vmem:[%s604 + $0x368] sm:$0xff] %v8482
      %8597 = vst [vmem:[%s604 + $0x370] sm:$0xff] %v8484
      %8598 = vst.msk [vmem:[%s604 + $0x378] sm:$0xff] %vm1973, %v8486
      %s8599 = smul.u32 16, %s29
      %p8600 = scmp.lt.s32.totalorder %s8599, 31
      %s8601 = scalar_select %p8600, %s8599, 31
      %s8602 = smul.addr %s8601, 7
      %s8603 = smul.addr %s8602, 8
      %s8604 = scalar_lea.vmem %s18, %s8603
      // Predicated region
      $region93: #{tpu_custom_call.1} parent=91 // pred_check
        %p8605 = pneg %p435
      $region94: #{tpu_custom_call.1} parent=91 // pred_check_branch
        %8607 = sbr.rel (%p8605) target = $region96
      $region95: #{tpu_custom_call.1} parent=91 // pred_region
        %s8608 = smul.u32 16, %s29
      $region96: #{tpu_custom_call.1} parent=91 // pred_fallthru
        _
    $region92: #{tpu_custom_call.1} parent=5 // pred_fallthru
      _
    %p8609 = scmp.le.s32.totalorder 2, %s24
    // Predicated region
    $region97: #{tpu_custom_call.1} parent=5 // pred_check
      %p8610 = pneg %p8609
    $region98: #{tpu_custom_call.1} parent=5 // pred_check_branch
      %8612 = sbr.rel (%p8610) target = $region100
    $region99: #{tpu_custom_call.1} parent=5 // pred_region
      %s8613 = ssub.s32 %s24, 2
      // Predicated region
      $region101: #{tpu_custom_call.1} parent=99 // pred_check
        %p8614 = pneg %p441
      $region102: #{tpu_custom_call.1} parent=99 // pred_check_branch
        %8616 = sbr.rel (%p8614) target = $region104
      $region103: #{tpu_custom_call.1} parent=99 // pred_region
        %s8617 = smul.u32 16, %s30
        %p8618 = scmp.lt.s32.totalorder %s8617, 31
        %s8619 = scalar_select %p8618, %s8617, 31
        %s8620 = smul.addr %s8619, 7
        %s8621 = smul.addr %s8620, 8
        %s8622 = scalar_lea.vmem %s18, %s8621
      $region104: #{tpu_custom_call.1} parent=99 // pred_fallthru
        _
    $region100: #{tpu_custom_call.1} parent=5 // pred_fallthru
      _
  $region6: #{tpu_custom_call.1} parent=0 // loop_footer
    %s28 = sadd.s32 1, %s24
  $region7: #{tpu_custom_call.1} parent=0 // loop_footer_branch
    %23 = sbr.rel target = $region3
  $region8: #{tpu_custom_call.1} parent=0 // loop_exit
    _

</llo_original>
